<compile_context>
chip_gen: v6e
topology: v6e:2x2x1
jax: 0.10.0
libtpu: 0.0.40
codegen_flags: <defaults>
</compile_context>

<pallas_src>
import jax
import jax.numpy as jnp
from jax import lax
from jax.experimental import pallas as pl
from jax.experimental.pallas import tpu as pltpu

LANE = 128          # TPU lane width: pad Cout to a multiple of this for lane-dense stores
BN_EPS = 1e-5       # PyTorch BatchNorm3d default eps


def _round_up(x, m):
    return (x + m - 1) // m * m


# --------------------------- MaxPool3d(kernel=2, stride=2) ---------------------------
def _maxpool_kernel(x_ref, o_ref):
    # x_ref: (1, 2, H, W, C)  ->  o_ref: (1, 1, H//2, W//2, C)
    hp, wp, c = o_ref.shape[2], o_ref.shape[3], o_ref.shape[4]
    x = jnp.maximum(x_ref[0, 0], x_ref[0, 1])          # max over the depth pair: (H, W, C)
    x = x.reshape(hp, 2, wp, 2, c)                     # split H, W into (out, window)
    x = jnp.max(jnp.max(x, axis=3), axis=1)            # (hp, wp, c)
    o_ref[0, 0] = x


def maxpool3d(x):
    # x: (N, D, H, W, C) -> (N, D//2, H//2, W//2, C)
    n, d, h, w, c = x.shape
    dp, hp, wp = d // 2, h // 2, w // 2
    x = x[:, : 2 * dp, : 2 * hp, : 2 * wp, :]          # MaxPool3d floor semantics for odd dims
    return pl.pallas_call(
        _maxpool_kernel,
        out_shape=jax.ShapeDtypeStruct((n, dp, hp, wp, c), x.dtype),
        grid=(n, dp),
        in_specs=[pl.BlockSpec((1, 2, 2 * hp, 2 * wp, c),
                               lambda ni, di: (ni, di, 0, 0, 0))],
        out_specs=pl.BlockSpec((1, 1, hp, wp, c),
                               lambda ni, di: (ni, di, 0, 0, 0)),
        compiler_params=pltpu.CompilerParams(
            dimension_semantics=("parallel", "parallel")),
    )(x)


# ------------- Conv3d 3x3x3 (padding=1, no bias) fused with BN-stat reduction -------------
def _conv_bnstats_kernel(x0_ref, x1_ref, x2_ref, w_ref, y_ref, s_ref):
    # x{0,1,2}_ref: (1, 1, Hp+2, Wp+2, Cin)   haloed depth slices d, d+1, d+2 (padded coords)
    # w_ref       : (27*Cin, Cpad)            rows ordered (kd, kh, kw, cin); Cout lane-padded
    # y_ref       : (1, 1, Hp, Wp, Cpad)      raw conv output (pre-BN)
    # s_ref       : (1, 1, 2, Cpad)           per-(n, d) partial [sum, sum-of-squares]
    hp, wp, cpad = y_ref.shape[2], y_ref.shape[3], y_ref.shape[4]
    cin = x0_ref.shape[4]

    slabs = (x0_ref[0, 0], x1_ref[0, 0], x2_ref[0, 0])   # each (Hp+2, Wp+2, Cin) in VMEM
    acc = jnp.zeros((hp * wp, cpad), jnp.float32)

    # In-VMEM im2col: 27 shifted slices, each dotted with its (Cin, Cpad) weight slice.
    tap = 0
    for kd in range(3):
        xk = slabs[kd]
        for kh in range(3):
            for kw in range(3):
                patch = xk[kh:kh + hp, kw:kw + wp, :].reshape(hp * wp, cin)
                wk = w_ref[tap * cin:(tap + 1) * cin, :]           # static slice, (Cin, Cpad)
                acc = acc + jnp.dot(patch, wk, preferred_element_type=jnp.float32)
                tap += 1

    y_ref[0, 0] = acc.reshape(hp, wp, cpad).astype(y_ref.dtype)

    # BatchNorm statistics fused into the epilogue (cheap VPU work under the MXU).
    ssum = jnp.sum(acc, axis=0, keepdims=True)                      # (1, Cpad)
    ssq = jnp.sum(acc * acc, axis=0, keepdims=True)                 # (1, Cpad)
    s_ref[0, 0] = jnp.concatenate([ssum, ssq], axis=0)              # (2, Cpad)


def conv3x3x3_bnstats(x, w_mat):
    # x: (N, Dp, Hp, Wp, Cin),  w_mat: (27*Cin, Cpad)
    n, dp, hp, wp, cin = x.shape
    cpad = w_mat.shape[1]
    assert w_mat.shape[0] == 27 * cin

    xp = jnp.pad(x, ((0, 0), (1, 1), (1, 1), (1, 1), (0, 0)))       # SAME padding (zeros)
    hpp, wpp = hp + 2, wp + 2

    # Depth block size 1 => block index == element index, so d+0/d+1/d+2 give the halo.
    x_spec0 = pl.BlockSpec((1, 1, hpp, wpp, cin), lambda ni, di: (ni, di, 0, 0, 0))
    x_spec1 = pl.BlockSpec((1, 1, hpp, wpp, cin), lambda ni, di: (ni, di + 1, 0, 0, 0))
    x_spec2 = pl.BlockSpec((1, 1, hpp, wpp, cin), lambda ni, di: (ni, di + 2, 0, 0, 0))
    # Constant index_map -> weight panel stays resident in VMEM across the grid.
    w_spec = pl.BlockSpec((27 * cin, cpad), lambda ni, di: (0, 0))

    y, stats = pl.pallas_call(
        _conv_bnstats_kernel,
        out_shape=(jax.ShapeDtypeStruct((n, dp, hp, wp, cpad), jnp.float32),
                   jax.ShapeDtypeStruct((n, dp, 2, cpad), jnp.float32)),
        grid=(n, dp),
        in_specs=[x_spec0, x_spec1, x_spec2, w_spec],
        out_specs=(pl.BlockSpec((1, 1, hp, wp, cpad), lambda ni, di: (ni, di, 0, 0, 0)),
                   pl.BlockSpec((1, 1, 2, cpad), lambda ni, di: (ni, di, 0, 0))),
        compiler_params=pltpu.CompilerParams(
            dimension_semantics=("parallel", "parallel")),
    )(xp, xp, xp, w_mat)
    return y, stats


# ----------------------- BatchNorm (train-mode) apply + ReLU -----------------------
def _bn_relu_kernel(x_ref, scale_ref, shift_ref, o_ref):
    # x/o: (1, 1, Hp, Wp, Cpad);  scale/shift: (1, 1, 1, 1, Cpad)
    y = x_ref[...] * scale_ref[...] + shift_ref[...]
    o_ref[...] = jnp.maximum(y, 0.0).astype(o_ref.dtype)


def bn_relu_apply(y, scale, shift):
    n, dp, hp, wp, cpad = y.shape
    scale5 = scale.reshape(1, 1, 1, 1, cpad)
    shift5 = shift.reshape(1, 1, 1, 1, cpad)
    return pl.pallas_call(
        _bn_relu_kernel,
        out_shape=jax.ShapeDtypeStruct(y.shape, y.dtype),
        grid=(n, dp),
        in_specs=[pl.BlockSpec((1, 1, hp, wp, cpad), lambda ni, di: (ni, di, 0, 0, 0)),
                  pl.BlockSpec((1, 1, 1, 1, cpad), lambda ni, di: (0, 0, 0, 0, 0)),
                  pl.BlockSpec((1, 1, 1, 1, cpad), lambda ni, di: (0, 0, 0, 0, 0))],
        out_specs=pl.BlockSpec((1, 1, hp, wp, cpad), lambda ni, di: (ni, di, 0, 0, 0)),
        compiler_params=pltpu.CompilerParams(
            dimension_semantics=("parallel", "parallel")),
    )(y, scale5, shift5)


def _bn_scale_shift(stats, gamma_pad, beta_pad, count):
    # stats: (N, Dp, 2, Cpad) partial sums -> per-channel affine (training-mode BN, biased var)
    s = jnp.sum(stats, axis=(0, 1))                    # (2, Cpad), tiny
    mean = s[0] / count
    var = jnp.maximum(s[1] / count - mean * mean, 0.0)
    inv = lax.rsqrt(var + BN_EPS)
    scale = gamma_pad * inv
    shift = beta_pad - mean * scale
    return scale, shift
    # TODO(synk): BatchNorm running_mean / running_var buffer updates (stateful side effect)
    # are not emitted; forward output is unaffected.


# ---------------------------------- module wrapper ----------------------------------
@jax.jit
def downsampling_layer(x_ncdhw, params):
    w1, w2 = params["w1"], params["w2"]                # PyTorch layout (Cout, Cin, kD, kH, kW)
    cout, cin = w1.shape[0], w1.shape[1]
    cpad = _round_up(cout, LANE)

    def to_mat(w, cin_pad):
        # (Cout, Cin, 3,3,3) -> (3,3,3,Cin,Cout) -> zero-pad channels -> (27*Cin_pad, Cpad)
        co, ci = w.shape[0], w.shape[1]
        wt = jnp.transpose(w, (2, 3, 4, 1, 0))
        wt = jnp.pad(wt, ((0, 0), (0, 0), (0, 0), (0, cin_pad - ci), (0, cpad - co)))
        return wt.reshape(27 * cin_pad, cpad)

    w1_mat = to_mat(w1, cin)                           # (27*Cin,  Cpad)
    w2_mat = to_mat(w2, cpad)                          # (27*Cpad, Cpad), zero rows for padding

    def pad_c(v):                                      # gamma/beta padded with zeros so that
        return jnp.pad(v, (0, cpad - cout))            # padded channels stay exactly 0

    g1, b1 = pad_c(params["gamma1"]), pad_c(params["beta1"])
    g2, b2 = pad_c(params["gamma2"]), pad_c(params["beta2"])

    x = jnp.transpose(x_ncdhw, (0, 2, 3, 4, 1))        # NCDHW -> NDHWC
    x = maxpool3d(x)                                   # (N, Dp, Hp, Wp, Cin)
    n, dp, hp, wp, _ = x.shape
    count = n * dp * hp * wp                           # elements per channel for BN stats

    y1, s1 = conv3x3x3_bnstats(x, w1_mat)
    sc1, sh1 = _bn_scale_shift(s1, g1, b1, count)
    a1 = bn_relu_apply(y1, sc1, sh1)

    y2, s2 = conv3x3x3_bnstats(a1, w2_mat)
    sc2, sh2 = _bn_scale_shift(s2, g2, b2, count)
    a2 = bn_relu_apply(y2, sc2, sh2)

    out = a2[..., :cout]                               # drop Cout lane padding
    return jnp.transpose(out, (0, 4, 1, 2, 3))         # NDHWC -> NCDHW


def init_params(key, cin, cout):
    k1, k2, k3, k4, k5, k6 = jax.random.split(key, 6)
    return {
        "w1": 0.1 * jax.random.normal(k1, (cout, cin, 3, 3, 3), jnp.float32),
        "w2": 0.1 * jax.random.normal(k2, (cout, cout, 3, 3, 3), jnp.float32),
        "gamma1": 1.0 + 0.1 * jax.random.normal(k3, (cout,), jnp.float32),
        "beta1": 0.1 * jax.random.normal(k4, (cout,), jnp.float32),
        "gamma2": 1.0 + 0.1 * jax.random.normal(k5, (cout,), jnp.float32),
        "beta2": 0.1 * jax.random.normal(k6, (cout,), jnp.float32),
    }


# ------------------------------- pure-JAX reference -------------------------------
def reference(x_ncdhw, params):
    x = jnp.transpose(x_ncdhw, (0, 2, 3, 4, 1))
    x = lax.reduce_window(x, -jnp.inf, lax.max, (1, 2, 2, 2, 1), (1, 2, 2, 2, 1), "VALID")

    def conv(x, w):
        w_dhwio = jnp.transpose(w, (2, 3, 4, 1, 0))
        return lax.conv_general_dilated(
            x, w_dhwio, (1, 1, 1), "SAME",
            dimension_numbers=("NDHWC", "DHWIO", "NDHWC"),
            precision=lax.Precision.HIGHEST)

    def bnr(x, g, b):
        mean = jnp.mean(x, axis=(0, 1, 2, 3), keepdims=True)
        var = jnp.var(x, axis=(0, 1, 2, 3), keepdims=True)
        return jnp.maximum((x - mean) * lax.rsqrt(var + BN_EPS) * g + b, 0.0)

    x = bnr(conv(x, params["w1"]), params["gamma1"], params["beta1"])
    x = bnr(conv(x, params["w2"]), params["gamma2"], params["beta2"])
    return jnp.transpose(x, (0, 4, 1, 2, 3))


if __name__ == "__main__":
    key = jax.random.PRNGKey(0)
    kx, kp = jax.random.split(key)
    N, Cin, Cout, D, H, W = 2, 4, 8, 8, 8, 8
    x = jax.random.normal(kx, (N, Cin, D, H, W), jnp.float32)   # NCDHW like PyTorch
    params = init_params(kp, Cin, Cout)

    out = jax.block_until_ready(downsampling_layer(x, params))
    assert out.shape == (N, Cout, D // 2, H // 2, W // 2), out.shape

    ref = jax.block_until_ready(reference(x, params))
    err = float(jnp.max(jnp.abs(out - ref)))
    assert err < 2e-3, f"max abs err {err}"
    print("KERNEL_OK")
</pallas_src>

<mosaic_0001>
module attributes {stable_mosaic.version = 11 : i64} {
  func.func @_maxpool_kernel(%arg0: i32, %arg1: i32, %arg2: memref<1x2x8x8x4xf32, #tpu.memory_space<vmem>>, %arg3: memref<1x1x4x4x4xf32, #tpu.memory_space<vmem>>) attributes {dimension_semantics = [#tpu.dimension_semantics<parallel>, #tpu.dimension_semantics<parallel>], iteration_bounds = array<i64: 2, 4>, scalar_prefetch = 0 : i64, scratch_operands = 0 : i64, tpu.core_type = #tpu.core_type<tc>, window_params = [{transform_indices = @transform_0, window_bounds = array<i64: 1, 2, 8, 8, 4>}, {transform_indices = @transform_1, window_bounds = array<i64: 1, 1, 4, 4, 4>}]} {
    %c0 = arith.constant 0 : index
    %c0_0 = arith.constant 0 : index
    %c0_1 = arith.constant 0 : index
    %c0_2 = arith.constant 0 : index
    %c0_3 = arith.constant 0 : index
    %0 = vector.load %arg2[%c0, %c0_0, %c0_1, %c0_2, %c0_3] : memref<1x2x8x8x4xf32, #tpu.memory_space<vmem>>, vector<1x1x8x8x4xf32>
    %1 = vector.shape_cast %0 : vector<1x1x8x8x4xf32> to vector<8x8x4xf32>
    %c0_4 = arith.constant 0 : index
    %c1 = arith.constant 1 : index
    %c0_5 = arith.constant 0 : index
    %c0_6 = arith.constant 0 : index
    %c0_7 = arith.constant 0 : index
    %2 = vector.load %arg2[%c0_4, %c1, %c0_5, %c0_6, %c0_7] : memref<1x2x8x8x4xf32, #tpu.memory_space<vmem>>, vector<1x1x8x8x4xf32>
    %3 = vector.shape_cast %2 : vector<1x1x8x8x4xf32> to vector<8x8x4xf32>
    %4 = arith.maximumf %1, %3 : vector<8x8x4xf32>
    %5 = vector.shape_cast %4 : vector<8x8x4xf32> to vector<4x2x4x2x4xf32>
    %cst = arith.constant dense<0xFF800000> : vector<4x2x4x4xf32>
    %6 = vector.multi_reduction <maximumf>, %5, %cst [3] : vector<4x2x4x2x4xf32> to vector<4x2x4x4xf32>
    %cst_8 = arith.constant dense<0xFF800000> : vector<4x4x4xf32>
    %7 = vector.multi_reduction <maximumf>, %6, %cst_8 [1] : vector<4x2x4x4xf32> to vector<4x4x4xf32>
    %c0_9 = arith.constant 0 : index
    %c0_10 = arith.constant 0 : index
    %c0_11 = arith.constant 0 : index
    %c0_12 = arith.constant 0 : index
    %c0_13 = arith.constant 0 : index
    %8 = vector.load %arg3[%c0_9, %c0_10, %c0_11, %c0_12, %c0_13] : memref<1x1x4x4x4xf32, #tpu.memory_space<vmem>>, vector<1x1x4x4x4xf32>
    %9 = vector.shape_cast %8 : vector<1x1x4x4x4xf32> to vector<4x4x4xf32>
    %10 = vector.shape_cast %7 : vector<4x4x4xf32> to vector<1x1x4x4x4xf32>
    tpu.vector_store %arg3[%c0_9, %c0_10, %c0_11, %c0_12, %c0_13], %10 {strides = array<i32>} : memref<1x1x4x4x4xf32, #tpu.memory_space<vmem>>, vector<1x1x4x4x4xf32>,
    return
  }
  func.func @transform_0(%arg0: i32, %arg1: i32) -> (i32, i32, i32, i32, i32) {
    %c0_i32 = arith.constant 0 : i32
    %c0_i32_0 = arith.constant 0 : i32
    %c0_i32_1 = arith.constant 0 : i32
    %c0_i32_2 = arith.constant 0 : i32
    return %arg0, %arg1, %c0_i32, %c0_i32_0, %c0_i32_1 : i32, i32, i32, i32, i32
  }
  func.func @transform_1(%arg0: i32, %arg1: i32) -> (i32, i32, i32, i32, i32) {
    %c0_i32 = arith.constant 0 : i32
    %c0_i32_0 = arith.constant 0 : i32
    %c0_i32_1 = arith.constant 0 : i32
    %c0_i32_2 = arith.constant 0 : i32
    return %arg0, %arg1, %c0_i32, %c0_i32_0, %c0_i32_1 : i32, i32, i32, i32, i32
  }
}

module attributes {stable_mosaic.version = 11 : i64} {
  func.func @_conv_bnstats_kernel(%arg0: i32, %arg1: i32, %arg2: memref<1x1x6x6x4xf32, #tpu.memory_space<vmem>>, %arg3: memref<1x1x6x6x4xf32, #tpu.memory_space<vmem>>, %arg4: memref<1x1x6x6x4xf32, #tpu.memory_space<vmem>>, %arg5: memref<108x128xf32, #tpu.memory_space<vmem>>, %arg6: memref<1x1x4x4x128xf32, #tpu.memory_space<vmem>>, %arg7: memref<1x1x2x128xf32, #tpu.memory_space<vmem>>) attributes {dimension_semantics = [#tpu.dimension_semantics<parallel>, #tpu.dimension_semantics<parallel>], iteration_bounds = array<i64: 2, 4>, scalar_prefetch = 0 : i64, scratch_operands = 0 : i64, tpu.core_type = #tpu.core_type<tc>, window_params = [{transform_indices = @transform_0, window_bounds = array<i64: 1, 1, 6, 6, 4>}, {transform_indices = @transform_1, window_bounds = array<i64: 1, 1, 6, 6, 4>}, {transform_indices = @transform_2, window_bounds = array<i64: 1, 1, 6, 6, 4>}, {pipeline_mode = #tpu.pipeline_mode<synchronous>, transform_indices = @transform_3, window_bounds = array<i64: 108, 128>}, {transform_indices = @transform_4, window_bounds = array<i64: 1, 1, 4, 4, 128>}, {transform_indices = @transform_5, window_bounds = array<i64: 1, 1, 2, 128>}]} {
    %c0 = arith.constant 0 : index
    %c0_0 = arith.constant 0 : index
    %c0_1 = arith.constant 0 : index
    %c0_2 = arith.constant 0 : index
    %c0_3 = arith.constant 0 : index
    %0 = vector.load %arg2[%c0, %c0_0, %c0_1, %c0_2, %c0_3] : memref<1x1x6x6x4xf32, #tpu.memory_space<vmem>>, vector<1x1x6x6x4xf32>
    %1 = vector.shape_cast %0 : vector<1x1x6x6x4xf32> to vector<6x6x4xf32>
    %c0_4 = arith.constant 0 : index
    %c0_5 = arith.constant 0 : index
    %c0_6 = arith.constant 0 : index
    %c0_7 = arith.constant 0 : index
    %c0_8 = arith.constant 0 : index
    %2 = vector.load %arg3[%c0_4, %c0_5, %c0_6, %c0_7, %c0_8] : memref<1x1x6x6x4xf32, #tpu.memory_space<vmem>>, vector<1x1x6x6x4xf32>
    %3 = vector.shape_cast %2 : vector<1x1x6x6x4xf32> to vector<6x6x4xf32>
    %c0_9 = arith.constant 0 : index
    %c0_10 = arith.constant 0 : index
    %c0_11 = arith.constant 0 : index
    %c0_12 = arith.constant 0 : index
    %c0_13 = arith.constant 0 : index
    %4 = vector.load %arg4[%c0_9, %c0_10, %c0_11, %c0_12, %c0_13] : memref<1x1x6x6x4xf32, #tpu.memory_space<vmem>>, vector<1x1x6x6x4xf32>
    %5 = vector.shape_cast %4 : vector<1x1x6x6x4xf32> to vector<6x6x4xf32>
    %cst = arith.constant 0.000000e+00 : f32
    %6 = vector.broadcast %cst : f32 to vector<16x128xf32>
    %7 = vector.extract_strided_slice %1 {offsets = [0, 0, 0], sizes = [4, 4, 4], strides = [1, 1, 1]} : vector<6x6x4xf32> to vector<4x4x4xf32>
    %8 = vector.shape_cast %7 : vector<4x4x4xf32> to vector<16x4xf32>
    %c0_14 = arith.constant 0 : index
    %c0_15 = arith.constant 0 : index
    %9 = vector.load %arg5[%c0_14, %c0_15] : memref<108x128xf32, #tpu.memory_space<vmem>>, vector<4x128xf32>
    %cst_16 = arith.constant dense<0.000000e+00> : vector<16x128xf32>
    %10 = tpu.matmul %8, %9, %cst_16 {dimension_numbers = #tpu.dot_dimension_numbers<[1], [0], [0], [1], [0, 0, 1, 1], [], []>} : vector<16x4xf32>, vector<4x128xf32>, vector<16x128xf32> -> vector<16x128xf32>
    %11 = arith.addf %6, %10 : vector<16x128xf32>
    %12 = vector.extract_strided_slice %1 {offsets = [0, 1, 0], sizes = [4, 4, 4], strides = [1, 1, 1]} : vector<6x6x4xf32> to vector<4x4x4xf32>
    %13 = vector.shape_cast %12 : vector<4x4x4xf32> to vector<16x4xf32>
    %c4 = arith.constant 4 : index
    %c0_17 = arith.constant 0 : index
    %14 = vector.load %arg5[%c4, %c0_17] : memref<108x128xf32, #tpu.memory_space<vmem>>, vector<4x128xf32>
    %cst_18 = arith.constant dense<0.000000e+00> : vector<16x128xf32>
    %15 = tpu.matmul %13, %14, %cst_18 {dimension_numbers = #tpu.dot_dimension_numbers<[1], [0], [0], [1], [0, 0, 1, 1], [], []>} : vector<16x4xf32>, vector<4x128xf32>, vector<16x128xf32> -> vector<16x128xf32>
    %16 = arith.addf %11, %15 : vector<16x128xf32>
    %17 = vector.extract_strided_slice %1 {offsets = [0, 2, 0], sizes = [4, 4, 4], strides = [1, 1, 1]} : vector<6x6x4xf32> to vector<4x4x4xf32>
    %18 = vector.shape_cast %17 : vector<4x4x4xf32> to vector<16x4xf32>
    %c8 = arith.constant 8 : index
    %c0_19 = arith.constant 0 : index
    %19 = vector.load %arg5[%c8, %c0_19] : memref<108x128xf32, #tpu.memory_space<vmem>>, vector<4x128xf32>
    %cst_20 = arith.constant dense<0.000000e+00> : vector<16x128xf32>
    %20 = tpu.matmul %18, %19, %cst_20 {dimension_numbers = #tpu.dot_dimension_numbers<[1], [0], [0], [1], [0, 0, 1, 1], [], []>} : vector<16x4xf32>, vector<4x128xf32>, vector<16x128xf32> -> vector<16x128xf32>
    %21 = arith.addf %16, %20 : vector<16x128xf32>
    %22 = vector.extract_strided_slice %1 {offsets = [1, 0, 0], sizes = [4, 4, 4], strides = [1, 1, 1]} : vector<6x6x4xf32> to vector<4x4x4xf32>
    %23 = vector.shape_cast %22 : vector<4x4x4xf32> to vector<16x4xf32>
    %c12 = arith.constant 12 : index
    %c0_21 = arith.constant 0 : index
    %24 = vector.load %arg5[%c12, %c0_21] : memref<108x128xf32, #tpu.memory_space<vmem>>, vector<4x128xf32>
    %cst_22 = arith.constant dense<0.000000e+00> : vector<16x128xf32>
    %25 = tpu.matmul %23, %24, %cst_22 {dimension_numbers = #tpu.dot_dimension_numbers<[1], [0], [0], [1], [0, 0, 1, 1], [], []>} : vector<16x4xf32>, vector<4x128xf32>, vector<16x128xf32> -> vector<16x128xf32>
    %26 = arith.addf %21, %25 : vector<16x128xf32>
    %27 = vector.extract_strided_slice %1 {offsets = [1, 1, 0], sizes = [4, 4, 4], strides = [1, 1, 1]} : vector<6x6x4xf32> to vector<4x4x4xf32>
    %28 = vector.shape_cast %27 : vector<4x4x4xf32> to vector<16x4xf32>
    %c16 = arith.constant 16 : index
    %c0_23 = arith.constant 0 : index
    %29 = vector.load %arg5[%c16, %c0_23] : memref<108x128xf32, #tpu.memory_space<vmem>>, vector<4x128xf32>
    %cst_24 = arith.constant dense<0.000000e+00> : vector<16x128xf32>
    %30 = tpu.matmul %28, %29, %cst_24 {dimension_numbers = #tpu.dot_dimension_numbers<[1], [0], [0], [1], [0, 0, 1, 1], [], []>} : vector<16x4xf32>, vector<4x128xf32>, vector<16x128xf32> -> vector<16x128xf32>
    %31 = arith.addf %26, %30 : vector<16x128xf32>
    %32 = vector.extract_strided_slice %1 {offsets = [1, 2, 0], sizes = [4, 4, 4], strides = [1, 1, 1]} : vector<6x6x4xf32> to vector<4x4x4xf32>
    %33 = vector.shape_cast %32 : vector<4x4x4xf32> to vector<16x4xf32>
    %c20 = arith.constant 20 : index
    %c0_25 = arith.constant 0 : index
    %34 = vector.load %arg5[%c20, %c0_25] : memref<108x128xf32, #tpu.memory_space<vmem>>, vector<4x128xf32>
    %cst_26 = arith.constant dense<0.000000e+00> : vector<16x128xf32>
    %35 = tpu.matmul %33, %34, %cst_26 {dimension_numbers = #tpu.dot_dimension_numbers<[1], [0], [0], [1], [0, 0, 1, 1], [], []>} : vector<16x4xf32>, vector<4x128xf32>, vector<16x128xf32> -> vector<16x128xf32>
    %36 = arith.addf %31, %35 : vector<16x128xf32>
    %37 = vector.extract_strided_slice %1 {offsets = [2, 0, 0], sizes = [4, 4, 4], strides = [1, 1, 1]} : vector<6x6x4xf32> to vector<4x4x4xf32>
    %38 = vector.shape_cast %37 : vector<4x4x4xf32> to vector<16x4xf32>
    %c24 = arith.constant 24 : index
    %c0_27 = arith.constant 0 : index
    %39 = vector.load %arg5[%c24, %c0_27] : memref<108x128xf32, #tpu.memory_space<vmem>>, vector<4x128xf32>
    %cst_28 = arith.constant dense<0.000000e+00> : vector<16x128xf32>
    %40 = tpu.matmul %38, %39, %cst_28 {dimension_numbers = #tpu.dot_dimension_numbers<[1], [0], [0], [1], [0, 0, 1, 1], [], []>} : vector<16x4xf32>, vector<4x128xf32>, vector<16x128xf32> -> vector<16x128xf32>
    %41 = arith.addf %36, %40 : vector<16x128xf32>
    %42 = vector.extract_strided_slice %1 {offsets = [2, 1, 0], sizes = [4, 4, 4], strides = [1, 1, 1]} : vector<6x6x4xf32> to vector<4x4x4xf32>
    %43 = vector.shape_cast %42 : vector<4x4x4xf32> to vector<16x4xf32>
    %c28 = arith.constant 28 : index
    %c0_29 = arith.constant 0 : index
    %44 = vector.load %arg5[%c28, %c0_29] : memref<108x128xf32, #tpu.memory_space<vmem>>, vector<4x128xf32>
    %cst_30 = arith.constant dense<0.000000e+00> : vector<16x128xf32>
    %45 = tpu.matmul %43, %44, %cst_30 {dimension_numbers = #tpu.dot_dimension_numbers<[1], [0], [0], [1], [0, 0, 1, 1], [], []>} : vector<16x4xf32>, vector<4x128xf32>, vector<16x128xf32> -> vector<16x128xf32>
    %46 = arith.addf %41, %45 : vector<16x128xf32>
    %47 = vector.extract_strided_slice %1 {offsets = [2, 2, 0], sizes = [4, 4, 4], strides = [1, 1, 1]} : vector<6x6x4xf32> to vector<4x4x4xf32>
    %48 = vector.shape_cast %47 : vector<4x4x4xf32> to vector<16x4xf32>
    %c32 = arith.constant 32 : index
    %c0_31 = arith.constant 0 : index
    %49 = vector.load %arg5[%c32, %c0_31] : memref<108x128xf32, #tpu.memory_space<vmem>>, vector<4x128xf32>
    %cst_32 = arith.constant dense<0.000000e+00> : vector<16x128xf32>
    %50 = tpu.matmul %48, %49, %cst_32 {dimension_numbers = #tpu.dot_dimension_numbers<[1], [0], [0], [1], [0, 0, 1, 1], [], []>} : vector<16x4xf32>, vector<4x128xf32>, vector<16x128xf32> -> vector<16x128xf32>
    %51 = arith.addf %46, %50 : vector<16x128xf32>
    %52 = vector.extract_strided_slice %3 {offsets = [0, 0, 0], sizes = [4, 4, 4], strides = [1, 1, 1]} : vector<6x6x4xf32> to vector<4x4x4xf32>
    %53 = vector.shape_cast %52 : vector<4x4x4xf32> to vector<16x4xf32>
    %c36 = arith.constant 36 : index
    %c0_33 = arith.constant 0 : index
    %54 = vector.load %arg5[%c36, %c0_33] : memref<108x128xf32, #tpu.memory_space<vmem>>, vector<4x128xf32>
    %cst_34 = arith.constant dense<0.000000e+00> : vector<16x128xf32>
    %55 = tpu.matmul %53, %54, %cst_34 {dimension_numbers = #tpu.dot_dimension_numbers<[1], [0], [0], [1], [0, 0, 1, 1], [], []>} : vector<16x4xf32>, vector<4x128xf32>, vector<16x128xf32> -> vector<16x128xf32>
    %56 = arith.addf %51, %55 : vector<16x128xf32>
    %57 = vector.extract_strided_slice %3 {offsets = [0, 1, 0], sizes = [4, 4, 4], strides = [1, 1, 1]} : vector<6x6x4xf32> to vector<4x4x4xf32>
    %58 = vector.shape_cast %57 : vector<4x4x4xf32> to vector<16x4xf32>
    %c40 = arith.constant 40 : index
    %c0_35 = arith.constant 0 : index
    %59 = vector.load %arg5[%c40, %c0_35] : memref<108x128xf32, #tpu.memory_space<vmem>>, vector<4x128xf32>
    %cst_36 = arith.constant dense<0.000000e+00> : vector<16x128xf32>
    %60 = tpu.matmul %58, %59, %cst_36 {dimension_numbers = #tpu.dot_dimension_numbers<[1], [0], [0], [1], [0, 0, 1, 1], [], []>} : vector<16x4xf32>, vector<4x128xf32>, vector<16x128xf32> -> vector<16x128xf32>
    %61 = arith.addf %56, %60 : vector<16x128xf32>
    %62 = vector.extract_strided_slice %3 {offsets = [0, 2, 0], sizes = [4, 4, 4], strides = [1, 1, 1]} : vector<6x6x4xf32> to vector<4x4x4xf32>
    %63 = vector.shape_cast %62 : vector<4x4x4xf32> to vector<16x4xf32>
    %c44 = arith.constant 44 : index
    %c0_37 = arith.constant 0 : index
    %64 = vector.load %arg5[%c44, %c0_37] : memref<108x128xf32, #tpu.memory_space<vmem>>, vector<4x128xf32>
    %cst_38 = arith.constant dense<0.000000e+00> : vector<16x128xf32>
    %65 = tpu.matmul %63, %64, %cst_38 {dimension_numbers = #tpu.dot_dimension_numbers<[1], [0], [0], [1], [0, 0, 1, 1], [], []>} : vector<16x4xf32>, vector<4x128xf32>, vector<16x128xf32> -> vector<16x128xf32>
    %66 = arith.addf %61, %65 : vector<16x128xf32>
    %67 = vector.extract_strided_slice %3 {offsets = [1, 0, 0], sizes = [4, 4, 4], strides = [1, 1, 1]} : vector<6x6x4xf32> to vector<4x4x4xf32>
    %68 = vector.shape_cast %67 : vector<4x4x4xf32> to vector<16x4xf32>
    %c48 = arith.constant 48 : index
    %c0_39 = arith.constant 0 : index
    %69 = vector.load %arg5[%c48, %c0_39] : memref<108x128xf32, #tpu.memory_space<vmem>>, vector<4x128xf32>
    %cst_40 = arith.constant dense<0.000000e+00> : vector<16x128xf32>
    %70 = tpu.matmul %68, %69, %cst_40 {dimension_numbers = #tpu.dot_dimension_numbers<[1], [0], [0], [1], [0, 0, 1, 1], [], []>} : vector<16x4xf32>, vector<4x128xf32>, vector<16x128xf32> -> vector<16x128xf32>
    %71 = arith.addf %66, %70 : vector<16x128xf32>
    %72 = vector.extract_strided_slice %3 {offsets = [1, 1, 0], sizes = [4, 4, 4], strides = [1, 1, 1]} : vector<6x6x4xf32> to vector<4x4x4xf32>
    %73 = vector.shape_cast %72 : vector<4x4x4xf32> to vector<16x4xf32>
    %c52 = arith.constant 52 : index
    %c0_41 = arith.constant 0 : index
    %74 = vector.load %arg5[%c52, %c0_41] : memref<108x128xf32, #tpu.memory_space<vmem>>, vector<4x128xf32>
    %cst_42 = arith.constant dense<0.000000e+00> : vector<16x128xf32>
    %75 = tpu.matmul %73, %74, %cst_42 {dimension_numbers = #tpu.dot_dimension_numbers<[1], [0], [0], [1], [0, 0, 1, 1], [], []>} : vector<16x4xf32>, vector<4x128xf32>, vector<16x128xf32> -> vector<16x128xf32>
    %76 = arith.addf %71, %75 : vector<16x128xf32>
    %77 = vector.extract_strided_slice %3 {offsets = [1, 2, 0], sizes = [4, 4, 4], strides = [1, 1, 1]} : vector<6x6x4xf32> to vector<4x4x4xf32>
    %78 = vector.shape_cast %77 : vector<4x4x4xf32> to vector<16x4xf32>
    %c56 = arith.constant 56 : index
    %c0_43 = arith.constant 0 : index
    %79 = vector.load %arg5[%c56, %c0_43] : memref<108x128xf32, #tpu.memory_space<vmem>>, vector<4x128xf32>
    %cst_44 = arith.constant dense<0.000000e+00> : vector<16x128xf32>
    %80 = tpu.matmul %78, %79, %cst_44 {dimension_numbers = #tpu.dot_dimension_numbers<[1], [0], [0], [1], [0, 0, 1, 1], [], []>} : vector<16x4xf32>, vector<4x128xf32>, vector<16x128xf32> -> vector<16x128xf32>
    %81 = arith.addf %76, %80 : vector<16x128xf32>
    %82 = vector.extract_strided_slice %3 {offsets = [2, 0, 0], sizes = [4, 4, 4], strides = [1, 1, 1]} : vector<6x6x4xf32> to vector<4x4x4xf32>
    %83 = vector.shape_cast %82 : vector<4x4x4xf32> to vector<16x4xf32>
    %c60 = arith.constant 60 : index
    %c0_45 = arith.constant 0 : index
    %84 = vector.load %arg5[%c60, %c0_45] : memref<108x128xf32, #tpu.memory_space<vmem>>, vector<4x128xf32>
    %cst_46 = arith.constant dense<0.000000e+00> : vector<16x128xf32>
    %85 = tpu.matmul %83, %84, %cst_46 {dimension_numbers = #tpu.dot_dimension_numbers<[1], [0], [0], [1], [0, 0, 1, 1], [], []>} : vector<16x4xf32>, vector<4x128xf32>, vector<16x128xf32> -> vector<16x128xf32>
    %86 = arith.addf %81, %85 : vector<16x128xf32>
    %87 = vector.extract_strided_slice %3 {offsets = [2, 1, 0], sizes = [4, 4, 4], strides = [1, 1, 1]} : vector<6x6x4xf32> to vector<4x4x4xf32>
    %88 = vector.shape_cast %87 : vector<4x4x4xf32> to vector<16x4xf32>
    %c64 = arith.constant 64 : index
    %c0_47 = arith.constant 0 : index
    %89 = vector.load %arg5[%c64, %c0_47] : memref<108x128xf32, #tpu.memory_space<vmem>>, vector<4x128xf32>
    %cst_48 = arith.constant dense<0.000000e+00> : vector<16x128xf32>
    %90 = tpu.matmul %88, %89, %cst_48 {dimension_numbers = #tpu.dot_dimension_numbers<[1], [0], [0], [1], [0, 0, 1, 1], [], []>} : vector<16x4xf32>, vector<4x128xf32>, vector<16x128xf32> -> vector<16x128xf32>
    %91 = arith.addf %86, %90 : vector<16x128xf32>
    %92 = vector.extract_strided_slice %3 {offsets = [2, 2, 0], sizes = [4, 4, 4], strides = [1, 1, 1]} : vector<6x6x4xf32> to vector<4x4x4xf32>
    %93 = vector.shape_cast %92 : vector<4x4x4xf32> to vector<16x4xf32>
    %c68 = arith.constant 68 : index
    %c0_49 = arith.constant 0 : index
    %94 = vector.load %arg5[%c68, %c0_49] : memref<108x128xf32, #tpu.memory_space<vmem>>, vector<4x128xf32>
    %cst_50 = arith.constant dense<0.000000e+00> : vector<16x128xf32>
    %95 = tpu.matmul %93, %94, %cst_50 {dimension_numbers = #tpu.dot_dimension_numbers<[1], [0], [0], [1], [0, 0, 1, 1], [], []>} : vector<16x4xf32>, vector<4x128xf32>, vector<16x128xf32> -> vector<16x128xf32>
    %96 = arith.addf %91, %95 : vector<16x128xf32>
    %97 = vector.extract_strided_slice %5 {offsets = [0, 0, 0], sizes = [4, 4, 4], strides = [1, 1, 1]} : vector<6x6x4xf32> to vector<4x4x4xf32>
    %98 = vector.shape_cast %97 : vector<4x4x4xf32> to vector<16x4xf32>
    %c72 = arith.constant 72 : index
    %c0_51 = arith.constant 0 : index
    %99 = vector.load %arg5[%c72, %c0_51] : memref<108x128xf32, #tpu.memory_space<vmem>>, vector<4x128xf32>
    %cst_52 = arith.constant dense<0.000000e+00> : vector<16x128xf32>
    %100 = tpu.matmul %98, %99, %cst_52 {dimension_numbers = #tpu.dot_dimension_numbers<[1], [0], [0], [1], [0, 0, 1, 1], [], []>} : vector<16x4xf32>, vector<4x128xf32>, vector<16x128xf32> -> vector<16x128xf32>
    %101 = arith.addf %96, %100 : vector<16x128xf32>
    %102 = vector.extract_strided_slice %5 {offsets = [0, 1, 0], sizes = [4, 4, 4], strides = [1, 1, 1]} : vector<6x6x4xf32> to vector<4x4x4xf32>
    %103 = vector.shape_cast %102 : vector<4x4x4xf32> to vector<16x4xf32>
    %c76 = arith.constant 76 : index
    %c0_53 = arith.constant 0 : index
    %104 = vector.load %arg5[%c76, %c0_53] : memref<108x128xf32, #tpu.memory_space<vmem>>, vector<4x128xf32>
    %cst_54 = arith.constant dense<0.000000e+00> : vector<16x128xf32>
    %105 = tpu.matmul %103, %104, %cst_54 {dimension_numbers = #tpu.dot_dimension_numbers<[1], [0], [0], [1], [0, 0, 1, 1], [], []>} : vector<16x4xf32>, vector<4x128xf32>, vector<16x128xf32> -> vector<16x128xf32>
    %106 = arith.addf %101, %105 : vector<16x128xf32>
    %107 = vector.extract_strided_slice %5 {offsets = [0, 2, 0], sizes = [4, 4, 4], strides = [1, 1, 1]} : vector<6x6x4xf32> to vector<4x4x4xf32>
    %108 = vector.shape_cast %107 : vector<4x4x4xf32> to vector<16x4xf32>
    %c80 = arith.constant 80 : index
    %c0_55 = arith.constant 0 : index
    %109 = vector.load %arg5[%c80, %c0_55] : memref<108x128xf32, #tpu.memory_space<vmem>>, vector<4x128xf32>
    %cst_56 = arith.constant dense<0.000000e+00> : vector<16x128xf32>
    %110 = tpu.matmul %108, %109, %cst_56 {dimension_numbers = #tpu.dot_dimension_numbers<[1], [0], [0], [1], [0, 0, 1, 1], [], []>} : vector<16x4xf32>, vector<4x128xf32>, vector<16x128xf32> -> vector<16x128xf32>
    %111 = arith.addf %106, %110 : vector<16x128xf32>
    %112 = vector.extract_strided_slice %5 {offsets = [1, 0, 0], sizes = [4, 4, 4], strides = [1, 1, 1]} : vector<6x6x4xf32> to vector<4x4x4xf32>
    %113 = vector.shape_cast %112 : vector<4x4x4xf32> to vector<16x4xf32>
    %c84 = arith.constant 84 : index
    %c0_57 = arith.constant 0 : index
    %114 = vector.load %arg5[%c84, %c0_57] : memref<108x128xf32, #tpu.memory_space<vmem>>, vector<4x128xf32>
    %cst_58 = arith.constant dense<0.000000e+00> : vector<16x128xf32>
    %115 = tpu.matmul %113, %114, %cst_58 {dimension_numbers = #tpu.dot_dimension_numbers<[1], [0], [0], [1], [0, 0, 1, 1], [], []>} : vector<16x4xf32>, vector<4x128xf32>, vector<16x128xf32> -> vector<16x128xf32>
    %116 = arith.addf %111, %115 : vector<16x128xf32>
    %117 = vector.extract_strided_slice %5 {offsets = [1, 1, 0], sizes = [4, 4, 4], strides = [1, 1, 1]} : vector<6x6x4xf32> to vector<4x4x4xf32>
    %118 = vector.shape_cast %117 : vector<4x4x4xf32> to vector<16x4xf32>
    %c88 = arith.constant 88 : index
    %c0_59 = arith.constant 0 : index
    %119 = vector.load %arg5[%c88, %c0_59] : memref<108x128xf32, #tpu.memory_space<vmem>>, vector<4x128xf32>
    %cst_60 = arith.constant dense<0.000000e+00> : vector<16x128xf32>
    %120 = tpu.matmul %118, %119, %cst_60 {dimension_numbers = #tpu.dot_dimension_numbers<[1], [0], [0], [1], [0, 0, 1, 1], [], []>} : vector<16x4xf32>, vector<4x128xf32>, vector<16x128xf32> -> vector<16x128xf32>
    %121 = arith.addf %116, %120 : vector<16x128xf32>
    %122 = vector.extract_strided_slice %5 {offsets = [1, 2, 0], sizes = [4, 4, 4], strides = [1, 1, 1]} : vector<6x6x4xf32> to vector<4x4x4xf32>
    %123 = vector.shape_cast %122 : vector<4x4x4xf32> to vector<16x4xf32>
    %c92 = arith.constant 92 : index
    %c0_61 = arith.constant 0 : index
    %124 = vector.load %arg5[%c92, %c0_61] : memref<108x128xf32, #tpu.memory_space<vmem>>, vector<4x128xf32>
    %cst_62 = arith.constant dense<0.000000e+00> : vector<16x128xf32>
    %125 = tpu.matmul %123, %124, %cst_62 {dimension_numbers = #tpu.dot_dimension_numbers<[1], [0], [0], [1], [0, 0, 1, 1], [], []>} : vector<16x4xf32>, vector<4x128xf32>, vector<16x128xf32> -> vector<16x128xf32>
    %126 = arith.addf %121, %125 : vector<16x128xf32>
    %127 = vector.extract_strided_slice %5 {offsets = [2, 0, 0], sizes = [4, 4, 4], strides = [1, 1, 1]} : vector<6x6x4xf32> to vector<4x4x4xf32>
    %128 = vector.shape_cast %127 : vector<4x4x4xf32> to vector<16x4xf32>
    %c96 = arith.constant 96 : index
    %c0_63 = arith.constant 0 : index
    %129 = vector.load %arg5[%c96, %c0_63] : memref<108x128xf32, #tpu.memory_space<vmem>>, vector<4x128xf32>
    %cst_64 = arith.constant dense<0.000000e+00> : vector<16x128xf32>
    %130 = tpu.matmul %128, %129, %cst_64 {dimension_numbers = #tpu.dot_dimension_numbers<[1], [0], [0], [1], [0, 0, 1, 1], [], []>} : vector<16x4xf32>, vector<4x128xf32>, vector<16x128xf32> -> vector<16x128xf32>
    %131 = arith.addf %126, %130 : vector<16x128xf32>
    %132 = vector.extract_strided_slice %5 {offsets = [2, 1, 0], sizes = [4, 4, 4], strides = [1, 1, 1]} : vector<6x6x4xf32> to vector<4x4x4xf32>
    %133 = vector.shape_cast %132 : vector<4x4x4xf32> to vector<16x4xf32>
    %c100 = arith.constant 100 : index
    %c0_65 = arith.constant 0 : index
    %134 = vector.load %arg5[%c100, %c0_65] : memref<108x128xf32, #tpu.memory_space<vmem>>, vector<4x128xf32>
    %cst_66 = arith.constant dense<0.000000e+00> : vector<16x128xf32>
    %135 = tpu.matmul %133, %134, %cst_66 {dimension_numbers = #tpu.dot_dimension_numbers<[1], [0], [0], [1], [0, 0, 1, 1], [], []>} : vector<16x4xf32>, vector<4x128xf32>, vector<16x128xf32> -> vector<16x128xf32>
    %136 = arith.addf %131, %135 : vector<16x128xf32>
    %137 = vector.extract_strided_slice %5 {offsets = [2, 2, 0], sizes = [4, 4, 4], strides = [1, 1, 1]} : vector<6x6x4xf32> to vector<4x4x4xf32>
    %138 = vector.shape_cast %137 : vector<4x4x4xf32> to vector<16x4xf32>
    %c104 = arith.constant 104 : index
    %c0_67 = arith.constant 0 : index
    %139 = vector.load %arg5[%c104, %c0_67] : memref<108x128xf32, #tpu.memory_space<vmem>>, vector<4x128xf32>
    %cst_68 = arith.constant dense<0.000000e+00> : vector<16x128xf32>
    %140 = tpu.matmul %138, %139, %cst_68 {dimension_numbers = #tpu.dot_dimension_numbers<[1], [0], [0], [1], [0, 0, 1, 1], [], []>} : vector<16x4xf32>, vector<4x128xf32>, vector<16x128xf32> -> vector<16x128xf32>
    %141 = arith.addf %136, %140 : vector<16x128xf32>
    %142 = vector.shape_cast %141 : vector<16x128xf32> to vector<4x4x128xf32>
    %c0_69 = arith.constant 0 : index
    %c0_70 = arith.constant 0 : index
    %c0_71 = arith.constant 0 : index
    %c0_72 = arith.constant 0 : index
    %c0_73 = arith.constant 0 : index
    %143 = vector.load %arg6[%c0_69, %c0_70, %c0_71, %c0_72, %c0_73] : memref<1x1x4x4x128xf32, #tpu.memory_space<vmem>>, vector<1x1x4x4x128xf32>
    %144 = vector.shape_cast %143 : vector<1x1x4x4x128xf32> to vector<4x4x128xf32>
    %145 = vector.shape_cast %142 : vector<4x4x128xf32> to vector<1x1x4x4x128xf32>
    tpu.vector_store %arg6[%c0_69, %c0_70, %c0_71, %c0_72, %c0_73], %145 {strides = array<i32>} : memref<1x1x4x4x128xf32, #tpu.memory_space<vmem>>, vector<1x1x4x4x128xf32>,
    %cst_74 = arith.constant dense<0.000000e+00> : vector<128xf32>
    %146 = vector.multi_reduction <add>, %141, %cst_74 [0] : vector<16x128xf32> to vector<128xf32>
    %147 = vector.shape_cast %146 : vector<128xf32> to vector<1x128xf32>
    %148 = arith.mulf %141, %141 : vector<16x128xf32>
    %cst_75 = arith.constant dense<0.000000e+00> : vector<128xf32>
    %149 = vector.multi_reduction <add>, %148, %cst_75 [0] : vector<16x128xf32> to vector<128xf32>
    %150 = vector.shape_cast %149 : vector<128xf32> to vector<1x128xf32>
    %151 = tpu.concatenate %147, %150 in 0 : vector<1x128xf32>, vector<1x128xf32> -> vector<2x128xf32>
    %c0_76 = arith.constant 0 : index
    %c0_77 = arith.constant 0 : index
    %c0_78 = arith.constant 0 : index
    %c0_79 = arith.constant 0 : index
    %152 = vector.load %arg7[%c0_76, %c0_77, %c0_78, %c0_79] : memref<1x1x2x128xf32, #tpu.memory_space<vmem>>, vector<1x1x2x128xf32>
    %153 = vector.shape_cast %152 : vector<1x1x2x128xf32> to vector<2x128xf32>
    %154 = vector.shape_cast %151 : vector<2x128xf32> to vector<1x1x2x128xf32>
    tpu.vector_store %arg7[%c0_76, %c0_77, %c0_78, %c0_79], %154 {strides = array<i32>} : memref<1x1x2x128xf32, #tpu.memory_space<vmem>>, vector<1x1x2x128xf32>,
    return
  }
  func.func @transform_0(%arg0: i32, %arg1: i32) -> (i32, i32, i32, i32, i32) {
    %c0_i32 = arith.constant 0 : i32
    %c0_i32_0 = arith.constant 0 : i32
    %c0_i32_1 = arith.constant 0 : i32
    %c0_i32_2 = arith.constant 0 : i32
    return %arg0, %arg1, %c0_i32, %c0_i32_0, %c0_i32_1 : i32, i32, i32, i32, i32
  }
  func.func @transform_1(%arg0: i32, %arg1: i32) -> (i32, i32, i32, i32, i32) {
    %c1_i32 = arith.constant 1 : i32
    %0 = arith.addi %arg1, %c1_i32 : i32
    %c0_i32 = arith.constant 0 : i32
    %c0_i32_0 = arith.constant 0 : i32
    %c0_i32_1 = arith.constant 0 : i32
    %c0_i32_2 = arith.constant 0 : i32
    return %arg0, %0, %c0_i32, %c0_i32_0, %c0_i32_1 : i32, i32, i32, i32, i32
  }
  func.func @transform_2(%arg0: i32, %arg1: i32) -> (i32, i32, i32, i32, i32) {
    %c2_i32 = arith.constant 2 : i32
    %0 = arith.addi %arg1, %c2_i32 : i32
    %c0_i32 = arith.constant 0 : i32
    %c0_i32_0 = arith.constant 0 : i32
    %c0_i32_1 = arith.constant 0 : i32
    %c0_i32_2 = arith.constant 0 : i32
    return %arg0, %0, %c0_i32, %c0_i32_0, %c0_i32_1 : i32, i32, i32, i32, i32
  }
  func.func @transform_3(%arg0: i32, %arg1: i32) -> (i32, i32) {
    %c0_i32 = arith.constant 0 : i32
    %c0_i32_0 = arith.constant 0 : i32
    %c0_i32_1 = arith.constant 0 : i32
    return %c0_i32, %c0_i32_0 : i32, i32
  }
  func.func @transform_4(%arg0: i32, %arg1: i32) -> (i32, i32, i32, i32, i32) {
    %c0_i32 = arith.constant 0 : i32
    %c0_i32_0 = arith.constant 0 : i32
    %c0_i32_1 = arith.constant 0 : i32
    %c0_i32_2 = arith.constant 0 : i32
    return %arg0, %arg1, %c0_i32, %c0_i32_0, %c0_i32_1 : i32, i32, i32, i32, i32
  }
  func.func @transform_5(%arg0: i32, %arg1: i32) -> (i32, i32, i32, i32) {
    %c0_i32 = arith.constant 0 : i32
    %c0_i32_0 = arith.constant 0 : i32
    %c0_i32_1 = arith.constant 0 : i32
    return %arg0, %arg1, %c0_i32, %c0_i32_0 : i32, i32, i32, i32
  }
}

module attributes {stable_mosaic.version = 11 : i64} {
  func.func @_bn_relu_kernel(%arg0: i32, %arg1: i32, %arg2: memref<1x1x4x4x128xf32, #tpu.memory_space<vmem>>, %arg3: memref<1x1x1x1x128xf32, #tpu.memory_space<vmem>>, %arg4: memref<1x1x1x1x128xf32, #tpu.memory_space<vmem>>, %arg5: memref<1x1x4x4x128xf32, #tpu.memory_space<vmem>>) attributes {dimension_semantics = [#tpu.dimension_semantics<parallel>, #tpu.dimension_semantics<parallel>], iteration_bounds = array<i64: 2, 4>, scalar_prefetch = 0 : i64, scratch_operands = 0 : i64, tpu.core_type = #tpu.core_type<tc>, window_params = [{transform_indices = @transform_0, window_bounds = array<i64: 1, 1, 4, 4, 128>}, {pipeline_mode = #tpu.pipeline_mode<synchronous>, transform_indices = @transform_1, window_bounds = array<i64: 1, 1, 1, 1, 128>}, {pipeline_mode = #tpu.pipeline_mode<synchronous>, transform_indices = @transform_2, window_bounds = array<i64: 1, 1, 1, 1, 128>}, {transform_indices = @transform_3, window_bounds = array<i64: 1, 1, 4, 4, 128>}]} {
    %c0 = arith.constant 0 : index
    %c0_0 = arith.constant 0 : index
    %c0_1 = arith.constant 0 : index
    %c0_2 = arith.constant 0 : index
    %c0_3 = arith.constant 0 : index
    %0 = vector.load %arg2[%c0, %c0_0, %c0_1, %c0_2, %c0_3] : memref<1x1x4x4x128xf32, #tpu.memory_space<vmem>>, vector<1x1x4x4x128xf32>
    %c0_4 = arith.constant 0 : index
    %c0_5 = arith.constant 0 : index
    %c0_6 = arith.constant 0 : index
    %c0_7 = arith.constant 0 : index
    %c0_8 = arith.constant 0 : index
    %1 = vector.load %arg3[%c0_4, %c0_5, %c0_6, %c0_7, %c0_8] : memref<1x1x1x1x128xf32, #tpu.memory_space<vmem>>, vector<1x1x1x1x128xf32>
    %2 = vector.broadcast %1 : vector<1x1x1x1x128xf32> to vector<1x1x4x4x128xf32>
    %3 = arith.mulf %0, %2 : vector<1x1x4x4x128xf32>
    %c0_9 = arith.constant 0 : index
    %c0_10 = arith.constant 0 : index
    %c0_11 = arith.constant 0 : index
    %c0_12 = arith.constant 0 : index
    %c0_13 = arith.constant 0 : index
    %4 = vector.load %arg4[%c0_9, %c0_10, %c0_11, %c0_12, %c0_13] : memref<1x1x1x1x128xf32, #tpu.memory_space<vmem>>, vector<1x1x1x1x128xf32>
    %5 = vector.broadcast %4 : vector<1x1x1x1x128xf32> to vector<1x1x4x4x128xf32>
    %6 = arith.addf %3, %5 : vector<1x1x4x4x128xf32>
    %cst = arith.constant 0.000000e+00 : f32
    %7 = vector.broadcast %cst : f32 to vector<1x1x4x4x128xf32>
    %8 = arith.maximumf %6, %7 : vector<1x1x4x4x128xf32>
    %c0_14 = arith.constant 0 : index
    %c0_15 = arith.constant 0 : index
    %c0_16 = arith.constant 0 : index
    %c0_17 = arith.constant 0 : index
    %c0_18 = arith.constant 0 : index
    %9 = vector.load %arg5[%c0_14, %c0_15, %c0_16, %c0_17, %c0_18] : memref<1x1x4x4x128xf32, #tpu.memory_space<vmem>>, vector<1x1x4x4x128xf32>
    tpu.vector_store %arg5[%c0_14, %c0_15, %c0_16, %c0_17, %c0_18], %8 {strides = array<i32>} : memref<1x1x4x4x128xf32, #tpu.memory_space<vmem>>, vector<1x1x4x4x128xf32>,
    return
  }
  func.func @transform_0(%arg0: i32, %arg1: i32) -> (i32, i32, i32, i32, i32) {
    %c0_i32 = arith.constant 0 : i32
    %c0_i32_0 = arith.constant 0 : i32
    %c0_i32_1 = arith.constant 0 : i32
    %c0_i32_2 = arith.constant 0 : i32
    return %arg0, %arg1, %c0_i32, %c0_i32_0, %c0_i32_1 : i32, i32, i32, i32, i32
  }
  func.func @transform_1(%arg0: i32, %arg1: i32) -> (i32, i32, i32, i32, i32) {
    %c0_i32 = arith.constant 0 : i32
    %c0_i32_0 = arith.constant 0 : i32
    %c0_i32_1 = arith.constant 0 : i32
    %c0_i32_2 = arith.constant 0 : i32
    %c0_i32_3 = arith.constant 0 : i32
    %c0_i32_4 = arith.constant 0 : i32
    return %c0_i32, %c0_i32_0, %c0_i32_1, %c0_i32_2, %c0_i32_3 : i32, i32, i32, i32, i32
  }
  func.func @transform_2(%arg0: i32, %arg1: i32) -> (i32, i32, i32, i32, i32) {
    %c0_i32 = arith.constant 0 : i32
    %c0_i32_0 = arith.constant 0 : i32
    %c0_i32_1 = arith.constant 0 : i32
    %c0_i32_2 = arith.constant 0 : i32
    %c0_i32_3 = arith.constant 0 : i32
    %c0_i32_4 = arith.constant 0 : i32
    return %c0_i32, %c0_i32_0, %c0_i32_1, %c0_i32_2, %c0_i32_3 : i32, i32, i32, i32, i32
  }
  func.func @transform_3(%arg0: i32, %arg1: i32) -> (i32, i32, i32, i32, i32) {
    %c0_i32 = arith.constant 0 : i32
    %c0_i32_0 = arith.constant 0 : i32
    %c0_i32_1 = arith.constant 0 : i32
    %c0_i32_2 = arith.constant 0 : i32
    return %arg0, %arg1, %c0_i32, %c0_i32_0, %c0_i32_1 : i32, i32, i32, i32, i32
  }
}

module attributes {stable_mosaic.version = 11 : i64} {
  func.func @_conv_bnstats_kernel(%arg0: i32, %arg1: i32, %arg2: memref<1x1x6x6x128xf32, #tpu.memory_space<vmem>>, %arg3: memref<1x1x6x6x128xf32, #tpu.memory_space<vmem>>, %arg4: memref<1x1x6x6x128xf32, #tpu.memory_space<vmem>>, %arg5: memref<3456x128xf32, #tpu.memory_space<vmem>>, %arg6: memref<1x1x4x4x128xf32, #tpu.memory_space<vmem>>, %arg7: memref<1x1x2x128xf32, #tpu.memory_space<vmem>>) attributes {dimension_semantics = [#tpu.dimension_semantics<parallel>, #tpu.dimension_semantics<parallel>], iteration_bounds = array<i64: 2, 4>, scalar_prefetch = 0 : i64, scratch_operands = 0 : i64, tpu.core_type = #tpu.core_type<tc>, window_params = [{transform_indices = @transform_0, window_bounds = array<i64: 1, 1, 6, 6, 128>}, {transform_indices = @transform_1, window_bounds = array<i64: 1, 1, 6, 6, 128>}, {transform_indices = @transform_2, window_bounds = array<i64: 1, 1, 6, 6, 128>}, {pipeline_mode = #tpu.pipeline_mode<synchronous>, transform_indices = @transform_3, window_bounds = array<i64: 3456, 128>}, {transform_indices = @transform_4, window_bounds = array<i64: 1, 1, 4, 4, 128>}, {transform_indices = @transform_5, window_bounds = array<i64: 1, 1, 2, 128>}]} {
    %c0 = arith.constant 0 : index
    %c0_0 = arith.constant 0 : index
    %c0_1 = arith.constant 0 : index
    %c0_2 = arith.constant 0 : index
    %c0_3 = arith.constant 0 : index
    %0 = vector.load %arg2[%c0, %c0_0, %c0_1, %c0_2, %c0_3] : memref<1x1x6x6x128xf32, #tpu.memory_space<vmem>>, vector<1x1x6x6x128xf32>
    %1 = vector.shape_cast %0 : vector<1x1x6x6x128xf32> to vector<6x6x128xf32>
    %c0_4 = arith.constant 0 : index
    %c0_5 = arith.constant 0 : index
    %c0_6 = arith.constant 0 : index
    %c0_7 = arith.constant 0 : index
    %c0_8 = arith.constant 0 : index
    %2 = vector.load %arg3[%c0_4, %c0_5, %c0_6, %c0_7, %c0_8] : memref<1x1x6x6x128xf32, #tpu.memory_space<vmem>>, vector<1x1x6x6x128xf32>
    %3 = vector.shape_cast %2 : vector<1x1x6x6x128xf32> to vector<6x6x128xf32>
    %c0_9 = arith.constant 0 : index
    %c0_10 = arith.constant 0 : index
    %c0_11 = arith.constant 0 : index
    %c0_12 = arith.constant 0 : index
    %c0_13 = arith.constant 0 : index
    %4 = vector.load %arg4[%c0_9, %c0_10, %c0_11, %c0_12, %c0_13] : memref<1x1x6x6x128xf32, #tpu.memory_space<vmem>>, vector<1x1x6x6x128xf32>
    %5 = vector.shape_cast %4 : vector<1x1x6x6x128xf32> to vector<6x6x128xf32>
    %cst = arith.constant 0.000000e+00 : f32
    %6 = vector.broadcast %cst : f32 to vector<16x128xf32>
    %7 = vector.extract_strided_slice %1 {offsets = [0, 0, 0], sizes = [4, 4, 128], strides = [1, 1, 1]} : vector<6x6x128xf32> to vector<4x4x128xf32>
    %8 = vector.shape_cast %7 : vector<4x4x128xf32> to vector<16x128xf32>
    %c0_14 = arith.constant 0 : index
    %c0_15 = arith.constant 0 : index
    %9 = vector.load %arg5[%c0_14, %c0_15] : memref<3456x128xf32, #tpu.memory_space<vmem>>, vector<128x128xf32>
    %cst_16 = arith.constant dense<0.000000e+00> : vector<16x128xf32>
    %10 = tpu.matmul %8, %9, %cst_16 {dimension_numbers = #tpu.dot_dimension_numbers<[1], [0], [0], [1], [0, 0, 1, 1], [], []>} : vector<16x128xf32>, vector<128x128xf32>, vector<16x128xf32> -> vector<16x128xf32>
    %11 = arith.addf %6, %10 : vector<16x128xf32>
    %12 = vector.extract_strided_slice %1 {offsets = [0, 1, 0], sizes = [4, 4, 128], strides = [1, 1, 1]} : vector<6x6x128xf32> to vector<4x4x128xf32>
    %13 = vector.shape_cast %12 : vector<4x4x128xf32> to vector<16x128xf32>
    %c128 = arith.constant 128 : index
    %c0_17 = arith.constant 0 : index
    %14 = vector.load %arg5[%c128, %c0_17] : memref<3456x128xf32, #tpu.memory_space<vmem>>, vector<128x128xf32>
    %cst_18 = arith.constant dense<0.000000e+00> : vector<16x128xf32>
    %15 = tpu.matmul %13, %14, %cst_18 {dimension_numbers = #tpu.dot_dimension_numbers<[1], [0], [0], [1], [0, 0, 1, 1], [], []>} : vector<16x128xf32>, vector<128x128xf32>, vector<16x128xf32> -> vector<16x128xf32>
    %16 = arith.addf %11, %15 : vector<16x128xf32>
    %17 = vector.extract_strided_slice %1 {offsets = [0, 2, 0], sizes = [4, 4, 128], strides = [1, 1, 1]} : vector<6x6x128xf32> to vector<4x4x128xf32>
    %18 = vector.shape_cast %17 : vector<4x4x128xf32> to vector<16x128xf32>
    %c256 = arith.constant 256 : index
    %c0_19 = arith.constant 0 : index
    %19 = vector.load %arg5[%c256, %c0_19] : memref<3456x128xf32, #tpu.memory_space<vmem>>, vector<128x128xf32>
    %cst_20 = arith.constant dense<0.000000e+00> : vector<16x128xf32>
    %20 = tpu.matmul %18, %19, %cst_20 {dimension_numbers = #tpu.dot_dimension_numbers<[1], [0], [0], [1], [0, 0, 1, 1], [], []>} : vector<16x128xf32>, vector<128x128xf32>, vector<16x128xf32> -> vector<16x128xf32>
    %21 = arith.addf %16, %20 : vector<16x128xf32>
    %22 = vector.extract_strided_slice %1 {offsets = [1, 0, 0], sizes = [4, 4, 128], strides = [1, 1, 1]} : vector<6x6x128xf32> to vector<4x4x128xf32>
    %23 = vector.shape_cast %22 : vector<4x4x128xf32> to vector<16x128xf32>
    %c384 = arith.constant 384 : index
    %c0_21 = arith.constant 0 : index
    %24 = vector.load %arg5[%c384, %c0_21] : memref<3456x128xf32, #tpu.memory_space<vmem>>, vector<128x128xf32>
    %cst_22 = arith.constant dense<0.000000e+00> : vector<16x128xf32>
    %25 = tpu.matmul %23, %24, %cst_22 {dimension_numbers = #tpu.dot_dimension_numbers<[1], [0], [0], [1], [0, 0, 1, 1], [], []>} : vector<16x128xf32>, vector<128x128xf32>, vector<16x128xf32> -> vector<16x128xf32>
    %26 = arith.addf %21, %25 : vector<16x128xf32>
    %27 = vector.extract_strided_slice %1 {offsets = [1, 1, 0], sizes = [4, 4, 128], strides = [1, 1, 1]} : vector<6x6x128xf32> to vector<4x4x128xf32>
    %28 = vector.shape_cast %27 : vector<4x4x128xf32> to vector<16x128xf32>
    %c512 = arith.constant 512 : index
    %c0_23 = arith.constant 0 : index
    %29 = vector.load %arg5[%c512, %c0_23] : memref<3456x128xf32, #tpu.memory_space<vmem>>, vector<128x128xf32>
    %cst_24 = arith.constant dense<0.000000e+00> : vector<16x128xf32>
    %30 = tpu.matmul %28, %29, %cst_24 {dimension_numbers = #tpu.dot_dimension_numbers<[1], [0], [0], [1], [0, 0, 1, 1], [], []>} : vector<16x128xf32>, vector<128x128xf32>, vector<16x128xf32> -> vector<16x128xf32>
    %31 = arith.addf %26, %30 : vector<16x128xf32>
    %32 = vector.extract_strided_slice %1 {offsets = [1, 2, 0], sizes = [4, 4, 128], strides = [1, 1, 1]} : vector<6x6x128xf32> to vector<4x4x128xf32>
    %33 = vector.shape_cast %32 : vector<4x4x128xf32> to vector<16x128xf32>
    %c640 = arith.constant 640 : index
    %c0_25 = arith.constant 0 : index
    %34 = vector.load %arg5[%c640, %c0_25] : memref<3456x128xf32, #tpu.memory_space<vmem>>, vector<128x128xf32>
    %cst_26 = arith.constant dense<0.000000e+00> : vector<16x128xf32>
    %35 = tpu.matmul %33, %34, %cst_26 {dimension_numbers = #tpu.dot_dimension_numbers<[1], [0], [0], [1], [0, 0, 1, 1], [], []>} : vector<16x128xf32>, vector<128x128xf32>, vector<16x128xf32> -> vector<16x128xf32>
    %36 = arith.addf %31, %35 : vector<16x128xf32>
    %37 = vector.extract_strided_slice %1 {offsets = [2, 0, 0], sizes = [4, 4, 128], strides = [1, 1, 1]} : vector<6x6x128xf32> to vector<4x4x128xf32>
    %38 = vector.shape_cast %37 : vector<4x4x128xf32> to vector<16x128xf32>
    %c768 = arith.constant 768 : index
    %c0_27 = arith.constant 0 : index
    %39 = vector.load %arg5[%c768, %c0_27] : memref<3456x128xf32, #tpu.memory_space<vmem>>, vector<128x128xf32>
    %cst_28 = arith.constant dense<0.000000e+00> : vector<16x128xf32>
    %40 = tpu.matmul %38, %39, %cst_28 {dimension_numbers = #tpu.dot_dimension_numbers<[1], [0], [0], [1], [0, 0, 1, 1], [], []>} : vector<16x128xf32>, vector<128x128xf32>, vector<16x128xf32> -> vector<16x128xf32>
    %41 = arith.addf %36, %40 : vector<16x128xf32>
    %42 = vector.extract_strided_slice %1 {offsets = [2, 1, 0], sizes = [4, 4, 128], strides = [1, 1, 1]} : vector<6x6x128xf32> to vector<4x4x128xf32>
    %43 = vector.shape_cast %42 : vector<4x4x128xf32> to vector<16x128xf32>
    %c896 = arith.constant 896 : index
    %c0_29 = arith.constant 0 : index
    %44 = vector.load %arg5[%c896, %c0_29] : memref<3456x128xf32, #tpu.memory_space<vmem>>, vector<128x128xf32>
    %cst_30 = arith.constant dense<0.000000e+00> : vector<16x128xf32>
    %45 = tpu.matmul %43, %44, %cst_30 {dimension_numbers = #tpu.dot_dimension_numbers<[1], [0], [0], [1], [0, 0, 1, 1], [], []>} : vector<16x128xf32>, vector<128x128xf32>, vector<16x128xf32> -> vector<16x128xf32>
    %46 = arith.addf %41, %45 : vector<16x128xf32>
    %47 = vector.extract_strided_slice %1 {offsets = [2, 2, 0], sizes = [4, 4, 128], strides = [1, 1, 1]} : vector<6x6x128xf32> to vector<4x4x128xf32>
    %48 = vector.shape_cast %47 : vector<4x4x128xf32> to vector<16x128xf32>
    %c1024 = arith.constant 1024 : index
    %c0_31 = arith.constant 0 : index
    %49 = vector.load %arg5[%c1024, %c0_31] : memref<3456x128xf32, #tpu.memory_space<vmem>>, vector<128x128xf32>
    %cst_32 = arith.constant dense<0.000000e+00> : vector<16x128xf32>
    %50 = tpu.matmul %48, %49, %cst_32 {dimension_numbers = #tpu.dot_dimension_numbers<[1], [0], [0], [1], [0, 0, 1, 1], [], []>} : vector<16x128xf32>, vector<128x128xf32>, vector<16x128xf32> -> vector<16x128xf32>
    %51 = arith.addf %46, %50 : vector<16x128xf32>
    %52 = vector.extract_strided_slice %3 {offsets = [0, 0, 0], sizes = [4, 4, 128], strides = [1, 1, 1]} : vector<6x6x128xf32> to vector<4x4x128xf32>
    %53 = vector.shape_cast %52 : vector<4x4x128xf32> to vector<16x128xf32>
    %c1152 = arith.constant 1152 : index
    %c0_33 = arith.constant 0 : index
    %54 = vector.load %arg5[%c1152, %c0_33] : memref<3456x128xf32, #tpu.memory_space<vmem>>, vector<128x128xf32>
    %cst_34 = arith.constant dense<0.000000e+00> : vector<16x128xf32>
    %55 = tpu.matmul %53, %54, %cst_34 {dimension_numbers = #tpu.dot_dimension_numbers<[1], [0], [0], [1], [0, 0, 1, 1], [], []>} : vector<16x128xf32>, vector<128x128xf32>, vector<16x128xf32> -> vector<16x128xf32>
    %56 = arith.addf %51, %55 : vector<16x128xf32>
    %57 = vector.extract_strided_slice %3 {offsets = [0, 1, 0], sizes = [4, 4, 128], strides = [1, 1, 1]} : vector<6x6x128xf32> to vector<4x4x128xf32>
    %58 = vector.shape_cast %57 : vector<4x4x128xf32> to vector<16x128xf32>
    %c1280 = arith.constant 1280 : index
    %c0_35 = arith.constant 0 : index
    %59 = vector.load %arg5[%c1280, %c0_35] : memref<3456x128xf32, #tpu.memory_space<vmem>>, vector<128x128xf32>
    %cst_36 = arith.constant dense<0.000000e+00> : vector<16x128xf32>
    %60 = tpu.matmul %58, %59, %cst_36 {dimension_numbers = #tpu.dot_dimension_numbers<[1], [0], [0], [1], [0, 0, 1, 1], [], []>} : vector<16x128xf32>, vector<128x128xf32>, vector<16x128xf32> -> vector<16x128xf32>
    %61 = arith.addf %56, %60 : vector<16x128xf32>
    %62 = vector.extract_strided_slice %3 {offsets = [0, 2, 0], sizes = [4, 4, 128], strides = [1, 1, 1]} : vector<6x6x128xf32> to vector<4x4x128xf32>
    %63 = vector.shape_cast %62 : vector<4x4x128xf32> to vector<16x128xf32>
    %c1408 = arith.constant 1408 : index
    %c0_37 = arith.constant 0 : index
    %64 = vector.load %arg5[%c1408, %c0_37] : memref<3456x128xf32, #tpu.memory_space<vmem>>, vector<128x128xf32>
    %cst_38 = arith.constant dense<0.000000e+00> : vector<16x128xf32>
    %65 = tpu.matmul %63, %64, %cst_38 {dimension_numbers = #tpu.dot_dimension_numbers<[1], [0], [0], [1], [0, 0, 1, 1], [], []>} : vector<16x128xf32>, vector<128x128xf32>, vector<16x128xf32> -> vector<16x128xf32>
    %66 = arith.addf %61, %65 : vector<16x128xf32>
    %67 = vector.extract_strided_slice %3 {offsets = [1, 0, 0], sizes = [4, 4, 128], strides = [1, 1, 1]} : vector<6x6x128xf32> to vector<4x4x128xf32>
    %68 = vector.shape_cast %67 : vector<4x4x128xf32> to vector<16x128xf32>
    %c1536 = arith.constant 1536 : index
    %c0_39 = arith.constant 0 : index
    %69 = vector.load %arg5[%c1536, %c0_39] : memref<3456x128xf32, #tpu.memory_space<vmem>>, vector<128x128xf32>
    %cst_40 = arith.constant dense<0.000000e+00> : vector<16x128xf32>
    %70 = tpu.matmul %68, %69, %cst_40 {dimension_numbers = #tpu.dot_dimension_numbers<[1], [0], [0], [1], [0, 0, 1, 1], [], []>} : vector<16x128xf32>, vector<128x128xf32>, vector<16x128xf32> -> vector<16x128xf32>
    %71 = arith.addf %66, %70 : vector<16x128xf32>
    %72 = vector.extract_strided_slice %3 {offsets = [1, 1, 0], sizes = [4, 4, 128], strides = [1, 1, 1]} : vector<6x6x128xf32> to vector<4x4x128xf32>
    %73 = vector.shape_cast %72 : vector<4x4x128xf32> to vector<16x128xf32>
    %c1664 = arith.constant 1664 : index
    %c0_41 = arith.constant 0 : index
    %74 = vector.load %arg5[%c1664, %c0_41] : memref<3456x128xf32, #tpu.memory_space<vmem>>, vector<128x128xf32>
    %cst_42 = arith.constant dense<0.000000e+00> : vector<16x128xf32>
    %75 = tpu.matmul %73, %74, %cst_42 {dimension_numbers = #tpu.dot_dimension_numbers<[1], [0], [0], [1], [0, 0, 1, 1], [], []>} : vector<16x128xf32>, vector<128x128xf32>, vector<16x128xf32> -> vector<16x128xf32>
    %76 = arith.addf %71, %75 : vector<16x128xf32>
    %77 = vector.extract_strided_slice %3 {offsets = [1, 2, 0], sizes = [4, 4, 128], strides = [1, 1, 1]} : vector<6x6x128xf32> to vector<4x4x128xf32>
    %78 = vector.shape_cast %77 : vector<4x4x128xf32> to vector<16x128xf32>
    %c1792 = arith.constant 1792 : index
    %c0_43 = arith.constant 0 : index
    %79 = vector.load %arg5[%c1792, %c0_43] : memref<3456x128xf32, #tpu.memory_space<vmem>>, vector<128x128xf32>
    %cst_44 = arith.constant dense<0.000000e+00> : vector<16x128xf32>
    %80 = tpu.matmul %78, %79, %cst_44 {dimension_numbers = #tpu.dot_dimension_numbers<[1], [0], [0], [1], [0, 0, 1, 1], [], []>} : vector<16x128xf32>, vector<128x128xf32>, vector<16x128xf32> -> vector<16x128xf32>
    %81 = arith.addf %76, %80 : vector<16x128xf32>
    %82 = vector.extract_strided_slice %3 {offsets = [2, 0, 0], sizes = [4, 4, 128], strides = [1, 1, 1]} : vector<6x6x128xf32> to vector<4x4x128xf32>
    %83 = vector.shape_cast %82 : vector<4x4x128xf32> to vector<16x128xf32>
    %c1920 = arith.constant 1920 : index
    %c0_45 = arith.constant 0 : index
    %84 = vector.load %arg5[%c1920, %c0_45] : memref<3456x128xf32, #tpu.memory_space<vmem>>, vector<128x128xf32>
    %cst_46 = arith.constant dense<0.000000e+00> : vector<16x128xf32>
    %85 = tpu.matmul %83, %84, %cst_46 {dimension_numbers = #tpu.dot_dimension_numbers<[1], [0], [0], [1], [0, 0, 1, 1], [], []>} : vector<16x128xf32>, vector<128x128xf32>, vector<16x128xf32> -> vector<16x128xf32>
    %86 = arith.addf %81, %85 : vector<16x128xf32>
    %87 = vector.extract_strided_slice %3 {offsets = [2, 1, 0], sizes = [4, 4, 128], strides = [1, 1, 1]} : vector<6x6x128xf32> to vector<4x4x128xf32>
    %88 = vector.shape_cast %87 : vector<4x4x128xf32> to vector<16x128xf32>
    %c2048 = arith.constant 2048 : index
    %c0_47 = arith.constant 0 : index
    %89 = vector.load %arg5[%c2048, %c0_47] : memref<3456x128xf32, #tpu.memory_space<vmem>>, vector<128x128xf32>
    %cst_48 = arith.constant dense<0.000000e+00> : vector<16x128xf32>
    %90 = tpu.matmul %88, %89, %cst_48 {dimension_numbers = #tpu.dot_dimension_numbers<[1], [0], [0], [1], [0, 0, 1, 1], [], []>} : vector<16x128xf32>, vector<128x128xf32>, vector<16x128xf32> -> vector<16x128xf32>
    %91 = arith.addf %86, %90 : vector<16x128xf32>
    %92 = vector.extract_strided_slice %3 {offsets = [2, 2, 0], sizes = [4, 4, 128], strides = [1, 1, 1]} : vector<6x6x128xf32> to vector<4x4x128xf32>
    %93 = vector.shape_cast %92 : vector<4x4x128xf32> to vector<16x128xf32>
    %c2176 = arith.constant 2176 : index
    %c0_49 = arith.constant 0 : index
    %94 = vector.load %arg5[%c2176, %c0_49] : memref<3456x128xf32, #tpu.memory_space<vmem>>, vector<128x128xf32>
    %cst_50 = arith.constant dense<0.000000e+00> : vector<16x128xf32>
    %95 = tpu.matmul %93, %94, %cst_50 {dimension_numbers = #tpu.dot_dimension_numbers<[1], [0], [0], [1], [0, 0, 1, 1], [], []>} : vector<16x128xf32>, vector<128x128xf32>, vector<16x128xf32> -> vector<16x128xf32>
    %96 = arith.addf %91, %95 : vector<16x128xf32>
    %97 = vector.extract_strided_slice %5 {offsets = [0, 0, 0], sizes = [4, 4, 128], strides = [1, 1, 1]} : vector<6x6x128xf32> to vector<4x4x128xf32>
    %98 = vector.shape_cast %97 : vector<4x4x128xf32> to vector<16x128xf32>
    %c2304 = arith.constant 2304 : index
    %c0_51 = arith.constant 0 : index
    %99 = vector.load %arg5[%c2304, %c0_51] : memref<3456x128xf32, #tpu.memory_space<vmem>>, vector<128x128xf32>
    %cst_52 = arith.constant dense<0.000000e+00> : vector<16x128xf32>
    %100 = tpu.matmul %98, %99, %cst_52 {dimension_numbers = #tpu.dot_dimension_numbers<[1], [0], [0], [1], [0, 0, 1, 1], [], []>} : vector<16x128xf32>, vector<128x128xf32>, vector<16x128xf32> -> vector<16x128xf32>
    %101 = arith.addf %96, %100 : vector<16x128xf32>
    %102 = vector.extract_strided_slice %5 {offsets = [0, 1, 0], sizes = [4, 4, 128], strides = [1, 1, 1]} : vector<6x6x128xf32> to vector<4x4x128xf32>
    %103 = vector.shape_cast %102 : vector<4x4x128xf32> to vector<16x128xf32>
    %c2432 = arith.constant 2432 : index
    %c0_53 = arith.constant 0 : index
    %104 = vector.load %arg5[%c2432, %c0_53] : memref<3456x128xf32, #tpu.memory_space<vmem>>, vector<128x128xf32>
    %cst_54 = arith.constant dense<0.000000e+00> : vector<16x128xf32>
    %105 = tpu.matmul %103, %104, %cst_54 {dimension_numbers = #tpu.dot_dimension_numbers<[1], [0], [0], [1], [0, 0, 1, 1], [], []>} : vector<16x128xf32>, vector<128x128xf32>, vector<16x128xf32> -> vector<16x128xf32>
    %106 = arith.addf %101, %105 : vector<16x128xf32>
    %107 = vector.extract_strided_slice %5 {offsets = [0, 2, 0], sizes = [4, 4, 128], strides = [1, 1, 1]} : vector<6x6x128xf32> to vector<4x4x128xf32>
    %108 = vector.shape_cast %107 : vector<4x4x128xf32> to vector<16x128xf32>
    %c2560 = arith.constant 2560 : index
    %c0_55 = arith.constant 0 : index
    %109 = vector.load %arg5[%c2560, %c0_55] : memref<3456x128xf32, #tpu.memory_space<vmem>>, vector<128x128xf32>
    %cst_56 = arith.constant dense<0.000000e+00> : vector<16x128xf32>
    %110 = tpu.matmul %108, %109, %cst_56 {dimension_numbers = #tpu.dot_dimension_numbers<[1], [0], [0], [1], [0, 0, 1, 1], [], []>} : vector<16x128xf32>, vector<128x128xf32>, vector<16x128xf32> -> vector<16x128xf32>
    %111 = arith.addf %106, %110 : vector<16x128xf32>
    %112 = vector.extract_strided_slice %5 {offsets = [1, 0, 0], sizes = [4, 4, 128], strides = [1, 1, 1]} : vector<6x6x128xf32> to vector<4x4x128xf32>
    %113 = vector.shape_cast %112 : vector<4x4x128xf32> to vector<16x128xf32>
    %c2688 = arith.constant 2688 : index
    %c0_57 = arith.constant 0 : index
    %114 = vector.load %arg5[%c2688, %c0_57] : memref<3456x128xf32, #tpu.memory_space<vmem>>, vector<128x128xf32>
    %cst_58 = arith.constant dense<0.000000e+00> : vector<16x128xf32>
    %115 = tpu.matmul %113, %114, %cst_58 {dimension_numbers = #tpu.dot_dimension_numbers<[1], [0], [0], [1], [0, 0, 1, 1], [], []>} : vector<16x128xf32>, vector<128x128xf32>, vector<16x128xf32> -> vector<16x128xf32>
    %116 = arith.addf %111, %115 : vector<16x128xf32>
    %117 = vector.extract_strided_slice %5 {offsets = [1, 1, 0], sizes = [4, 4, 128], strides = [1, 1, 1]} : vector<6x6x128xf32> to vector<4x4x128xf32>
    %118 = vector.shape_cast %117 : vector<4x4x128xf32> to vector<16x128xf32>
    %c2816 = arith.constant 2816 : index
    %c0_59 = arith.constant 0 : index
    %119 = vector.load %arg5[%c2816, %c0_59] : memref<3456x128xf32, #tpu.memory_space<vmem>>, vector<128x128xf32>
    %cst_60 = arith.constant dense<0.000000e+00> : vector<16x128xf32>
    %120 = tpu.matmul %118, %119, %cst_60 {dimension_numbers = #tpu.dot_dimension_numbers<[1], [0], [0], [1], [0, 0, 1, 1], [], []>} : vector<16x128xf32>, vector<128x128xf32>, vector<16x128xf32> -> vector<16x128xf32>
    %121 = arith.addf %116, %120 : vector<16x128xf32>
    %122 = vector.extract_strided_slice %5 {offsets = [1, 2, 0], sizes = [4, 4, 128], strides = [1, 1, 1]} : vector<6x6x128xf32> to vector<4x4x128xf32>
    %123 = vector.shape_cast %122 : vector<4x4x128xf32> to vector<16x128xf32>
    %c2944 = arith.constant 2944 : index
    %c0_61 = arith.constant 0 : index
    %124 = vector.load %arg5[%c2944, %c0_61] : memref<3456x128xf32, #tpu.memory_space<vmem>>, vector<128x128xf32>
    %cst_62 = arith.constant dense<0.000000e+00> : vector<16x128xf32>
    %125 = tpu.matmul %123, %124, %cst_62 {dimension_numbers = #tpu.dot_dimension_numbers<[1], [0], [0], [1], [0, 0, 1, 1], [], []>} : vector<16x128xf32>, vector<128x128xf32>, vector<16x128xf32> -> vector<16x128xf32>
    %126 = arith.addf %121, %125 : vector<16x128xf32>
    %127 = vector.extract_strided_slice %5 {offsets = [2, 0, 0], sizes = [4, 4, 128], strides = [1, 1, 1]} : vector<6x6x128xf32> to vector<4x4x128xf32>
    %128 = vector.shape_cast %127 : vector<4x4x128xf32> to vector<16x128xf32>
    %c3072 = arith.constant 3072 : index
    %c0_63 = arith.constant 0 : index
    %129 = vector.load %arg5[%c3072, %c0_63] : memref<3456x128xf32, #tpu.memory_space<vmem>>, vector<128x128xf32>
    %cst_64 = arith.constant dense<0.000000e+00> : vector<16x128xf32>
    %130 = tpu.matmul %128, %129, %cst_64 {dimension_numbers = #tpu.dot_dimension_numbers<[1], [0], [0], [1], [0, 0, 1, 1], [], []>} : vector<16x128xf32>, vector<128x128xf32>, vector<16x128xf32> -> vector<16x128xf32>
    %131 = arith.addf %126, %130 : vector<16x128xf32>
    %132 = vector.extract_strided_slice %5 {offsets = [2, 1, 0], sizes = [4, 4, 128], strides = [1, 1, 1]} : vector<6x6x128xf32> to vector<4x4x128xf32>
    %133 = vector.shape_cast %132 : vector<4x4x128xf32> to vector<16x128xf32>
    %c3200 = arith.constant 3200 : index
    %c0_65 = arith.constant 0 : index
    %134 = vector.load %arg5[%c3200, %c0_65] : memref<3456x128xf32, #tpu.memory_space<vmem>>, vector<128x128xf32>
    %cst_66 = arith.constant dense<0.000000e+00> : vector<16x128xf32>
    %135 = tpu.matmul %133, %134, %cst_66 {dimension_numbers = #tpu.dot_dimension_numbers<[1], [0], [0], [1], [0, 0, 1, 1], [], []>} : vector<16x128xf32>, vector<128x128xf32>, vector<16x128xf32> -> vector<16x128xf32>
    %136 = arith.addf %131, %135 : vector<16x128xf32>
    %137 = vector.extract_strided_slice %5 {offsets = [2, 2, 0], sizes = [4, 4, 128], strides = [1, 1, 1]} : vector<6x6x128xf32> to vector<4x4x128xf32>
    %138 = vector.shape_cast %137 : vector<4x4x128xf32> to vector<16x128xf32>
    %c3328 = arith.constant 3328 : index
    %c0_67 = arith.constant 0 : index
    %139 = vector.load %arg5[%c3328, %c0_67] : memref<3456x128xf32, #tpu.memory_space<vmem>>, vector<128x128xf32>
    %cst_68 = arith.constant dense<0.000000e+00> : vector<16x128xf32>
    %140 = tpu.matmul %138, %139, %cst_68 {dimension_numbers = #tpu.dot_dimension_numbers<[1], [0], [0], [1], [0, 0, 1, 1], [], []>} : vector<16x128xf32>, vector<128x128xf32>, vector<16x128xf32> -> vector<16x128xf32>
    %141 = arith.addf %136, %140 : vector<16x128xf32>
    %142 = vector.shape_cast %141 : vector<16x128xf32> to vector<4x4x128xf32>
    %c0_69 = arith.constant 0 : index
    %c0_70 = arith.constant 0 : index
    %c0_71 = arith.constant 0 : index
    %c0_72 = arith.constant 0 : index
    %c0_73 = arith.constant 0 : index
    %143 = vector.load %arg6[%c0_69, %c0_70, %c0_71, %c0_72, %c0_73] : memref<1x1x4x4x128xf32, #tpu.memory_space<vmem>>, vector<1x1x4x4x128xf32>
    %144 = vector.shape_cast %143 : vector<1x1x4x4x128xf32> to vector<4x4x128xf32>
    %145 = vector.shape_cast %142 : vector<4x4x128xf32> to vector<1x1x4x4x128xf32>
    tpu.vector_store %arg6[%c0_69, %c0_70, %c0_71, %c0_72, %c0_73], %145 {strides = array<i32>} : memref<1x1x4x4x128xf32, #tpu.memory_space<vmem>>, vector<1x1x4x4x128xf32>,
    %cst_74 = arith.constant dense<0.000000e+00> : vector<128xf32>
    %146 = vector.multi_reduction <add>, %141, %cst_74 [0] : vector<16x128xf32> to vector<128xf32>
    %147 = vector.shape_cast %146 : vector<128xf32> to vector<1x128xf32>
    %148 = arith.mulf %141, %141 : vector<16x128xf32>
    %cst_75 = arith.constant dense<0.000000e+00> : vector<128xf32>
    %149 = vector.multi_reduction <add>, %148, %cst_75 [0] : vector<16x128xf32> to vector<128xf32>
    %150 = vector.shape_cast %149 : vector<128xf32> to vector<1x128xf32>
    %151 = tpu.concatenate %147, %150 in 0 : vector<1x128xf32>, vector<1x128xf32> -> vector<2x128xf32>
    %c0_76 = arith.constant 0 : index
    %c0_77 = arith.constant 0 : index
    %c0_78 = arith.constant 0 : index
    %c0_79 = arith.constant 0 : index
    %152 = vector.load %arg7[%c0_76, %c0_77, %c0_78, %c0_79] : memref<1x1x2x128xf32, #tpu.memory_space<vmem>>, vector<1x1x2x128xf32>
    %153 = vector.shape_cast %152 : vector<1x1x2x128xf32> to vector<2x128xf32>
    %154 = vector.shape_cast %151 : vector<2x128xf32> to vector<1x1x2x128xf32>
    tpu.vector_store %arg7[%c0_76, %c0_77, %c0_78, %c0_79], %154 {strides = array<i32>} : memref<1x1x2x128xf32, #tpu.memory_space<vmem>>, vector<1x1x2x128xf32>,
    return
  }
  func.func @transform_0(%arg0: i32, %arg1: i32) -> (i32, i32, i32, i32, i32) {
    %c0_i32 = arith.constant 0 : i32
    %c0_i32_0 = arith.constant 0 : i32
    %c0_i32_1 = arith.constant 0 : i32
    %c0_i32_2 = arith.constant 0 : i32
    return %arg0, %arg1, %c0_i32, %c0_i32_0, %c0_i32_1 : i32, i32, i32, i32, i32
  }
  func.func @transform_1(%arg0: i32, %arg1: i32) -> (i32, i32, i32, i32, i32) {
    %c1_i32 = arith.constant 1 : i32
    %0 = arith.addi %arg1, %c1_i32 : i32
    %c0_i32 = arith.constant 0 : i32
    %c0_i32_0 = arith.constant 0 : i32
    %c0_i32_1 = arith.constant 0 : i32
    %c0_i32_2 = arith.constant 0 : i32
    return %arg0, %0, %c0_i32, %c0_i32_0, %c0_i32_1 : i32, i32, i32, i32, i32
  }
  func.func @transform_2(%arg0: i32, %arg1: i32) -> (i32, i32, i32, i32, i32) {
    %c2_i32 = arith.constant 2 : i32
    %0 = arith.addi %arg1, %c2_i32 : i32
    %c0_i32 = arith.constant 0 : i32
    %c0_i32_0 = arith.constant 0 : i32
    %c0_i32_1 = arith.constant 0 : i32
    %c0_i32_2 = arith.constant 0 : i32
    return %arg0, %0, %c0_i32, %c0_i32_0, %c0_i32_1 : i32, i32, i32, i32, i32
  }
  func.func @transform_3(%arg0: i32, %arg1: i32) -> (i32, i32) {
    %c0_i32 = arith.constant 0 : i32
    %c0_i32_0 = arith.constant 0 : i32
    %c0_i32_1 = arith.constant 0 : i32
    return %c0_i32, %c0_i32_0 : i32, i32
  }
  func.func @transform_4(%arg0: i32, %arg1: i32) -> (i32, i32, i32, i32, i32) {
    %c0_i32 = arith.constant 0 : i32
    %c0_i32_0 = arith.constant 0 : i32
    %c0_i32_1 = arith.constant 0 : i32
    %c0_i32_2 = arith.constant 0 : i32
    return %arg0, %arg1, %c0_i32, %c0_i32_0, %c0_i32_1 : i32, i32, i32, i32, i32
  }
  func.func @transform_5(%arg0: i32, %arg1: i32) -> (i32, i32, i32, i32) {
    %c0_i32 = arith.constant 0 : i32
    %c0_i32_0 = arith.constant 0 : i32
    %c0_i32_1 = arith.constant 0 : i32
    return %arg0, %arg1, %c0_i32, %c0_i32_0 : i32, i32, i32, i32
  }
}

</mosaic_0001>

<llo_original>
// kernel: downsampling_layer.5
$region0: #{downsampling_layer.5}
  #allocation0 [shape = 'u32[]', space=smem, size = 0x4, offset = 0x4, fixed_abs, tag = 'smem constant byte address 0x4 - core index']
  #allocation1 [shape = 'u32[144,128]{1,0:T(1,128)}', space=vmem, size = 0x12000, scoped, tag = 'internal scratch']
  %s0 = inlined_call_operand.vmem [shape: f32[2,8,8,8,4], index: 0, kind: input, shape index: {}]
  %s1 = inlined_call_operand.vmem [shape: f32[2,4,4,4,4], index: 1, kind: output, shape index: {}]
  %s2 = sld [smem:[#allocation0]]
  $region37: #{downsampling_layer.5} parent=0
    _
  %s4 = ssub.s32 1, %s2
  %s5 = scalar_select 0, %s4, %s2
  loop: start=0, step=1, limit=10
  $region2: #{downsampling_layer.5} parent=0 // loop_pre_header
    _
  $region3: #{downsampling_layer.5} parent=0 // loop_header
    %s7 = sphi 0, %s11
    %p8 = scmp.ge.s32.totalorder %s7, 10
    %s14 = sphi 0, %s26
    %s15 = sphi 0, %s22
    %s16 = sphi 0, %s14
    %s17 = sphi 0, %s15
    %s18 = sphi 0, %s16
    %s19 = sphi 0, %s17
    %s31 = sphi 0, %s33
    %s34 = sphi 0, %s31
    %s35 = sphi 0, %s34
    %s51 = sphi 0, %s35
    %s59 = sphi 0, %s61
    %s62 = sphi 0, %s59
    %s63 = sphi 0, %s62
    %s79 = sphi 0, %s63
  $region4: #{downsampling_layer.5} parent=0 // loop_header_branch
    %10 = sbr.rel (%p8) target = $region8
  $region5: #{downsampling_layer.5} parent=0 // loop_body
    %s12 = ssub.s32 %s7, 1
    %s13 = ssub.s32 %s7, 2
    %s20 = sadd.s32 1, %s15
    %p21 = scmp.ge.s32.totalorder %s20, 4
    %s22 = scalar_select %p21, 0, %s20
    %s23 = sadd.s32 1, %s14
    %s24 = scalar_select %p21, %s23, %s14
    %p25 = scmp.ge.s32.totalorder %s24, 2
    %s26 = scalar_select %p25, 0, %s24
    %s27 = ssub.s32 %s14, %s26
    %s28 = ssub.s32 %s15, %s22
    %s29 = sor.u32 %s27, %s28
    %p30 = scmp.eq.s32.totalorder %s29, 0
    %s32 = sadd.s32 %s31, 1
    %s33 = scalar_select %p30, %s31, %s32
    %p36 = pneg %p30
    %p37 = scmp.eq.s32.totalorder %s7, 7
    %p38 = por %p36, %p37
    %p39 = scmp.ne.s32.totalorder %s31, %s34
    %p40 = scmp.eq.s32.totalorder %s7, 0
    %p41 = por %p39, %p40
    %p42 = scmp.ne.s32.totalorder %s31, %s34
    %p43 = scmp.eq.s32.totalorder %s12, 7
    %p44 = por %p42, %p43
    %p45 = scmp.ne.s32.totalorder %s34, %s35
    %p46 = scmp.eq.s32.totalorder %s12, 0
    %p47 = por %p45, %p46
    %p48 = scmp.ne.s32.totalorder %s34, %s35
    %p49 = scmp.eq.s32.totalorder %s13, 7
    %p50 = por %p48, %p49
    %p52 = scmp.ne.s32.totalorder %s35, %s51
    %p53 = scmp.eq.s32.totalorder %s13, 0
    %p54 = por %p52, %p53
    %s55 = ssub.s32 %s14, %s26
    %s56 = ssub.s32 %s15, %s22
    %s57 = sor.u32 %s55, %s56
    %p58 = scmp.eq.s32.totalorder %s57, 0
    %s60 = sadd.s32 %s59, 1
    %s61 = scalar_select %p58, %s59, %s60
    %p64 = pneg %p58
    %p65 = scmp.eq.s32.totalorder %s7, 7
    %p66 = por %p64, %p65
    %p67 = scmp.ne.s32.totalorder %s59, %s62
    %p68 = scmp.eq.s32.totalorder %s7, 0
    %p69 = por %p67, %p68
    %p70 = scmp.ne.s32.totalorder %s59, %s62
    %p71 = scmp.eq.s32.totalorder %s12, 7
    %p72 = por %p70, %p71
    %p73 = scmp.ne.s32.totalorder %s62, %s63
    %p74 = scmp.eq.s32.totalorder %s12, 0
    %p75 = por %p73, %p74
    %p76 = scmp.ne.s32.totalorder %s62, %s63
    %p77 = scmp.eq.s32.totalorder %s13, 7
    %p78 = por %p76, %p77
    %p80 = scmp.ne.s32.totalorder %s63, %s79
    %p81 = scmp.eq.s32.totalorder %s13, 0
    %p82 = por %p80, %p81
    %p83 = scmp.le.s32.totalorder 1, %s7
    %p84 = scmp.lt.s32.totalorder %s7, 9
    %p85 = pnand %p83, %p84
    %p86 = pneg %p85
    // Predicated region
    $region9: #{downsampling_layer.5} parent=5 // pred_check
      _
    $region10: #{downsampling_layer.5} parent=5 // pred_check_branch
      %88 = sbr.rel (%p85) target = $region12
    $region11: #{downsampling_layer.5} parent=5 // pred_region
      %s89 = ssub.s32 %s7, 1
    $region12: #{downsampling_layer.5} parent=5 // pred_fallthru
      _
    %p90 = scmp.lt.s32.totalorder %s7, 8
    // Predicated region
    $region13: #{downsampling_layer.5} parent=5 // pred_check
      %p91 = pneg %p90
    $region14: #{downsampling_layer.5} parent=5 // pred_check_branch
      %93 = sbr.rel (%p91) target = $region16
    $region15: #{downsampling_layer.5} parent=5 // pred_region
      // Predicated region
      $region17: #{downsampling_layer.5} parent=15 // pred_check
        %p94 = pneg %p41
      $region18: #{downsampling_layer.5} parent=15 // pred_check_branch
        %96 = sbr.rel (%p94) target = $region20
      $region19: #{downsampling_layer.5} parent=15 // pred_region
        %s97 = smul.u32 2, %s15
        %p98 = scmp.lt.s32.totalorder %s14, 1
        %s99 = scalar_select %p98, %s14, 1
        %p100 = scmp.lt.s32.totalorder %s97, 7
        %s101 = scalar_select %p100, %s97, 7
        %s102 = smul.addr %s101, 8
        %s103 = smul.addr %s99, 64
        %s104 = sadd.s32 %s102, %s103
        %s105 = smul.addr %s104, 8
        %s106 = scalar_lea.vmem %s0, %s105
        %s107 = smul.u32 2, %s15
      $region20: #{downsampling_layer.5} parent=15 // pred_fallthru
        _
    $region16: #{downsampling_layer.5} parent=5 // pred_fallthru
      _
    %p108 = scmp.le.s32.totalorder 1, %s7
    %p109 = scmp.lt.s32.totalorder %s7, 9
    %p110 = pnand %p108, %p109
    %p111 = pneg %p110
    // Predicated region
    $region21: #{downsampling_layer.5} parent=5 // pred_check
      _
    $region22: #{downsampling_layer.5} parent=5 // pred_check_branch
      %113 = sbr.rel (%p110) target = $region24
    $region23: #{downsampling_layer.5} parent=5 // pred_region
      %s114 = ssub.s32 %s7, 1
      %s115 = smul.u32 2, %s17
      %p116 = scmp.lt.s32.totalorder %s16, 1
      %s117 = scalar_select %p116, %s16, 1
      %p118 = scmp.lt.s32.totalorder %s115, 7
      %s119 = scalar_select %p118, %s115, 7
      %s120 = smul.addr %s119, 8
      %s121 = smul.addr %s117, 64
      %s122 = sadd.s32 %s120, %s121
      %s123 = smul.addr %s122, 8
      %s124 = scalar_lea.vmem %s0, %s123
      %p125 = pneg %p47
      %p126 = pneg %p44
      %p127 = pneg %p75
      %p128 = pneg %p72
      %p129 = scmp.lt.s32.totalorder %s16, 1
      %s130 = scalar_select %p129, %s16, 1
      %p131 = scmp.lt.s32.totalorder %s17, 3
      %s132 = scalar_select %p131, %s17, 3
      %s133 = smul.addr %s132, 4
      %s134 = smul.addr %s130, 16
      %s135 = sadd.s32 %s133, %s134
      %s136 = smul.addr %s135, 4
      %s137 = scalar_lea.vmem %s1, %s136
      %s138 = smul.u32 2, %s17
      %p139 = scmp.lt.s32.totalorder %s16, 1
      %s140 = scalar_select %p139, %s16, 1
      %p141 = scmp.lt.s32.totalorder %s138, 7
      %s142 = scalar_select %p141, %s138, 7
      %s143 = smul.addr %s142, 8
      %s144 = smul.addr %s140, 64
      %s145 = sadd.s32 %s143, %s144
      %s146 = smul.addr %s145, 8
      %s147 = scalar_lea.vmem %s0, %s146
      %s148 = smul.u32 2, %s17
      %p149 = scmp.lt.s32.totalorder %s16, 1
      %s150 = scalar_select %p149, %s16, 1
      %p151 = scmp.lt.s32.totalorder %s17, 3
      %s152 = scalar_select %p151, %s17, 3
      %s153 = smul.addr %s152, 4
      %s154 = smul.addr %s150, 16
      %s155 = sadd.s32 %s153, %s154
      %s156 = smul.addr %s155, 4
      %s157 = scalar_lea.vmem %s1, %s156
      %v158 = vld [vmem:[%s147] sm:$0xff]
      %v159 = vld [vmem:[%s147 + $0x8] sm:$0xff]
      %v160 = vld [vmem:[%s147 + $0x10] sm:$0xff]
      %v161 = vld [vmem:[%s147 + $0x18] sm:$0xff]
      %v162 = vld [vmem:[%s147 + $0x20] sm:$0xff]
      %v163 = vld [vmem:[%s147 + $0x28] sm:$0xff]
      %v164 = vld [vmem:[%s147 + $0x30] sm:$0xff]
      %v165 = vld [vmem:[%s147 + $0x38] sm:$0xff]
      %s166 = scalar_lea.vmem %s147, 64
      %v167 = vld [vmem:[%s166] sm:$0xff]
      %v168 = vld [vmem:[%s166 + $0x8] sm:$0xff]
      %v169 = vld [vmem:[%s166 + $0x10] sm:$0xff]
      %v170 = vld [vmem:[%s166 + $0x18] sm:$0xff]
      %v171 = vld [vmem:[%s166 + $0x20] sm:$0xff]
      %v172 = vld [vmem:[%s166 + $0x28] sm:$0xff]
      %v173 = vld [vmem:[%s166 + $0x30] sm:$0xff]
      %v174 = vld [vmem:[%s166 + $0x38] sm:$0xff]
      %v175 = vmax.f32 %v158, %v167
      %v176 = vmax.f32 %v159, %v168
      %v177 = vmax.f32 %v160, %v169
      %v178 = vmax.f32 %v161, %v170
      %v179 = vmax.f32 %v162, %v171
      %v180 = vmax.f32 %v163, %v172
      %v181 = vmax.f32 %v164, %v173
      %v182 = vmax.f32 %v165, %v174
      %v191 = vcombine.high %v175, %v175
      %v193 = vunpack.c.l.s4 1983009808
      %v194 = vunpack.c.0.s8 %v193
      %v195 = vlaneseq
      %v196 = vshrl.u32 %v195, 7
      %v197 = vsub.s32 %v194, %v196
      %v198 = vrot.slane %v175, %v197
      %v200 = vunpack.c.l.s4 1983009808
      %v201 = vunpack.c.0.s8 %v200
      %v202 = vlaneseq
      %v203 = vshrl.u32 %v202, 7
      %v204 = vsub.s32 %v201, %v203
      %v205 = vrot.slane %v191, %v204
      %v206 = vcombine.high %v198, %v198
      %v207 = vcombine.high %v205, %v205
      %v208 = vcombine.high %v176, %v176
      %v210 = vunpack.c.l.s4 1983009808
      %v211 = vunpack.c.0.s8 %v210
      %v212 = vlaneseq
      %v213 = vshrl.u32 %v212, 7
      %v214 = vsub.s32 %v211, %v213
      %v215 = vrot.slane %v176, %v214
      %v217 = vunpack.c.l.s4 1983009808
      %v218 = vunpack.c.0.s8 %v217
      %v219 = vlaneseq
      %v220 = vshrl.u32 %v219, 7
      %v221 = vsub.s32 %v218, %v220
      %v222 = vrot.slane %v208, %v221
      %v223 = vcombine.high %v215, %v215
      %v224 = vcombine.high %v222, %v222
      %v225 = vcombine.high %v177, %v177
      %v227 = vunpack.c.l.s4 1983009808
      %v228 = vunpack.c.0.s8 %v227
      %v229 = vlaneseq
      %v230 = vshrl.u32 %v229, 7
      %v231 = vsub.s32 %v228, %v230
      %v232 = vrot.slane %v177, %v231
      %v234 = vunpack.c.l.s4 1983009808
      %v235 = vunpack.c.0.s8 %v234
      %v236 = vlaneseq
      %v237 = vshrl.u32 %v236, 7
      %v238 = vsub.s32 %v235, %v237
      %v239 = vrot.slane %v225, %v238
      %v240 = vcombine.high %v232, %v232
      %v241 = vcombine.high %v239, %v239
      %v242 = vcombine.high %v178, %v178
      %v244 = vunpack.c.l.s4 1983009808
      %v245 = vunpack.c.0.s8 %v244
      %v246 = vlaneseq
      %v247 = vshrl.u32 %v246, 7
      %v248 = vsub.s32 %v245, %v247
      %v249 = vrot.slane %v178, %v248
      %v251 = vunpack.c.l.s4 1983009808
      %v252 = vunpack.c.0.s8 %v251
      %v253 = vlaneseq
      %v254 = vshrl.u32 %v253, 7
      %v255 = vsub.s32 %v252, %v254
      %v256 = vrot.slane %v242, %v255
      %v257 = vcombine.high %v249, %v249
      %v258 = vcombine.high %v256, %v256
      %v259 = vcombine.high %v179, %v179
      %v261 = vunpack.c.l.s4 1983009808
      %v262 = vunpack.c.0.s8 %v261
      %v263 = vlaneseq
      %v264 = vshrl.u32 %v263, 7
      %v265 = vsub.s32 %v262, %v264
      %v266 = vrot.slane %v179, %v265
      %v268 = vunpack.c.l.s4 1983009808
      %v269 = vunpack.c.0.s8 %v268
      %v270 = vlaneseq
      %v271 = vshrl.u32 %v270, 7
      %v272 = vsub.s32 %v269, %v271
      %v273 = vrot.slane %v259, %v272
      %v274 = vcombine.high %v266, %v266
      %v275 = vcombine.high %v273, %v273
      %v276 = vcombine.high %v180, %v180
      %v278 = vunpack.c.l.s4 1983009808
      %v279 = vunpack.c.0.s8 %v278
      %v280 = vlaneseq
      %v281 = vshrl.u32 %v280, 7
      %v282 = vsub.s32 %v279, %v281
      %v283 = vrot.slane %v180, %v282
      %v285 = vunpack.c.l.s4 1983009808
      %v286 = vunpack.c.0.s8 %v285
      %v287 = vlaneseq
      %v288 = vshrl.u32 %v287, 7
      %v289 = vsub.s32 %v286, %v288
      %v290 = vrot.slane %v276, %v289
      %v291 = vcombine.high %v283, %v283
      %v292 = vcombine.high %v290, %v290
      %v293 = vcombine.high %v181, %v181
      %v295 = vunpack.c.l.s4 1983009808
      %v296 = vunpack.c.0.s8 %v295
      %v297 = vlaneseq
      %v298 = vshrl.u32 %v297, 7
      %v299 = vsub.s32 %v296, %v298
      %v300 = vrot.slane %v181, %v299
      %v302 = vunpack.c.l.s4 1983009808
      %v303 = vunpack.c.0.s8 %v302
      %v304 = vlaneseq
      %v305 = vshrl.u32 %v304, 7
      %v306 = vsub.s32 %v303, %v305
      %v307 = vrot.slane %v293, %v306
      %v308 = vcombine.high %v300, %v300
      %v309 = vcombine.high %v307, %v307
      %v310 = vcombine.high %v182, %v182
      %v312 = vunpack.c.l.s4 1983009808
      %v313 = vunpack.c.0.s8 %v312
      %v314 = vlaneseq
      %v315 = vshrl.u32 %v314, 7
      %v316 = vsub.s32 %v313, %v315
      %v317 = vrot.slane %v182, %v316
      %v319 = vunpack.c.l.s4 1983009808
      %v320 = vunpack.c.0.s8 %v319
      %v321 = vlaneseq
      %v322 = vshrl.u32 %v321, 7
      %v323 = vsub.s32 %v320, %v322
      %v324 = vrot.slane %v310, %v323
      %v325 = vcombine.high %v317, %v317
      %v326 = vcombine.high %v324, %v324
      %vm359 = vcmask 25600
      %v360 = vsel %vm359, %v198, -inf
      %v361 = vrot.slane %v360, 4
      %v362 = vmax.f32 %v360, %v361
      %v363 = vrot.slane %v362, 2
      %v364 = vmax.f32 %v362, %v363
      %v365 = vrot.slane %v364, 1
      %v366 = vmax.f32 %v364, %v365
      %v367 = vsel %vm359, %v206, -inf
      %v368 = vrot.slane %v367, 4
      %v369 = vmax.f32 %v367, %v368
      %v370 = vrot.slane %v369, 2
      %v371 = vmax.f32 %v369, %v370
      %v372 = vrot.slane %v371, 1
      %v373 = vmax.f32 %v371, %v372
      %v374 = vsel %vm359, %v205, -inf
      %v375 = vrot.slane %v374, 4
      %v376 = vmax.f32 %v374, %v375
      %v377 = vrot.slane %v376, 2
      %v378 = vmax.f32 %v376, %v377
      %v379 = vrot.slane %v378, 1
      %v380 = vmax.f32 %v378, %v379
      %v381 = vsel %vm359, %v207, -inf
      %v382 = vrot.slane %v381, 4
      %v383 = vmax.f32 %v381, %v382
      %v384 = vrot.slane %v383, 2
      %v385 = vmax.f32 %v383, %v384
      %v386 = vrot.slane %v385, 1
      %v387 = vmax.f32 %v385, %v386
      %v388 = vsel %vm359, %v215, -inf
      %v389 = vrot.slane %v388, 4
      %v390 = vmax.f32 %v388, %v389
      %v391 = vrot.slane %v390, 2
      %v392 = vmax.f32 %v390, %v391
      %v393 = vrot.slane %v392, 1
      %v394 = vmax.f32 %v392, %v393
      %v395 = vsel %vm359, %v223, -inf
      %v396 = vrot.slane %v395, 4
      %v397 = vmax.f32 %v395, %v396
      %v398 = vrot.slane %v397, 2
      %v399 = vmax.f32 %v397, %v398
      %v400 = vrot.slane %v399, 1
      %v401 = vmax.f32 %v399, %v400
      %v402 = vsel %vm359, %v222, -inf
      %v403 = vrot.slane %v402, 4
      %v404 = vmax.f32 %v402, %v403
      %v405 = vrot.slane %v404, 2
      %v406 = vmax.f32 %v404, %v405
      %v407 = vrot.slane %v406, 1
      %v408 = vmax.f32 %v406, %v407
      %v409 = vsel %vm359, %v224, -inf
      %v410 = vrot.slane %v409, 4
      %v411 = vmax.f32 %v409, %v410
      %v412 = vrot.slane %v411, 2
      %v413 = vmax.f32 %v411, %v412
      %v414 = vrot.slane %v413, 1
      %v415 = vmax.f32 %v413, %v414
      %v416 = vsel %vm359, %v232, -inf
      %v417 = vrot.slane %v416, 4
      %v418 = vmax.f32 %v416, %v417
      %v419 = vrot.slane %v418, 2
      %v420 = vmax.f32 %v418, %v419
      %v421 = vrot.slane %v420, 1
      %v422 = vmax.f32 %v420, %v421
      %v423 = vsel %vm359, %v240, -inf
      %v424 = vrot.slane %v423, 4
      %v425 = vmax.f32 %v423, %v424
      %v426 = vrot.slane %v425, 2
      %v427 = vmax.f32 %v425, %v426
      %v428 = vrot.slane %v427, 1
      %v429 = vmax.f32 %v427, %v428
      %v430 = vsel %vm359, %v239, -inf
      %v431 = vrot.slane %v430, 4
      %v432 = vmax.f32 %v430, %v431
      %v433 = vrot.slane %v432, 2
      %v434 = vmax.f32 %v432, %v433
      %v435 = vrot.slane %v434, 1
      %v436 = vmax.f32 %v434, %v435
      %v437 = vsel %vm359, %v241, -inf
      %v438 = vrot.slane %v437, 4
      %v439 = vmax.f32 %v437, %v438
      %v440 = vrot.slane %v439, 2
      %v441 = vmax.f32 %v439, %v440
      %v442 = vrot.slane %v441, 1
      %v443 = vmax.f32 %v441, %v442
      %v444 = vsel %vm359, %v249, -inf
      %v445 = vrot.slane %v444, 4
      %v446 = vmax.f32 %v444, %v445
      %v447 = vrot.slane %v446, 2
      %v448 = vmax.f32 %v446, %v447
      %v449 = vrot.slane %v448, 1
      %v450 = vmax.f32 %v448, %v449
      %v451 = vsel %vm359, %v257, -inf
      %v452 = vrot.slane %v451, 4
      %v453 = vmax.f32 %v451, %v452
      %v454 = vrot.slane %v453, 2
      %v455 = vmax.f32 %v453, %v454
      %v456 = vrot.slane %v455, 1
      %v457 = vmax.f32 %v455, %v456
      %v458 = vsel %vm359, %v256, -inf
      %v459 = vrot.slane %v458, 4
      %v460 = vmax.f32 %v458, %v459
      %v461 = vrot.slane %v460, 2
      %v462 = vmax.f32 %v460, %v461
      %v463 = vrot.slane %v462, 1
      %v464 = vmax.f32 %v462, %v463
      %v465 = vsel %vm359, %v258, -inf
      %v466 = vrot.slane %v465, 4
      %v467 = vmax.f32 %v465, %v466
      %v468 = vrot.slane %v467, 2
      %v469 = vmax.f32 %v467, %v468
      %v470 = vrot.slane %v469, 1
      %v471 = vmax.f32 %v469, %v470
      %v472 = vsel %vm359, %v266, -inf
      %v473 = vrot.slane %v472, 4
      %v474 = vmax.f32 %v472, %v473
      %v475 = vrot.slane %v474, 2
      %v476 = vmax.f32 %v474, %v475
      %v477 = vrot.slane %v476, 1
      %v478 = vmax.f32 %v476, %v477
      %v479 = vsel %vm359, %v274, -inf
      %v480 = vrot.slane %v479, 4
      %v481 = vmax.f32 %v479, %v480
      %v482 = vrot.slane %v481, 2
      %v483 = vmax.f32 %v481, %v482
      %v484 = vrot.slane %v483, 1
      %v485 = vmax.f32 %v483, %v484
      %v486 = vsel %vm359, %v273, -inf
      %v487 = vrot.slane %v486, 4
      %v488 = vmax.f32 %v486, %v487
      %v489 = vrot.slane %v488, 2
      %v490 = vmax.f32 %v488, %v489
      %v491 = vrot.slane %v490, 1
      %v492 = vmax.f32 %v490, %v491
      %v493 = vsel %vm359, %v275, -inf
      %v494 = vrot.slane %v493, 4
      %v495 = vmax.f32 %v493, %v494
      %v496 = vrot.slane %v495, 2
      %v497 = vmax.f32 %v495, %v496
      %v498 = vrot.slane %v497, 1
      %v499 = vmax.f32 %v497, %v498
      %v500 = vsel %vm359, %v283, -inf
      %v501 = vrot.slane %v500, 4
      %v502 = vmax.f32 %v500, %v501
      %v503 = vrot.slane %v502, 2
      %v504 = vmax.f32 %v502, %v503
      %v505 = vrot.slane %v504, 1
      %v506 = vmax.f32 %v504, %v505
      %v507 = vsel %vm359, %v291, -inf
      %v508 = vrot.slane %v507, 4
      %v509 = vmax.f32 %v507, %v508
      %v510 = vrot.slane %v509, 2
      %v511 = vmax.f32 %v509, %v510
      %v512 = vrot.slane %v511, 1
      %v513 = vmax.f32 %v511, %v512
      %v514 = vsel %vm359, %v290, -inf
      %v515 = vrot.slane %v514, 4
      %v516 = vmax.f32 %v514, %v515
      %v517 = vrot.slane %v516, 2
      %v518 = vmax.f32 %v516, %v517
      %v519 = vrot.slane %v518, 1
      %v520 = vmax.f32 %v518, %v519
      %v521 = vsel %vm359, %v292, -inf
      %v522 = vrot.slane %v521, 4
      %v523 = vmax.f32 %v521, %v522
      %v524 = vrot.slane %v523, 2
      %v525 = vmax.f32 %v523, %v524
      %v526 = vrot.slane %v525, 1
      %v527 = vmax.f32 %v525, %v526
      %v528 = vsel %vm359, %v300, -inf
      %v529 = vrot.slane %v528, 4
      %v530 = vmax.f32 %v528, %v529
      %v531 = vrot.slane %v530, 2
      %v532 = vmax.f32 %v530, %v531
      %v533 = vrot.slane %v532, 1
      %v534 = vmax.f32 %v532, %v533
      %v535 = vsel %vm359, %v308, -inf
      %v536 = vrot.slane %v535, 4
      %v537 = vmax.f32 %v535, %v536
      %v538 = vrot.slane %v537, 2
      %v539 = vmax.f32 %v537, %v538
      %v540 = vrot.slane %v539, 1
      %v541 = vmax.f32 %v539, %v540
      %v542 = vsel %vm359, %v307, -inf
      %v543 = vrot.slane %v542, 4
      %v544 = vmax.f32 %v542, %v543
      %v545 = vrot.slane %v544, 2
      %v546 = vmax.f32 %v544, %v545
      %v547 = vrot.slane %v546, 1
      %v548 = vmax.f32 %v546, %v547
      %v549 = vsel %vm359, %v309, -inf
      %v550 = vrot.slane %v549, 4
      %v551 = vmax.f32 %v549, %v550
      %v552 = vrot.slane %v551, 2
      %v553 = vmax.f32 %v551, %v552
      %v554 = vrot.slane %v553, 1
      %v555 = vmax.f32 %v553, %v554
      %v556 = vsel %vm359, %v317, -inf
      %v557 = vrot.slane %v556, 4
      %v558 = vmax.f32 %v556, %v557
      %v559 = vrot.slane %v558, 2
      %v560 = vmax.f32 %v558, %v559
      %v561 = vrot.slane %v560, 1
      %v562 = vmax.f32 %v560, %v561
      %v563 = vsel %vm359, %v325, -inf
      %v564 = vrot.slane %v563, 4
      %v565 = vmax.f32 %v563, %v564
      %v566 = vrot.slane %v565, 2
      %v567 = vmax.f32 %v565, %v566
      %v568 = vrot.slane %v567, 1
      %v569 = vmax.f32 %v567, %v568
      %v570 = vsel %vm359, %v324, -inf
      %v571 = vrot.slane %v570, 4
      %v572 = vmax.f32 %v570, %v571
      %v573 = vrot.slane %v572, 2
      %v574 = vmax.f32 %v572, %v573
      %v575 = vrot.slane %v574, 1
      %v576 = vmax.f32 %v574, %v575
      %v577 = vsel %vm359, %v326, -inf
      %v578 = vrot.slane %v577, 4
      %v579 = vmax.f32 %v577, %v578
      %v580 = vrot.slane %v579, 2
      %v581 = vmax.f32 %v579, %v580
      %v582 = vrot.slane %v581, 1
      %v583 = vmax.f32 %v581, %v582
      %vm584 = vcmask 31744
      %v585 = vsel %vm584, %v366, -inf
      %v586 = vsel %vm584, %v394, -inf
      %v587 = vmax.f32 %v585, %v586
      %v588 = vsel %vm584, %v373, -inf
      %v589 = vsel %vm584, %v401, -inf
      %v590 = vmax.f32 %v588, %v589
      %v591 = vsel %vm584, %v380, -inf
      %v592 = vsel %vm584, %v408, -inf
      %v593 = vmax.f32 %v591, %v592
      %v594 = vsel %vm584, %v387, -inf
      %v595 = vsel %vm584, %v415, -inf
      %v596 = vmax.f32 %v594, %v595
      %v597 = vsel %vm584, %v422, -inf
      %v598 = vsel %vm584, %v450, -inf
      %v599 = vmax.f32 %v597, %v598
      %v600 = vsel %vm584, %v429, -inf
      %v601 = vsel %vm584, %v457, -inf
      %v602 = vmax.f32 %v600, %v601
      %v603 = vsel %vm584, %v436, -inf
      %v604 = vsel %vm584, %v464, -inf
      %v605 = vmax.f32 %v603, %v604
      %v606 = vsel %vm584, %v443, -inf
      %v607 = vsel %vm584, %v471, -inf
      %v608 = vmax.f32 %v606, %v607
      %v609 = vsel %vm584, %v478, -inf
      %v610 = vsel %vm584, %v506, -inf
      %v611 = vmax.f32 %v609, %v610
      %v612 = vsel %vm584, %v485, -inf
      %v613 = vsel %vm584, %v513, -inf
      %v614 = vmax.f32 %v612, %v613
      %v615 = vsel %vm584, %v492, -inf
      %v616 = vsel %vm584, %v520, -inf
      %v617 = vmax.f32 %v615, %v616
      %v618 = vsel %vm584, %v499, -inf
      %v619 = vsel %vm584, %v527, -inf
      %v620 = vmax.f32 %v618, %v619
      %v621 = vsel %vm584, %v534, -inf
      %v622 = vsel %vm584, %v562, -inf
      %v623 = vmax.f32 %v621, %v622
      %v624 = vsel %vm584, %v541, -inf
      %v625 = vsel %vm584, %v569, -inf
      %v626 = vmax.f32 %v624, %v625
      %v627 = vsel %vm584, %v548, -inf
      %v628 = vsel %vm584, %v576, -inf
      %v629 = vmax.f32 %v627, %v628
      %v630 = vsel %vm584, %v555, -inf
      %v631 = vsel %vm584, %v583, -inf
      %v632 = vmax.f32 %v630, %v631
      %vm649 = vcmask 1041409
      %v650 = vsel %vm649, %v590, %v587
      %vm651 = vcmask 1042434
      %v652 = vsel %vm651, %v593, %v650
      %vm653 = vcmask 1043459
      %v654 = vsel %vm653, %v596, %v652
      %v655 = vsel %vm649, %v602, %v599
      %v656 = vsel %vm651, %v605, %v655
      %v657 = vsel %vm653, %v608, %v656
      %v658 = vsel %vm649, %v614, %v611
      %v659 = vsel %vm651, %v617, %v658
      %v660 = vsel %vm653, %v620, %v659
      %v661 = vsel %vm649, %v626, %v623
      %v662 = vsel %vm651, %v629, %v661
      %v663 = vsel %vm653, %v632, %v662
      %vm668 = vcmask 27648
      %669 = vst.msk [vmem:[%s157] sm:$0xf] %vm668, %v654
      %670 = vst.msk [vmem:[%s157 + $0x4] sm:$0xf] %vm668, %v657
      %671 = vst.msk [vmem:[%s157 + $0x8] sm:$0xf] %vm668, %v660
      %672 = vst.msk [vmem:[%s157 + $0xc] sm:$0xf] %vm668, %v663
      %p673 = scmp.lt.s32.totalorder %s16, 1
      %s674 = scalar_select %p673, %s16, 1
      %p675 = scmp.lt.s32.totalorder %s17, 3
      %s676 = scalar_select %p675, %s17, 3
      %s677 = smul.addr %s676, 4
      %s678 = smul.addr %s674, 16
      %s679 = sadd.s32 %s677, %s678
      %s680 = smul.addr %s679, 4
      %s681 = scalar_lea.vmem %s1, %s680
      // Predicated region
      $region25: #{downsampling_layer.5} parent=23 // pred_check
        %p682 = pneg %p72
      $region26: #{downsampling_layer.5} parent=23 // pred_check_branch
        %684 = sbr.rel (%p682) target = $region28
      $region27: #{downsampling_layer.5} parent=23 // pred_region
        _
      $region28: #{downsampling_layer.5} parent=23 // pred_fallthru
        _
    $region24: #{downsampling_layer.5} parent=5 // pred_fallthru
      _
    %p685 = scmp.le.s32.totalorder 2, %s7
    // Predicated region
    $region29: #{downsampling_layer.5} parent=5 // pred_check
      %p686 = pneg %p685
    $region30: #{downsampling_layer.5} parent=5 // pred_check_branch
      %688 = sbr.rel (%p686) target = $region32
    $region31: #{downsampling_layer.5} parent=5 // pred_region
      %s689 = ssub.s32 %s7, 2
      // Predicated region
      $region33: #{downsampling_layer.5} parent=31 // pred_check
        %p690 = pneg %p78
      $region34: #{downsampling_layer.5} parent=31 // pred_check_branch
        %692 = sbr.rel (%p690) target = $region36
      $region35: #{downsampling_layer.5} parent=31 // pred_region
        %p693 = scmp.lt.s32.totalorder %s18, 1
        %s694 = scalar_select %p693, %s18, 1
        %p695 = scmp.lt.s32.totalorder %s19, 3
        %s696 = scalar_select %p695, %s19, 3
        %s697 = smul.addr %s696, 4
        %s698 = smul.addr %s694, 16
        %s699 = sadd.s32 %s697, %s698
        %s700 = smul.addr %s699, 4
        %s701 = scalar_lea.vmem %s1, %s700
      $region36: #{downsampling_layer.5} parent=31 // pred_fallthru
        _
    $region32: #{downsampling_layer.5} parent=5 // pred_fallthru
      _
  $region6: #{downsampling_layer.5} parent=0 // loop_footer
    %s11 = sadd.s32 1, %s7
  $region7: #{downsampling_layer.5} parent=0 // loop_footer_branch
    %6 = sbr.rel target = $region3
  $region8: #{downsampling_layer.5} parent=0 // loop_exit
    _

// kernel: downsampling_layer.7
$region0: #{downsampling_layer.7}
  #allocation0 [shape = 'u32[]', space=smem, size = 0x4, offset = 0x4, fixed_abs, tag = 'smem constant byte address 0x4 - core index']
  #allocation1 [shape = 'u32[144,128]{1,0:T(1,128)}', space=vmem, size = 0x12000, scoped, tag = 'internal scratch']
  %s0 = inlined_call_operand.vmem [shape: f32[2,4,4,4,128], index: 0, kind: input, shape index: {}]
  %s1 = inlined_call_operand.vmem [shape: f32[1,1,1,1,128], index: 1, kind: input, shape index: {}]
  %s2 = inlined_call_operand.vmem [shape: f32[1,1,1,1,128], index: 2, kind: input, shape index: {}]
  %s3 = inlined_call_operand.vmem [shape: f32[2,4,4,4,128], index: 3, kind: output, shape index: {}]
  %s4 = sld [smem:[#allocation0]]
  $region45: #{downsampling_layer.7} parent=0
    _
  %s6 = ssub.s32 1, %s4
  %s7 = scalar_select 0, %s6, %s4
  loop: start=0, step=1, limit=10
  $region2: #{downsampling_layer.7} parent=0 // loop_pre_header
    _
  $region3: #{downsampling_layer.7} parent=0 // loop_header
    %s9 = sphi 0, %s13
    %p10 = scmp.ge.s32.totalorder %s9, 10
    %s16 = sphi 0, %s28
    %s17 = sphi 0, %s24
    %s18 = sphi 0, %s16
    %s19 = sphi 0, %s17
    %s20 = sphi 0, %s18
    %s21 = sphi 0, %s19
    %s33 = sphi 0, %s35
    %s36 = sphi 0, %s33
    %s37 = sphi 0, %s36
    %s53 = sphi 0, %s37
    %s57 = sphi 0, %s57
    %s59 = sphi 0, %s57
    %s60 = sphi 0, %s59
    %s74 = sphi 0, %s60
    %s78 = sphi 0, %s78
    %s80 = sphi 0, %s78
    %s81 = sphi 0, %s80
    %s95 = sphi 0, %s81
    %s103 = sphi 0, %s105
    %s106 = sphi 0, %s103
    %s107 = sphi 0, %s106
    %s123 = sphi 0, %s107
  $region4: #{downsampling_layer.7} parent=0 // loop_header_branch
    %12 = sbr.rel (%p10) target = $region8
  $region5: #{downsampling_layer.7} parent=0 // loop_body
    %s14 = ssub.s32 %s9, 1
    %s15 = ssub.s32 %s9, 2
    %s22 = sadd.s32 1, %s17
    %p23 = scmp.ge.s32.totalorder %s22, 4
    %s24 = scalar_select %p23, 0, %s22
    %s25 = sadd.s32 1, %s16
    %s26 = scalar_select %p23, %s25, %s16
    %p27 = scmp.ge.s32.totalorder %s26, 2
    %s28 = scalar_select %p27, 0, %s26
    %s29 = ssub.s32 %s16, %s28
    %s30 = ssub.s32 %s17, %s24
    %s31 = sor.u32 %s29, %s30
    %p32 = scmp.eq.s32.totalorder %s31, 0
    %s34 = sadd.s32 %s33, 1
    %s35 = scalar_select %p32, %s33, %s34
    %p38 = pneg %p32
    %p39 = scmp.eq.s32.totalorder %s9, 7
    %p40 = por %p38, %p39
    %p41 = scmp.ne.s32.totalorder %s33, %s36
    %p42 = scmp.eq.s32.totalorder %s9, 0
    %p43 = por %p41, %p42
    %p44 = scmp.ne.s32.totalorder %s33, %s36
    %p45 = scmp.eq.s32.totalorder %s14, 7
    %p46 = por %p44, %p45
    %p47 = scmp.ne.s32.totalorder %s36, %s37
    %p48 = scmp.eq.s32.totalorder %s14, 0
    %p49 = por %p47, %p48
    %p50 = scmp.ne.s32.totalorder %s36, %s37
    %p51 = scmp.eq.s32.totalorder %s15, 7
    %p52 = por %p50, %p51
    %p54 = scmp.ne.s32.totalorder %s37, %s53
    %p55 = scmp.eq.s32.totalorder %s15, 0
    %p56 = por %p54, %p55
    %s58 = sadd.s32 %s57, 1
    %p61 = scmp.eq.s32.totalorder %s9, 7
    %p62 = scmp.ne.s32.totalorder %s57, %s59
    %p63 = scmp.eq.s32.totalorder %s9, 0
    %p64 = por %p62, %p63
    %p65 = scmp.ne.s32.totalorder %s57, %s59
    %p66 = scmp.eq.s32.totalorder %s14, 7
    %p67 = por %p65, %p66
    %p68 = scmp.ne.s32.totalorder %s59, %s60
    %p69 = scmp.eq.s32.totalorder %s14, 0
    %p70 = por %p68, %p69
    %p71 = scmp.ne.s32.totalorder %s59, %s60
    %p72 = scmp.eq.s32.totalorder %s15, 7
    %p73 = por %p71, %p72
    %p75 = scmp.ne.s32.totalorder %s60, %s74
    %p76 = scmp.eq.s32.totalorder %s15, 0
    %p77 = por %p75, %p76
    %s79 = sadd.s32 %s78, 1
    %p82 = scmp.eq.s32.totalorder %s9, 7
    %p83 = scmp.ne.s32.totalorder %s78, %s80
    %p84 = scmp.eq.s32.totalorder %s9, 0
    %p85 = por %p83, %p84
    %p86 = scmp.ne.s32.totalorder %s78, %s80
    %p87 = scmp.eq.s32.totalorder %s14, 7
    %p88 = por %p86, %p87
    %p89 = scmp.ne.s32.totalorder %s80, %s81
    %p90 = scmp.eq.s32.totalorder %s14, 0
    %p91 = por %p89, %p90
    %p92 = scmp.ne.s32.totalorder %s80, %s81
    %p93 = scmp.eq.s32.totalorder %s15, 7
    %p94 = por %p92, %p93
    %p96 = scmp.ne.s32.totalorder %s81, %s95
    %p97 = scmp.eq.s32.totalorder %s15, 0
    %p98 = por %p96, %p97
    %s99 = ssub.s32 %s16, %s28
    %s100 = ssub.s32 %s17, %s24
    %s101 = sor.u32 %s99, %s100
    %p102 = scmp.eq.s32.totalorder %s101, 0
    %s104 = sadd.s32 %s103, 1
    %s105 = scalar_select %p102, %s103, %s104
    %p108 = pneg %p102
    %p109 = scmp.eq.s32.totalorder %s9, 7
    %p110 = por %p108, %p109
    %p111 = scmp.ne.s32.totalorder %s103, %s106
    %p112 = scmp.eq.s32.totalorder %s9, 0
    %p113 = por %p111, %p112
    %p114 = scmp.ne.s32.totalorder %s103, %s106
    %p115 = scmp.eq.s32.totalorder %s14, 7
    %p116 = por %p114, %p115
    %p117 = scmp.ne.s32.totalorder %s106, %s107
    %p118 = scmp.eq.s32.totalorder %s14, 0
    %p119 = por %p117, %p118
    %p120 = scmp.ne.s32.totalorder %s106, %s107
    %p121 = scmp.eq.s32.totalorder %s15, 7
    %p122 = por %p120, %p121
    %p124 = scmp.ne.s32.totalorder %s107, %s123
    %p125 = scmp.eq.s32.totalorder %s15, 0
    %p126 = por %p124, %p125
    %p127 = scmp.le.s32.totalorder 1, %s9
    %p128 = scmp.lt.s32.totalorder %s9, 9
    %p129 = pnand %p127, %p128
    %p130 = pneg %p129
    // Predicated region
    $region9: #{downsampling_layer.7} parent=5 // pred_check
      _
    $region10: #{downsampling_layer.7} parent=5 // pred_check_branch
      %132 = sbr.rel (%p129) target = $region12
    $region11: #{downsampling_layer.7} parent=5 // pred_region
      %s133 = ssub.s32 %s9, 1
      // Predicated region
      $region13: #{downsampling_layer.7} parent=11 // pred_check
        %p134 = pneg %p70
      $region14: #{downsampling_layer.7} parent=11 // pred_check_branch
        %136 = sbr.rel (%p134) target = $region16
      $region15: #{downsampling_layer.7} parent=11 // pred_region
        _
      $region16: #{downsampling_layer.7} parent=11 // pred_fallthru
        _
      // Predicated region
      $region17: #{downsampling_layer.7} parent=11 // pred_check
        %p137 = pneg %p91
      $region18: #{downsampling_layer.7} parent=11 // pred_check_branch
        %139 = sbr.rel (%p137) target = $region20
      $region19: #{downsampling_layer.7} parent=11 // pred_region
        _
      $region20: #{downsampling_layer.7} parent=11 // pred_fallthru
        _
    $region12: #{downsampling_layer.7} parent=5 // pred_fallthru
      _
    %p140 = scmp.lt.s32.totalorder %s9, 8
    // Predicated region
    $region21: #{downsampling_layer.7} parent=5 // pred_check
      %p141 = pneg %p140
    $region22: #{downsampling_layer.7} parent=5 // pred_check_branch
      %143 = sbr.rel (%p141) target = $region24
    $region23: #{downsampling_layer.7} parent=5 // pred_region
      // Predicated region
      $region25: #{downsampling_layer.7} parent=23 // pred_check
        %p144 = pneg %p43
      $region26: #{downsampling_layer.7} parent=23 // pred_check_branch
        %146 = sbr.rel (%p144) target = $region28
      $region27: #{downsampling_layer.7} parent=23 // pred_region
        %p147 = scmp.lt.s32.totalorder %s16, 1
        %s148 = scalar_select %p147, %s16, 1
        %p149 = scmp.lt.s32.totalorder %s17, 3
        %s150 = scalar_select %p149, %s17, 3
        %s151 = smul.addr %s150, 4
        %s152 = smul.addr %s148, 16
        %s153 = sadd.s32 %s151, %s152
        %s154 = smul.addr %s153, 4
        %s155 = scalar_lea.vmem %s0, %s154
      $region28: #{downsampling_layer.7} parent=23 // pred_fallthru
        _
    $region24: #{downsampling_layer.7} parent=5 // pred_fallthru
      _
    %p156 = scmp.le.s32.totalorder 1, %s9
    %p157 = scmp.lt.s32.totalorder %s9, 9
    %p158 = pnand %p156, %p157
    %p159 = pneg %p158
    // Predicated region
    $region29: #{downsampling_layer.7} parent=5 // pred_check
      _
    $region30: #{downsampling_layer.7} parent=5 // pred_check_branch
      %161 = sbr.rel (%p158) target = $region32
    $region31: #{downsampling_layer.7} parent=5 // pred_region
      %s162 = ssub.s32 %s9, 1
      %p163 = scmp.lt.s32.totalorder %s18, 1
      %s164 = scalar_select %p163, %s18, 1
      %p165 = scmp.lt.s32.totalorder %s19, 3
      %s166 = scalar_select %p165, %s19, 3
      %s167 = smul.addr %s166, 4
      %s168 = smul.addr %s164, 16
      %s169 = sadd.s32 %s167, %s168
      %s170 = smul.addr %s169, 4
      %s171 = scalar_lea.vmem %s0, %s170
      %p172 = pneg %p49
      %p173 = pneg %p46
      %p174 = pneg %p70
      %p175 = pneg %p67
      %p176 = pneg %p91
      %p177 = pneg %p88
      %p178 = pneg %p119
      %p179 = pneg %p116
      %p180 = scmp.lt.s32.totalorder %s18, 1
      %s181 = scalar_select %p180, %s18, 1
      %p182 = scmp.lt.s32.totalorder %s19, 3
      %s183 = scalar_select %p182, %s19, 3
      %s184 = smul.addr %s183, 4
      %s185 = smul.addr %s181, 16
      %s186 = sadd.s32 %s184, %s185
      %s187 = smul.addr %s186, 4
      %s188 = scalar_lea.vmem %s3, %s187
      %p189 = scmp.lt.s32.totalorder %s18, 1
      %s190 = scalar_select %p189, %s18, 1
      %p191 = scmp.lt.s32.totalorder %s19, 3
      %s192 = scalar_select %p191, %s19, 3
      %s193 = smul.addr %s192, 4
      %s194 = smul.addr %s190, 16
      %s195 = sadd.s32 %s193, %s194
      %s196 = smul.addr %s195, 4
      %s197 = scalar_lea.vmem %s0, %s196
      %p198 = scmp.lt.s32.totalorder %s18, 1
      %s199 = scalar_select %p198, %s18, 1
      %p200 = scmp.lt.s32.totalorder %s19, 3
      %s201 = scalar_select %p200, %s19, 3
      %s202 = smul.addr %s201, 4
      %s203 = smul.addr %s199, 16
      %s204 = sadd.s32 %s202, %s203
      %s205 = smul.addr %s204, 4
      %s206 = scalar_lea.vmem %s3, %s205
      %v207 = vld [vmem:[%s197] sm:$0xf]
      %v208 = vld [vmem:[%s197 + $0x4] sm:$0xf]
      %v209 = vld [vmem:[%s197 + $0x8] sm:$0xf]
      %v210 = vld [vmem:[%s197 + $0xc] sm:$0xf]
      %v211 = vld [vmem:[%s1] sm:$0x1]
      %v213 = vlaneseq
      %v214 = vshrl.u32 %v213, 7
      %v215 = vsub.s32 0, %v214
      %v216 = vrot.slane %v211, %v215
      %v218 = vmul.f32 %v207, %v216
      %v219 = vmul.f32 %v208, %v216
      %v220 = vmul.f32 %v209, %v216
      %v221 = vmul.f32 %v210, %v216
      %v222 = vld [vmem:[%s2] sm:$0x1]
      %v224 = vlaneseq
      %v225 = vshrl.u32 %v224, 7
      %v226 = vsub.s32 0, %v225
      %v227 = vrot.slane %v222, %v226
      %v229 = vadd.f32 %v218, %v227
      %v230 = vadd.f32 %v219, %v227
      %v231 = vadd.f32 %v220, %v227
      %v232 = vadd.f32 %v221, %v227
      %v233 = vmax.f32 %v229, 0.0
      %v234 = vmax.f32 %v230, 0.0
      %v235 = vmax.f32 %v231, 0.0
      %v236 = vmax.f32 %v232, 0.0
      %237 = vst [vmem:[%s206] sm:$0xf] %v233
      %238 = vst [vmem:[%s206 + $0x4] sm:$0xf] %v234
      %239 = vst [vmem:[%s206 + $0x8] sm:$0xf] %v235
      %240 = vst [vmem:[%s206 + $0xc] sm:$0xf] %v236
      %p241 = scmp.lt.s32.totalorder %s18, 1
      %s242 = scalar_select %p241, %s18, 1
      %p243 = scmp.lt.s32.totalorder %s19, 3
      %s244 = scalar_select %p243, %s19, 3
      %s245 = smul.addr %s244, 4
      %s246 = smul.addr %s242, 16
      %s247 = sadd.s32 %s245, %s246
      %s248 = smul.addr %s247, 4
      %s249 = scalar_lea.vmem %s3, %s248
      // Predicated region
      $region33: #{downsampling_layer.7} parent=31 // pred_check
        %p250 = pneg %p116
      $region34: #{downsampling_layer.7} parent=31 // pred_check_branch
        %252 = sbr.rel (%p250) target = $region36
      $region35: #{downsampling_layer.7} parent=31 // pred_region
        _
      $region36: #{downsampling_layer.7} parent=31 // pred_fallthru
        _
    $region32: #{downsampling_layer.7} parent=5 // pred_fallthru
      _
    %p253 = scmp.le.s32.totalorder 2, %s9
    // Predicated region
    $region37: #{downsampling_layer.7} parent=5 // pred_check
      %p254 = pneg %p253
    $region38: #{downsampling_layer.7} parent=5 // pred_check_branch
      %256 = sbr.rel (%p254) target = $region40
    $region39: #{downsampling_layer.7} parent=5 // pred_region
      %s257 = ssub.s32 %s9, 2
      // Predicated region
      $region41: #{downsampling_layer.7} parent=39 // pred_check
        %p258 = pneg %p122
      $region42: #{downsampling_layer.7} parent=39 // pred_check_branch
        %260 = sbr.rel (%p258) target = $region44
      $region43: #{downsampling_layer.7} parent=39 // pred_region
        %p261 = scmp.lt.s32.totalorder %s20, 1
        %s262 = scalar_select %p261, %s20, 1
        %p263 = scmp.lt.s32.totalorder %s21, 3
        %s264 = scalar_select %p263, %s21, 3
        %s265 = smul.addr %s264, 4
        %s266 = smul.addr %s262, 16
        %s267 = sadd.s32 %s265, %s266
        %s268 = smul.addr %s267, 4
        %s269 = scalar_lea.vmem %s3, %s268
      $region44: #{downsampling_layer.7} parent=39 // pred_fallthru
        _
    $region40: #{downsampling_layer.7} parent=5 // pred_fallthru
      _
  $region6: #{downsampling_layer.7} parent=0 // loop_footer
    %s13 = sadd.s32 1, %s9
  $region7: #{downsampling_layer.7} parent=0 // loop_footer_branch
    %8 = sbr.rel target = $region3
  $region8: #{downsampling_layer.7} parent=0 // loop_exit
    _

// kernel: downsampling_layer.6
$region0: #{downsampling_layer.6}
  #allocation0 [shape = 'u32[]', space=smem, size = 0x4, offset = 0x4, fixed_abs, tag = 'smem constant byte address 0x4 - core index']
  #allocation1 [shape = 'u32[144,128]{1,0:T(1,128)}', space=vmem, size = 0x12000, scoped, tag = 'internal scratch']
  %s0 = inlined_call_operand.vmem [shape: f32[2,6,6,6,4], index: 0, kind: input, shape index: {}, may-alias: {0,1,2}]
  %s1 = inlined_call_operand.vmem [shape: f32[2,6,6,6,4], index: 1, kind: input, shape index: {}, may-alias: {0,1,2}]
  %s2 = inlined_call_operand.vmem [shape: f32[2,6,6,6,4], index: 2, kind: input, shape index: {}, may-alias: {0,1,2}]
  %s3 = inlined_call_operand.vmem [shape: f32[108,128], index: 3, kind: input, shape index: {}]
  %s4 = inlined_call_operand.vmem [shape: f32[2,4,4,4,128], index: 4, kind: output, shape index: {0}]
  %s5 = inlined_call_operand.vmem [shape: f32[2,4,2,128], index: 5, kind: output, shape index: {1}]
  %6 = xla_tuple %s4, %s5
  %s7 = sld [smem:[#allocation0]]
  $region57: #{downsampling_layer.6} parent=0
    _
  %s9 = ssub.s32 1, %s7
  %s10 = scalar_select 0, %s9, %s7
  loop: start=0, step=1, limit=10
  $region2: #{downsampling_layer.6} parent=0 // loop_pre_header
    _
  $region3: #{downsampling_layer.6} parent=0 // loop_header
    %s12 = sphi 0, %s16
    %p13 = scmp.ge.s32.totalorder %s12, 10
    %s19 = sphi 0, %s31
    %s20 = sphi 0, %s27
    %s21 = sphi 0, %s19
    %s22 = sphi 0, %s20
    %s23 = sphi 0, %s21
    %s24 = sphi 0, %s22
    %s36 = sphi 0, %s38
    %s39 = sphi 0, %s36
    %s40 = sphi 0, %s39
    %s56 = sphi 0, %s40
    %s66 = sphi 0, %s68
    %s69 = sphi 0, %s66
    %s70 = sphi 0, %s69
    %s86 = sphi 0, %s70
    %s96 = sphi 0, %s98
    %s99 = sphi 0, %s96
    %s100 = sphi 0, %s99
    %s116 = sphi 0, %s100
    %s120 = sphi 0, %s120
    %s122 = sphi 0, %s120
    %s123 = sphi 0, %s122
    %s137 = sphi 0, %s123
    %s145 = sphi 0, %s147
    %s148 = sphi 0, %s145
    %s149 = sphi 0, %s148
    %s165 = sphi 0, %s149
    %s173 = sphi 0, %s175
    %s176 = sphi 0, %s173
    %s177 = sphi 0, %s176
    %s193 = sphi 0, %s177
  $region4: #{downsampling_layer.6} parent=0 // loop_header_branch
    %15 = sbr.rel (%p13) target = $region8
  $region5: #{downsampling_layer.6} parent=0 // loop_body
    %s17 = ssub.s32 %s12, 1
    %s18 = ssub.s32 %s12, 2
    %s25 = sadd.s32 1, %s20
    %p26 = scmp.ge.s32.totalorder %s25, 4
    %s27 = scalar_select %p26, 0, %s25
    %s28 = sadd.s32 1, %s19
    %s29 = scalar_select %p26, %s28, %s19
    %p30 = scmp.ge.s32.totalorder %s29, 2
    %s31 = scalar_select %p30, 0, %s29
    %s32 = ssub.s32 %s19, %s31
    %s33 = ssub.s32 %s20, %s27
    %s34 = sor.u32 %s32, %s33
    %p35 = scmp.eq.s32.totalorder %s34, 0
    %s37 = sadd.s32 %s36, 1
    %s38 = scalar_select %p35, %s36, %s37
    %p41 = pneg %p35
    %p42 = scmp.eq.s32.totalorder %s12, 7
    %p43 = por %p41, %p42
    %p44 = scmp.ne.s32.totalorder %s36, %s39
    %p45 = scmp.eq.s32.totalorder %s12, 0
    %p46 = por %p44, %p45
    %p47 = scmp.ne.s32.totalorder %s36, %s39
    %p48 = scmp.eq.s32.totalorder %s17, 7
    %p49 = por %p47, %p48
    %p50 = scmp.ne.s32.totalorder %s39, %s40
    %p51 = scmp.eq.s32.totalorder %s17, 0
    %p52 = por %p50, %p51
    %p53 = scmp.ne.s32.totalorder %s39, %s40
    %p54 = scmp.eq.s32.totalorder %s18, 7
    %p55 = por %p53, %p54
    %p57 = scmp.ne.s32.totalorder %s40, %s56
    %p58 = scmp.eq.s32.totalorder %s18, 0
    %p59 = por %p57, %p58
    %s60 = sadd.s32 %s20, 1
    %s61 = sadd.s32 %s27, 1
    %s62 = ssub.s32 %s19, %s31
    %s63 = ssub.s32 %s60, %s61
    %s64 = sor.u32 %s62, %s63
    %p65 = scmp.eq.s32.totalorder %s64, 0
    %s67 = sadd.s32 %s66, 1
    %s68 = scalar_select %p65, %s66, %s67
    %p71 = pneg %p65
    %p72 = scmp.eq.s32.totalorder %s12, 7
    %p73 = por %p71, %p72
    %p74 = scmp.ne.s32.totalorder %s66, %s69
    %p75 = scmp.eq.s32.totalorder %s12, 0
    %p76 = por %p74, %p75
    %p77 = scmp.ne.s32.totalorder %s66, %s69
    %p78 = scmp.eq.s32.totalorder %s17, 7
    %p79 = por %p77, %p78
    %p80 = scmp.ne.s32.totalorder %s69, %s70
    %p81 = scmp.eq.s32.totalorder %s17, 0
    %p82 = por %p80, %p81
    %p83 = scmp.ne.s32.totalorder %s69, %s70
    %p84 = scmp.eq.s32.totalorder %s18, 7
    %p85 = por %p83, %p84
    %p87 = scmp.ne.s32.totalorder %s70, %s86
    %p88 = scmp.eq.s32.totalorder %s18, 0
    %p89 = por %p87, %p88
    %s90 = sadd.s32 %s20, 2
    %s91 = sadd.s32 %s27, 2
    %s92 = ssub.s32 %s19, %s31
    %s93 = ssub.s32 %s90, %s91
    %s94 = sor.u32 %s92, %s93
    %p95 = scmp.eq.s32.totalorder %s94, 0
    %s97 = sadd.s32 %s96, 1
    %s98 = scalar_select %p95, %s96, %s97
    %p101 = pneg %p95
    %p102 = scmp.eq.s32.totalorder %s12, 7
    %p103 = por %p101, %p102
    %p104 = scmp.ne.s32.totalorder %s96, %s99
    %p105 = scmp.eq.s32.totalorder %s12, 0
    %p106 = por %p104, %p105
    %p107 = scmp.ne.s32.totalorder %s96, %s99
    %p108 = scmp.eq.s32.totalorder %s17, 7
    %p109 = por %p107, %p108
    %p110 = scmp.ne.s32.totalorder %s99, %s100
    %p111 = scmp.eq.s32.totalorder %s17, 0
    %p112 = por %p110, %p111
    %p113 = scmp.ne.s32.totalorder %s99, %s100
    %p114 = scmp.eq.s32.totalorder %s18, 7
    %p115 = por %p113, %p114
    %p117 = scmp.ne.s32.totalorder %s100, %s116
    %p118 = scmp.eq.s32.totalorder %s18, 0
    %p119 = por %p117, %p118
    %s121 = sadd.s32 %s120, 1
    %p124 = scmp.eq.s32.totalorder %s12, 7
    %p125 = scmp.ne.s32.totalorder %s120, %s122
    %p126 = scmp.eq.s32.totalorder %s12, 0
    %p127 = por %p125, %p126
    %p128 = scmp.ne.s32.totalorder %s120, %s122
    %p129 = scmp.eq.s32.totalorder %s17, 7
    %p130 = por %p128, %p129
    %p131 = scmp.ne.s32.totalorder %s122, %s123
    %p132 = scmp.eq.s32.totalorder %s17, 0
    %p133 = por %p131, %p132
    %p134 = scmp.ne.s32.totalorder %s122, %s123
    %p135 = scmp.eq.s32.totalorder %s18, 7
    %p136 = por %p134, %p135
    %p138 = scmp.ne.s32.totalorder %s123, %s137
    %p139 = scmp.eq.s32.totalorder %s18, 0
    %p140 = por %p138, %p139
    %s141 = ssub.s32 %s19, %s31
    %s142 = ssub.s32 %s20, %s27
    %s143 = sor.u32 %s141, %s142
    %p144 = scmp.eq.s32.totalorder %s143, 0
    %s146 = sadd.s32 %s145, 1
    %s147 = scalar_select %p144, %s145, %s146
    %p150 = pneg %p144
    %p151 = scmp.eq.s32.totalorder %s12, 7
    %p152 = por %p150, %p151
    %p153 = scmp.ne.s32.totalorder %s145, %s148
    %p154 = scmp.eq.s32.totalorder %s12, 0
    %p155 = por %p153, %p154
    %p156 = scmp.ne.s32.totalorder %s145, %s148
    %p157 = scmp.eq.s32.totalorder %s17, 7
    %p158 = por %p156, %p157
    %p159 = scmp.ne.s32.totalorder %s148, %s149
    %p160 = scmp.eq.s32.totalorder %s17, 0
    %p161 = por %p159, %p160
    %p162 = scmp.ne.s32.totalorder %s148, %s149
    %p163 = scmp.eq.s32.totalorder %s18, 7
    %p164 = por %p162, %p163
    %p166 = scmp.ne.s32.totalorder %s149, %s165
    %p167 = scmp.eq.s32.totalorder %s18, 0
    %p168 = por %p166, %p167
    %s169 = ssub.s32 %s19, %s31
    %s170 = ssub.s32 %s20, %s27
    %s171 = sor.u32 %s169, %s170
    %p172 = scmp.eq.s32.totalorder %s171, 0
    %s174 = sadd.s32 %s173, 1
    %s175 = scalar_select %p172, %s173, %s174
    %p178 = pneg %p172
    %p179 = scmp.eq.s32.totalorder %s12, 7
    %p180 = por %p178, %p179
    %p181 = scmp.ne.s32.totalorder %s173, %s176
    %p182 = scmp.eq.s32.totalorder %s12, 0
    %p183 = por %p181, %p182
    %p184 = scmp.ne.s32.totalorder %s173, %s176
    %p185 = scmp.eq.s32.totalorder %s17, 7
    %p186 = por %p184, %p185
    %p187 = scmp.ne.s32.totalorder %s176, %s177
    %p188 = scmp.eq.s32.totalorder %s17, 0
    %p189 = por %p187, %p188
    %p190 = scmp.ne.s32.totalorder %s176, %s177
    %p191 = scmp.eq.s32.totalorder %s18, 7
    %p192 = por %p190, %p191
    %p194 = scmp.ne.s32.totalorder %s177, %s193
    %p195 = scmp.eq.s32.totalorder %s18, 0
    %p196 = por %p194, %p195
    %p197 = scmp.le.s32.totalorder 1, %s12
    %p198 = scmp.lt.s32.totalorder %s12, 9
    %p199 = pnand %p197, %p198
    %p200 = pneg %p199
    // Predicated region
    $region9: #{downsampling_layer.6} parent=5 // pred_check
      _
    $region10: #{downsampling_layer.6} parent=5 // pred_check_branch
      %202 = sbr.rel (%p199) target = $region12
    $region11: #{downsampling_layer.6} parent=5 // pred_region
      %s203 = ssub.s32 %s12, 1
      // Predicated region
      $region13: #{downsampling_layer.6} parent=11 // pred_check
        %p204 = pneg %p133
      $region14: #{downsampling_layer.6} parent=11 // pred_check_branch
        %206 = sbr.rel (%p204) target = $region16
      $region15: #{downsampling_layer.6} parent=11 // pred_region
        _
      $region16: #{downsampling_layer.6} parent=11 // pred_fallthru
        _
    $region12: #{downsampling_layer.6} parent=5 // pred_fallthru
      _
    %p207 = scmp.lt.s32.totalorder %s12, 8
    // Predicated region
    $region17: #{downsampling_layer.6} parent=5 // pred_check
      %p208 = pneg %p207
    $region18: #{downsampling_layer.6} parent=5 // pred_check_branch
      %210 = sbr.rel (%p208) target = $region20
    $region19: #{downsampling_layer.6} parent=5 // pred_region
      // Predicated region
      $region21: #{downsampling_layer.6} parent=19 // pred_check
        %p211 = pneg %p46
      $region22: #{downsampling_layer.6} parent=19 // pred_check_branch
        %213 = sbr.rel (%p211) target = $region24
      $region23: #{downsampling_layer.6} parent=19 // pred_region
        %p214 = scmp.lt.s32.totalorder %s19, 1
        %s215 = scalar_select %p214, %s19, 1
        %p216 = scmp.lt.s32.totalorder %s20, 5
        %s217 = scalar_select %p216, %s20, 5
        %s218 = smul.addr %s217, 6
        %s219 = smul.addr %s215, 36
        %s220 = sadd.s32 %s218, %s219
        %s221 = smul.addr %s220, 8
        %s222 = scalar_lea.vmem %s0, %s221
      $region24: #{downsampling_layer.6} parent=19 // pred_fallthru
        _
      // Predicated region
      $region25: #{downsampling_layer.6} parent=19 // pred_check
        %p223 = pneg %p76
      $region26: #{downsampling_layer.6} parent=19 // pred_check_branch
        %225 = sbr.rel (%p223) target = $region28
      $region27: #{downsampling_layer.6} parent=19 // pred_region
        %s226 = sadd.s32 %s20, 1
        %p227 = scmp.lt.s32.totalorder %s19, 1
        %s228 = scalar_select %p227, %s19, 1
        %p229 = scmp.lt.s32.totalorder %s226, 5
        %s230 = scalar_select %p229, %s226, 5
        %s231 = smul.addr %s230, 6
        %s232 = smul.addr %s228, 36
        %s233 = sadd.s32 %s231, %s232
        %s234 = smul.addr %s233, 8
        %s235 = scalar_lea.vmem %s1, %s234
        %s236 = sadd.s32 %s20, 1
      $region28: #{downsampling_layer.6} parent=19 // pred_fallthru
        _
      // Predicated region
      $region29: #{downsampling_layer.6} parent=19 // pred_check
        %p237 = pneg %p106
      $region30: #{downsampling_layer.6} parent=19 // pred_check_branch
        %239 = sbr.rel (%p237) target = $region32
      $region31: #{downsampling_layer.6} parent=19 // pred_region
        %s240 = sadd.s32 %s20, 2
        %p241 = scmp.lt.s32.totalorder %s19, 1
        %s242 = scalar_select %p241, %s19, 1
        %p243 = scmp.lt.s32.totalorder %s240, 5
        %s244 = scalar_select %p243, %s240, 5
        %s245 = smul.addr %s244, 6
        %s246 = smul.addr %s242, 36
        %s247 = sadd.s32 %s245, %s246
        %s248 = smul.addr %s247, 8
        %s249 = scalar_lea.vmem %s2, %s248
        %s250 = sadd.s32 %s20, 2
      $region32: #{downsampling_layer.6} parent=19 // pred_fallthru
        _
    $region20: #{downsampling_layer.6} parent=5 // pred_fallthru
      _
    %p251 = scmp.le.s32.totalorder 1, %s12
    %p252 = scmp.lt.s32.totalorder %s12, 9
    %p253 = pnand %p251, %p252
    %p254 = pneg %p253
    // Predicated region
    $region33: #{downsampling_layer.6} parent=5 // pred_check
      _
    $region34: #{downsampling_layer.6} parent=5 // pred_check_branch
      %256 = sbr.rel (%p253) target = $region36
    $region35: #{downsampling_layer.6} parent=5 // pred_region
      %s257 = ssub.s32 %s12, 1
      %p258 = scmp.lt.s32.totalorder %s21, 1
      %s259 = scalar_select %p258, %s21, 1
      %p260 = scmp.lt.s32.totalorder %s22, 5
      %s261 = scalar_select %p260, %s22, 5
      %s262 = smul.addr %s261, 6
      %s263 = smul.addr %s259, 36
      %s264 = sadd.s32 %s262, %s263
      %s265 = smul.addr %s264, 8
      %s266 = scalar_lea.vmem %s0, %s265
      %p267 = pneg %p52
      %p268 = pneg %p49
      %s269 = sadd.s32 %s22, 1
      %p270 = scmp.lt.s32.totalorder %s21, 1
      %s271 = scalar_select %p270, %s21, 1
      %p272 = scmp.lt.s32.totalorder %s269, 5
      %s273 = scalar_select %p272, %s269, 5
      %s274 = smul.addr %s273, 6
      %s275 = smul.addr %s271, 36
      %s276 = sadd.s32 %s274, %s275
      %s277 = smul.addr %s276, 8
      %s278 = scalar_lea.vmem %s1, %s277
      %p279 = pneg %p82
      %p280 = pneg %p79
      %s281 = sadd.s32 %s22, 2
      %p282 = scmp.lt.s32.totalorder %s21, 1
      %s283 = scalar_select %p282, %s21, 1
      %p284 = scmp.lt.s32.totalorder %s281, 5
      %s285 = scalar_select %p284, %s281, 5
      %s286 = smul.addr %s285, 6
      %s287 = smul.addr %s283, 36
      %s288 = sadd.s32 %s286, %s287
      %s289 = smul.addr %s288, 8
      %s290 = scalar_lea.vmem %s2, %s289
      %p291 = pneg %p112
      %p292 = pneg %p109
      %p293 = pneg %p133
      %p294 = pneg %p130
      %p295 = pneg %p161
      %p296 = pneg %p158
      %p297 = scmp.lt.s32.totalorder %s21, 1
      %s298 = scalar_select %p297, %s21, 1
      %p299 = scmp.lt.s32.totalorder %s22, 3
      %s300 = scalar_select %p299, %s22, 3
      %s301 = smul.addr %s300, 4
      %s302 = smul.addr %s298, 16
      %s303 = sadd.s32 %s301, %s302
      %s304 = smul.addr %s303, 4
      %s305 = scalar_lea.vmem %s4, %s304
      %p306 = pneg %p189
      %p307 = pneg %p186
      %p308 = scmp.lt.s32.totalorder %s21, 1
      %s309 = scalar_select %p308, %s21, 1
      %p310 = scmp.lt.s32.totalorder %s22, 3
      %s311 = scalar_select %p310, %s22, 3
      %s312 = smul.addr %s309, 4
      %s313 = sadd.s32 %s311, %s312
      %s314 = smul.addr %s313, 2
      %s315 = scalar_lea.vmem %s5, %s314
      %p316 = scmp.lt.s32.totalorder %s21, 1
      %s317 = scalar_select %p316, %s21, 1
      %p318 = scmp.lt.s32.totalorder %s22, 5
      %s319 = scalar_select %p318, %s22, 5
      %s320 = smul.addr %s319, 6
      %s321 = smul.addr %s317, 36
      %s322 = sadd.s32 %s320, %s321
      %s323 = smul.addr %s322, 8
      %s324 = scalar_lea.vmem %s0, %s323
      %s325 = sadd.s32 %s22, 1
      %p326 = scmp.lt.s32.totalorder %s21, 1
      %s327 = scalar_select %p326, %s21, 1
      %p328 = scmp.lt.s32.totalorder %s325, 5
      %s329 = scalar_select %p328, %s325, 5
      %s330 = smul.addr %s329, 6
      %s331 = smul.addr %s327, 36
      %s332 = sadd.s32 %s330, %s331
      %s333 = smul.addr %s332, 8
      %s334 = scalar_lea.vmem %s1, %s333
      %s335 = sadd.s32 %s22, 1
      %s336 = sadd.s32 %s22, 2
      %p337 = scmp.lt.s32.totalorder %s21, 1
      %s338 = scalar_select %p337, %s21, 1
      %p339 = scmp.lt.s32.totalorder %s336, 5
      %s340 = scalar_select %p339, %s336, 5
      %s341 = smul.addr %s340, 6
      %s342 = smul.addr %s338, 36
      %s343 = sadd.s32 %s341, %s342
      %s344 = smul.addr %s343, 8
      %s345 = scalar_lea.vmem %s2, %s344
      %s346 = sadd.s32 %s22, 2
      %p347 = scmp.lt.s32.totalorder %s21, 1
      %s348 = scalar_select %p347, %s21, 1
      %p349 = scmp.lt.s32.totalorder %s22, 3
      %s350 = scalar_select %p349, %s22, 3
      %s351 = smul.addr %s350, 4
      %s352 = smul.addr %s348, 16
      %s353 = sadd.s32 %s351, %s352
      %s354 = smul.addr %s353, 4
      %s355 = scalar_lea.vmem %s4, %s354
      %p356 = scmp.lt.s32.totalorder %s21, 1
      %s357 = scalar_select %p356, %s21, 1
      %p358 = scmp.lt.s32.totalorder %s22, 3
      %s359 = scalar_select %p358, %s22, 3
      %s360 = smul.addr %s357, 4
      %s361 = sadd.s32 %s359, %s360
      %s362 = smul.addr %s361, 2
      %s363 = scalar_lea.vmem %s5, %s362
      %v364 = vld [vmem:[%s324] sm:$0x3f]
      %v365 = vld [vmem:[%s324 + $0x8] sm:$0x3f]
      %v366 = vld [vmem:[%s324 + $0x10] sm:$0x3f]
      %v367 = vld [vmem:[%s324 + $0x18] sm:$0x3f]
      %v368 = vld [vmem:[%s324 + $0x20] sm:$0x3f]
      %v369 = vld [vmem:[%s324 + $0x28] sm:$0x3f]
      %v370 = vld [vmem:[%s334] sm:$0x3f]
      %v371 = vld [vmem:[%s334 + $0x8] sm:$0x3f]
      %v372 = vld [vmem:[%s334 + $0x10] sm:$0x3f]
      %v373 = vld [vmem:[%s334 + $0x18] sm:$0x3f]
      %v374 = vld [vmem:[%s334 + $0x20] sm:$0x3f]
      %v375 = vld [vmem:[%s334 + $0x28] sm:$0x3f]
      %v376 = vld [vmem:[%s345] sm:$0x3f]
      %v377 = vld [vmem:[%s345 + $0x8] sm:$0x3f]
      %v378 = vld [vmem:[%s345 + $0x10] sm:$0x3f]
      %v379 = vld [vmem:[%s345 + $0x18] sm:$0x3f]
      %v380 = vld [vmem:[%s345 + $0x20] sm:$0x3f]
      %v381 = vld [vmem:[%s345 + $0x28] sm:$0x3f]
      %v382 = vld [vmem:[%s3] sm:$0xf]
      %v387 = vcombine.high %v364, %v364
      %v388 = vcombine.high %v365, %v365
      %v389 = vcombine.high %v366, %v366
      %v390 = vcombine.high %v367, %v367
      %vm391 = vcmask 1042432
      %vm392 = vcmask 1046532
      %vm393 = vmor %vm391, %vm392
      %v394 = vrot.slane %v364, 5
      %v395 = vrot.slane %v394, 4
      %v396 = vrot.slane %v387, 5
      %v397 = vsel %vm393, %v395, %v396
      %v398 = vrot.slane %v365, 5
      %v399 = vrot.slane %v398, 4
      %v400 = vrot.slane %v388, 5
      %v401 = vsel %vm393, %v399, %v400
      %v402 = vrot.slane %v366, 5
      %v403 = vrot.slane %v402, 4
      %v404 = vrot.slane %v389, 5
      %v405 = vsel %vm393, %v403, %v404
      %v406 = vrot.slane %v367, 5
      %v407 = vrot.slane %v406, 4
      %v408 = vrot.slane %v390, 5
      %v409 = vsel %vm393, %v407, %v408
      %v410 = vld [vmem:[%s3 + $0x4] sm:$0xf]
      %v411 = vcombine.low %v397, %v401
      %v412 = vcombine.low %v405, %v409
      %vm413 = vcmask 31744
      %v414 = vsel %vm413, %v411, 0
      %v416 = vsel %vm413, %v412, 0
      %vm418 = vcmask 1043456
      %v420 = vsel %vm418, %v410, 0
      %422 = vmatprep.subr.mxu0 0.0
      %423 = vmatpush1.msra.mxu0 0.0
      %424 = vmatprep.subr.mxu0 0.0
      %425 = vmatpush1.msra.mxu0 0.0
      %426 = vmatprep.subr.mxu0 0.0
      %427 = vmatpush1.msra.mxu0 0.0
      %428 = vmatprep.subr.mxu0 0.0
      %429 = vmatpush1.msra.mxu0 0.0
      %430 = vmatprep.subr.mxu0 0.0
      %431 = vmatpush1.msra.mxu0 0.0
      %432 = vmatprep.subr.mxu0 0.0
      %433 = vmatpush1.msra.mxu0 0.0
      %434 = vmatprep.subr.mxu0 0.0
      %435 = vmatpush1.msra.mxu0 0.0
      %436 = vmatprep.subr.mxu0 0.0
      %437 = vmatpush1.msra.mxu0 0.0
      %438 = vmatprep.subr.mxu0 0.0
      %439 = vmatpush1.msra.mxu0 0.0
      %440 = vmatprep.subr.mxu0 0.0
      %441 = vmatpush1.msra.mxu0 0.0
      %442 = vmatprep.subr.mxu0 0.0
      %443 = vmatpush1.msra.mxu0 0.0
      %444 = vmatprep.subr.mxu0 0.0
      %445 = vmatpush1.msra.mxu0 0.0
      %446 = vmatprep.subr.mxu0 0.0
      %447 = vmatpush1.msra.mxu0 0.0
      %448 = vmatprep.subr.mxu0 0.0
      %449 = vmatpush1.msra.mxu0 0.0
      %450 = vmatprep.subr.mxu0 0.0
      %451 = vmatpush1.msra.mxu0 0.0
      %452 = vmatprep.subr.mxu0 0.0
      %453 = vmatpush1.msra.mxu0 %v420
      %454 = vmatprep.subr.mxu0 0.0
      %455 = vmatpush2.msra.mxu0 0.0
      %456 = vmatprep.subr.mxu0 0.0
      %457 = vmatpush2.msra.mxu0 0.0
      %458 = vmatprep.subr.mxu0 0.0
      %459 = vmatpush2.msra.mxu0 0.0
      %460 = vmatprep.subr.mxu0 0.0
      %461 = vmatpush2.msra.mxu0 0.0
      %462 = vmatprep.subr.mxu0 0.0
      %463 = vmatpush2.msra.mxu0 0.0
      %464 = vmatprep.subr.mxu0 0.0
      %465 = vmatpush2.msra.mxu0 0.0
      %466 = vmatprep.subr.mxu0 0.0
      %467 = vmatpush2.msra.mxu0 0.0
      %468 = vmatprep.subr.mxu0 0.0
      %469 = vmatpush2.msra.mxu0 0.0
      %470 = vmatprep.subr.mxu0 0.0
      %471 = vmatpush2.msra.mxu0 0.0
      %472 = vmatprep.subr.mxu0 0.0
      %473 = vmatpush2.msra.mxu0 0.0
      %474 = vmatprep.subr.mxu0 0.0
      %475 = vmatpush2.msra.mxu0 0.0
      %476 = vmatprep.subr.mxu0 0.0
      %477 = vmatpush2.msra.mxu0 0.0
      %478 = vmatprep.subr.mxu0 0.0
      %479 = vmatpush2.msra.mxu0 0.0
      %480 = vmatprep.subr.mxu0 0.0
      %481 = vmatpush2.msra.mxu0 0.0
      %482 = vmatprep.subr.mxu0 0.0
      %483 = vmatpush2.msra.mxu0 0.0
      %484 = vmatprep.subr.mxu0 0.0
      %485 = vmatpush2.msra.mxu0 0.0
      %486 = vmatprep.mubr.f32.mxu0 0.0
      %487 = vmatmul.mubr.f32.gmra.mxu0 %v414
      %v488 = vpop.f32.mrf.mxu0
      %v489 = vadd.f32 0.0, %v488
      %v490 = vpop.f32.mrf.mxu0
      %491 = vmatprep.mubr.f32.mxu0 0.0
      %492 = vmatmul.mubr.f32.gmra.mxu0 %v416
      %v493 = vpop.f32.mrf.mxu0
      %v494 = vadd.f32 0.0, %v493
      %v495 = vpop.f32.mrf.mxu0
      %496 = vdwg.mxu0
      %v497 = vcombine.low %v364, %v365
      %v498 = vcombine.low %v366, %v367
      %v499 = vsel %vm413, %v497, 0
      %v501 = vsel %vm413, %v498, 0
      %v504 = vsel %vm418, %v382, 0
      %506 = vmatprep.subr.mxu0 0.0
      %507 = vmatpush1.msra.mxu0 0.0
      %508 = vmatprep.subr.mxu0 0.0
      %509 = vmatpush1.msra.mxu0 0.0
      %510 = vmatprep.subr.mxu0 0.0
      %511 = vmatpush1.msra.mxu0 0.0
      %512 = vmatprep.subr.mxu0 0.0
      %513 = vmatpush1.msra.mxu0 0.0
      %514 = vmatprep.subr.mxu0 0.0
      %515 = vmatpush1.msra.mxu0 0.0
      %516 = vmatprep.subr.mxu0 0.0
      %517 = vmatpush1.msra.mxu0 0.0
      %518 = vmatprep.subr.mxu0 0.0
      %519 = vmatpush1.msra.mxu0 0.0
      %520 = vmatprep.subr.mxu0 0.0
      %521 = vmatpush1.msra.mxu0 0.0
      %522 = vmatprep.subr.mxu0 0.0
      %523 = vmatpush1.msra.mxu0 0.0
      %524 = vmatprep.subr.mxu0 0.0
      %525 = vmatpush1.msra.mxu0 0.0
      %526 = vmatprep.subr.mxu0 0.0
      %527 = vmatpush1.msra.mxu0 0.0
      %528 = vmatprep.subr.mxu0 0.0
      %529 = vmatpush1.msra.mxu0 0.0
      %530 = vmatprep.subr.mxu0 0.0
      %531 = vmatpush1.msra.mxu0 0.0
      %532 = vmatprep.subr.mxu0 0.0
      %533 = vmatpush1.msra.mxu0 0.0
      %534 = vmatprep.subr.mxu0 0.0
      %535 = vmatpush1.msra.mxu0 0.0
      %536 = vmatprep.subr.mxu0 0.0
      %537 = vmatpush1.msra.mxu0 %v504
      %538 = vmatprep.subr.mxu0 0.0
      %539 = vmatpush2.msra.mxu0 0.0
      %540 = vmatprep.subr.mxu0 0.0
      %541 = vmatpush2.msra.mxu0 0.0
      %542 = vmatprep.subr.mxu0 0.0
      %543 = vmatpush2.msra.mxu0 0.0
      %544 = vmatprep.subr.mxu0 0.0
      %545 = vmatpush2.msra.mxu0 0.0
      %546 = vmatprep.subr.mxu0 0.0
      %547 = vmatpush2.msra.mxu0 0.0
      %548 = vmatprep.subr.mxu0 0.0
      %549 = vmatpush2.msra.mxu0 0.0
      %550 = vmatprep.subr.mxu0 0.0
      %551 = vmatpush2.msra.mxu0 0.0
      %552 = vmatprep.subr.mxu0 0.0
      %553 = vmatpush2.msra.mxu0 0.0
      %554 = vmatprep.subr.mxu0 0.0
      %555 = vmatpush2.msra.mxu0 0.0
      %556 = vmatprep.subr.mxu0 0.0
      %557 = vmatpush2.msra.mxu0 0.0
      %558 = vmatprep.subr.mxu0 0.0
      %559 = vmatpush2.msra.mxu0 0.0
      %560 = vmatprep.subr.mxu0 0.0
      %561 = vmatpush2.msra.mxu0 0.0
      %562 = vmatprep.subr.mxu0 0.0
      %563 = vmatpush2.msra.mxu0 0.0
      %564 = vmatprep.subr.mxu0 0.0
      %565 = vmatpush2.msra.mxu0 0.0
      %566 = vmatprep.subr.mxu0 0.0
      %567 = vmatpush2.msra.mxu0 0.0
      %568 = vmatprep.subr.mxu0 0.0
      %569 = vmatpush2.msra.mxu0 0.0
      %570 = vmatprep.mubr.f32.mxu0 0.0
      %571 = vmatmul.mubr.f32.gmra.mxu0 %v499
      %v572 = vpop.f32.mrf.mxu0
      %v573 = vadd.f32 %v489, %v572
      %v574 = vpop.f32.mrf.mxu0
      %575 = vmatprep.mubr.f32.mxu0 0.0
      %576 = vmatmul.mubr.f32.gmra.mxu0 %v501
      %v577 = vpop.f32.mrf.mxu0
      %v578 = vadd.f32 %v494, %v577
      %v579 = vpop.f32.mrf.mxu0
      %580 = vdwg.mxu0
      %vm581 = vcmask 1041408
      %vm582 = vcmask 1045508
      %vm583 = vmor %vm581, %vm582
      %v584 = vrot.slane %v364, 6
      %v585 = vrot.slane %v584, 4
      %v586 = vrot.slane %v387, 6
      %v587 = vsel %vm583, %v585, %v586
      %v588 = vrot.slane %v365, 6
      %v589 = vrot.slane %v588, 4
      %v590 = vrot.slane %v388, 6
      %v591 = vsel %vm583, %v589, %v590
      %v592 = vrot.slane %v366, 6
      %v593 = vrot.slane %v592, 4
      %v594 = vrot.slane %v389, 6
      %v595 = vsel %vm583, %v593, %v594
      %v596 = vrot.slane %v367, 6
      %v597 = vrot.slane %v596, 4
      %v598 = vrot.slane %v390, 6
      %v599 = vsel %vm583, %v597, %v598
      %v600 = vld [vmem:[%s3 + $0x8] sm:$0xf]
      %v601 = vcombine.low %v587, %v591
      %v602 = vcombine.low %v595, %v599
      %v603 = vsel %vm413, %v601, 0
      %v605 = vsel %vm413, %v602, 0
      %v608 = vsel %vm418, %v600, 0
      %610 = vmatprep.subr.mxu0 0.0
      %611 = vmatpush1.msra.mxu0 0.0
      %612 = vmatprep.subr.mxu0 0.0
      %613 = vmatpush1.msra.mxu0 0.0
      %614 = vmatprep.subr.mxu0 0.0
      %615 = vmatpush1.msra.mxu0 0.0
      %616 = vmatprep.subr.mxu0 0.0
      %617 = vmatpush1.msra.mxu0 0.0
      %618 = vmatprep.subr.mxu0 0.0
      %619 = vmatpush1.msra.mxu0 0.0
      %620 = vmatprep.subr.mxu0 0.0
      %621 = vmatpush1.msra.mxu0 0.0
      %622 = vmatprep.subr.mxu0 0.0
      %623 = vmatpush1.msra.mxu0 0.0
      %624 = vmatprep.subr.mxu0 0.0
      %625 = vmatpush1.msra.mxu0 0.0
      %626 = vmatprep.subr.mxu0 0.0
      %627 = vmatpush1.msra.mxu0 0.0
      %628 = vmatprep.subr.mxu0 0.0
      %629 = vmatpush1.msra.mxu0 0.0
      %630 = vmatprep.subr.mxu0 0.0
      %631 = vmatpush1.msra.mxu0 0.0
      %632 = vmatprep.subr.mxu0 0.0
      %633 = vmatpush1.msra.mxu0 0.0
      %634 = vmatprep.subr.mxu0 0.0
      %635 = vmatpush1.msra.mxu0 0.0
      %636 = vmatprep.subr.mxu0 0.0
      %637 = vmatpush1.msra.mxu0 0.0
      %638 = vmatprep.subr.mxu0 0.0
      %639 = vmatpush1.msra.mxu0 0.0
      %640 = vmatprep.subr.mxu0 0.0
      %641 = vmatpush1.msra.mxu0 %v608
      %642 = vmatprep.subr.mxu0 0.0
      %643 = vmatpush2.msra.mxu0 0.0
      %644 = vmatprep.subr.mxu0 0.0
      %645 = vmatpush2.msra.mxu0 0.0
      %646 = vmatprep.subr.mxu0 0.0
      %647 = vmatpush2.msra.mxu0 0.0
      %648 = vmatprep.subr.mxu0 0.0
      %649 = vmatpush2.msra.mxu0 0.0
      %650 = vmatprep.subr.mxu0 0.0
      %651 = vmatpush2.msra.mxu0 0.0
      %652 = vmatprep.subr.mxu0 0.0
      %653 = vmatpush2.msra.mxu0 0.0
      %654 = vmatprep.subr.mxu0 0.0
      %655 = vmatpush2.msra.mxu0 0.0
      %656 = vmatprep.subr.mxu0 0.0
      %657 = vmatpush2.msra.mxu0 0.0
      %658 = vmatprep.subr.mxu0 0.0
      %659 = vmatpush2.msra.mxu0 0.0
      %660 = vmatprep.subr.mxu0 0.0
      %661 = vmatpush2.msra.mxu0 0.0
      %662 = vmatprep.subr.mxu0 0.0
      %663 = vmatpush2.msra.mxu0 0.0
      %664 = vmatprep.subr.mxu0 0.0
      %665 = vmatpush2.msra.mxu0 0.0
      %666 = vmatprep.subr.mxu0 0.0
      %667 = vmatpush2.msra.mxu0 0.0
      %668 = vmatprep.subr.mxu0 0.0
      %669 = vmatpush2.msra.mxu0 0.0
      %670 = vmatprep.subr.mxu0 0.0
      %671 = vmatpush2.msra.mxu0 0.0
      %672 = vmatprep.subr.mxu0 0.0
      %673 = vmatpush2.msra.mxu0 0.0
      %674 = vmatprep.mubr.f32.mxu0 0.0
      %675 = vmatmul.mubr.f32.gmra.mxu0 %v603
      %v676 = vpop.f32.mrf.mxu0
      %v677 = vadd.f32 0.0, %v676
      %v678 = vpop.f32.mrf.mxu0
      %679 = vmatprep.mubr.f32.mxu0 0.0
      %680 = vmatmul.mubr.f32.gmra.mxu0 %v605
      %v681 = vpop.f32.mrf.mxu0
      %v682 = vadd.f32 0.0, %v681
      %v683 = vpop.f32.mrf.mxu0
      %684 = vdwg.mxu0
      %v685 = vadd.f32 %v573, %v677
      %v686 = vadd.f32 %v578, %v682
      %v687 = vld [vmem:[%s3 + $0xc] sm:$0xf]
      %v689 = vcombine.low %v365, %v366
      %v690 = vcombine.low %v367, %v368
      %v691 = vsel %vm413, %v689, 0
      %v693 = vsel %vm413, %v690, 0
      %v696 = vsel %vm418, %v687, 0
      %698 = vmatprep.subr.mxu0 0.0
      %699 = vmatpush1.msra.mxu0 0.0
      %700 = vmatprep.subr.mxu0 0.0
      %701 = vmatpush1.msra.mxu0 0.0
      %702 = vmatprep.subr.mxu0 0.0
      %703 = vmatpush1.msra.mxu0 0.0
      %704 = vmatprep.subr.mxu0 0.0
      %705 = vmatpush1.msra.mxu0 0.0
      %706 = vmatprep.subr.mxu0 0.0
      %707 = vmatpush1.msra.mxu0 0.0
      %708 = vmatprep.subr.mxu0 0.0
      %709 = vmatpush1.msra.mxu0 0.0
      %710 = vmatprep.subr.mxu0 0.0
      %711 = vmatpush1.msra.mxu0 0.0
      %712 = vmatprep.subr.mxu0 0.0
      %713 = vmatpush1.msra.mxu0 0.0
      %714 = vmatprep.subr.mxu0 0.0
      %715 = vmatpush1.msra.mxu0 0.0
      %716 = vmatprep.subr.mxu0 0.0
      %717 = vmatpush1.msra.mxu0 0.0
      %718 = vmatprep.subr.mxu0 0.0
      %719 = vmatpush1.msra.mxu0 0.0
      %720 = vmatprep.subr.mxu0 0.0
      %721 = vmatpush1.msra.mxu0 0.0
      %722 = vmatprep.subr.mxu0 0.0
      %723 = vmatpush1.msra.mxu0 0.0
      %724 = vmatprep.subr.mxu0 0.0
      %725 = vmatpush1.msra.mxu0 0.0
      %726 = vmatprep.subr.mxu0 0.0
      %727 = vmatpush1.msra.mxu0 0.0
      %728 = vmatprep.subr.mxu0 0.0
      %729 = vmatpush1.msra.mxu0 %v696
      %730 = vmatprep.subr.mxu0 0.0
      %731 = vmatpush2.msra.mxu0 0.0
      %732 = vmatprep.subr.mxu0 0.0
      %733 = vmatpush2.msra.mxu0 0.0
      %734 = vmatprep.subr.mxu0 0.0
      %735 = vmatpush2.msra.mxu0 0.0
      %736 = vmatprep.subr.mxu0 0.0
      %737 = vmatpush2.msra.mxu0 0.0
      %738 = vmatprep.subr.mxu0 0.0
      %739 = vmatpush2.msra.mxu0 0.0
      %740 = vmatprep.subr.mxu0 0.0
      %741 = vmatpush2.msra.mxu0 0.0
      %742 = vmatprep.subr.mxu0 0.0
      %743 = vmatpush2.msra.mxu0 0.0
      %744 = vmatprep.subr.mxu0 0.0
      %745 = vmatpush2.msra.mxu0 0.0
      %746 = vmatprep.subr.mxu0 0.0
      %747 = vmatpush2.msra.mxu0 0.0
      %748 = vmatprep.subr.mxu0 0.0
      %749 = vmatpush2.msra.mxu0 0.0
      %750 = vmatprep.subr.mxu0 0.0
      %751 = vmatpush2.msra.mxu0 0.0
      %752 = vmatprep.subr.mxu0 0.0
      %753 = vmatpush2.msra.mxu0 0.0
      %754 = vmatprep.subr.mxu0 0.0
      %755 = vmatpush2.msra.mxu0 0.0
      %756 = vmatprep.subr.mxu0 0.0
      %757 = vmatpush2.msra.mxu0 0.0
      %758 = vmatprep.subr.mxu0 0.0
      %759 = vmatpush2.msra.mxu0 0.0
      %760 = vmatprep.subr.mxu0 0.0
      %761 = vmatpush2.msra.mxu0 0.0
      %762 = vmatprep.mubr.f32.mxu0 0.0
      %763 = vmatmul.mubr.f32.gmra.mxu0 %v691
      %v764 = vpop.f32.mrf.mxu0
      %v765 = vadd.f32 0.0, %v764
      %v766 = vpop.f32.mrf.mxu0
      %767 = vmatprep.mubr.f32.mxu0 0.0
      %768 = vmatmul.mubr.f32.gmra.mxu0 %v693
      %v769 = vpop.f32.mrf.mxu0
      %v770 = vadd.f32 0.0, %v769
      %v771 = vpop.f32.mrf.mxu0
      %772 = vdwg.mxu0
      %v773 = vadd.f32 %v685, %v765
      %v774 = vadd.f32 %v686, %v770
      %v775 = vcombine.high %v368, %v368
      %v776 = vrot.slane %v368, 5
      %v777 = vrot.slane %v776, 4
      %v778 = vrot.slane %v775, 5
      %v779 = vsel %vm393, %v777, %v778
      %v780 = vld [vmem:[%s3 + $0x10] sm:$0xf]
      %v781 = vcombine.low %v401, %v405
      %v782 = vcombine.low %v409, %v779
      %v783 = vsel %vm413, %v781, 0
      %v785 = vsel %vm413, %v782, 0
      %v788 = vsel %vm418, %v780, 0
      %790 = vmatprep.subr.mxu0 0.0
      %791 = vmatpush1.msra.mxu0 0.0
      %792 = vmatprep.subr.mxu0 0.0
      %793 = vmatpush1.msra.mxu0 0.0
      %794 = vmatprep.subr.mxu0 0.0
      %795 = vmatpush1.msra.mxu0 0.0
      %796 = vmatprep.subr.mxu0 0.0
      %797 = vmatpush1.msra.mxu0 0.0
      %798 = vmatprep.subr.mxu0 0.0
      %799 = vmatpush1.msra.mxu0 0.0
      %800 = vmatprep.subr.mxu0 0.0
      %801 = vmatpush1.msra.mxu0 0.0
      %802 = vmatprep.subr.mxu0 0.0
      %803 = vmatpush1.msra.mxu0 0.0
      %804 = vmatprep.subr.mxu0 0.0
      %805 = vmatpush1.msra.mxu0 0.0
      %806 = vmatprep.subr.mxu0 0.0
      %807 = vmatpush1.msra.mxu0 0.0
      %808 = vmatprep.subr.mxu0 0.0
      %809 = vmatpush1.msra.mxu0 0.0
      %810 = vmatprep.subr.mxu0 0.0
      %811 = vmatpush1.msra.mxu0 0.0
      %812 = vmatprep.subr.mxu0 0.0
      %813 = vmatpush1.msra.mxu0 0.0
      %814 = vmatprep.subr.mxu0 0.0
      %815 = vmatpush1.msra.mxu0 0.0
      %816 = vmatprep.subr.mxu0 0.0
      %817 = vmatpush1.msra.mxu0 0.0
      %818 = vmatprep.subr.mxu0 0.0
      %819 = vmatpush1.msra.mxu0 0.0
      %820 = vmatprep.subr.mxu0 0.0
      %821 = vmatpush1.msra.mxu0 %v788
      %822 = vmatprep.subr.mxu0 0.0
      %823 = vmatpush2.msra.mxu0 0.0
      %824 = vmatprep.subr.mxu0 0.0
      %825 = vmatpush2.msra.mxu0 0.0
      %826 = vmatprep.subr.mxu0 0.0
      %827 = vmatpush2.msra.mxu0 0.0
      %828 = vmatprep.subr.mxu0 0.0
      %829 = vmatpush2.msra.mxu0 0.0
      %830 = vmatprep.subr.mxu0 0.0
      %831 = vmatpush2.msra.mxu0 0.0
      %832 = vmatprep.subr.mxu0 0.0
      %833 = vmatpush2.msra.mxu0 0.0
      %834 = vmatprep.subr.mxu0 0.0
      %835 = vmatpush2.msra.mxu0 0.0
      %836 = vmatprep.subr.mxu0 0.0
      %837 = vmatpush2.msra.mxu0 0.0
      %838 = vmatprep.subr.mxu0 0.0
      %839 = vmatpush2.msra.mxu0 0.0
      %840 = vmatprep.subr.mxu0 0.0
      %841 = vmatpush2.msra.mxu0 0.0
      %842 = vmatprep.subr.mxu0 0.0
      %843 = vmatpush2.msra.mxu0 0.0
      %844 = vmatprep.subr.mxu0 0.0
      %845 = vmatpush2.msra.mxu0 0.0
      %846 = vmatprep.subr.mxu0 0.0
      %847 = vmatpush2.msra.mxu0 0.0
      %848 = vmatprep.subr.mxu0 0.0
      %849 = vmatpush2.msra.mxu0 0.0
      %850 = vmatprep.subr.mxu0 0.0
      %851 = vmatpush2.msra.mxu0 0.0
      %852 = vmatprep.subr.mxu0 0.0
      %853 = vmatpush2.msra.mxu0 0.0
      %854 = vmatprep.mubr.f32.mxu0 0.0
      %855 = vmatmul.mubr.f32.gmra.mxu0 %v783
      %v856 = vpop.f32.mrf.mxu0
      %v857 = vadd.f32 0.0, %v856
      %v858 = vpop.f32.mrf.mxu0
      %859 = vmatprep.mubr.f32.mxu0 0.0
      %860 = vmatmul.mubr.f32.gmra.mxu0 %v785
      %v861 = vpop.f32.mrf.mxu0
      %v862 = vadd.f32 0.0, %v861
      %v863 = vpop.f32.mrf.mxu0
      %864 = vdwg.mxu0
      %v865 = vadd.f32 %v773, %v857
      %v866 = vadd.f32 %v774, %v862
      %v867 = vrot.slane %v368, 6
      %v868 = vrot.slane %v867, 4
      %v869 = vrot.slane %v775, 6
      %v870 = vsel %vm583, %v868, %v869
      %v871 = vld [vmem:[%s3 + $0x14] sm:$0xf]
      %v872 = vcombine.low %v591, %v595
      %v873 = vcombine.low %v599, %v870
      %v874 = vsel %vm413, %v872, 0
      %v876 = vsel %vm413, %v873, 0
      %v879 = vsel %vm418, %v871, 0
      %881 = vmatprep.subr.mxu0 0.0
      %882 = vmatpush1.msra.mxu0 0.0
      %883 = vmatprep.subr.mxu0 0.0
      %884 = vmatpush1.msra.mxu0 0.0
      %885 = vmatprep.subr.mxu0 0.0
      %886 = vmatpush1.msra.mxu0 0.0
      %887 = vmatprep.subr.mxu0 0.0
      %888 = vmatpush1.msra.mxu0 0.0
      %889 = vmatprep.subr.mxu0 0.0
      %890 = vmatpush1.msra.mxu0 0.0
      %891 = vmatprep.subr.mxu0 0.0
      %892 = vmatpush1.msra.mxu0 0.0
      %893 = vmatprep.subr.mxu0 0.0
      %894 = vmatpush1.msra.mxu0 0.0
      %895 = vmatprep.subr.mxu0 0.0
      %896 = vmatpush1.msra.mxu0 0.0
      %897 = vmatprep.subr.mxu0 0.0
      %898 = vmatpush1.msra.mxu0 0.0
      %899 = vmatprep.subr.mxu0 0.0
      %900 = vmatpush1.msra.mxu0 0.0
      %901 = vmatprep.subr.mxu0 0.0
      %902 = vmatpush1.msra.mxu0 0.0
      %903 = vmatprep.subr.mxu0 0.0
      %904 = vmatpush1.msra.mxu0 0.0
      %905 = vmatprep.subr.mxu0 0.0
      %906 = vmatpush1.msra.mxu0 0.0
      %907 = vmatprep.subr.mxu0 0.0
      %908 = vmatpush1.msra.mxu0 0.0
      %909 = vmatprep.subr.mxu0 0.0
      %910 = vmatpush1.msra.mxu0 0.0
      %911 = vmatprep.subr.mxu0 0.0
      %912 = vmatpush1.msra.mxu0 %v879
      %913 = vmatprep.subr.mxu0 0.0
      %914 = vmatpush2.msra.mxu0 0.0
      %915 = vmatprep.subr.mxu0 0.0
      %916 = vmatpush2.msra.mxu0 0.0
      %917 = vmatprep.subr.mxu0 0.0
      %918 = vmatpush2.msra.mxu0 0.0
      %919 = vmatprep.subr.mxu0 0.0
      %920 = vmatpush2.msra.mxu0 0.0
      %921 = vmatprep.subr.mxu0 0.0
      %922 = vmatpush2.msra.mxu0 0.0
      %923 = vmatprep.subr.mxu0 0.0
      %924 = vmatpush2.msra.mxu0 0.0
      %925 = vmatprep.subr.mxu0 0.0
      %926 = vmatpush2.msra.mxu0 0.0
      %927 = vmatprep.subr.mxu0 0.0
      %928 = vmatpush2.msra.mxu0 0.0
      %929 = vmatprep.subr.mxu0 0.0
      %930 = vmatpush2.msra.mxu0 0.0
      %931 = vmatprep.subr.mxu0 0.0
      %932 = vmatpush2.msra.mxu0 0.0
      %933 = vmatprep.subr.mxu0 0.0
      %934 = vmatpush2.msra.mxu0 0.0
      %935 = vmatprep.subr.mxu0 0.0
      %936 = vmatpush2.msra.mxu0 0.0
      %937 = vmatprep.subr.mxu0 0.0
      %938 = vmatpush2.msra.mxu0 0.0
      %939 = vmatprep.subr.mxu0 0.0
      %940 = vmatpush2.msra.mxu0 0.0
      %941 = vmatprep.subr.mxu0 0.0
      %942 = vmatpush2.msra.mxu0 0.0
      %943 = vmatprep.subr.mxu0 0.0
      %944 = vmatpush2.msra.mxu0 0.0
      %945 = vmatprep.mubr.f32.mxu0 0.0
      %946 = vmatmul.mubr.f32.gmra.mxu0 %v874
      %v947 = vpop.f32.mrf.mxu0
      %v948 = vadd.f32 0.0, %v947
      %v949 = vpop.f32.mrf.mxu0
      %950 = vmatprep.mubr.f32.mxu0 0.0
      %951 = vmatmul.mubr.f32.gmra.mxu0 %v876
      %v952 = vpop.f32.mrf.mxu0
      %v953 = vadd.f32 0.0, %v952
      %v954 = vpop.f32.mrf.mxu0
      %955 = vdwg.mxu0
      %v956 = vadd.f32 %v865, %v948
      %v957 = vadd.f32 %v866, %v953
      %v958 = vld [vmem:[%s3 + $0x18] sm:$0xf]
      %v960 = vcombine.low %v368, %v369
      %v961 = vsel %vm413, %v960, 0
      %v964 = vsel %vm418, %v958, 0
      %966 = vmatprep.subr.mxu0 0.0
      %967 = vmatpush1.msra.mxu0 0.0
      %968 = vmatprep.subr.mxu0 0.0
      %969 = vmatpush1.msra.mxu0 0.0
      %970 = vmatprep.subr.mxu0 0.0
      %971 = vmatpush1.msra.mxu0 0.0
      %972 = vmatprep.subr.mxu0 0.0
      %973 = vmatpush1.msra.mxu0 0.0
      %974 = vmatprep.subr.mxu0 0.0
      %975 = vmatpush1.msra.mxu0 0.0
      %976 = vmatprep.subr.mxu0 0.0
      %977 = vmatpush1.msra.mxu0 0.0
      %978 = vmatprep.subr.mxu0 0.0
      %979 = vmatpush1.msra.mxu0 0.0
      %980 = vmatprep.subr.mxu0 0.0
      %981 = vmatpush1.msra.mxu0 0.0
      %982 = vmatprep.subr.mxu0 0.0
      %983 = vmatpush1.msra.mxu0 0.0
      %984 = vmatprep.subr.mxu0 0.0
      %985 = vmatpush1.msra.mxu0 0.0
      %986 = vmatprep.subr.mxu0 0.0
      %987 = vmatpush1.msra.mxu0 0.0
      %988 = vmatprep.subr.mxu0 0.0
      %989 = vmatpush1.msra.mxu0 0.0
      %990 = vmatprep.subr.mxu0 0.0
      %991 = vmatpush1.msra.mxu0 0.0
      %992 = vmatprep.subr.mxu0 0.0
      %993 = vmatpush1.msra.mxu0 0.0
      %994 = vmatprep.subr.mxu0 0.0
      %995 = vmatpush1.msra.mxu0 0.0
      %996 = vmatprep.subr.mxu0 0.0
      %997 = vmatpush1.msra.mxu0 %v964
      %998 = vmatprep.subr.mxu0 0.0
      %999 = vmatpush2.msra.mxu0 0.0
      %1000 = vmatprep.subr.mxu0 0.0
      %1001 = vmatpush2.msra.mxu0 0.0
      %1002 = vmatprep.subr.mxu0 0.0
      %1003 = vmatpush2.msra.mxu0 0.0
      %1004 = vmatprep.subr.mxu0 0.0
      %1005 = vmatpush2.msra.mxu0 0.0
      %1006 = vmatprep.subr.mxu0 0.0
      %1007 = vmatpush2.msra.mxu0 0.0
      %1008 = vmatprep.subr.mxu0 0.0
      %1009 = vmatpush2.msra.mxu0 0.0
      %1010 = vmatprep.subr.mxu0 0.0
      %1011 = vmatpush2.msra.mxu0 0.0
      %1012 = vmatprep.subr.mxu0 0.0
      %1013 = vmatpush2.msra.mxu0 0.0
      %1014 = vmatprep.subr.mxu0 0.0
      %1015 = vmatpush2.msra.mxu0 0.0
      %1016 = vmatprep.subr.mxu0 0.0
      %1017 = vmatpush2.msra.mxu0 0.0
      %1018 = vmatprep.subr.mxu0 0.0
      %1019 = vmatpush2.msra.mxu0 0.0
      %1020 = vmatprep.subr.mxu0 0.0
      %1021 = vmatpush2.msra.mxu0 0.0
      %1022 = vmatprep.subr.mxu0 0.0
      %1023 = vmatpush2.msra.mxu0 0.0
      %1024 = vmatprep.subr.mxu0 0.0
      %1025 = vmatpush2.msra.mxu0 0.0
      %1026 = vmatprep.subr.mxu0 0.0
      %1027 = vmatpush2.msra.mxu0 0.0
      %1028 = vmatprep.subr.mxu0 0.0
      %1029 = vmatpush2.msra.mxu0 0.0
      %1030 = vmatprep.mubr.f32.mxu0 0.0
      %1031 = vmatmul.mubr.f32.gmra.mxu0 %v501
      %v1032 = vpop.f32.mrf.mxu0
      %v1033 = vadd.f32 0.0, %v1032
      %v1034 = vpop.f32.mrf.mxu0
      %1035 = vmatprep.mubr.f32.mxu0 0.0
      %1036 = vmatmul.mubr.f32.gmra.mxu0 %v961
      %v1037 = vpop.f32.mrf.mxu0
      %v1038 = vadd.f32 0.0, %v1037
      %v1039 = vpop.f32.mrf.mxu0
      %1040 = vdwg.mxu0
      %v1041 = vadd.f32 %v956, %v1033
      %v1042 = vadd.f32 %v957, %v1038
      %v1043 = vcombine.high %v369, %v369
      %v1044 = vrot.slane %v369, 5
      %v1045 = vrot.slane %v1044, 4
      %v1046 = vrot.slane %v1043, 5
      %v1047 = vsel %vm393, %v1045, %v1046
      %v1048 = vld [vmem:[%s3 + $0x1c] sm:$0xf]
      %v1049 = vcombine.low %v779, %v1047
      %v1050 = vsel %vm413, %v1049, 0
      %v1053 = vsel %vm418, %v1048, 0
      %1055 = vmatprep.subr.mxu0 0.0
      %1056 = vmatpush1.msra.mxu0 0.0
      %1057 = vmatprep.subr.mxu0 0.0
      %1058 = vmatpush1.msra.mxu0 0.0
      %1059 = vmatprep.subr.mxu0 0.0
      %1060 = vmatpush1.msra.mxu0 0.0
      %1061 = vmatprep.subr.mxu0 0.0
      %1062 = vmatpush1.msra.mxu0 0.0
      %1063 = vmatprep.subr.mxu0 0.0
      %1064 = vmatpush1.msra.mxu0 0.0
      %1065 = vmatprep.subr.mxu0 0.0
      %1066 = vmatpush1.msra.mxu0 0.0
      %1067 = vmatprep.subr.mxu0 0.0
      %1068 = vmatpush1.msra.mxu0 0.0
      %1069 = vmatprep.subr.mxu0 0.0
      %1070 = vmatpush1.msra.mxu0 0.0
      %1071 = vmatprep.subr.mxu0 0.0
      %1072 = vmatpush1.msra.mxu0 0.0
      %1073 = vmatprep.subr.mxu0 0.0
      %1074 = vmatpush1.msra.mxu0 0.0
      %1075 = vmatprep.subr.mxu0 0.0
      %1076 = vmatpush1.msra.mxu0 0.0
      %1077 = vmatprep.subr.mxu0 0.0
      %1078 = vmatpush1.msra.mxu0 0.0
      %1079 = vmatprep.subr.mxu0 0.0
      %1080 = vmatpush1.msra.mxu0 0.0
      %1081 = vmatprep.subr.mxu0 0.0
      %1082 = vmatpush1.msra.mxu0 0.0
      %1083 = vmatprep.subr.mxu0 0.0
      %1084 = vmatpush1.msra.mxu0 0.0
      %1085 = vmatprep.subr.mxu0 0.0
      %1086 = vmatpush1.msra.mxu0 %v1053
      %1087 = vmatprep.subr.mxu0 0.0
      %1088 = vmatpush2.msra.mxu0 0.0
      %1089 = vmatprep.subr.mxu0 0.0
      %1090 = vmatpush2.msra.mxu0 0.0
      %1091 = vmatprep.subr.mxu0 0.0
      %1092 = vmatpush2.msra.mxu0 0.0
      %1093 = vmatprep.subr.mxu0 0.0
      %1094 = vmatpush2.msra.mxu0 0.0
      %1095 = vmatprep.subr.mxu0 0.0
      %1096 = vmatpush2.msra.mxu0 0.0
      %1097 = vmatprep.subr.mxu0 0.0
      %1098 = vmatpush2.msra.mxu0 0.0
      %1099 = vmatprep.subr.mxu0 0.0
      %1100 = vmatpush2.msra.mxu0 0.0
      %1101 = vmatprep.subr.mxu0 0.0
      %1102 = vmatpush2.msra.mxu0 0.0
      %1103 = vmatprep.subr.mxu0 0.0
      %1104 = vmatpush2.msra.mxu0 0.0
      %1105 = vmatprep.subr.mxu0 0.0
      %1106 = vmatpush2.msra.mxu0 0.0
      %1107 = vmatprep.subr.mxu0 0.0
      %1108 = vmatpush2.msra.mxu0 0.0
      %1109 = vmatprep.subr.mxu0 0.0
      %1110 = vmatpush2.msra.mxu0 0.0
      %1111 = vmatprep.subr.mxu0 0.0
      %1112 = vmatpush2.msra.mxu0 0.0
      %1113 = vmatprep.subr.mxu0 0.0
      %1114 = vmatpush2.msra.mxu0 0.0
      %1115 = vmatprep.subr.mxu0 0.0
      %1116 = vmatpush2.msra.mxu0 0.0
      %1117 = vmatprep.subr.mxu0 0.0
      %1118 = vmatpush2.msra.mxu0 0.0
      %1119 = vmatprep.mubr.f32.mxu0 0.0
      %1120 = vmatmul.mubr.f32.gmra.mxu0 %v416
      %v1121 = vpop.f32.mrf.mxu0
      %v1122 = vadd.f32 0.0, %v1121
      %v1123 = vpop.f32.mrf.mxu0
      %1124 = vmatprep.mubr.f32.mxu0 0.0
      %1125 = vmatmul.mubr.f32.gmra.mxu0 %v1050
      %v1126 = vpop.f32.mrf.mxu0
      %v1127 = vadd.f32 0.0, %v1126
      %v1128 = vpop.f32.mrf.mxu0
      %1129 = vdwg.mxu0
      %v1130 = vadd.f32 %v1041, %v1122
      %v1131 = vadd.f32 %v1042, %v1127
      %v1132 = vrot.slane %v369, 6
      %v1133 = vrot.slane %v1132, 4
      %v1134 = vrot.slane %v1043, 6
      %v1135 = vsel %vm583, %v1133, %v1134
      %v1136 = vld [vmem:[%s3 + $0x20] sm:$0xf]
      %v1137 = vcombine.low %v870, %v1135
      %v1138 = vsel %vm413, %v1137, 0
      %v1141 = vsel %vm418, %v1136, 0
      %1143 = vmatprep.subr.mxu0 0.0
      %1144 = vmatpush1.msra.mxu0 0.0
      %1145 = vmatprep.subr.mxu0 0.0
      %1146 = vmatpush1.msra.mxu0 0.0
      %1147 = vmatprep.subr.mxu0 0.0
      %1148 = vmatpush1.msra.mxu0 0.0
      %1149 = vmatprep.subr.mxu0 0.0
      %1150 = vmatpush1.msra.mxu0 0.0
      %1151 = vmatprep.subr.mxu0 0.0
      %1152 = vmatpush1.msra.mxu0 0.0
      %1153 = vmatprep.subr.mxu0 0.0
      %1154 = vmatpush1.msra.mxu0 0.0
      %1155 = vmatprep.subr.mxu0 0.0
      %1156 = vmatpush1.msra.mxu0 0.0
      %1157 = vmatprep.subr.mxu0 0.0
      %1158 = vmatpush1.msra.mxu0 0.0
      %1159 = vmatprep.subr.mxu0 0.0
      %1160 = vmatpush1.msra.mxu0 0.0
      %1161 = vmatprep.subr.mxu0 0.0
      %1162 = vmatpush1.msra.mxu0 0.0
      %1163 = vmatprep.subr.mxu0 0.0
      %1164 = vmatpush1.msra.mxu0 0.0
      %1165 = vmatprep.subr.mxu0 0.0
      %1166 = vmatpush1.msra.mxu0 0.0
      %1167 = vmatprep.subr.mxu0 0.0
      %1168 = vmatpush1.msra.mxu0 0.0
      %1169 = vmatprep.subr.mxu0 0.0
      %1170 = vmatpush1.msra.mxu0 0.0
      %1171 = vmatprep.subr.mxu0 0.0
      %1172 = vmatpush1.msra.mxu0 0.0
      %1173 = vmatprep.subr.mxu0 0.0
      %1174 = vmatpush1.msra.mxu0 %v1141
      %1175 = vmatprep.subr.mxu0 0.0
      %1176 = vmatpush2.msra.mxu0 0.0
      %1177 = vmatprep.subr.mxu0 0.0
      %1178 = vmatpush2.msra.mxu0 0.0
      %1179 = vmatprep.subr.mxu0 0.0
      %1180 = vmatpush2.msra.mxu0 0.0
      %1181 = vmatprep.subr.mxu0 0.0
      %1182 = vmatpush2.msra.mxu0 0.0
      %1183 = vmatprep.subr.mxu0 0.0
      %1184 = vmatpush2.msra.mxu0 0.0
      %1185 = vmatprep.subr.mxu0 0.0
      %1186 = vmatpush2.msra.mxu0 0.0
      %1187 = vmatprep.subr.mxu0 0.0
      %1188 = vmatpush2.msra.mxu0 0.0
      %1189 = vmatprep.subr.mxu0 0.0
      %1190 = vmatpush2.msra.mxu0 0.0
      %1191 = vmatprep.subr.mxu0 0.0
      %1192 = vmatpush2.msra.mxu0 0.0
      %1193 = vmatprep.subr.mxu0 0.0
      %1194 = vmatpush2.msra.mxu0 0.0
      %1195 = vmatprep.subr.mxu0 0.0
      %1196 = vmatpush2.msra.mxu0 0.0
      %1197 = vmatprep.subr.mxu0 0.0
      %1198 = vmatpush2.msra.mxu0 0.0
      %1199 = vmatprep.subr.mxu0 0.0
      %1200 = vmatpush2.msra.mxu0 0.0
      %1201 = vmatprep.subr.mxu0 0.0
      %1202 = vmatpush2.msra.mxu0 0.0
      %1203 = vmatprep.subr.mxu0 0.0
      %1204 = vmatpush2.msra.mxu0 0.0
      %1205 = vmatprep.subr.mxu0 0.0
      %1206 = vmatpush2.msra.mxu0 0.0
      %1207 = vmatprep.mubr.f32.mxu0 0.0
      %1208 = vmatmul.mubr.f32.gmra.mxu0 %v605
      %v1209 = vpop.f32.mrf.mxu0
      %v1210 = vadd.f32 0.0, %v1209
      %v1211 = vpop.f32.mrf.mxu0
      %1212 = vmatprep.mubr.f32.mxu0 0.0
      %1213 = vmatmul.mubr.f32.gmra.mxu0 %v1138
      %v1214 = vpop.f32.mrf.mxu0
      %v1215 = vadd.f32 0.0, %v1214
      %v1216 = vpop.f32.mrf.mxu0
      %1217 = vdwg.mxu0
      %v1218 = vadd.f32 %v1130, %v1210
      %v1219 = vadd.f32 %v1131, %v1215
      %v1220 = vld [vmem:[%s3 + $0x24] sm:$0xf]
      %v1225 = vcombine.low %v370, %v371
      %v1226 = vcombine.low %v372, %v373
      %v1227 = vsel %vm413, %v1225, 0
      %v1229 = vsel %vm413, %v1226, 0
      %v1232 = vsel %vm418, %v1220, 0
      %1234 = vmatprep.subr.mxu0 0.0
      %1235 = vmatpush1.msra.mxu0 0.0
      %1236 = vmatprep.subr.mxu0 0.0
      %1237 = vmatpush1.msra.mxu0 0.0
      %1238 = vmatprep.subr.mxu0 0.0
      %1239 = vmatpush1.msra.mxu0 0.0
      %1240 = vmatprep.subr.mxu0 0.0
      %1241 = vmatpush1.msra.mxu0 0.0
      %1242 = vmatprep.subr.mxu0 0.0
      %1243 = vmatpush1.msra.mxu0 0.0
      %1244 = vmatprep.subr.mxu0 0.0
      %1245 = vmatpush1.msra.mxu0 0.0
      %1246 = vmatprep.subr.mxu0 0.0
      %1247 = vmatpush1.msra.mxu0 0.0
      %1248 = vmatprep.subr.mxu0 0.0
      %1249 = vmatpush1.msra.mxu0 0.0
      %1250 = vmatprep.subr.mxu0 0.0
      %1251 = vmatpush1.msra.mxu0 0.0
      %1252 = vmatprep.subr.mxu0 0.0
      %1253 = vmatpush1.msra.mxu0 0.0
      %1254 = vmatprep.subr.mxu0 0.0
      %1255 = vmatpush1.msra.mxu0 0.0
      %1256 = vmatprep.subr.mxu0 0.0
      %1257 = vmatpush1.msra.mxu0 0.0
      %1258 = vmatprep.subr.mxu0 0.0
      %1259 = vmatpush1.msra.mxu0 0.0
      %1260 = vmatprep.subr.mxu0 0.0
      %1261 = vmatpush1.msra.mxu0 0.0
      %1262 = vmatprep.subr.mxu0 0.0
      %1263 = vmatpush1.msra.mxu0 0.0
      %1264 = vmatprep.subr.mxu0 0.0
      %1265 = vmatpush1.msra.mxu0 %v1232
      %1266 = vmatprep.subr.mxu0 0.0
      %1267 = vmatpush2.msra.mxu0 0.0
      %1268 = vmatprep.subr.mxu0 0.0
      %1269 = vmatpush2.msra.mxu0 0.0
      %1270 = vmatprep.subr.mxu0 0.0
      %1271 = vmatpush2.msra.mxu0 0.0
      %1272 = vmatprep.subr.mxu0 0.0
      %1273 = vmatpush2.msra.mxu0 0.0
      %1274 = vmatprep.subr.mxu0 0.0
      %1275 = vmatpush2.msra.mxu0 0.0
      %1276 = vmatprep.subr.mxu0 0.0
      %1277 = vmatpush2.msra.mxu0 0.0
      %1278 = vmatprep.subr.mxu0 0.0
      %1279 = vmatpush2.msra.mxu0 0.0
      %1280 = vmatprep.subr.mxu0 0.0
      %1281 = vmatpush2.msra.mxu0 0.0
      %1282 = vmatprep.subr.mxu0 0.0
      %1283 = vmatpush2.msra.mxu0 0.0
      %1284 = vmatprep.subr.mxu0 0.0
      %1285 = vmatpush2.msra.mxu0 0.0
      %1286 = vmatprep.subr.mxu0 0.0
      %1287 = vmatpush2.msra.mxu0 0.0
      %1288 = vmatprep.subr.mxu0 0.0
      %1289 = vmatpush2.msra.mxu0 0.0
      %1290 = vmatprep.subr.mxu0 0.0
      %1291 = vmatpush2.msra.mxu0 0.0
      %1292 = vmatprep.subr.mxu0 0.0
      %1293 = vmatpush2.msra.mxu0 0.0
      %1294 = vmatprep.subr.mxu0 0.0
      %1295 = vmatpush2.msra.mxu0 0.0
      %1296 = vmatprep.subr.mxu0 0.0
      %1297 = vmatpush2.msra.mxu0 0.0
      %1298 = vmatprep.mubr.f32.mxu0 0.0
      %1299 = vmatmul.mubr.f32.gmra.mxu0 %v1227
      %v1300 = vpop.f32.mrf.mxu0
      %v1301 = vadd.f32 0.0, %v1300
      %v1302 = vpop.f32.mrf.mxu0
      %1303 = vmatprep.mubr.f32.mxu0 0.0
      %1304 = vmatmul.mubr.f32.gmra.mxu0 %v1229
      %v1305 = vpop.f32.mrf.mxu0
      %v1306 = vadd.f32 0.0, %v1305
      %v1307 = vpop.f32.mrf.mxu0
      %1308 = vdwg.mxu0
      %v1309 = vadd.f32 %v1218, %v1301
      %v1310 = vadd.f32 %v1219, %v1306
      %v1311 = vcombine.high %v370, %v370
      %v1312 = vcombine.high %v371, %v371
      %v1313 = vcombine.high %v372, %v372
      %v1314 = vcombine.high %v373, %v373
      %v1315 = vrot.slane %v370, 5
      %v1316 = vrot.slane %v1315, 4
      %v1317 = vrot.slane %v1311, 5
      %v1318 = vsel %vm393, %v1316, %v1317
      %v1319 = vrot.slane %v371, 5
      %v1320 = vrot.slane %v1319, 4
      %v1321 = vrot.slane %v1312, 5
      %v1322 = vsel %vm393, %v1320, %v1321
      %v1323 = vrot.slane %v372, 5
      %v1324 = vrot.slane %v1323, 4
      %v1325 = vrot.slane %v1313, 5
      %v1326 = vsel %vm393, %v1324, %v1325
      %v1327 = vrot.slane %v373, 5
      %v1328 = vrot.slane %v1327, 4
      %v1329 = vrot.slane %v1314, 5
      %v1330 = vsel %vm393, %v1328, %v1329
      %v1331 = vld [vmem:[%s3 + $0x28] sm:$0xf]
      %v1332 = vcombine.low %v1318, %v1322
      %v1333 = vcombine.low %v1326, %v1330
      %v1334 = vsel %vm413, %v1332, 0
      %v1336 = vsel %vm413, %v1333, 0
      %v1339 = vsel %vm418, %v1331, 0
      %1341 = vmatprep.subr.mxu0 0.0
      %1342 = vmatpush1.msra.mxu0 0.0
      %1343 = vmatprep.subr.mxu0 0.0
      %1344 = vmatpush1.msra.mxu0 0.0
      %1345 = vmatprep.subr.mxu0 0.0
      %1346 = vmatpush1.msra.mxu0 0.0
      %1347 = vmatprep.subr.mxu0 0.0
      %1348 = vmatpush1.msra.mxu0 0.0
      %1349 = vmatprep.subr.mxu0 0.0
      %1350 = vmatpush1.msra.mxu0 0.0
      %1351 = vmatprep.subr.mxu0 0.0
      %1352 = vmatpush1.msra.mxu0 0.0
      %1353 = vmatprep.subr.mxu0 0.0
      %1354 = vmatpush1.msra.mxu0 0.0
      %1355 = vmatprep.subr.mxu0 0.0
      %1356 = vmatpush1.msra.mxu0 0.0
      %1357 = vmatprep.subr.mxu0 0.0
      %1358 = vmatpush1.msra.mxu0 0.0
      %1359 = vmatprep.subr.mxu0 0.0
      %1360 = vmatpush1.msra.mxu0 0.0
      %1361 = vmatprep.subr.mxu0 0.0
      %1362 = vmatpush1.msra.mxu0 0.0
      %1363 = vmatprep.subr.mxu0 0.0
      %1364 = vmatpush1.msra.mxu0 0.0
      %1365 = vmatprep.subr.mxu0 0.0
      %1366 = vmatpush1.msra.mxu0 0.0
      %1367 = vmatprep.subr.mxu0 0.0
      %1368 = vmatpush1.msra.mxu0 0.0
      %1369 = vmatprep.subr.mxu0 0.0
      %1370 = vmatpush1.msra.mxu0 0.0
      %1371 = vmatprep.subr.mxu0 0.0
      %1372 = vmatpush1.msra.mxu0 %v1339
      %1373 = vmatprep.subr.mxu0 0.0
      %1374 = vmatpush2.msra.mxu0 0.0
      %1375 = vmatprep.subr.mxu0 0.0
      %1376 = vmatpush2.msra.mxu0 0.0
      %1377 = vmatprep.subr.mxu0 0.0
      %1378 = vmatpush2.msra.mxu0 0.0
      %1379 = vmatprep.subr.mxu0 0.0
      %1380 = vmatpush2.msra.mxu0 0.0
      %1381 = vmatprep.subr.mxu0 0.0
      %1382 = vmatpush2.msra.mxu0 0.0
      %1383 = vmatprep.subr.mxu0 0.0
      %1384 = vmatpush2.msra.mxu0 0.0
      %1385 = vmatprep.subr.mxu0 0.0
      %1386 = vmatpush2.msra.mxu0 0.0
      %1387 = vmatprep.subr.mxu0 0.0
      %1388 = vmatpush2.msra.mxu0 0.0
      %1389 = vmatprep.subr.mxu0 0.0
      %1390 = vmatpush2.msra.mxu0 0.0
      %1391 = vmatprep.subr.mxu0 0.0
      %1392 = vmatpush2.msra.mxu0 0.0
      %1393 = vmatprep.subr.mxu0 0.0
      %1394 = vmatpush2.msra.mxu0 0.0
      %1395 = vmatprep.subr.mxu0 0.0
      %1396 = vmatpush2.msra.mxu0 0.0
      %1397 = vmatprep.subr.mxu0 0.0
      %1398 = vmatpush2.msra.mxu0 0.0
      %1399 = vmatprep.subr.mxu0 0.0
      %1400 = vmatpush2.msra.mxu0 0.0
      %1401 = vmatprep.subr.mxu0 0.0
      %1402 = vmatpush2.msra.mxu0 0.0
      %1403 = vmatprep.subr.mxu0 0.0
      %1404 = vmatpush2.msra.mxu0 0.0
      %1405 = vmatprep.mubr.f32.mxu0 0.0
      %1406 = vmatmul.mubr.f32.gmra.mxu0 %v1334
      %v1407 = vpop.f32.mrf.mxu0
      %v1408 = vadd.f32 0.0, %v1407
      %v1409 = vpop.f32.mrf.mxu0
      %1410 = vmatprep.mubr.f32.mxu0 0.0
      %1411 = vmatmul.mubr.f32.gmra.mxu0 %v1336
      %v1412 = vpop.f32.mrf.mxu0
      %v1413 = vadd.f32 0.0, %v1412
      %v1414 = vpop.f32.mrf.mxu0
      %1415 = vdwg.mxu0
      %v1416 = vadd.f32 %v1309, %v1408
      %v1417 = vadd.f32 %v1310, %v1413
      %v1418 = vrot.slane %v370, 6
      %v1419 = vrot.slane %v1418, 4
      %v1420 = vrot.slane %v1311, 6
      %v1421 = vsel %vm583, %v1419, %v1420
      %v1422 = vrot.slane %v371, 6
      %v1423 = vrot.slane %v1422, 4
      %v1424 = vrot.slane %v1312, 6
      %v1425 = vsel %vm583, %v1423, %v1424
      %v1426 = vrot.slane %v372, 6
      %v1427 = vrot.slane %v1426, 4
      %v1428 = vrot.slane %v1313, 6
      %v1429 = vsel %vm583, %v1427, %v1428
      %v1430 = vrot.slane %v373, 6
      %v1431 = vrot.slane %v1430, 4
      %v1432 = vrot.slane %v1314, 6
      %v1433 = vsel %vm583, %v1431, %v1432
      %v1434 = vld [vmem:[%s3 + $0x2c] sm:$0xf]
      %v1435 = vcombine.low %v1421, %v1425
      %v1436 = vcombine.low %v1429, %v1433
      %v1437 = vsel %vm413, %v1435, 0
      %v1439 = vsel %vm413, %v1436, 0
      %v1442 = vsel %vm418, %v1434, 0
      %1444 = vmatprep.subr.mxu0 0.0
      %1445 = vmatpush1.msra.mxu0 0.0
      %1446 = vmatprep.subr.mxu0 0.0
      %1447 = vmatpush1.msra.mxu0 0.0
      %1448 = vmatprep.subr.mxu0 0.0
      %1449 = vmatpush1.msra.mxu0 0.0
      %1450 = vmatprep.subr.mxu0 0.0
      %1451 = vmatpush1.msra.mxu0 0.0
      %1452 = vmatprep.subr.mxu0 0.0
      %1453 = vmatpush1.msra.mxu0 0.0
      %1454 = vmatprep.subr.mxu0 0.0
      %1455 = vmatpush1.msra.mxu0 0.0
      %1456 = vmatprep.subr.mxu0 0.0
      %1457 = vmatpush1.msra.mxu0 0.0
      %1458 = vmatprep.subr.mxu0 0.0
      %1459 = vmatpush1.msra.mxu0 0.0
      %1460 = vmatprep.subr.mxu0 0.0
      %1461 = vmatpush1.msra.mxu0 0.0
      %1462 = vmatprep.subr.mxu0 0.0
      %1463 = vmatpush1.msra.mxu0 0.0
      %1464 = vmatprep.subr.mxu0 0.0
      %1465 = vmatpush1.msra.mxu0 0.0
      %1466 = vmatprep.subr.mxu0 0.0
      %1467 = vmatpush1.msra.mxu0 0.0
      %1468 = vmatprep.subr.mxu0 0.0
      %1469 = vmatpush1.msra.mxu0 0.0
      %1470 = vmatprep.subr.mxu0 0.0
      %1471 = vmatpush1.msra.mxu0 0.0
      %1472 = vmatprep.subr.mxu0 0.0
      %1473 = vmatpush1.msra.mxu0 0.0
      %1474 = vmatprep.subr.mxu0 0.0
      %1475 = vmatpush1.msra.mxu0 %v1442
      %1476 = vmatprep.subr.mxu0 0.0
      %1477 = vmatpush2.msra.mxu0 0.0
      %1478 = vmatprep.subr.mxu0 0.0
      %1479 = vmatpush2.msra.mxu0 0.0
      %1480 = vmatprep.subr.mxu0 0.0
      %1481 = vmatpush2.msra.mxu0 0.0
      %1482 = vmatprep.subr.mxu0 0.0
      %1483 = vmatpush2.msra.mxu0 0.0
      %1484 = vmatprep.subr.mxu0 0.0
      %1485 = vmatpush2.msra.mxu0 0.0
      %1486 = vmatprep.subr.mxu0 0.0
      %1487 = vmatpush2.msra.mxu0 0.0
      %1488 = vmatprep.subr.mxu0 0.0
      %1489 = vmatpush2.msra.mxu0 0.0
      %1490 = vmatprep.subr.mxu0 0.0
      %1491 = vmatpush2.msra.mxu0 0.0
      %1492 = vmatprep.subr.mxu0 0.0
      %1493 = vmatpush2.msra.mxu0 0.0
      %1494 = vmatprep.subr.mxu0 0.0
      %1495 = vmatpush2.msra.mxu0 0.0
      %1496 = vmatprep.subr.mxu0 0.0
      %1497 = vmatpush2.msra.mxu0 0.0
      %1498 = vmatprep.subr.mxu0 0.0
      %1499 = vmatpush2.msra.mxu0 0.0
      %1500 = vmatprep.subr.mxu0 0.0
      %1501 = vmatpush2.msra.mxu0 0.0
      %1502 = vmatprep.subr.mxu0 0.0
      %1503 = vmatpush2.msra.mxu0 0.0
      %1504 = vmatprep.subr.mxu0 0.0
      %1505 = vmatpush2.msra.mxu0 0.0
      %1506 = vmatprep.subr.mxu0 0.0
      %1507 = vmatpush2.msra.mxu0 0.0
      %1508 = vmatprep.mubr.f32.mxu0 0.0
      %1509 = vmatmul.mubr.f32.gmra.mxu0 %v1437
      %v1510 = vpop.f32.mrf.mxu0
      %v1511 = vadd.f32 0.0, %v1510
      %v1512 = vpop.f32.mrf.mxu0
      %1513 = vmatprep.mubr.f32.mxu0 0.0
      %1514 = vmatmul.mubr.f32.gmra.mxu0 %v1439
      %v1515 = vpop.f32.mrf.mxu0
      %v1516 = vadd.f32 0.0, %v1515
      %v1517 = vpop.f32.mrf.mxu0
      %1518 = vdwg.mxu0
      %v1519 = vadd.f32 %v1416, %v1511
      %v1520 = vadd.f32 %v1417, %v1516
      %v1521 = vld [vmem:[%s3 + $0x30] sm:$0xf]
      %v1523 = vcombine.low %v371, %v372
      %v1524 = vcombine.low %v373, %v374
      %v1525 = vsel %vm413, %v1523, 0
      %v1527 = vsel %vm413, %v1524, 0
      %v1530 = vsel %vm418, %v1521, 0
      %1532 = vmatprep.subr.mxu0 0.0
      %1533 = vmatpush1.msra.mxu0 0.0
      %1534 = vmatprep.subr.mxu0 0.0
      %1535 = vmatpush1.msra.mxu0 0.0
      %1536 = vmatprep.subr.mxu0 0.0
      %1537 = vmatpush1.msra.mxu0 0.0
      %1538 = vmatprep.subr.mxu0 0.0
      %1539 = vmatpush1.msra.mxu0 0.0
      %1540 = vmatprep.subr.mxu0 0.0
      %1541 = vmatpush1.msra.mxu0 0.0
      %1542 = vmatprep.subr.mxu0 0.0
      %1543 = vmatpush1.msra.mxu0 0.0
      %1544 = vmatprep.subr.mxu0 0.0
      %1545 = vmatpush1.msra.mxu0 0.0
      %1546 = vmatprep.subr.mxu0 0.0
      %1547 = vmatpush1.msra.mxu0 0.0
      %1548 = vmatprep.subr.mxu0 0.0
      %1549 = vmatpush1.msra.mxu0 0.0
      %1550 = vmatprep.subr.mxu0 0.0
      %1551 = vmatpush1.msra.mxu0 0.0
      %1552 = vmatprep.subr.mxu0 0.0
      %1553 = vmatpush1.msra.mxu0 0.0
      %1554 = vmatprep.subr.mxu0 0.0
      %1555 = vmatpush1.msra.mxu0 0.0
      %1556 = vmatprep.subr.mxu0 0.0
      %1557 = vmatpush1.msra.mxu0 0.0
      %1558 = vmatprep.subr.mxu0 0.0
      %1559 = vmatpush1.msra.mxu0 0.0
      %1560 = vmatprep.subr.mxu0 0.0
      %1561 = vmatpush1.msra.mxu0 0.0
      %1562 = vmatprep.subr.mxu0 0.0
      %1563 = vmatpush1.msra.mxu0 %v1530
      %1564 = vmatprep.subr.mxu0 0.0
      %1565 = vmatpush2.msra.mxu0 0.0
      %1566 = vmatprep.subr.mxu0 0.0
      %1567 = vmatpush2.msra.mxu0 0.0
      %1568 = vmatprep.subr.mxu0 0.0
      %1569 = vmatpush2.msra.mxu0 0.0
      %1570 = vmatprep.subr.mxu0 0.0
      %1571 = vmatpush2.msra.mxu0 0.0
      %1572 = vmatprep.subr.mxu0 0.0
      %1573 = vmatpush2.msra.mxu0 0.0
      %1574 = vmatprep.subr.mxu0 0.0
      %1575 = vmatpush2.msra.mxu0 0.0
      %1576 = vmatprep.subr.mxu0 0.0
      %1577 = vmatpush2.msra.mxu0 0.0
      %1578 = vmatprep.subr.mxu0 0.0
      %1579 = vmatpush2.msra.mxu0 0.0
      %1580 = vmatprep.subr.mxu0 0.0
      %1581 = vmatpush2.msra.mxu0 0.0
      %1582 = vmatprep.subr.mxu0 0.0
      %1583 = vmatpush2.msra.mxu0 0.0
      %1584 = vmatprep.subr.mxu0 0.0
      %1585 = vmatpush2.msra.mxu0 0.0
      %1586 = vmatprep.subr.mxu0 0.0
      %1587 = vmatpush2.msra.mxu0 0.0
      %1588 = vmatprep.subr.mxu0 0.0
      %1589 = vmatpush2.msra.mxu0 0.0
      %1590 = vmatprep.subr.mxu0 0.0
      %1591 = vmatpush2.msra.mxu0 0.0
      %1592 = vmatprep.subr.mxu0 0.0
      %1593 = vmatpush2.msra.mxu0 0.0
      %1594 = vmatprep.subr.mxu0 0.0
      %1595 = vmatpush2.msra.mxu0 0.0
      %1596 = vmatprep.mubr.f32.mxu0 0.0
      %1597 = vmatmul.mubr.f32.gmra.mxu0 %v1525
      %v1598 = vpop.f32.mrf.mxu0
      %v1599 = vadd.f32 0.0, %v1598
      %v1600 = vpop.f32.mrf.mxu0
      %1601 = vmatprep.mubr.f32.mxu0 0.0
      %1602 = vmatmul.mubr.f32.gmra.mxu0 %v1527
      %v1603 = vpop.f32.mrf.mxu0
      %v1604 = vadd.f32 0.0, %v1603
      %v1605 = vpop.f32.mrf.mxu0
      %1606 = vdwg.mxu0
      %v1607 = vadd.f32 %v1519, %v1599
      %v1608 = vadd.f32 %v1520, %v1604
      %v1609 = vcombine.high %v374, %v374
      %v1610 = vrot.slane %v374, 5
      %v1611 = vrot.slane %v1610, 4
      %v1612 = vrot.slane %v1609, 5
      %v1613 = vsel %vm393, %v1611, %v1612
      %v1614 = vld [vmem:[%s3 + $0x34] sm:$0xf]
      %v1615 = vcombine.low %v1322, %v1326
      %v1616 = vcombine.low %v1330, %v1613
      %v1617 = vsel %vm413, %v1615, 0
      %v1619 = vsel %vm413, %v1616, 0
      %v1622 = vsel %vm418, %v1614, 0
      %1624 = vmatprep.subr.mxu0 0.0
      %1625 = vmatpush1.msra.mxu0 0.0
      %1626 = vmatprep.subr.mxu0 0.0
      %1627 = vmatpush1.msra.mxu0 0.0
      %1628 = vmatprep.subr.mxu0 0.0
      %1629 = vmatpush1.msra.mxu0 0.0
      %1630 = vmatprep.subr.mxu0 0.0
      %1631 = vmatpush1.msra.mxu0 0.0
      %1632 = vmatprep.subr.mxu0 0.0
      %1633 = vmatpush1.msra.mxu0 0.0
      %1634 = vmatprep.subr.mxu0 0.0
      %1635 = vmatpush1.msra.mxu0 0.0
      %1636 = vmatprep.subr.mxu0 0.0
      %1637 = vmatpush1.msra.mxu0 0.0
      %1638 = vmatprep.subr.mxu0 0.0
      %1639 = vmatpush1.msra.mxu0 0.0
      %1640 = vmatprep.subr.mxu0 0.0
      %1641 = vmatpush1.msra.mxu0 0.0
      %1642 = vmatprep.subr.mxu0 0.0
      %1643 = vmatpush1.msra.mxu0 0.0
      %1644 = vmatprep.subr.mxu0 0.0
      %1645 = vmatpush1.msra.mxu0 0.0
      %1646 = vmatprep.subr.mxu0 0.0
      %1647 = vmatpush1.msra.mxu0 0.0
      %1648 = vmatprep.subr.mxu0 0.0
      %1649 = vmatpush1.msra.mxu0 0.0
      %1650 = vmatprep.subr.mxu0 0.0
      %1651 = vmatpush1.msra.mxu0 0.0
      %1652 = vmatprep.subr.mxu0 0.0
      %1653 = vmatpush1.msra.mxu0 0.0
      %1654 = vmatprep.subr.mxu0 0.0
      %1655 = vmatpush1.msra.mxu0 %v1622
      %1656 = vmatprep.subr.mxu0 0.0
      %1657 = vmatpush2.msra.mxu0 0.0
      %1658 = vmatprep.subr.mxu0 0.0
      %1659 = vmatpush2.msra.mxu0 0.0
      %1660 = vmatprep.subr.mxu0 0.0
      %1661 = vmatpush2.msra.mxu0 0.0
      %1662 = vmatprep.subr.mxu0 0.0
      %1663 = vmatpush2.msra.mxu0 0.0
      %1664 = vmatprep.subr.mxu0 0.0
      %1665 = vmatpush2.msra.mxu0 0.0
      %1666 = vmatprep.subr.mxu0 0.0
      %1667 = vmatpush2.msra.mxu0 0.0
      %1668 = vmatprep.subr.mxu0 0.0
      %1669 = vmatpush2.msra.mxu0 0.0
      %1670 = vmatprep.subr.mxu0 0.0
      %1671 = vmatpush2.msra.mxu0 0.0
      %1672 = vmatprep.subr.mxu0 0.0
      %1673 = vmatpush2.msra.mxu0 0.0
      %1674 = vmatprep.subr.mxu0 0.0
      %1675 = vmatpush2.msra.mxu0 0.0
      %1676 = vmatprep.subr.mxu0 0.0
      %1677 = vmatpush2.msra.mxu0 0.0
      %1678 = vmatprep.subr.mxu0 0.0
      %1679 = vmatpush2.msra.mxu0 0.0
      %1680 = vmatprep.subr.mxu0 0.0
      %1681 = vmatpush2.msra.mxu0 0.0
      %1682 = vmatprep.subr.mxu0 0.0
      %1683 = vmatpush2.msra.mxu0 0.0
      %1684 = vmatprep.subr.mxu0 0.0
      %1685 = vmatpush2.msra.mxu0 0.0
      %1686 = vmatprep.subr.mxu0 0.0
      %1687 = vmatpush2.msra.mxu0 0.0
      %1688 = vmatprep.mubr.f32.mxu0 0.0
      %1689 = vmatmul.mubr.f32.gmra.mxu0 %v1617
      %v1690 = vpop.f32.mrf.mxu0
      %v1691 = vadd.f32 0.0, %v1690
      %v1692 = vpop.f32.mrf.mxu0
      %1693 = vmatprep.mubr.f32.mxu0 0.0
      %1694 = vmatmul.mubr.f32.gmra.mxu0 %v1619
      %v1695 = vpop.f32.mrf.mxu0
      %v1696 = vadd.f32 0.0, %v1695
      %v1697 = vpop.f32.mrf.mxu0
      %1698 = vdwg.mxu0
      %v1699 = vadd.f32 %v1607, %v1691
      %v1700 = vadd.f32 %v1608, %v1696
      %v1701 = vrot.slane %v374, 6
      %v1702 = vrot.slane %v1701, 4
      %v1703 = vrot.slane %v1609, 6
      %v1704 = vsel %vm583, %v1702, %v1703
      %v1705 = vld [vmem:[%s3 + $0x38] sm:$0xf]
      %v1706 = vcombine.low %v1425, %v1429
      %v1707 = vcombine.low %v1433, %v1704
      %v1708 = vsel %vm413, %v1706, 0
      %v1710 = vsel %vm413, %v1707, 0
      %v1713 = vsel %vm418, %v1705, 0
      %1715 = vmatprep.subr.mxu0 0.0
      %1716 = vmatpush1.msra.mxu0 0.0
      %1717 = vmatprep.subr.mxu0 0.0
      %1718 = vmatpush1.msra.mxu0 0.0
      %1719 = vmatprep.subr.mxu0 0.0
      %1720 = vmatpush1.msra.mxu0 0.0
      %1721 = vmatprep.subr.mxu0 0.0
      %1722 = vmatpush1.msra.mxu0 0.0
      %1723 = vmatprep.subr.mxu0 0.0
      %1724 = vmatpush1.msra.mxu0 0.0
      %1725 = vmatprep.subr.mxu0 0.0
      %1726 = vmatpush1.msra.mxu0 0.0
      %1727 = vmatprep.subr.mxu0 0.0
      %1728 = vmatpush1.msra.mxu0 0.0
      %1729 = vmatprep.subr.mxu0 0.0
      %1730 = vmatpush1.msra.mxu0 0.0
      %1731 = vmatprep.subr.mxu0 0.0
      %1732 = vmatpush1.msra.mxu0 0.0
      %1733 = vmatprep.subr.mxu0 0.0
      %1734 = vmatpush1.msra.mxu0 0.0
      %1735 = vmatprep.subr.mxu0 0.0
      %1736 = vmatpush1.msra.mxu0 0.0
      %1737 = vmatprep.subr.mxu0 0.0
      %1738 = vmatpush1.msra.mxu0 0.0
      %1739 = vmatprep.subr.mxu0 0.0
      %1740 = vmatpush1.msra.mxu0 0.0
      %1741 = vmatprep.subr.mxu0 0.0
      %1742 = vmatpush1.msra.mxu0 0.0
      %1743 = vmatprep.subr.mxu0 0.0
      %1744 = vmatpush1.msra.mxu0 0.0
      %1745 = vmatprep.subr.mxu0 0.0
      %1746 = vmatpush1.msra.mxu0 %v1713
      %1747 = vmatprep.subr.mxu0 0.0
      %1748 = vmatpush2.msra.mxu0 0.0
      %1749 = vmatprep.subr.mxu0 0.0
      %1750 = vmatpush2.msra.mxu0 0.0
      %1751 = vmatprep.subr.mxu0 0.0
      %1752 = vmatpush2.msra.mxu0 0.0
      %1753 = vmatprep.subr.mxu0 0.0
      %1754 = vmatpush2.msra.mxu0 0.0
      %1755 = vmatprep.subr.mxu0 0.0
      %1756 = vmatpush2.msra.mxu0 0.0
      %1757 = vmatprep.subr.mxu0 0.0
      %1758 = vmatpush2.msra.mxu0 0.0
      %1759 = vmatprep.subr.mxu0 0.0
      %1760 = vmatpush2.msra.mxu0 0.0
      %1761 = vmatprep.subr.mxu0 0.0
      %1762 = vmatpush2.msra.mxu0 0.0
      %1763 = vmatprep.subr.mxu0 0.0
      %1764 = vmatpush2.msra.mxu0 0.0
      %1765 = vmatprep.subr.mxu0 0.0
      %1766 = vmatpush2.msra.mxu0 0.0
      %1767 = vmatprep.subr.mxu0 0.0
      %1768 = vmatpush2.msra.mxu0 0.0
      %1769 = vmatprep.subr.mxu0 0.0
      %1770 = vmatpush2.msra.mxu0 0.0
      %1771 = vmatprep.subr.mxu0 0.0
      %1772 = vmatpush2.msra.mxu0 0.0
      %1773 = vmatprep.subr.mxu0 0.0
      %1774 = vmatpush2.msra.mxu0 0.0
      %1775 = vmatprep.subr.mxu0 0.0
      %1776 = vmatpush2.msra.mxu0 0.0
      %1777 = vmatprep.subr.mxu0 0.0
      %1778 = vmatpush2.msra.mxu0 0.0
      %1779 = vmatprep.mubr.f32.mxu0 0.0
      %1780 = vmatmul.mubr.f32.gmra.mxu0 %v1708
      %v1781 = vpop.f32.mrf.mxu0
      %v1782 = vadd.f32 0.0, %v1781
      %v1783 = vpop.f32.mrf.mxu0
      %1784 = vmatprep.mubr.f32.mxu0 0.0
      %1785 = vmatmul.mubr.f32.gmra.mxu0 %v1710
      %v1786 = vpop.f32.mrf.mxu0
      %v1787 = vadd.f32 0.0, %v1786
      %v1788 = vpop.f32.mrf.mxu0
      %1789 = vdwg.mxu0
      %v1790 = vadd.f32 %v1699, %v1782
      %v1791 = vadd.f32 %v1700, %v1787
      %v1792 = vld [vmem:[%s3 + $0x3c] sm:$0xf]
      %v1794 = vcombine.low %v374, %v375
      %v1795 = vsel %vm413, %v1794, 0
      %v1798 = vsel %vm418, %v1792, 0
      %1800 = vmatprep.subr.mxu0 0.0
      %1801 = vmatpush1.msra.mxu0 0.0
      %1802 = vmatprep.subr.mxu0 0.0
      %1803 = vmatpush1.msra.mxu0 0.0
      %1804 = vmatprep.subr.mxu0 0.0
      %1805 = vmatpush1.msra.mxu0 0.0
      %1806 = vmatprep.subr.mxu0 0.0
      %1807 = vmatpush1.msra.mxu0 0.0
      %1808 = vmatprep.subr.mxu0 0.0
      %1809 = vmatpush1.msra.mxu0 0.0
      %1810 = vmatprep.subr.mxu0 0.0
      %1811 = vmatpush1.msra.mxu0 0.0
      %1812 = vmatprep.subr.mxu0 0.0
      %1813 = vmatpush1.msra.mxu0 0.0
      %1814 = vmatprep.subr.mxu0 0.0
      %1815 = vmatpush1.msra.mxu0 0.0
      %1816 = vmatprep.subr.mxu0 0.0
      %1817 = vmatpush1.msra.mxu0 0.0
      %1818 = vmatprep.subr.mxu0 0.0
      %1819 = vmatpush1.msra.mxu0 0.0
      %1820 = vmatprep.subr.mxu0 0.0
      %1821 = vmatpush1.msra.mxu0 0.0
      %1822 = vmatprep.subr.mxu0 0.0
      %1823 = vmatpush1.msra.mxu0 0.0
      %1824 = vmatprep.subr.mxu0 0.0
      %1825 = vmatpush1.msra.mxu0 0.0
      %1826 = vmatprep.subr.mxu0 0.0
      %1827 = vmatpush1.msra.mxu0 0.0
      %1828 = vmatprep.subr.mxu0 0.0
      %1829 = vmatpush1.msra.mxu0 0.0
      %1830 = vmatprep.subr.mxu0 0.0
      %1831 = vmatpush1.msra.mxu0 %v1798
      %1832 = vmatprep.subr.mxu0 0.0
      %1833 = vmatpush2.msra.mxu0 0.0
      %1834 = vmatprep.subr.mxu0 0.0
      %1835 = vmatpush2.msra.mxu0 0.0
      %1836 = vmatprep.subr.mxu0 0.0
      %1837 = vmatpush2.msra.mxu0 0.0
      %1838 = vmatprep.subr.mxu0 0.0
      %1839 = vmatpush2.msra.mxu0 0.0
      %1840 = vmatprep.subr.mxu0 0.0
      %1841 = vmatpush2.msra.mxu0 0.0
      %1842 = vmatprep.subr.mxu0 0.0
      %1843 = vmatpush2.msra.mxu0 0.0
      %1844 = vmatprep.subr.mxu0 0.0
      %1845 = vmatpush2.msra.mxu0 0.0
      %1846 = vmatprep.subr.mxu0 0.0
      %1847 = vmatpush2.msra.mxu0 0.0
      %1848 = vmatprep.subr.mxu0 0.0
      %1849 = vmatpush2.msra.mxu0 0.0
      %1850 = vmatprep.subr.mxu0 0.0
      %1851 = vmatpush2.msra.mxu0 0.0
      %1852 = vmatprep.subr.mxu0 0.0
      %1853 = vmatpush2.msra.mxu0 0.0
      %1854 = vmatprep.subr.mxu0 0.0
      %1855 = vmatpush2.msra.mxu0 0.0
      %1856 = vmatprep.subr.mxu0 0.0
      %1857 = vmatpush2.msra.mxu0 0.0
      %1858 = vmatprep.subr.mxu0 0.0
      %1859 = vmatpush2.msra.mxu0 0.0
      %1860 = vmatprep.subr.mxu0 0.0
      %1861 = vmatpush2.msra.mxu0 0.0
      %1862 = vmatprep.subr.mxu0 0.0
      %1863 = vmatpush2.msra.mxu0 0.0
      %1864 = vmatprep.mubr.f32.mxu0 0.0
      %1865 = vmatmul.mubr.f32.gmra.mxu0 %v1229
      %v1866 = vpop.f32.mrf.mxu0
      %v1867 = vadd.f32 0.0, %v1866
      %v1868 = vpop.f32.mrf.mxu0
      %1869 = vmatprep.mubr.f32.mxu0 0.0
      %1870 = vmatmul.mubr.f32.gmra.mxu0 %v1795
      %v1871 = vpop.f32.mrf.mxu0
      %v1872 = vadd.f32 0.0, %v1871
      %v1873 = vpop.f32.mrf.mxu0
      %1874 = vdwg.mxu0
      %v1875 = vadd.f32 %v1790, %v1867
      %v1876 = vadd.f32 %v1791, %v1872
      %v1877 = vcombine.high %v375, %v375
      %v1878 = vrot.slane %v375, 5
      %v1879 = vrot.slane %v1878, 4
      %v1880 = vrot.slane %v1877, 5
      %v1881 = vsel %vm393, %v1879, %v1880
      %v1882 = vld [vmem:[%s3 + $0x40] sm:$0xf]
      %v1883 = vcombine.low %v1613, %v1881
      %v1884 = vsel %vm413, %v1883, 0
      %v1887 = vsel %vm418, %v1882, 0
      %1889 = vmatprep.subr.mxu0 0.0
      %1890 = vmatpush1.msra.mxu0 0.0
      %1891 = vmatprep.subr.mxu0 0.0
      %1892 = vmatpush1.msra.mxu0 0.0
      %1893 = vmatprep.subr.mxu0 0.0
      %1894 = vmatpush1.msra.mxu0 0.0
      %1895 = vmatprep.subr.mxu0 0.0
      %1896 = vmatpush1.msra.mxu0 0.0
      %1897 = vmatprep.subr.mxu0 0.0
      %1898 = vmatpush1.msra.mxu0 0.0
      %1899 = vmatprep.subr.mxu0 0.0
      %1900 = vmatpush1.msra.mxu0 0.0
      %1901 = vmatprep.subr.mxu0 0.0
      %1902 = vmatpush1.msra.mxu0 0.0
      %1903 = vmatprep.subr.mxu0 0.0
      %1904 = vmatpush1.msra.mxu0 0.0
      %1905 = vmatprep.subr.mxu0 0.0
      %1906 = vmatpush1.msra.mxu0 0.0
      %1907 = vmatprep.subr.mxu0 0.0
      %1908 = vmatpush1.msra.mxu0 0.0
      %1909 = vmatprep.subr.mxu0 0.0
      %1910 = vmatpush1.msra.mxu0 0.0
      %1911 = vmatprep.subr.mxu0 0.0
      %1912 = vmatpush1.msra.mxu0 0.0
      %1913 = vmatprep.subr.mxu0 0.0
      %1914 = vmatpush1.msra.mxu0 0.0
      %1915 = vmatprep.subr.mxu0 0.0
      %1916 = vmatpush1.msra.mxu0 0.0
      %1917 = vmatprep.subr.mxu0 0.0
      %1918 = vmatpush1.msra.mxu0 0.0
      %1919 = vmatprep.subr.mxu0 0.0
      %1920 = vmatpush1.msra.mxu0 %v1887
      %1921 = vmatprep.subr.mxu0 0.0
      %1922 = vmatpush2.msra.mxu0 0.0
      %1923 = vmatprep.subr.mxu0 0.0
      %1924 = vmatpush2.msra.mxu0 0.0
      %1925 = vmatprep.subr.mxu0 0.0
      %1926 = vmatpush2.msra.mxu0 0.0
      %1927 = vmatprep.subr.mxu0 0.0
      %1928 = vmatpush2.msra.mxu0 0.0
      %1929 = vmatprep.subr.mxu0 0.0
      %1930 = vmatpush2.msra.mxu0 0.0
      %1931 = vmatprep.subr.mxu0 0.0
      %1932 = vmatpush2.msra.mxu0 0.0
      %1933 = vmatprep.subr.mxu0 0.0
      %1934 = vmatpush2.msra.mxu0 0.0
      %1935 = vmatprep.subr.mxu0 0.0
      %1936 = vmatpush2.msra.mxu0 0.0
      %1937 = vmatprep.subr.mxu0 0.0
      %1938 = vmatpush2.msra.mxu0 0.0
      %1939 = vmatprep.subr.mxu0 0.0
      %1940 = vmatpush2.msra.mxu0 0.0
      %1941 = vmatprep.subr.mxu0 0.0
      %1942 = vmatpush2.msra.mxu0 0.0
      %1943 = vmatprep.subr.mxu0 0.0
      %1944 = vmatpush2.msra.mxu0 0.0
      %1945 = vmatprep.subr.mxu0 0.0
      %1946 = vmatpush2.msra.mxu0 0.0
      %1947 = vmatprep.subr.mxu0 0.0
      %1948 = vmatpush2.msra.mxu0 0.0
      %1949 = vmatprep.subr.mxu0 0.0
      %1950 = vmatpush2.msra.mxu0 0.0
      %1951 = vmatprep.subr.mxu0 0.0
      %1952 = vmatpush2.msra.mxu0 0.0
      %1953 = vmatprep.mubr.f32.mxu0 0.0
      %1954 = vmatmul.mubr.f32.gmra.mxu0 %v1336
      %v1955 = vpop.f32.mrf.mxu0
      %v1956 = vadd.f32 0.0, %v1955
      %v1957 = vpop.f32.mrf.mxu0
      %1958 = vmatprep.mubr.f32.mxu0 0.0
      %1959 = vmatmul.mubr.f32.gmra.mxu0 %v1884
      %v1960 = vpop.f32.mrf.mxu0
      %v1961 = vadd.f32 0.0, %v1960
      %v1962 = vpop.f32.mrf.mxu0
      %1963 = vdwg.mxu0
      %v1964 = vadd.f32 %v1875, %v1956
      %v1965 = vadd.f32 %v1876, %v1961
      %v1966 = vrot.slane %v375, 6
      %v1967 = vrot.slane %v1966, 4
      %v1968 = vrot.slane %v1877, 6
      %v1969 = vsel %vm583, %v1967, %v1968
      %v1970 = vld [vmem:[%s3 + $0x44] sm:$0xf]
      %v1971 = vcombine.low %v1704, %v1969
      %v1972 = vsel %vm413, %v1971, 0
      %v1975 = vsel %vm418, %v1970, 0
      %1977 = vmatprep.subr.mxu0 0.0
      %1978 = vmatpush1.msra.mxu0 0.0
      %1979 = vmatprep.subr.mxu0 0.0
      %1980 = vmatpush1.msra.mxu0 0.0
      %1981 = vmatprep.subr.mxu0 0.0
      %1982 = vmatpush1.msra.mxu0 0.0
      %1983 = vmatprep.subr.mxu0 0.0
      %1984 = vmatpush1.msra.mxu0 0.0
      %1985 = vmatprep.subr.mxu0 0.0
      %1986 = vmatpush1.msra.mxu0 0.0
      %1987 = vmatprep.subr.mxu0 0.0
      %1988 = vmatpush1.msra.mxu0 0.0
      %1989 = vmatprep.subr.mxu0 0.0
      %1990 = vmatpush1.msra.mxu0 0.0
      %1991 = vmatprep.subr.mxu0 0.0
      %1992 = vmatpush1.msra.mxu0 0.0
      %1993 = vmatprep.subr.mxu0 0.0
      %1994 = vmatpush1.msra.mxu0 0.0
      %1995 = vmatprep.subr.mxu0 0.0
      %1996 = vmatpush1.msra.mxu0 0.0
      %1997 = vmatprep.subr.mxu0 0.0
      %1998 = vmatpush1.msra.mxu0 0.0
      %1999 = vmatprep.subr.mxu0 0.0
      %2000 = vmatpush1.msra.mxu0 0.0
      %2001 = vmatprep.subr.mxu0 0.0
      %2002 = vmatpush1.msra.mxu0 0.0
      %2003 = vmatprep.subr.mxu0 0.0
      %2004 = vmatpush1.msra.mxu0 0.0
      %2005 = vmatprep.subr.mxu0 0.0
      %2006 = vmatpush1.msra.mxu0 0.0
      %2007 = vmatprep.subr.mxu0 0.0
      %2008 = vmatpush1.msra.mxu0 %v1975
      %2009 = vmatprep.subr.mxu0 0.0
      %2010 = vmatpush2.msra.mxu0 0.0
      %2011 = vmatprep.subr.mxu0 0.0
      %2012 = vmatpush2.msra.mxu0 0.0
      %2013 = vmatprep.subr.mxu0 0.0
      %2014 = vmatpush2.msra.mxu0 0.0
      %2015 = vmatprep.subr.mxu0 0.0
      %2016 = vmatpush2.msra.mxu0 0.0
      %2017 = vmatprep.subr.mxu0 0.0
      %2018 = vmatpush2.msra.mxu0 0.0
      %2019 = vmatprep.subr.mxu0 0.0
      %2020 = vmatpush2.msra.mxu0 0.0
      %2021 = vmatprep.subr.mxu0 0.0
      %2022 = vmatpush2.msra.mxu0 0.0
      %2023 = vmatprep.subr.mxu0 0.0
      %2024 = vmatpush2.msra.mxu0 0.0
      %2025 = vmatprep.subr.mxu0 0.0
      %2026 = vmatpush2.msra.mxu0 0.0
      %2027 = vmatprep.subr.mxu0 0.0
      %2028 = vmatpush2.msra.mxu0 0.0
      %2029 = vmatprep.subr.mxu0 0.0
      %2030 = vmatpush2.msra.mxu0 0.0
      %2031 = vmatprep.subr.mxu0 0.0
      %2032 = vmatpush2.msra.mxu0 0.0
      %2033 = vmatprep.subr.mxu0 0.0
      %2034 = vmatpush2.msra.mxu0 0.0
      %2035 = vmatprep.subr.mxu0 0.0
      %2036 = vmatpush2.msra.mxu0 0.0
      %2037 = vmatprep.subr.mxu0 0.0
      %2038 = vmatpush2.msra.mxu0 0.0
      %2039 = vmatprep.subr.mxu0 0.0
      %2040 = vmatpush2.msra.mxu0 0.0
      %2041 = vmatprep.mubr.f32.mxu0 0.0
      %2042 = vmatmul.mubr.f32.gmra.mxu0 %v1439
      %v2043 = vpop.f32.mrf.mxu0
      %v2044 = vadd.f32 0.0, %v2043
      %v2045 = vpop.f32.mrf.mxu0
      %2046 = vmatprep.mubr.f32.mxu0 0.0
      %2047 = vmatmul.mubr.f32.gmra.mxu0 %v1972
      %v2048 = vpop.f32.mrf.mxu0
      %v2049 = vadd.f32 0.0, %v2048
      %v2050 = vpop.f32.mrf.mxu0
      %2051 = vdwg.mxu0
      %v2052 = vadd.f32 %v1964, %v2044
      %v2053 = vadd.f32 %v1965, %v2049
      %v2054 = vld [vmem:[%s3 + $0x48] sm:$0xf]
      %v2059 = vcombine.low %v376, %v377
      %v2060 = vcombine.low %v378, %v379
      %v2061 = vsel %vm413, %v2059, 0
      %v2063 = vsel %vm413, %v2060, 0
      %v2066 = vsel %vm418, %v2054, 0
      %2068 = vmatprep.subr.mxu0 0.0
      %2069 = vmatpush1.msra.mxu0 0.0
      %2070 = vmatprep.subr.mxu0 0.0
      %2071 = vmatpush1.msra.mxu0 0.0
      %2072 = vmatprep.subr.mxu0 0.0
      %2073 = vmatpush1.msra.mxu0 0.0
      %2074 = vmatprep.subr.mxu0 0.0
      %2075 = vmatpush1.msra.mxu0 0.0
      %2076 = vmatprep.subr.mxu0 0.0
      %2077 = vmatpush1.msra.mxu0 0.0
      %2078 = vmatprep.subr.mxu0 0.0
      %2079 = vmatpush1.msra.mxu0 0.0
      %2080 = vmatprep.subr.mxu0 0.0
      %2081 = vmatpush1.msra.mxu0 0.0
      %2082 = vmatprep.subr.mxu0 0.0
      %2083 = vmatpush1.msra.mxu0 0.0
      %2084 = vmatprep.subr.mxu0 0.0
      %2085 = vmatpush1.msra.mxu0 0.0
      %2086 = vmatprep.subr.mxu0 0.0
      %2087 = vmatpush1.msra.mxu0 0.0
      %2088 = vmatprep.subr.mxu0 0.0
      %2089 = vmatpush1.msra.mxu0 0.0
      %2090 = vmatprep.subr.mxu0 0.0
      %2091 = vmatpush1.msra.mxu0 0.0
      %2092 = vmatprep.subr.mxu0 0.0
      %2093 = vmatpush1.msra.mxu0 0.0
      %2094 = vmatprep.subr.mxu0 0.0
      %2095 = vmatpush1.msra.mxu0 0.0
      %2096 = vmatprep.subr.mxu0 0.0
      %2097 = vmatpush1.msra.mxu0 0.0
      %2098 = vmatprep.subr.mxu0 0.0
      %2099 = vmatpush1.msra.mxu0 %v2066
      %2100 = vmatprep.subr.mxu0 0.0
      %2101 = vmatpush2.msra.mxu0 0.0
      %2102 = vmatprep.subr.mxu0 0.0
      %2103 = vmatpush2.msra.mxu0 0.0
      %2104 = vmatprep.subr.mxu0 0.0
      %2105 = vmatpush2.msra.mxu0 0.0
      %2106 = vmatprep.subr.mxu0 0.0
      %2107 = vmatpush2.msra.mxu0 0.0
      %2108 = vmatprep.subr.mxu0 0.0
      %2109 = vmatpush2.msra.mxu0 0.0
      %2110 = vmatprep.subr.mxu0 0.0
      %2111 = vmatpush2.msra.mxu0 0.0
      %2112 = vmatprep.subr.mxu0 0.0
      %2113 = vmatpush2.msra.mxu0 0.0
      %2114 = vmatprep.subr.mxu0 0.0
      %2115 = vmatpush2.msra.mxu0 0.0
      %2116 = vmatprep.subr.mxu0 0.0
      %2117 = vmatpush2.msra.mxu0 0.0
      %2118 = vmatprep.subr.mxu0 0.0
      %2119 = vmatpush2.msra.mxu0 0.0
      %2120 = vmatprep.subr.mxu0 0.0
      %2121 = vmatpush2.msra.mxu0 0.0
      %2122 = vmatprep.subr.mxu0 0.0
      %2123 = vmatpush2.msra.mxu0 0.0
      %2124 = vmatprep.subr.mxu0 0.0
      %2125 = vmatpush2.msra.mxu0 0.0
      %2126 = vmatprep.subr.mxu0 0.0
      %2127 = vmatpush2.msra.mxu0 0.0
      %2128 = vmatprep.subr.mxu0 0.0
      %2129 = vmatpush2.msra.mxu0 0.0
      %2130 = vmatprep.subr.mxu0 0.0
      %2131 = vmatpush2.msra.mxu0 0.0
      %2132 = vmatprep.mubr.f32.mxu0 0.0
      %2133 = vmatmul.mubr.f32.gmra.mxu0 %v2061
      %v2134 = vpop.f32.mrf.mxu0
      %v2135 = vadd.f32 0.0, %v2134
      %v2136 = vpop.f32.mrf.mxu0
      %2137 = vmatprep.mubr.f32.mxu0 0.0
      %2138 = vmatmul.mubr.f32.gmra.mxu0 %v2063
      %v2139 = vpop.f32.mrf.mxu0
      %v2140 = vadd.f32 0.0, %v2139
      %v2141 = vpop.f32.mrf.mxu0
      %2142 = vdwg.mxu0
      %v2143 = vadd.f32 %v2052, %v2135
      %v2144 = vadd.f32 %v2053, %v2140
      %v2145 = vcombine.high %v376, %v376
      %v2146 = vcombine.high %v377, %v377
      %v2147 = vcombine.high %v378, %v378
      %v2148 = vcombine.high %v379, %v379
      %v2149 = vrot.slane %v376, 5
      %v2150 = vrot.slane %v2149, 4
      %v2151 = vrot.slane %v2145, 5
      %v2152 = vsel %vm393, %v2150, %v2151
      %v2153 = vrot.slane %v377, 5
      %v2154 = vrot.slane %v2153, 4
      %v2155 = vrot.slane %v2146, 5
      %v2156 = vsel %vm393, %v2154, %v2155
      %v2157 = vrot.slane %v378, 5
      %v2158 = vrot.slane %v2157, 4
      %v2159 = vrot.slane %v2147, 5
      %v2160 = vsel %vm393, %v2158, %v2159
      %v2161 = vrot.slane %v379, 5
      %v2162 = vrot.slane %v2161, 4
      %v2163 = vrot.slane %v2148, 5
      %v2164 = vsel %vm393, %v2162, %v2163
      %v2165 = vld [vmem:[%s3 + $0x4c] sm:$0xf]
      %v2166 = vcombine.low %v2152, %v2156
      %v2167 = vcombine.low %v2160, %v2164
      %v2168 = vsel %vm413, %v2166, 0
      %v2170 = vsel %vm413, %v2167, 0
      %v2173 = vsel %vm418, %v2165, 0
      %2175 = vmatprep.subr.mxu0 0.0
      %2176 = vmatpush1.msra.mxu0 0.0
      %2177 = vmatprep.subr.mxu0 0.0
      %2178 = vmatpush1.msra.mxu0 0.0
      %2179 = vmatprep.subr.mxu0 0.0
      %2180 = vmatpush1.msra.mxu0 0.0
      %2181 = vmatprep.subr.mxu0 0.0
      %2182 = vmatpush1.msra.mxu0 0.0
      %2183 = vmatprep.subr.mxu0 0.0
      %2184 = vmatpush1.msra.mxu0 0.0
      %2185 = vmatprep.subr.mxu0 0.0
      %2186 = vmatpush1.msra.mxu0 0.0
      %2187 = vmatprep.subr.mxu0 0.0
      %2188 = vmatpush1.msra.mxu0 0.0
      %2189 = vmatprep.subr.mxu0 0.0
      %2190 = vmatpush1.msra.mxu0 0.0
      %2191 = vmatprep.subr.mxu0 0.0
      %2192 = vmatpush1.msra.mxu0 0.0
      %2193 = vmatprep.subr.mxu0 0.0
      %2194 = vmatpush1.msra.mxu0 0.0
      %2195 = vmatprep.subr.mxu0 0.0
      %2196 = vmatpush1.msra.mxu0 0.0
      %2197 = vmatprep.subr.mxu0 0.0
      %2198 = vmatpush1.msra.mxu0 0.0
      %2199 = vmatprep.subr.mxu0 0.0
      %2200 = vmatpush1.msra.mxu0 0.0
      %2201 = vmatprep.subr.mxu0 0.0
      %2202 = vmatpush1.msra.mxu0 0.0
      %2203 = vmatprep.subr.mxu0 0.0
      %2204 = vmatpush1.msra.mxu0 0.0
      %2205 = vmatprep.subr.mxu0 0.0
      %2206 = vmatpush1.msra.mxu0 %v2173
      %2207 = vmatprep.subr.mxu0 0.0
      %2208 = vmatpush2.msra.mxu0 0.0
      %2209 = vmatprep.subr.mxu0 0.0
      %2210 = vmatpush2.msra.mxu0 0.0
      %2211 = vmatprep.subr.mxu0 0.0
      %2212 = vmatpush2.msra.mxu0 0.0
      %2213 = vmatprep.subr.mxu0 0.0
      %2214 = vmatpush2.msra.mxu0 0.0
      %2215 = vmatprep.subr.mxu0 0.0
      %2216 = vmatpush2.msra.mxu0 0.0
      %2217 = vmatprep.subr.mxu0 0.0
      %2218 = vmatpush2.msra.mxu0 0.0
      %2219 = vmatprep.subr.mxu0 0.0
      %2220 = vmatpush2.msra.mxu0 0.0
      %2221 = vmatprep.subr.mxu0 0.0
      %2222 = vmatpush2.msra.mxu0 0.0
      %2223 = vmatprep.subr.mxu0 0.0
      %2224 = vmatpush2.msra.mxu0 0.0
      %2225 = vmatprep.subr.mxu0 0.0
      %2226 = vmatpush2.msra.mxu0 0.0
      %2227 = vmatprep.subr.mxu0 0.0
      %2228 = vmatpush2.msra.mxu0 0.0
      %2229 = vmatprep.subr.mxu0 0.0
      %2230 = vmatpush2.msra.mxu0 0.0
      %2231 = vmatprep.subr.mxu0 0.0
      %2232 = vmatpush2.msra.mxu0 0.0
      %2233 = vmatprep.subr.mxu0 0.0
      %2234 = vmatpush2.msra.mxu0 0.0
      %2235 = vmatprep.subr.mxu0 0.0
      %2236 = vmatpush2.msra.mxu0 0.0
      %2237 = vmatprep.subr.mxu0 0.0
      %2238 = vmatpush2.msra.mxu0 0.0
      %2239 = vmatprep.mubr.f32.mxu0 0.0
      %2240 = vmatmul.mubr.f32.gmra.mxu0 %v2168
      %v2241 = vpop.f32.mrf.mxu0
      %v2242 = vadd.f32 0.0, %v2241
      %v2243 = vpop.f32.mrf.mxu0
      %2244 = vmatprep.mubr.f32.mxu0 0.0
      %2245 = vmatmul.mubr.f32.gmra.mxu0 %v2170
      %v2246 = vpop.f32.mrf.mxu0
      %v2247 = vadd.f32 0.0, %v2246
      %v2248 = vpop.f32.mrf.mxu0
      %2249 = vdwg.mxu0
      %v2250 = vadd.f32 %v2143, %v2242
      %v2251 = vadd.f32 %v2144, %v2247
      %v2252 = vrot.slane %v376, 6
      %v2253 = vrot.slane %v2252, 4
      %v2254 = vrot.slane %v2145, 6
      %v2255 = vsel %vm583, %v2253, %v2254
      %v2256 = vrot.slane %v377, 6
      %v2257 = vrot.slane %v2256, 4
      %v2258 = vrot.slane %v2146, 6
      %v2259 = vsel %vm583, %v2257, %v2258
      %v2260 = vrot.slane %v378, 6
      %v2261 = vrot.slane %v2260, 4
      %v2262 = vrot.slane %v2147, 6
      %v2263 = vsel %vm583, %v2261, %v2262
      %v2264 = vrot.slane %v379, 6
      %v2265 = vrot.slane %v2264, 4
      %v2266 = vrot.slane %v2148, 6
      %v2267 = vsel %vm583, %v2265, %v2266
      %v2268 = vld [vmem:[%s3 + $0x50] sm:$0xf]
      %v2269 = vcombine.low %v2255, %v2259
      %v2270 = vcombine.low %v2263, %v2267
      %v2271 = vsel %vm413, %v2269, 0
      %v2273 = vsel %vm413, %v2270, 0
      %v2276 = vsel %vm418, %v2268, 0
      %2278 = vmatprep.subr.mxu0 0.0
      %2279 = vmatpush1.msra.mxu0 0.0
      %2280 = vmatprep.subr.mxu0 0.0
      %2281 = vmatpush1.msra.mxu0 0.0
      %2282 = vmatprep.subr.mxu0 0.0
      %2283 = vmatpush1.msra.mxu0 0.0
      %2284 = vmatprep.subr.mxu0 0.0
      %2285 = vmatpush1.msra.mxu0 0.0
      %2286 = vmatprep.subr.mxu0 0.0
      %2287 = vmatpush1.msra.mxu0 0.0
      %2288 = vmatprep.subr.mxu0 0.0
      %2289 = vmatpush1.msra.mxu0 0.0
      %2290 = vmatprep.subr.mxu0 0.0
      %2291 = vmatpush1.msra.mxu0 0.0
      %2292 = vmatprep.subr.mxu0 0.0
      %2293 = vmatpush1.msra.mxu0 0.0
      %2294 = vmatprep.subr.mxu0 0.0
      %2295 = vmatpush1.msra.mxu0 0.0
      %2296 = vmatprep.subr.mxu0 0.0
      %2297 = vmatpush1.msra.mxu0 0.0
      %2298 = vmatprep.subr.mxu0 0.0
      %2299 = vmatpush1.msra.mxu0 0.0
      %2300 = vmatprep.subr.mxu0 0.0
      %2301 = vmatpush1.msra.mxu0 0.0
      %2302 = vmatprep.subr.mxu0 0.0
      %2303 = vmatpush1.msra.mxu0 0.0
      %2304 = vmatprep.subr.mxu0 0.0
      %2305 = vmatpush1.msra.mxu0 0.0
      %2306 = vmatprep.subr.mxu0 0.0
      %2307 = vmatpush1.msra.mxu0 0.0
      %2308 = vmatprep.subr.mxu0 0.0
      %2309 = vmatpush1.msra.mxu0 %v2276
      %2310 = vmatprep.subr.mxu0 0.0
      %2311 = vmatpush2.msra.mxu0 0.0
      %2312 = vmatprep.subr.mxu0 0.0
      %2313 = vmatpush2.msra.mxu0 0.0
      %2314 = vmatprep.subr.mxu0 0.0
      %2315 = vmatpush2.msra.mxu0 0.0
      %2316 = vmatprep.subr.mxu0 0.0
      %2317 = vmatpush2.msra.mxu0 0.0
      %2318 = vmatprep.subr.mxu0 0.0
      %2319 = vmatpush2.msra.mxu0 0.0
      %2320 = vmatprep.subr.mxu0 0.0
      %2321 = vmatpush2.msra.mxu0 0.0
      %2322 = vmatprep.subr.mxu0 0.0
      %2323 = vmatpush2.msra.mxu0 0.0
      %2324 = vmatprep.subr.mxu0 0.0
      %2325 = vmatpush2.msra.mxu0 0.0
      %2326 = vmatprep.subr.mxu0 0.0
      %2327 = vmatpush2.msra.mxu0 0.0
      %2328 = vmatprep.subr.mxu0 0.0
      %2329 = vmatpush2.msra.mxu0 0.0
      %2330 = vmatprep.subr.mxu0 0.0
      %2331 = vmatpush2.msra.mxu0 0.0
      %2332 = vmatprep.subr.mxu0 0.0
      %2333 = vmatpush2.msra.mxu0 0.0
      %2334 = vmatprep.subr.mxu0 0.0
      %2335 = vmatpush2.msra.mxu0 0.0
      %2336 = vmatprep.subr.mxu0 0.0
      %2337 = vmatpush2.msra.mxu0 0.0
      %2338 = vmatprep.subr.mxu0 0.0
      %2339 = vmatpush2.msra.mxu0 0.0
      %2340 = vmatprep.subr.mxu0 0.0
      %2341 = vmatpush2.msra.mxu0 0.0
      %2342 = vmatprep.mubr.f32.mxu0 0.0
      %2343 = vmatmul.mubr.f32.gmra.mxu0 %v2271
      %v2344 = vpop.f32.mrf.mxu0
      %v2345 = vadd.f32 0.0, %v2344
      %v2346 = vpop.f32.mrf.mxu0
      %2347 = vmatprep.mubr.f32.mxu0 0.0
      %2348 = vmatmul.mubr.f32.gmra.mxu0 %v2273
      %v2349 = vpop.f32.mrf.mxu0
      %v2350 = vadd.f32 0.0, %v2349
      %v2351 = vpop.f32.mrf.mxu0
      %2352 = vdwg.mxu0
      %v2353 = vadd.f32 %v2250, %v2345
      %v2354 = vadd.f32 %v2251, %v2350
      %v2355 = vld [vmem:[%s3 + $0x54] sm:$0xf]
      %v2357 = vcombine.low %v377, %v378
      %v2358 = vcombine.low %v379, %v380
      %v2359 = vsel %vm413, %v2357, 0
      %v2361 = vsel %vm413, %v2358, 0
      %v2364 = vsel %vm418, %v2355, 0
      %2366 = vmatprep.subr.mxu0 0.0
      %2367 = vmatpush1.msra.mxu0 0.0
      %2368 = vmatprep.subr.mxu0 0.0
      %2369 = vmatpush1.msra.mxu0 0.0
      %2370 = vmatprep.subr.mxu0 0.0
      %2371 = vmatpush1.msra.mxu0 0.0
      %2372 = vmatprep.subr.mxu0 0.0
      %2373 = vmatpush1.msra.mxu0 0.0
      %2374 = vmatprep.subr.mxu0 0.0
      %2375 = vmatpush1.msra.mxu0 0.0
      %2376 = vmatprep.subr.mxu0 0.0
      %2377 = vmatpush1.msra.mxu0 0.0
      %2378 = vmatprep.subr.mxu0 0.0
      %2379 = vmatpush1.msra.mxu0 0.0
      %2380 = vmatprep.subr.mxu0 0.0
      %2381 = vmatpush1.msra.mxu0 0.0
      %2382 = vmatprep.subr.mxu0 0.0
      %2383 = vmatpush1.msra.mxu0 0.0
      %2384 = vmatprep.subr.mxu0 0.0
      %2385 = vmatpush1.msra.mxu0 0.0
      %2386 = vmatprep.subr.mxu0 0.0
      %2387 = vmatpush1.msra.mxu0 0.0
      %2388 = vmatprep.subr.mxu0 0.0
      %2389 = vmatpush1.msra.mxu0 0.0
      %2390 = vmatprep.subr.mxu0 0.0
      %2391 = vmatpush1.msra.mxu0 0.0
      %2392 = vmatprep.subr.mxu0 0.0
      %2393 = vmatpush1.msra.mxu0 0.0
      %2394 = vmatprep.subr.mxu0 0.0
      %2395 = vmatpush1.msra.mxu0 0.0
      %2396 = vmatprep.subr.mxu0 0.0
      %2397 = vmatpush1.msra.mxu0 %v2364
      %2398 = vmatprep.subr.mxu0 0.0
      %2399 = vmatpush2.msra.mxu0 0.0
      %2400 = vmatprep.subr.mxu0 0.0
      %2401 = vmatpush2.msra.mxu0 0.0
      %2402 = vmatprep.subr.mxu0 0.0
      %2403 = vmatpush2.msra.mxu0 0.0
      %2404 = vmatprep.subr.mxu0 0.0
      %2405 = vmatpush2.msra.mxu0 0.0
      %2406 = vmatprep.subr.mxu0 0.0
      %2407 = vmatpush2.msra.mxu0 0.0
      %2408 = vmatprep.subr.mxu0 0.0
      %2409 = vmatpush2.msra.mxu0 0.0
      %2410 = vmatprep.subr.mxu0 0.0
      %2411 = vmatpush2.msra.mxu0 0.0
      %2412 = vmatprep.subr.mxu0 0.0
      %2413 = vmatpush2.msra.mxu0 0.0
      %2414 = vmatprep.subr.mxu0 0.0
      %2415 = vmatpush2.msra.mxu0 0.0
      %2416 = vmatprep.subr.mxu0 0.0
      %2417 = vmatpush2.msra.mxu0 0.0
      %2418 = vmatprep.subr.mxu0 0.0
      %2419 = vmatpush2.msra.mxu0 0.0
      %2420 = vmatprep.subr.mxu0 0.0
      %2421 = vmatpush2.msra.mxu0 0.0
      %2422 = vmatprep.subr.mxu0 0.0
      %2423 = vmatpush2.msra.mxu0 0.0
      %2424 = vmatprep.subr.mxu0 0.0
      %2425 = vmatpush2.msra.mxu0 0.0
      %2426 = vmatprep.subr.mxu0 0.0
      %2427 = vmatpush2.msra.mxu0 0.0
      %2428 = vmatprep.subr.mxu0 0.0
      %2429 = vmatpush2.msra.mxu0 0.0
      %2430 = vmatprep.mubr.f32.mxu0 0.0
      %2431 = vmatmul.mubr.f32.gmra.mxu0 %v2359
      %v2432 = vpop.f32.mrf.mxu0
      %v2433 = vadd.f32 0.0, %v2432
      %v2434 = vpop.f32.mrf.mxu0
      %2435 = vmatprep.mubr.f32.mxu0 0.0
      %2436 = vmatmul.mubr.f32.gmra.mxu0 %v2361
      %v2437 = vpop.f32.mrf.mxu0
      %v2438 = vadd.f32 0.0, %v2437
      %v2439 = vpop.f32.mrf.mxu0
      %2440 = vdwg.mxu0
      %v2441 = vadd.f32 %v2353, %v2433
      %v2442 = vadd.f32 %v2354, %v2438
      %v2443 = vcombine.high %v380, %v380
      %v2444 = vrot.slane %v380, 5
      %v2445 = vrot.slane %v2444, 4
      %v2446 = vrot.slane %v2443, 5
      %v2447 = vsel %vm393, %v2445, %v2446
      %v2448 = vld [vmem:[%s3 + $0x58] sm:$0xf]
      %v2449 = vcombine.low %v2156, %v2160
      %v2450 = vcombine.low %v2164, %v2447
      %v2451 = vsel %vm413, %v2449, 0
      %v2453 = vsel %vm413, %v2450, 0
      %v2456 = vsel %vm418, %v2448, 0
      %2458 = vmatprep.subr.mxu0 0.0
      %2459 = vmatpush1.msra.mxu0 0.0
      %2460 = vmatprep.subr.mxu0 0.0
      %2461 = vmatpush1.msra.mxu0 0.0
      %2462 = vmatprep.subr.mxu0 0.0
      %2463 = vmatpush1.msra.mxu0 0.0
      %2464 = vmatprep.subr.mxu0 0.0
      %2465 = vmatpush1.msra.mxu0 0.0
      %2466 = vmatprep.subr.mxu0 0.0
      %2467 = vmatpush1.msra.mxu0 0.0
      %2468 = vmatprep.subr.mxu0 0.0
      %2469 = vmatpush1.msra.mxu0 0.0
      %2470 = vmatprep.subr.mxu0 0.0
      %2471 = vmatpush1.msra.mxu0 0.0
      %2472 = vmatprep.subr.mxu0 0.0
      %2473 = vmatpush1.msra.mxu0 0.0
      %2474 = vmatprep.subr.mxu0 0.0
      %2475 = vmatpush1.msra.mxu0 0.0
      %2476 = vmatprep.subr.mxu0 0.0
      %2477 = vmatpush1.msra.mxu0 0.0
      %2478 = vmatprep.subr.mxu0 0.0
      %2479 = vmatpush1.msra.mxu0 0.0
      %2480 = vmatprep.subr.mxu0 0.0
      %2481 = vmatpush1.msra.mxu0 0.0
      %2482 = vmatprep.subr.mxu0 0.0
      %2483 = vmatpush1.msra.mxu0 0.0
      %2484 = vmatprep.subr.mxu0 0.0
      %2485 = vmatpush1.msra.mxu0 0.0
      %2486 = vmatprep.subr.mxu0 0.0
      %2487 = vmatpush1.msra.mxu0 0.0
      %2488 = vmatprep.subr.mxu0 0.0
      %2489 = vmatpush1.msra.mxu0 %v2456
      %2490 = vmatprep.subr.mxu0 0.0
      %2491 = vmatpush2.msra.mxu0 0.0
      %2492 = vmatprep.subr.mxu0 0.0
      %2493 = vmatpush2.msra.mxu0 0.0
      %2494 = vmatprep.subr.mxu0 0.0
      %2495 = vmatpush2.msra.mxu0 0.0
      %2496 = vmatprep.subr.mxu0 0.0
      %2497 = vmatpush2.msra.mxu0 0.0
      %2498 = vmatprep.subr.mxu0 0.0
      %2499 = vmatpush2.msra.mxu0 0.0
      %2500 = vmatprep.subr.mxu0 0.0
      %2501 = vmatpush2.msra.mxu0 0.0
      %2502 = vmatprep.subr.mxu0 0.0
      %2503 = vmatpush2.msra.mxu0 0.0
      %2504 = vmatprep.subr.mxu0 0.0
      %2505 = vmatpush2.msra.mxu0 0.0
      %2506 = vmatprep.subr.mxu0 0.0
      %2507 = vmatpush2.msra.mxu0 0.0
      %2508 = vmatprep.subr.mxu0 0.0
      %2509 = vmatpush2.msra.mxu0 0.0
      %2510 = vmatprep.subr.mxu0 0.0
      %2511 = vmatpush2.msra.mxu0 0.0
      %2512 = vmatprep.subr.mxu0 0.0
      %2513 = vmatpush2.msra.mxu0 0.0
      %2514 = vmatprep.subr.mxu0 0.0
      %2515 = vmatpush2.msra.mxu0 0.0
      %2516 = vmatprep.subr.mxu0 0.0
      %2517 = vmatpush2.msra.mxu0 0.0
      %2518 = vmatprep.subr.mxu0 0.0
      %2519 = vmatpush2.msra.mxu0 0.0
      %2520 = vmatprep.subr.mxu0 0.0
      %2521 = vmatpush2.msra.mxu0 0.0
      %2522 = vmatprep.mubr.f32.mxu0 0.0
      %2523 = vmatmul.mubr.f32.gmra.mxu0 %v2451
      %v2524 = vpop.f32.mrf.mxu0
      %v2525 = vadd.f32 0.0, %v2524
      %v2526 = vpop.f32.mrf.mxu0
      %2527 = vmatprep.mubr.f32.mxu0 0.0
      %2528 = vmatmul.mubr.f32.gmra.mxu0 %v2453
      %v2529 = vpop.f32.mrf.mxu0
      %v2530 = vadd.f32 0.0, %v2529
      %v2531 = vpop.f32.mrf.mxu0
      %2532 = vdwg.mxu0
      %v2533 = vadd.f32 %v2441, %v2525
      %v2534 = vadd.f32 %v2442, %v2530
      %v2535 = vrot.slane %v380, 6
      %v2536 = vrot.slane %v2535, 4
      %v2537 = vrot.slane %v2443, 6
      %v2538 = vsel %vm583, %v2536, %v2537
      %v2539 = vld [vmem:[%s3 + $0x5c] sm:$0xf]
      %v2540 = vcombine.low %v2259, %v2263
      %v2541 = vcombine.low %v2267, %v2538
      %v2542 = vsel %vm413, %v2540, 0
      %v2544 = vsel %vm413, %v2541, 0
      %v2547 = vsel %vm418, %v2539, 0
      %2549 = vmatprep.subr.mxu0 0.0
      %2550 = vmatpush1.msra.mxu0 0.0
      %2551 = vmatprep.subr.mxu0 0.0
      %2552 = vmatpush1.msra.mxu0 0.0
      %2553 = vmatprep.subr.mxu0 0.0
      %2554 = vmatpush1.msra.mxu0 0.0
      %2555 = vmatprep.subr.mxu0 0.0
      %2556 = vmatpush1.msra.mxu0 0.0
      %2557 = vmatprep.subr.mxu0 0.0
      %2558 = vmatpush1.msra.mxu0 0.0
      %2559 = vmatprep.subr.mxu0 0.0
      %2560 = vmatpush1.msra.mxu0 0.0
      %2561 = vmatprep.subr.mxu0 0.0
      %2562 = vmatpush1.msra.mxu0 0.0
      %2563 = vmatprep.subr.mxu0 0.0
      %2564 = vmatpush1.msra.mxu0 0.0
      %2565 = vmatprep.subr.mxu0 0.0
      %2566 = vmatpush1.msra.mxu0 0.0
      %2567 = vmatprep.subr.mxu0 0.0
      %2568 = vmatpush1.msra.mxu0 0.0
      %2569 = vmatprep.subr.mxu0 0.0
      %2570 = vmatpush1.msra.mxu0 0.0
      %2571 = vmatprep.subr.mxu0 0.0
      %2572 = vmatpush1.msra.mxu0 0.0
      %2573 = vmatprep.subr.mxu0 0.0
      %2574 = vmatpush1.msra.mxu0 0.0
      %2575 = vmatprep.subr.mxu0 0.0
      %2576 = vmatpush1.msra.mxu0 0.0
      %2577 = vmatprep.subr.mxu0 0.0
      %2578 = vmatpush1.msra.mxu0 0.0
      %2579 = vmatprep.subr.mxu0 0.0
      %2580 = vmatpush1.msra.mxu0 %v2547
      %2581 = vmatprep.subr.mxu0 0.0
      %2582 = vmatpush2.msra.mxu0 0.0
      %2583 = vmatprep.subr.mxu0 0.0
      %2584 = vmatpush2.msra.mxu0 0.0
      %2585 = vmatprep.subr.mxu0 0.0
      %2586 = vmatpush2.msra.mxu0 0.0
      %2587 = vmatprep.subr.mxu0 0.0
      %2588 = vmatpush2.msra.mxu0 0.0
      %2589 = vmatprep.subr.mxu0 0.0
      %2590 = vmatpush2.msra.mxu0 0.0
      %2591 = vmatprep.subr.mxu0 0.0
      %2592 = vmatpush2.msra.mxu0 0.0
      %2593 = vmatprep.subr.mxu0 0.0
      %2594 = vmatpush2.msra.mxu0 0.0
      %2595 = vmatprep.subr.mxu0 0.0
      %2596 = vmatpush2.msra.mxu0 0.0
      %2597 = vmatprep.subr.mxu0 0.0
      %2598 = vmatpush2.msra.mxu0 0.0
      %2599 = vmatprep.subr.mxu0 0.0
      %2600 = vmatpush2.msra.mxu0 0.0
      %2601 = vmatprep.subr.mxu0 0.0
      %2602 = vmatpush2.msra.mxu0 0.0
      %2603 = vmatprep.subr.mxu0 0.0
      %2604 = vmatpush2.msra.mxu0 0.0
      %2605 = vmatprep.subr.mxu0 0.0
      %2606 = vmatpush2.msra.mxu0 0.0
      %2607 = vmatprep.subr.mxu0 0.0
      %2608 = vmatpush2.msra.mxu0 0.0
      %2609 = vmatprep.subr.mxu0 0.0
      %2610 = vmatpush2.msra.mxu0 0.0
      %2611 = vmatprep.subr.mxu0 0.0
      %2612 = vmatpush2.msra.mxu0 0.0
      %2613 = vmatprep.mubr.f32.mxu0 0.0
      %2614 = vmatmul.mubr.f32.gmra.mxu0 %v2542
      %v2615 = vpop.f32.mrf.mxu0
      %v2616 = vadd.f32 0.0, %v2615
      %v2617 = vpop.f32.mrf.mxu0
      %2618 = vmatprep.mubr.f32.mxu0 0.0
      %2619 = vmatmul.mubr.f32.gmra.mxu0 %v2544
      %v2620 = vpop.f32.mrf.mxu0
      %v2621 = vadd.f32 0.0, %v2620
      %v2622 = vpop.f32.mrf.mxu0
      %2623 = vdwg.mxu0
      %v2624 = vadd.f32 %v2533, %v2616
      %v2625 = vadd.f32 %v2534, %v2621
      %v2626 = vld [vmem:[%s3 + $0x60] sm:$0xf]
      %v2628 = vcombine.low %v380, %v381
      %v2629 = vsel %vm413, %v2628, 0
      %v2632 = vsel %vm418, %v2626, 0
      %2634 = vmatprep.subr.mxu0 0.0
      %2635 = vmatpush1.msra.mxu0 0.0
      %2636 = vmatprep.subr.mxu0 0.0
      %2637 = vmatpush1.msra.mxu0 0.0
      %2638 = vmatprep.subr.mxu0 0.0
      %2639 = vmatpush1.msra.mxu0 0.0
      %2640 = vmatprep.subr.mxu0 0.0
      %2641 = vmatpush1.msra.mxu0 0.0
      %2642 = vmatprep.subr.mxu0 0.0
      %2643 = vmatpush1.msra.mxu0 0.0
      %2644 = vmatprep.subr.mxu0 0.0
      %2645 = vmatpush1.msra.mxu0 0.0
      %2646 = vmatprep.subr.mxu0 0.0
      %2647 = vmatpush1.msra.mxu0 0.0
      %2648 = vmatprep.subr.mxu0 0.0
      %2649 = vmatpush1.msra.mxu0 0.0
      %2650 = vmatprep.subr.mxu0 0.0
      %2651 = vmatpush1.msra.mxu0 0.0
      %2652 = vmatprep.subr.mxu0 0.0
      %2653 = vmatpush1.msra.mxu0 0.0
      %2654 = vmatprep.subr.mxu0 0.0
      %2655 = vmatpush1.msra.mxu0 0.0
      %2656 = vmatprep.subr.mxu0 0.0
      %2657 = vmatpush1.msra.mxu0 0.0
      %2658 = vmatprep.subr.mxu0 0.0
      %2659 = vmatpush1.msra.mxu0 0.0
      %2660 = vmatprep.subr.mxu0 0.0
      %2661 = vmatpush1.msra.mxu0 0.0
      %2662 = vmatprep.subr.mxu0 0.0
      %2663 = vmatpush1.msra.mxu0 0.0
      %2664 = vmatprep.subr.mxu0 0.0
      %2665 = vmatpush1.msra.mxu0 %v2632
      %2666 = vmatprep.subr.mxu0 0.0
      %2667 = vmatpush2.msra.mxu0 0.0
      %2668 = vmatprep.subr.mxu0 0.0
      %2669 = vmatpush2.msra.mxu0 0.0
      %2670 = vmatprep.subr.mxu0 0.0
      %2671 = vmatpush2.msra.mxu0 0.0
      %2672 = vmatprep.subr.mxu0 0.0
      %2673 = vmatpush2.msra.mxu0 0.0
      %2674 = vmatprep.subr.mxu0 0.0
      %2675 = vmatpush2.msra.mxu0 0.0
      %2676 = vmatprep.subr.mxu0 0.0
      %2677 = vmatpush2.msra.mxu0 0.0
      %2678 = vmatprep.subr.mxu0 0.0
      %2679 = vmatpush2.msra.mxu0 0.0
      %2680 = vmatprep.subr.mxu0 0.0
      %2681 = vmatpush2.msra.mxu0 0.0
      %2682 = vmatprep.subr.mxu0 0.0
      %2683 = vmatpush2.msra.mxu0 0.0
      %2684 = vmatprep.subr.mxu0 0.0
      %2685 = vmatpush2.msra.mxu0 0.0
      %2686 = vmatprep.subr.mxu0 0.0
      %2687 = vmatpush2.msra.mxu0 0.0
      %2688 = vmatprep.subr.mxu0 0.0
      %2689 = vmatpush2.msra.mxu0 0.0
      %2690 = vmatprep.subr.mxu0 0.0
      %2691 = vmatpush2.msra.mxu0 0.0
      %2692 = vmatprep.subr.mxu0 0.0
      %2693 = vmatpush2.msra.mxu0 0.0
      %2694 = vmatprep.subr.mxu0 0.0
      %2695 = vmatpush2.msra.mxu0 0.0
      %2696 = vmatprep.subr.mxu0 0.0
      %2697 = vmatpush2.msra.mxu0 0.0
      %2698 = vmatprep.mubr.f32.mxu0 0.0
      %2699 = vmatmul.mubr.f32.gmra.mxu0 %v2063
      %v2700 = vpop.f32.mrf.mxu0
      %v2701 = vadd.f32 0.0, %v2700
      %v2702 = vpop.f32.mrf.mxu0
      %2703 = vmatprep.mubr.f32.mxu0 0.0
      %2704 = vmatmul.mubr.f32.gmra.mxu0 %v2629
      %v2705 = vpop.f32.mrf.mxu0
      %v2706 = vadd.f32 0.0, %v2705
      %v2707 = vpop.f32.mrf.mxu0
      %2708 = vdwg.mxu0
      %v2709 = vadd.f32 %v2624, %v2701
      %v2710 = vadd.f32 %v2625, %v2706
      %v2711 = vcombine.high %v381, %v381
      %v2712 = vrot.slane %v381, 5
      %v2713 = vrot.slane %v2712, 4
      %v2714 = vrot.slane %v2711, 5
      %v2715 = vsel %vm393, %v2713, %v2714
      %v2716 = vld [vmem:[%s3 + $0x64] sm:$0xf]
      %v2717 = vcombine.low %v2447, %v2715
      %v2718 = vsel %vm413, %v2717, 0
      %v2721 = vsel %vm418, %v2716, 0
      %2723 = vmatprep.subr.mxu0 0.0
      %2724 = vmatpush1.msra.mxu0 0.0
      %2725 = vmatprep.subr.mxu0 0.0
      %2726 = vmatpush1.msra.mxu0 0.0
      %2727 = vmatprep.subr.mxu0 0.0
      %2728 = vmatpush1.msra.mxu0 0.0
      %2729 = vmatprep.subr.mxu0 0.0
      %2730 = vmatpush1.msra.mxu0 0.0
      %2731 = vmatprep.subr.mxu0 0.0
      %2732 = vmatpush1.msra.mxu0 0.0
      %2733 = vmatprep.subr.mxu0 0.0
      %2734 = vmatpush1.msra.mxu0 0.0
      %2735 = vmatprep.subr.mxu0 0.0
      %2736 = vmatpush1.msra.mxu0 0.0
      %2737 = vmatprep.subr.mxu0 0.0
      %2738 = vmatpush1.msra.mxu0 0.0
      %2739 = vmatprep.subr.mxu0 0.0
      %2740 = vmatpush1.msra.mxu0 0.0
      %2741 = vmatprep.subr.mxu0 0.0
      %2742 = vmatpush1.msra.mxu0 0.0
      %2743 = vmatprep.subr.mxu0 0.0
      %2744 = vmatpush1.msra.mxu0 0.0
      %2745 = vmatprep.subr.mxu0 0.0
      %2746 = vmatpush1.msra.mxu0 0.0
      %2747 = vmatprep.subr.mxu0 0.0
      %2748 = vmatpush1.msra.mxu0 0.0
      %2749 = vmatprep.subr.mxu0 0.0
      %2750 = vmatpush1.msra.mxu0 0.0
      %2751 = vmatprep.subr.mxu0 0.0
      %2752 = vmatpush1.msra.mxu0 0.0
      %2753 = vmatprep.subr.mxu0 0.0
      %2754 = vmatpush1.msra.mxu0 %v2721
      %2755 = vmatprep.subr.mxu0 0.0
      %2756 = vmatpush2.msra.mxu0 0.0
      %2757 = vmatprep.subr.mxu0 0.0
      %2758 = vmatpush2.msra.mxu0 0.0
      %2759 = vmatprep.subr.mxu0 0.0
      %2760 = vmatpush2.msra.mxu0 0.0
      %2761 = vmatprep.subr.mxu0 0.0
      %2762 = vmatpush2.msra.mxu0 0.0
      %2763 = vmatprep.subr.mxu0 0.0
      %2764 = vmatpush2.msra.mxu0 0.0
      %2765 = vmatprep.subr.mxu0 0.0
      %2766 = vmatpush2.msra.mxu0 0.0
      %2767 = vmatprep.subr.mxu0 0.0
      %2768 = vmatpush2.msra.mxu0 0.0
      %2769 = vmatprep.subr.mxu0 0.0
      %2770 = vmatpush2.msra.mxu0 0.0
      %2771 = vmatprep.subr.mxu0 0.0
      %2772 = vmatpush2.msra.mxu0 0.0
      %2773 = vmatprep.subr.mxu0 0.0
      %2774 = vmatpush2.msra.mxu0 0.0
      %2775 = vmatprep.subr.mxu0 0.0
      %2776 = vmatpush2.msra.mxu0 0.0
      %2777 = vmatprep.subr.mxu0 0.0
      %2778 = vmatpush2.msra.mxu0 0.0
      %2779 = vmatprep.subr.mxu0 0.0
      %2780 = vmatpush2.msra.mxu0 0.0
      %2781 = vmatprep.subr.mxu0 0.0
      %2782 = vmatpush2.msra.mxu0 0.0
      %2783 = vmatprep.subr.mxu0 0.0
      %2784 = vmatpush2.msra.mxu0 0.0
      %2785 = vmatprep.subr.mxu0 0.0
      %2786 = vmatpush2.msra.mxu0 0.0
      %2787 = vmatprep.mubr.f32.mxu0 0.0
      %2788 = vmatmul.mubr.f32.gmra.mxu0 %v2170
      %v2789 = vpop.f32.mrf.mxu0
      %v2790 = vadd.f32 0.0, %v2789
      %v2791 = vpop.f32.mrf.mxu0
      %2792 = vmatprep.mubr.f32.mxu0 0.0
      %2793 = vmatmul.mubr.f32.gmra.mxu0 %v2718
      %v2794 = vpop.f32.mrf.mxu0
      %v2795 = vadd.f32 0.0, %v2794
      %v2796 = vpop.f32.mrf.mxu0
      %2797 = vdwg.mxu0
      %v2798 = vadd.f32 %v2709, %v2790
      %v2799 = vadd.f32 %v2710, %v2795
      %v2800 = vrot.slane %v381, 6
      %v2801 = vrot.slane %v2800, 4
      %v2802 = vrot.slane %v2711, 6
      %v2803 = vsel %vm583, %v2801, %v2802
      %v2804 = vld [vmem:[%s3 + $0x68] sm:$0xf]
      %v2805 = vcombine.low %v2538, %v2803
      %v2806 = vsel %vm413, %v2805, 0
      %v2809 = vsel %vm418, %v2804, 0
      %2811 = vmatprep.subr.mxu0 0.0
      %2812 = vmatpush1.msra.mxu0 0.0
      %2813 = vmatprep.subr.mxu0 0.0
      %2814 = vmatpush1.msra.mxu0 0.0
      %2815 = vmatprep.subr.mxu0 0.0
      %2816 = vmatpush1.msra.mxu0 0.0
      %2817 = vmatprep.subr.mxu0 0.0
      %2818 = vmatpush1.msra.mxu0 0.0
      %2819 = vmatprep.subr.mxu0 0.0
      %2820 = vmatpush1.msra.mxu0 0.0
      %2821 = vmatprep.subr.mxu0 0.0
      %2822 = vmatpush1.msra.mxu0 0.0
      %2823 = vmatprep.subr.mxu0 0.0
      %2824 = vmatpush1.msra.mxu0 0.0
      %2825 = vmatprep.subr.mxu0 0.0
      %2826 = vmatpush1.msra.mxu0 0.0
      %2827 = vmatprep.subr.mxu0 0.0
      %2828 = vmatpush1.msra.mxu0 0.0
      %2829 = vmatprep.subr.mxu0 0.0
      %2830 = vmatpush1.msra.mxu0 0.0
      %2831 = vmatprep.subr.mxu0 0.0
      %2832 = vmatpush1.msra.mxu0 0.0
      %2833 = vmatprep.subr.mxu0 0.0
      %2834 = vmatpush1.msra.mxu0 0.0
      %2835 = vmatprep.subr.mxu0 0.0
      %2836 = vmatpush1.msra.mxu0 0.0
      %2837 = vmatprep.subr.mxu0 0.0
      %2838 = vmatpush1.msra.mxu0 0.0
      %2839 = vmatprep.subr.mxu0 0.0
      %2840 = vmatpush1.msra.mxu0 0.0
      %2841 = vmatprep.subr.mxu0 0.0
      %2842 = vmatpush1.msra.mxu0 %v2809
      %2843 = vmatprep.subr.mxu0 0.0
      %2844 = vmatpush2.msra.mxu0 0.0
      %2845 = vmatprep.subr.mxu0 0.0
      %2846 = vmatpush2.msra.mxu0 0.0
      %2847 = vmatprep.subr.mxu0 0.0
      %2848 = vmatpush2.msra.mxu0 0.0
      %2849 = vmatprep.subr.mxu0 0.0
      %2850 = vmatpush2.msra.mxu0 0.0
      %2851 = vmatprep.subr.mxu0 0.0
      %2852 = vmatpush2.msra.mxu0 0.0
      %2853 = vmatprep.subr.mxu0 0.0
      %2854 = vmatpush2.msra.mxu0 0.0
      %2855 = vmatprep.subr.mxu0 0.0
      %2856 = vmatpush2.msra.mxu0 0.0
      %2857 = vmatprep.subr.mxu0 0.0
      %2858 = vmatpush2.msra.mxu0 0.0
      %2859 = vmatprep.subr.mxu0 0.0
      %2860 = vmatpush2.msra.mxu0 0.0
      %2861 = vmatprep.subr.mxu0 0.0
      %2862 = vmatpush2.msra.mxu0 0.0
      %2863 = vmatprep.subr.mxu0 0.0
      %2864 = vmatpush2.msra.mxu0 0.0
      %2865 = vmatprep.subr.mxu0 0.0
      %2866 = vmatpush2.msra.mxu0 0.0
      %2867 = vmatprep.subr.mxu0 0.0
      %2868 = vmatpush2.msra.mxu0 0.0
      %2869 = vmatprep.subr.mxu0 0.0
      %2870 = vmatpush2.msra.mxu0 0.0
      %2871 = vmatprep.subr.mxu0 0.0
      %2872 = vmatpush2.msra.mxu0 0.0
      %2873 = vmatprep.subr.mxu0 0.0
      %2874 = vmatpush2.msra.mxu0 0.0
      %2875 = vmatprep.mubr.f32.mxu0 0.0
      %2876 = vmatmul.mubr.f32.gmra.mxu0 %v2273
      %v2877 = vpop.f32.mrf.mxu0
      %v2878 = vadd.f32 0.0, %v2877
      %v2879 = vpop.f32.mrf.mxu0
      %2880 = vmatprep.mubr.f32.mxu0 0.0
      %2881 = vmatmul.mubr.f32.gmra.mxu0 %v2806
      %v2882 = vpop.f32.mrf.mxu0
      %v2883 = vadd.f32 0.0, %v2882
      %v2884 = vpop.f32.mrf.mxu0
      %2885 = vdwg.mxu0
      %v2886 = vadd.f32 %v2798, %v2878
      %v2887 = vadd.f32 %v2799, %v2883
      %v2890 = vcombine.high %v2886, %v2886
      %v2891 = vcombine.high %v2887, %v2887
      %2894 = vst [vmem:[%s355] sm:$0xf] %v2886
      %2895 = vst [vmem:[%s355 + $0x4] sm:$0xf] %v2890
      %2896 = vst [vmem:[%s355 + $0x8] sm:$0xf] %v2887
      %2897 = vst [vmem:[%s355 + $0xc] sm:$0xf] %v2891
      %v2898 = vadd.f32 %v2886, %v2887
      %v2899 = vrot.slane %v2898, 4
      %v2900 = vadd.f32 %v2898, %v2899
      %v2901 = vrot.slane %v2900, 2
      %v2902 = vadd.f32 %v2900, %v2901
      %v2903 = vrot.slane %v2902, 1
      %v2904 = vadd.f32 %v2902, %v2903
      %v2905 = vmul.f32 %v2886, %v2886
      %v2906 = vmul.f32 %v2887, %v2887
      %v2907 = vadd.f32 %v2905, %v2906
      %v2908 = vrot.slane %v2907, 4
      %v2909 = vadd.f32 %v2907, %v2908
      %v2910 = vrot.slane %v2909, 2
      %v2911 = vadd.f32 %v2909, %v2910
      %v2912 = vrot.slane %v2911, 1
      %v2913 = vadd.f32 %v2911, %v2912
      %vm2914 = vcmask 1040384
      %v2915 = vsel %vm2914, %v2904, %v2913
      %2916 = vst [vmem:[%s363] sm:$0x3] %v2915
      %p2917 = scmp.lt.s32.totalorder %s21, 1
      %s2918 = scalar_select %p2917, %s21, 1
      %p2919 = scmp.lt.s32.totalorder %s22, 3
      %s2920 = scalar_select %p2919, %s22, 3
      %s2921 = smul.addr %s2920, 4
      %s2922 = smul.addr %s2918, 16
      %s2923 = sadd.s32 %s2921, %s2922
      %s2924 = smul.addr %s2923, 4
      %s2925 = scalar_lea.vmem %s4, %s2924
      %p2926 = scmp.lt.s32.totalorder %s21, 1
      %s2927 = scalar_select %p2926, %s21, 1
      %p2928 = scmp.lt.s32.totalorder %s22, 3
      %s2929 = scalar_select %p2928, %s22, 3
      %s2930 = smul.addr %s2927, 4
      %s2931 = sadd.s32 %s2929, %s2930
      %s2932 = smul.addr %s2931, 2
      %s2933 = scalar_lea.vmem %s5, %s2932
      // Predicated region
      $region37: #{downsampling_layer.6} parent=35 // pred_check
        %p2934 = pneg %p158
      $region38: #{downsampling_layer.6} parent=35 // pred_check_branch
        %2936 = sbr.rel (%p2934) target = $region40
      $region39: #{downsampling_layer.6} parent=35 // pred_region
        _
      $region40: #{downsampling_layer.6} parent=35 // pred_fallthru
        _
      // Predicated region
      $region41: #{downsampling_layer.6} parent=35 // pred_check
        %p2937 = pneg %p186
      $region42: #{downsampling_layer.6} parent=35 // pred_check_branch
        %2939 = sbr.rel (%p2937) target = $region44
      $region43: #{downsampling_layer.6} parent=35 // pred_region
        _
      $region44: #{downsampling_layer.6} parent=35 // pred_fallthru
        _
    $region36: #{downsampling_layer.6} parent=5 // pred_fallthru
      _
    %p2940 = scmp.le.s32.totalorder 2, %s12
    // Predicated region
    $region45: #{downsampling_layer.6} parent=5 // pred_check
      %p2941 = pneg %p2940
    $region46: #{downsampling_layer.6} parent=5 // pred_check_branch
      %2943 = sbr.rel (%p2941) target = $region48
    $region47: #{downsampling_layer.6} parent=5 // pred_region
      %s2944 = ssub.s32 %s12, 2
      // Predicated region
      $region49: #{downsampling_layer.6} parent=47 // pred_check
        %p2945 = pneg %p164
      $region50: #{downsampling_layer.6} parent=47 // pred_check_branch
        %2947 = sbr.rel (%p2945) target = $region52
      $region51: #{downsampling_layer.6} parent=47 // pred_region
        %p2948 = scmp.lt.s32.totalorder %s23, 1
        %s2949 = scalar_select %p2948, %s23, 1
        %p2950 = scmp.lt.s32.totalorder %s24, 3
        %s2951 = scalar_select %p2950, %s24, 3
        %s2952 = smul.addr %s2951, 4
        %s2953 = smul.addr %s2949, 16
        %s2954 = sadd.s32 %s2952, %s2953
        %s2955 = smul.addr %s2954, 4
        %s2956 = scalar_lea.vmem %s4, %s2955
      $region52: #{downsampling_layer.6} parent=47 // pred_fallthru
        _
      // Predicated region
      $region53: #{downsampling_layer.6} parent=47 // pred_check
        %p2957 = pneg %p192
      $region54: #{downsampling_layer.6} parent=47 // pred_check_branch
        %2959 = sbr.rel (%p2957) target = $region56
      $region55: #{downsampling_layer.6} parent=47 // pred_region
        %p2960 = scmp.lt.s32.totalorder %s23, 1
        %s2961 = scalar_select %p2960, %s23, 1
        %p2962 = scmp.lt.s32.totalorder %s24, 3
        %s2963 = scalar_select %p2962, %s24, 3
        %s2964 = smul.addr %s2961, 4
        %s2965 = sadd.s32 %s2963, %s2964
        %s2966 = smul.addr %s2965, 2
        %s2967 = scalar_lea.vmem %s5, %s2966
      $region56: #{downsampling_layer.6} parent=47 // pred_fallthru
        _
    $region48: #{downsampling_layer.6} parent=5 // pred_fallthru
      _
  $region6: #{downsampling_layer.6} parent=0 // loop_footer
    %s16 = sadd.s32 1, %s12
  $region7: #{downsampling_layer.6} parent=0 // loop_footer_branch
    %11 = sbr.rel target = $region3
  $region8: #{downsampling_layer.6} parent=0 // loop_exit
    _

// kernel: downsampling_layer.8
$region0: #{downsampling_layer.8}
  #allocation0 [shape = 'u32[]', space=smem, size = 0x4, offset = 0x4, fixed_abs, tag = 'smem constant byte address 0x4 - core index']
  #allocation1 [shape = 'u32[144,128]{1,0:T(1,128)}', space=vmem, size = 0x12000, scoped, tag = 'internal scratch']
  %s0 = inlined_call_operand.vmem [shape: f32[2,6,6,6,128], index: 0, kind: input, shape index: {}, may-alias: {0,1,2}]
  %s1 = inlined_call_operand.vmem [shape: f32[2,6,6,6,128], index: 1, kind: input, shape index: {}, may-alias: {0,1,2}]
  %s2 = inlined_call_operand.vmem [shape: f32[2,6,6,6,128], index: 2, kind: input, shape index: {}, may-alias: {0,1,2}]
  %s3 = inlined_call_operand.vmem [shape: f32[3456,128], index: 3, kind: input, shape index: {}]
  %s4 = inlined_call_operand.vmem [shape: f32[2,4,4,4,128], index: 4, kind: output, shape index: {0}]
  %s5 = inlined_call_operand.vmem [shape: f32[2,4,2,128], index: 5, kind: output, shape index: {1}]
  %6 = xla_tuple %s4, %s5
  %s7 = sld [smem:[#allocation0]]
  $region57: #{downsampling_layer.8} parent=0
    _
  %s9 = ssub.s32 1, %s7
  %s10 = scalar_select 0, %s9, %s7
  loop: start=0, step=1, limit=10
  $region2: #{downsampling_layer.8} parent=0 // loop_pre_header
    _
  $region3: #{downsampling_layer.8} parent=0 // loop_header
    %s12 = sphi 0, %s16
    %p13 = scmp.ge.s32.totalorder %s12, 10
    %s19 = sphi 0, %s31
    %s20 = sphi 0, %s27
    %s21 = sphi 0, %s19
    %s22 = sphi 0, %s20
    %s23 = sphi 0, %s21
    %s24 = sphi 0, %s22
    %s36 = sphi 0, %s38
    %s39 = sphi 0, %s36
    %s40 = sphi 0, %s39
    %s56 = sphi 0, %s40
    %s66 = sphi 0, %s68
    %s69 = sphi 0, %s66
    %s70 = sphi 0, %s69
    %s86 = sphi 0, %s70
    %s96 = sphi 0, %s98
    %s99 = sphi 0, %s96
    %s100 = sphi 0, %s99
    %s116 = sphi 0, %s100
    %s120 = sphi 0, %s120
    %s122 = sphi 0, %s120
    %s123 = sphi 0, %s122
    %s137 = sphi 0, %s123
    %s145 = sphi 0, %s147
    %s148 = sphi 0, %s145
    %s149 = sphi 0, %s148
    %s165 = sphi 0, %s149
    %s173 = sphi 0, %s175
    %s176 = sphi 0, %s173
    %s177 = sphi 0, %s176
    %s193 = sphi 0, %s177
  $region4: #{downsampling_layer.8} parent=0 // loop_header_branch
    %15 = sbr.rel (%p13) target = $region8
  $region5: #{downsampling_layer.8} parent=0 // loop_body
    %s17 = ssub.s32 %s12, 1
    %s18 = ssub.s32 %s12, 2
    %s25 = sadd.s32 1, %s20
    %p26 = scmp.ge.s32.totalorder %s25, 4
    %s27 = scalar_select %p26, 0, %s25
    %s28 = sadd.s32 1, %s19
    %s29 = scalar_select %p26, %s28, %s19
    %p30 = scmp.ge.s32.totalorder %s29, 2
    %s31 = scalar_select %p30, 0, %s29
    %s32 = ssub.s32 %s19, %s31
    %s33 = ssub.s32 %s20, %s27
    %s34 = sor.u32 %s32, %s33
    %p35 = scmp.eq.s32.totalorder %s34, 0
    %s37 = sadd.s32 %s36, 1
    %s38 = scalar_select %p35, %s36, %s37
    %p41 = pneg %p35
    %p42 = scmp.eq.s32.totalorder %s12, 7
    %p43 = por %p41, %p42
    %p44 = scmp.ne.s32.totalorder %s36, %s39
    %p45 = scmp.eq.s32.totalorder %s12, 0
    %p46 = por %p44, %p45
    %p47 = scmp.ne.s32.totalorder %s36, %s39
    %p48 = scmp.eq.s32.totalorder %s17, 7
    %p49 = por %p47, %p48
    %p50 = scmp.ne.s32.totalorder %s39, %s40
    %p51 = scmp.eq.s32.totalorder %s17, 0
    %p52 = por %p50, %p51
    %p53 = scmp.ne.s32.totalorder %s39, %s40
    %p54 = scmp.eq.s32.totalorder %s18, 7
    %p55 = por %p53, %p54
    %p57 = scmp.ne.s32.totalorder %s40, %s56
    %p58 = scmp.eq.s32.totalorder %s18, 0
    %p59 = por %p57, %p58
    %s60 = sadd.s32 %s20, 1
    %s61 = sadd.s32 %s27, 1
    %s62 = ssub.s32 %s19, %s31
    %s63 = ssub.s32 %s60, %s61
    %s64 = sor.u32 %s62, %s63
    %p65 = scmp.eq.s32.totalorder %s64, 0
    %s67 = sadd.s32 %s66, 1
    %s68 = scalar_select %p65, %s66, %s67
    %p71 = pneg %p65
    %p72 = scmp.eq.s32.totalorder %s12, 7
    %p73 = por %p71, %p72
    %p74 = scmp.ne.s32.totalorder %s66, %s69
    %p75 = scmp.eq.s32.totalorder %s12, 0
    %p76 = por %p74, %p75
    %p77 = scmp.ne.s32.totalorder %s66, %s69
    %p78 = scmp.eq.s32.totalorder %s17, 7
    %p79 = por %p77, %p78
    %p80 = scmp.ne.s32.totalorder %s69, %s70
    %p81 = scmp.eq.s32.totalorder %s17, 0
    %p82 = por %p80, %p81
    %p83 = scmp.ne.s32.totalorder %s69, %s70
    %p84 = scmp.eq.s32.totalorder %s18, 7
    %p85 = por %p83, %p84
    %p87 = scmp.ne.s32.totalorder %s70, %s86
    %p88 = scmp.eq.s32.totalorder %s18, 0
    %p89 = por %p87, %p88
    %s90 = sadd.s32 %s20, 2
    %s91 = sadd.s32 %s27, 2
    %s92 = ssub.s32 %s19, %s31
    %s93 = ssub.s32 %s90, %s91
    %s94 = sor.u32 %s92, %s93
    %p95 = scmp.eq.s32.totalorder %s94, 0
    %s97 = sadd.s32 %s96, 1
    %s98 = scalar_select %p95, %s96, %s97
    %p101 = pneg %p95
    %p102 = scmp.eq.s32.totalorder %s12, 7
    %p103 = por %p101, %p102
    %p104 = scmp.ne.s32.totalorder %s96, %s99
    %p105 = scmp.eq.s32.totalorder %s12, 0
    %p106 = por %p104, %p105
    %p107 = scmp.ne.s32.totalorder %s96, %s99
    %p108 = scmp.eq.s32.totalorder %s17, 7
    %p109 = por %p107, %p108
    %p110 = scmp.ne.s32.totalorder %s99, %s100
    %p111 = scmp.eq.s32.totalorder %s17, 0
    %p112 = por %p110, %p111
    %p113 = scmp.ne.s32.totalorder %s99, %s100
    %p114 = scmp.eq.s32.totalorder %s18, 7
    %p115 = por %p113, %p114
    %p117 = scmp.ne.s32.totalorder %s100, %s116
    %p118 = scmp.eq.s32.totalorder %s18, 0
    %p119 = por %p117, %p118
    %s121 = sadd.s32 %s120, 1
    %p124 = scmp.eq.s32.totalorder %s12, 7
    %p125 = scmp.ne.s32.totalorder %s120, %s122
    %p126 = scmp.eq.s32.totalorder %s12, 0
    %p127 = por %p125, %p126
    %p128 = scmp.ne.s32.totalorder %s120, %s122
    %p129 = scmp.eq.s32.totalorder %s17, 7
    %p130 = por %p128, %p129
    %p131 = scmp.ne.s32.totalorder %s122, %s123
    %p132 = scmp.eq.s32.totalorder %s17, 0
    %p133 = por %p131, %p132
    %p134 = scmp.ne.s32.totalorder %s122, %s123
    %p135 = scmp.eq.s32.totalorder %s18, 7
    %p136 = por %p134, %p135
    %p138 = scmp.ne.s32.totalorder %s123, %s137
    %p139 = scmp.eq.s32.totalorder %s18, 0
    %p140 = por %p138, %p139
    %s141 = ssub.s32 %s19, %s31
    %s142 = ssub.s32 %s20, %s27
    %s143 = sor.u32 %s141, %s142
    %p144 = scmp.eq.s32.totalorder %s143, 0
    %s146 = sadd.s32 %s145, 1
    %s147 = scalar_select %p144, %s145, %s146
    %p150 = pneg %p144
    %p151 = scmp.eq.s32.totalorder %s12, 7
    %p152 = por %p150, %p151
    %p153 = scmp.ne.s32.totalorder %s145, %s148
    %p154 = scmp.eq.s32.totalorder %s12, 0
    %p155 = por %p153, %p154
    %p156 = scmp.ne.s32.totalorder %s145, %s148
    %p157 = scmp.eq.s32.totalorder %s17, 7
    %p158 = por %p156, %p157
    %p159 = scmp.ne.s32.totalorder %s148, %s149
    %p160 = scmp.eq.s32.totalorder %s17, 0
    %p161 = por %p159, %p160
    %p162 = scmp.ne.s32.totalorder %s148, %s149
    %p163 = scmp.eq.s32.totalorder %s18, 7
    %p164 = por %p162, %p163
    %p166 = scmp.ne.s32.totalorder %s149, %s165
    %p167 = scmp.eq.s32.totalorder %s18, 0
    %p168 = por %p166, %p167
    %s169 = ssub.s32 %s19, %s31
    %s170 = ssub.s32 %s20, %s27
    %s171 = sor.u32 %s169, %s170
    %p172 = scmp.eq.s32.totalorder %s171, 0
    %s174 = sadd.s32 %s173, 1
    %s175 = scalar_select %p172, %s173, %s174
    %p178 = pneg %p172
    %p179 = scmp.eq.s32.totalorder %s12, 7
    %p180 = por %p178, %p179
    %p181 = scmp.ne.s32.totalorder %s173, %s176
    %p182 = scmp.eq.s32.totalorder %s12, 0
    %p183 = por %p181, %p182
    %p184 = scmp.ne.s32.totalorder %s173, %s176
    %p185 = scmp.eq.s32.totalorder %s17, 7
    %p186 = por %p184, %p185
    %p187 = scmp.ne.s32.totalorder %s176, %s177
    %p188 = scmp.eq.s32.totalorder %s17, 0
    %p189 = por %p187, %p188
    %p190 = scmp.ne.s32.totalorder %s176, %s177
    %p191 = scmp.eq.s32.totalorder %s18, 7
    %p192 = por %p190, %p191
    %p194 = scmp.ne.s32.totalorder %s177, %s193
    %p195 = scmp.eq.s32.totalorder %s18, 0
    %p196 = por %p194, %p195
    %p197 = scmp.le.s32.totalorder 1, %s12
    %p198 = scmp.lt.s32.totalorder %s12, 9
    %p199 = pnand %p197, %p198
    %p200 = pneg %p199
    // Predicated region
    $region9: #{downsampling_layer.8} parent=5 // pred_check
      _
    $region10: #{downsampling_layer.8} parent=5 // pred_check_branch
      %202 = sbr.rel (%p199) target = $region12
    $region11: #{downsampling_layer.8} parent=5 // pred_region
      %s203 = ssub.s32 %s12, 1
      // Predicated region
      $region13: #{downsampling_layer.8} parent=11 // pred_check
        %p204 = pneg %p133
      $region14: #{downsampling_layer.8} parent=11 // pred_check_branch
        %206 = sbr.rel (%p204) target = $region16
      $region15: #{downsampling_layer.8} parent=11 // pred_region
        _
      $region16: #{downsampling_layer.8} parent=11 // pred_fallthru
        _
    $region12: #{downsampling_layer.8} parent=5 // pred_fallthru
      _
    %p207 = scmp.lt.s32.totalorder %s12, 8
    // Predicated region
    $region17: #{downsampling_layer.8} parent=5 // pred_check
      %p208 = pneg %p207
    $region18: #{downsampling_layer.8} parent=5 // pred_check_branch
      %210 = sbr.rel (%p208) target = $region20
    $region19: #{downsampling_layer.8} parent=5 // pred_region
      // Predicated region
      $region21: #{downsampling_layer.8} parent=19 // pred_check
        %p211 = pneg %p46
      $region22: #{downsampling_layer.8} parent=19 // pred_check_branch
        %213 = sbr.rel (%p211) target = $region24
      $region23: #{downsampling_layer.8} parent=19 // pred_region
        %p214 = scmp.lt.s32.totalorder %s19, 1
        %s215 = scalar_select %p214, %s19, 1
        %p216 = scmp.lt.s32.totalorder %s20, 5
        %s217 = scalar_select %p216, %s20, 5
        %s218 = smul.addr %s217, 6
        %s219 = smul.addr %s215, 36
        %s220 = sadd.s32 %s218, %s219
        %s221 = smul.addr %s220, 8
        %s222 = scalar_lea.vmem %s0, %s221
      $region24: #{downsampling_layer.8} parent=19 // pred_fallthru
        _
      // Predicated region
      $region25: #{downsampling_layer.8} parent=19 // pred_check
        %p223 = pneg %p76
      $region26: #{downsampling_layer.8} parent=19 // pred_check_branch
        %225 = sbr.rel (%p223) target = $region28
      $region27: #{downsampling_layer.8} parent=19 // pred_region
        %s226 = sadd.s32 %s20, 1
        %p227 = scmp.lt.s32.totalorder %s19, 1
        %s228 = scalar_select %p227, %s19, 1
        %p229 = scmp.lt.s32.totalorder %s226, 5
        %s230 = scalar_select %p229, %s226, 5
        %s231 = smul.addr %s230, 6
        %s232 = smul.addr %s228, 36
        %s233 = sadd.s32 %s231, %s232
        %s234 = smul.addr %s233, 8
        %s235 = scalar_lea.vmem %s1, %s234
        %s236 = sadd.s32 %s20, 1
      $region28: #{downsampling_layer.8} parent=19 // pred_fallthru
        _
      // Predicated region
      $region29: #{downsampling_layer.8} parent=19 // pred_check
        %p237 = pneg %p106
      $region30: #{downsampling_layer.8} parent=19 // pred_check_branch
        %239 = sbr.rel (%p237) target = $region32
      $region31: #{downsampling_layer.8} parent=19 // pred_region
        %s240 = sadd.s32 %s20, 2
        %p241 = scmp.lt.s32.totalorder %s19, 1
        %s242 = scalar_select %p241, %s19, 1
        %p243 = scmp.lt.s32.totalorder %s240, 5
        %s244 = scalar_select %p243, %s240, 5
        %s245 = smul.addr %s244, 6
        %s246 = smul.addr %s242, 36
        %s247 = sadd.s32 %s245, %s246
        %s248 = smul.addr %s247, 8
        %s249 = scalar_lea.vmem %s2, %s248
        %s250 = sadd.s32 %s20, 2
      $region32: #{downsampling_layer.8} parent=19 // pred_fallthru
        _
    $region20: #{downsampling_layer.8} parent=5 // pred_fallthru
      _
    %p251 = scmp.le.s32.totalorder 1, %s12
    %p252 = scmp.lt.s32.totalorder %s12, 9
    %p253 = pnand %p251, %p252
    %p254 = pneg %p253
    // Predicated region
    $region33: #{downsampling_layer.8} parent=5 // pred_check
      _
    $region34: #{downsampling_layer.8} parent=5 // pred_check_branch
      %256 = sbr.rel (%p253) target = $region36
    $region35: #{downsampling_layer.8} parent=5 // pred_region
      %s257 = ssub.s32 %s12, 1
      %p258 = scmp.lt.s32.totalorder %s21, 1
      %s259 = scalar_select %p258, %s21, 1
      %p260 = scmp.lt.s32.totalorder %s22, 5
      %s261 = scalar_select %p260, %s22, 5
      %s262 = smul.addr %s261, 6
      %s263 = smul.addr %s259, 36
      %s264 = sadd.s32 %s262, %s263
      %s265 = smul.addr %s264, 8
      %s266 = scalar_lea.vmem %s0, %s265
      %p267 = pneg %p52
      %p268 = pneg %p49
      %s269 = sadd.s32 %s22, 1
      %p270 = scmp.lt.s32.totalorder %s21, 1
      %s271 = scalar_select %p270, %s21, 1
      %p272 = scmp.lt.s32.totalorder %s269, 5
      %s273 = scalar_select %p272, %s269, 5
      %s274 = smul.addr %s273, 6
      %s275 = smul.addr %s271, 36
      %s276 = sadd.s32 %s274, %s275
      %s277 = smul.addr %s276, 8
      %s278 = scalar_lea.vmem %s1, %s277
      %p279 = pneg %p82
      %p280 = pneg %p79
      %s281 = sadd.s32 %s22, 2
      %p282 = scmp.lt.s32.totalorder %s21, 1
      %s283 = scalar_select %p282, %s21, 1
      %p284 = scmp.lt.s32.totalorder %s281, 5
      %s285 = scalar_select %p284, %s281, 5
      %s286 = smul.addr %s285, 6
      %s287 = smul.addr %s283, 36
      %s288 = sadd.s32 %s286, %s287
      %s289 = smul.addr %s288, 8
      %s290 = scalar_lea.vmem %s2, %s289
      %p291 = pneg %p112
      %p292 = pneg %p109
      %p293 = pneg %p133
      %p294 = pneg %p130
      %p295 = pneg %p161
      %p296 = pneg %p158
      %p297 = scmp.lt.s32.totalorder %s21, 1
      %s298 = scalar_select %p297, %s21, 1
      %p299 = scmp.lt.s32.totalorder %s22, 3
      %s300 = scalar_select %p299, %s22, 3
      %s301 = smul.addr %s300, 4
      %s302 = smul.addr %s298, 16
      %s303 = sadd.s32 %s301, %s302
      %s304 = smul.addr %s303, 4
      %s305 = scalar_lea.vmem %s4, %s304
      %p306 = pneg %p189
      %p307 = pneg %p186
      %p308 = scmp.lt.s32.totalorder %s21, 1
      %s309 = scalar_select %p308, %s21, 1
      %p310 = scmp.lt.s32.totalorder %s22, 3
      %s311 = scalar_select %p310, %s22, 3
      %s312 = smul.addr %s309, 4
      %s313 = sadd.s32 %s311, %s312
      %s314 = smul.addr %s313, 2
      %s315 = scalar_lea.vmem %s5, %s314
      %p316 = scmp.lt.s32.totalorder %s21, 1
      %s317 = scalar_select %p316, %s21, 1
      %p318 = scmp.lt.s32.totalorder %s22, 5
      %s319 = scalar_select %p318, %s22, 5
      %s320 = smul.addr %s319, 6
      %s321 = smul.addr %s317, 36
      %s322 = sadd.s32 %s320, %s321
      %s323 = smul.addr %s322, 8
      %s324 = scalar_lea.vmem %s0, %s323
      %s325 = sadd.s32 %s22, 1
      %p326 = scmp.lt.s32.totalorder %s21, 1
      %s327 = scalar_select %p326, %s21, 1
      %p328 = scmp.lt.s32.totalorder %s325, 5
      %s329 = scalar_select %p328, %s325, 5
      %s330 = smul.addr %s329, 6
      %s331 = smul.addr %s327, 36
      %s332 = sadd.s32 %s330, %s331
      %s333 = smul.addr %s332, 8
      %s334 = scalar_lea.vmem %s1, %s333
      %s335 = sadd.s32 %s22, 1
      %s336 = sadd.s32 %s22, 2
      %p337 = scmp.lt.s32.totalorder %s21, 1
      %s338 = scalar_select %p337, %s21, 1
      %p339 = scmp.lt.s32.totalorder %s336, 5
      %s340 = scalar_select %p339, %s336, 5
      %s341 = smul.addr %s340, 6
      %s342 = smul.addr %s338, 36
      %s343 = sadd.s32 %s341, %s342
      %s344 = smul.addr %s343, 8
      %s345 = scalar_lea.vmem %s2, %s344
      %s346 = sadd.s32 %s22, 2
      %p347 = scmp.lt.s32.totalorder %s21, 1
      %s348 = scalar_select %p347, %s21, 1
      %p349 = scmp.lt.s32.totalorder %s22, 3
      %s350 = scalar_select %p349, %s22, 3
      %s351 = smul.addr %s350, 4
      %s352 = smul.addr %s348, 16
      %s353 = sadd.s32 %s351, %s352
      %s354 = smul.addr %s353, 4
      %s355 = scalar_lea.vmem %s4, %s354
      %p356 = scmp.lt.s32.totalorder %s21, 1
      %s357 = scalar_select %p356, %s21, 1
      %p358 = scmp.lt.s32.totalorder %s22, 3
      %s359 = scalar_select %p358, %s22, 3
      %s360 = smul.addr %s357, 4
      %s361 = sadd.s32 %s359, %s360
      %s362 = smul.addr %s361, 2
      %s363 = scalar_lea.vmem %s5, %s362
      %v364 = vld [vmem:[%s324] sm:$0x3f]
      %v365 = vld [vmem:[%s324 + $0x8] sm:$0x3f]
      %v366 = vld [vmem:[%s324 + $0x10] sm:$0x3f]
      %v367 = vld [vmem:[%s324 + $0x18] sm:$0x3f]
      %v368 = vld [vmem:[%s324 + $0x20] sm:$0x3f]
      %v369 = vld [vmem:[%s324 + $0x28] sm:$0x3f]
      %v370 = vld [vmem:[%s334] sm:$0x3f]
      %v371 = vld [vmem:[%s334 + $0x8] sm:$0x3f]
      %v372 = vld [vmem:[%s334 + $0x10] sm:$0x3f]
      %v373 = vld [vmem:[%s334 + $0x18] sm:$0x3f]
      %v374 = vld [vmem:[%s334 + $0x20] sm:$0x3f]
      %v375 = vld [vmem:[%s334 + $0x28] sm:$0x3f]
      %v376 = vld [vmem:[%s345] sm:$0x3f]
      %v377 = vld [vmem:[%s345 + $0x8] sm:$0x3f]
      %v378 = vld [vmem:[%s345 + $0x10] sm:$0x3f]
      %v379 = vld [vmem:[%s345 + $0x18] sm:$0x3f]
      %v380 = vld [vmem:[%s345 + $0x20] sm:$0x3f]
      %v381 = vld [vmem:[%s345 + $0x28] sm:$0x3f]
      %v382 = vld [vmem:[%s3] sm:$0xff]
      %v383 = vld [vmem:[%s3 + $0x8] sm:$0xff]
      %v384 = vld [vmem:[%s3 + $0x10] sm:$0xff]
      %v385 = vld [vmem:[%s3 + $0x18] sm:$0xff]
      %v386 = vld [vmem:[%s3 + $0x20] sm:$0xff]
      %v387 = vld [vmem:[%s3 + $0x28] sm:$0xff]
      %v388 = vld [vmem:[%s3 + $0x30] sm:$0xff]
      %v389 = vld [vmem:[%s3 + $0x38] sm:$0xff]
      %v390 = vld [vmem:[%s3 + $0x40] sm:$0xff]
      %v391 = vld [vmem:[%s3 + $0x48] sm:$0xff]
      %v392 = vld [vmem:[%s3 + $0x50] sm:$0xff]
      %v393 = vld [vmem:[%s3 + $0x58] sm:$0xff]
      %v394 = vld [vmem:[%s3 + $0x60] sm:$0xff]
      %v395 = vld [vmem:[%s3 + $0x68] sm:$0xff]
      %v396 = vld [vmem:[%s3 + $0x70] sm:$0xff]
      %v397 = vld [vmem:[%s3 + $0x78] sm:$0xff]
      %v402 = vcombine.high %v364, %v364
      %v403 = vcombine.high %v365, %v365
      %v404 = vcombine.high %v366, %v366
      %v405 = vcombine.high %v367, %v367
      %vm406 = vcmask 1042432
      %vm407 = vcmask 1046532
      %vm408 = vmor %vm406, %vm407
      %v409 = vrot.slane %v364, 5
      %v410 = vrot.slane %v409, 4
      %v411 = vrot.slane %v402, 5
      %v412 = vsel %vm408, %v410, %v411
      %v413 = vrot.slane %v365, 5
      %v414 = vrot.slane %v413, 4
      %v415 = vrot.slane %v403, 5
      %v416 = vsel %vm408, %v414, %v415
      %v417 = vrot.slane %v366, 5
      %v418 = vrot.slane %v417, 4
      %v419 = vrot.slane %v404, 5
      %v420 = vsel %vm408, %v418, %v419
      %v421 = vrot.slane %v367, 5
      %v422 = vrot.slane %v421, 4
      %v423 = vrot.slane %v405, 5
      %v424 = vsel %vm408, %v422, %v423
      %v425 = vld [vmem:[%s3 + $0x80] sm:$0xff]
      %v426 = vld [vmem:[%s3 + $0x88] sm:$0xff]
      %v427 = vld [vmem:[%s3 + $0x90] sm:$0xff]
      %v428 = vld [vmem:[%s3 + $0x98] sm:$0xff]
      %v429 = vld [vmem:[%s3 + $0xa0] sm:$0xff]
      %v430 = vld [vmem:[%s3 + $0xa8] sm:$0xff]
      %v431 = vld [vmem:[%s3 + $0xb0] sm:$0xff]
      %v432 = vld [vmem:[%s3 + $0xb8] sm:$0xff]
      %v433 = vld [vmem:[%s3 + $0xc0] sm:$0xff]
      %v434 = vld [vmem:[%s3 + $0xc8] sm:$0xff]
      %v435 = vld [vmem:[%s3 + $0xd0] sm:$0xff]
      %v436 = vld [vmem:[%s3 + $0xd8] sm:$0xff]
      %v437 = vld [vmem:[%s3 + $0xe0] sm:$0xff]
      %v438 = vld [vmem:[%s3 + $0xe8] sm:$0xff]
      %v439 = vld [vmem:[%s3 + $0xf0] sm:$0xff]
      %v440 = vld [vmem:[%s3 + $0xf8] sm:$0xff]
      %v441 = vcombine.low %v412, %v416
      %v442 = vcombine.low %v420, %v424
      %445 = vmatprep.subr.mxu0 0.0
      %446 = vmatpush1.msra.mxu0 %v440
      %447 = vmatprep.subr.mxu0 0.0
      %448 = vmatpush1.msra.mxu0 %v439
      %449 = vmatprep.subr.mxu0 0.0
      %450 = vmatpush1.msra.mxu0 %v438
      %451 = vmatprep.subr.mxu0 0.0
      %452 = vmatpush1.msra.mxu0 %v437
      %453 = vmatprep.subr.mxu0 0.0
      %454 = vmatpush1.msra.mxu0 %v436
      %455 = vmatprep.subr.mxu0 0.0
      %456 = vmatpush1.msra.mxu0 %v435
      %457 = vmatprep.subr.mxu0 0.0
      %458 = vmatpush1.msra.mxu0 %v434
      %459 = vmatprep.subr.mxu0 0.0
      %460 = vmatpush1.msra.mxu0 %v433
      %461 = vmatprep.subr.mxu0 0.0
      %462 = vmatpush1.msra.mxu0 %v432
      %463 = vmatprep.subr.mxu0 0.0
      %464 = vmatpush1.msra.mxu0 %v431
      %465 = vmatprep.subr.mxu0 0.0
      %466 = vmatpush1.msra.mxu0 %v430
      %467 = vmatprep.subr.mxu0 0.0
      %468 = vmatpush1.msra.mxu0 %v429
      %469 = vmatprep.subr.mxu0 0.0
      %470 = vmatpush1.msra.mxu0 %v428
      %471 = vmatprep.subr.mxu0 0.0
      %472 = vmatpush1.msra.mxu0 %v427
      %473 = vmatprep.subr.mxu0 0.0
      %474 = vmatpush1.msra.mxu0 %v426
      %475 = vmatprep.subr.mxu0 0.0
      %476 = vmatpush1.msra.mxu0 %v425
      %477 = vmatprep.subr.mxu0 0.0
      %478 = vmatpush2.msra.mxu0 0.0
      %479 = vmatprep.subr.mxu0 0.0
      %480 = vmatpush2.msra.mxu0 0.0
      %481 = vmatprep.subr.mxu0 0.0
      %482 = vmatpush2.msra.mxu0 0.0
      %483 = vmatprep.subr.mxu0 0.0
      %484 = vmatpush2.msra.mxu0 0.0
      %485 = vmatprep.subr.mxu0 0.0
      %486 = vmatpush2.msra.mxu0 0.0
      %487 = vmatprep.subr.mxu0 0.0
      %488 = vmatpush2.msra.mxu0 0.0
      %489 = vmatprep.subr.mxu0 0.0
      %490 = vmatpush2.msra.mxu0 0.0
      %491 = vmatprep.subr.mxu0 0.0
      %492 = vmatpush2.msra.mxu0 0.0
      %493 = vmatprep.subr.mxu0 0.0
      %494 = vmatpush2.msra.mxu0 0.0
      %495 = vmatprep.subr.mxu0 0.0
      %496 = vmatpush2.msra.mxu0 0.0
      %497 = vmatprep.subr.mxu0 0.0
      %498 = vmatpush2.msra.mxu0 0.0
      %499 = vmatprep.subr.mxu0 0.0
      %500 = vmatpush2.msra.mxu0 0.0
      %501 = vmatprep.subr.mxu0 0.0
      %502 = vmatpush2.msra.mxu0 0.0
      %503 = vmatprep.subr.mxu0 0.0
      %504 = vmatpush2.msra.mxu0 0.0
      %505 = vmatprep.subr.mxu0 0.0
      %506 = vmatpush2.msra.mxu0 0.0
      %507 = vmatprep.subr.mxu0 0.0
      %508 = vmatpush2.msra.mxu0 0.0
      %509 = vmatprep.mubr.f32.mxu0 0.0
      %510 = vmatmul.mubr.f32.gmra.mxu0 %v441
      %v511 = vpop.f32.mrf.mxu0
      %v512 = vadd.f32 0.0, %v511
      %v513 = vpop.f32.mrf.mxu0
      %514 = vmatprep.mubr.f32.mxu0 0.0
      %515 = vmatmul.mubr.f32.gmra.mxu0 %v442
      %v516 = vpop.f32.mrf.mxu0
      %v517 = vadd.f32 0.0, %v516
      %v518 = vpop.f32.mrf.mxu0
      %519 = vdwg.mxu0
      %v520 = vcombine.low %v364, %v365
      %v521 = vcombine.low %v366, %v367
      %524 = vmatprep.subr.mxu0 0.0
      %525 = vmatpush1.msra.mxu0 %v397
      %526 = vmatprep.subr.mxu0 0.0
      %527 = vmatpush1.msra.mxu0 %v396
      %528 = vmatprep.subr.mxu0 0.0
      %529 = vmatpush1.msra.mxu0 %v395
      %530 = vmatprep.subr.mxu0 0.0
      %531 = vmatpush1.msra.mxu0 %v394
      %532 = vmatprep.subr.mxu0 0.0
      %533 = vmatpush1.msra.mxu0 %v393
      %534 = vmatprep.subr.mxu0 0.0
      %535 = vmatpush1.msra.mxu0 %v392
      %536 = vmatprep.subr.mxu0 0.0
      %537 = vmatpush1.msra.mxu0 %v391
      %538 = vmatprep.subr.mxu0 0.0
      %539 = vmatpush1.msra.mxu0 %v390
      %540 = vmatprep.subr.mxu0 0.0
      %541 = vmatpush1.msra.mxu0 %v389
      %542 = vmatprep.subr.mxu0 0.0
      %543 = vmatpush1.msra.mxu0 %v388
      %544 = vmatprep.subr.mxu0 0.0
      %545 = vmatpush1.msra.mxu0 %v387
      %546 = vmatprep.subr.mxu0 0.0
      %547 = vmatpush1.msra.mxu0 %v386
      %548 = vmatprep.subr.mxu0 0.0
      %549 = vmatpush1.msra.mxu0 %v385
      %550 = vmatprep.subr.mxu0 0.0
      %551 = vmatpush1.msra.mxu0 %v384
      %552 = vmatprep.subr.mxu0 0.0
      %553 = vmatpush1.msra.mxu0 %v383
      %554 = vmatprep.subr.mxu0 0.0
      %555 = vmatpush1.msra.mxu0 %v382
      %556 = vmatprep.subr.mxu0 0.0
      %557 = vmatpush2.msra.mxu0 0.0
      %558 = vmatprep.subr.mxu0 0.0
      %559 = vmatpush2.msra.mxu0 0.0
      %560 = vmatprep.subr.mxu0 0.0
      %561 = vmatpush2.msra.mxu0 0.0
      %562 = vmatprep.subr.mxu0 0.0
      %563 = vmatpush2.msra.mxu0 0.0
      %564 = vmatprep.subr.mxu0 0.0
      %565 = vmatpush2.msra.mxu0 0.0
      %566 = vmatprep.subr.mxu0 0.0
      %567 = vmatpush2.msra.mxu0 0.0
      %568 = vmatprep.subr.mxu0 0.0
      %569 = vmatpush2.msra.mxu0 0.0
      %570 = vmatprep.subr.mxu0 0.0
      %571 = vmatpush2.msra.mxu0 0.0
      %572 = vmatprep.subr.mxu0 0.0
      %573 = vmatpush2.msra.mxu0 0.0
      %574 = vmatprep.subr.mxu0 0.0
      %575 = vmatpush2.msra.mxu0 0.0
      %576 = vmatprep.subr.mxu0 0.0
      %577 = vmatpush2.msra.mxu0 0.0
      %578 = vmatprep.subr.mxu0 0.0
      %579 = vmatpush2.msra.mxu0 0.0
      %580 = vmatprep.subr.mxu0 0.0
      %581 = vmatpush2.msra.mxu0 0.0
      %582 = vmatprep.subr.mxu0 0.0
      %583 = vmatpush2.msra.mxu0 0.0
      %584 = vmatprep.subr.mxu0 0.0
      %585 = vmatpush2.msra.mxu0 0.0
      %586 = vmatprep.subr.mxu0 0.0
      %587 = vmatpush2.msra.mxu0 0.0
      %588 = vmatprep.mubr.f32.mxu0 0.0
      %589 = vmatmul.mubr.f32.gmra.mxu0 %v520
      %v590 = vpop.f32.mrf.mxu0
      %v591 = vadd.f32 %v512, %v590
      %v592 = vpop.f32.mrf.mxu0
      %593 = vmatprep.mubr.f32.mxu0 0.0
      %594 = vmatmul.mubr.f32.gmra.mxu0 %v521
      %v595 = vpop.f32.mrf.mxu0
      %v596 = vadd.f32 %v517, %v595
      %v597 = vpop.f32.mrf.mxu0
      %598 = vdwg.mxu0
      %vm599 = vcmask 1041408
      %vm600 = vcmask 1045508
      %vm601 = vmor %vm599, %vm600
      %v602 = vrot.slane %v364, 6
      %v603 = vrot.slane %v602, 4
      %v604 = vrot.slane %v402, 6
      %v605 = vsel %vm601, %v603, %v604
      %v606 = vrot.slane %v365, 6
      %v607 = vrot.slane %v606, 4
      %v608 = vrot.slane %v403, 6
      %v609 = vsel %vm601, %v607, %v608
      %v610 = vrot.slane %v366, 6
      %v611 = vrot.slane %v610, 4
      %v612 = vrot.slane %v404, 6
      %v613 = vsel %vm601, %v611, %v612
      %v614 = vrot.slane %v367, 6
      %v615 = vrot.slane %v614, 4
      %v616 = vrot.slane %v405, 6
      %v617 = vsel %vm601, %v615, %v616
      %v618 = vld [vmem:[%s3 + $0x100] sm:$0xff]
      %v619 = vld [vmem:[%s3 + $0x108] sm:$0xff]
      %v620 = vld [vmem:[%s3 + $0x110] sm:$0xff]
      %v621 = vld [vmem:[%s3 + $0x118] sm:$0xff]
      %v622 = vld [vmem:[%s3 + $0x120] sm:$0xff]
      %v623 = vld [vmem:[%s3 + $0x128] sm:$0xff]
      %v624 = vld [vmem:[%s3 + $0x130] sm:$0xff]
      %v625 = vld [vmem:[%s3 + $0x138] sm:$0xff]
      %v626 = vld [vmem:[%s3 + $0x140] sm:$0xff]
      %v627 = vld [vmem:[%s3 + $0x148] sm:$0xff]
      %v628 = vld [vmem:[%s3 + $0x150] sm:$0xff]
      %v629 = vld [vmem:[%s3 + $0x158] sm:$0xff]
      %v630 = vld [vmem:[%s3 + $0x160] sm:$0xff]
      %v631 = vld [vmem:[%s3 + $0x168] sm:$0xff]
      %v632 = vld [vmem:[%s3 + $0x170] sm:$0xff]
      %v633 = vld [vmem:[%s3 + $0x178] sm:$0xff]
      %v634 = vcombine.low %v605, %v609
      %v635 = vcombine.low %v613, %v617
      %638 = vmatprep.subr.mxu0 0.0
      %639 = vmatpush1.msra.mxu0 %v633
      %640 = vmatprep.subr.mxu0 0.0
      %641 = vmatpush1.msra.mxu0 %v632
      %642 = vmatprep.subr.mxu0 0.0
      %643 = vmatpush1.msra.mxu0 %v631
      %644 = vmatprep.subr.mxu0 0.0
      %645 = vmatpush1.msra.mxu0 %v630
      %646 = vmatprep.subr.mxu0 0.0
      %647 = vmatpush1.msra.mxu0 %v629
      %648 = vmatprep.subr.mxu0 0.0
      %649 = vmatpush1.msra.mxu0 %v628
      %650 = vmatprep.subr.mxu0 0.0
      %651 = vmatpush1.msra.mxu0 %v627
      %652 = vmatprep.subr.mxu0 0.0
      %653 = vmatpush1.msra.mxu0 %v626
      %654 = vmatprep.subr.mxu0 0.0
      %655 = vmatpush1.msra.mxu0 %v625
      %656 = vmatprep.subr.mxu0 0.0
      %657 = vmatpush1.msra.mxu0 %v624
      %658 = vmatprep.subr.mxu0 0.0
      %659 = vmatpush1.msra.mxu0 %v623
      %660 = vmatprep.subr.mxu0 0.0
      %661 = vmatpush1.msra.mxu0 %v622
      %662 = vmatprep.subr.mxu0 0.0
      %663 = vmatpush1.msra.mxu0 %v621
      %664 = vmatprep.subr.mxu0 0.0
      %665 = vmatpush1.msra.mxu0 %v620
      %666 = vmatprep.subr.mxu0 0.0
      %667 = vmatpush1.msra.mxu0 %v619
      %668 = vmatprep.subr.mxu0 0.0
      %669 = vmatpush1.msra.mxu0 %v618
      %670 = vmatprep.subr.mxu0 0.0
      %671 = vmatpush2.msra.mxu0 0.0
      %672 = vmatprep.subr.mxu0 0.0
      %673 = vmatpush2.msra.mxu0 0.0
      %674 = vmatprep.subr.mxu0 0.0
      %675 = vmatpush2.msra.mxu0 0.0
      %676 = vmatprep.subr.mxu0 0.0
      %677 = vmatpush2.msra.mxu0 0.0
      %678 = vmatprep.subr.mxu0 0.0
      %679 = vmatpush2.msra.mxu0 0.0
      %680 = vmatprep.subr.mxu0 0.0
      %681 = vmatpush2.msra.mxu0 0.0
      %682 = vmatprep.subr.mxu0 0.0
      %683 = vmatpush2.msra.mxu0 0.0
      %684 = vmatprep.subr.mxu0 0.0
      %685 = vmatpush2.msra.mxu0 0.0
      %686 = vmatprep.subr.mxu0 0.0
      %687 = vmatpush2.msra.mxu0 0.0
      %688 = vmatprep.subr.mxu0 0.0
      %689 = vmatpush2.msra.mxu0 0.0
      %690 = vmatprep.subr.mxu0 0.0
      %691 = vmatpush2.msra.mxu0 0.0
      %692 = vmatprep.subr.mxu0 0.0
      %693 = vmatpush2.msra.mxu0 0.0
      %694 = vmatprep.subr.mxu0 0.0
      %695 = vmatpush2.msra.mxu0 0.0
      %696 = vmatprep.subr.mxu0 0.0
      %697 = vmatpush2.msra.mxu0 0.0
      %698 = vmatprep.subr.mxu0 0.0
      %699 = vmatpush2.msra.mxu0 0.0
      %700 = vmatprep.subr.mxu0 0.0
      %701 = vmatpush2.msra.mxu0 0.0
      %702 = vmatprep.mubr.f32.mxu0 0.0
      %703 = vmatmul.mubr.f32.gmra.mxu0 %v634
      %v704 = vpop.f32.mrf.mxu0
      %v705 = vadd.f32 0.0, %v704
      %v706 = vpop.f32.mrf.mxu0
      %707 = vmatprep.mubr.f32.mxu0 0.0
      %708 = vmatmul.mubr.f32.gmra.mxu0 %v635
      %v709 = vpop.f32.mrf.mxu0
      %v710 = vadd.f32 0.0, %v709
      %v711 = vpop.f32.mrf.mxu0
      %712 = vdwg.mxu0
      %v713 = vadd.f32 %v591, %v705
      %v714 = vadd.f32 %v596, %v710
      %v715 = vld [vmem:[%s3 + $0x180] sm:$0xff]
      %v716 = vld [vmem:[%s3 + $0x188] sm:$0xff]
      %v717 = vld [vmem:[%s3 + $0x190] sm:$0xff]
      %v718 = vld [vmem:[%s3 + $0x198] sm:$0xff]
      %v719 = vld [vmem:[%s3 + $0x1a0] sm:$0xff]
      %v720 = vld [vmem:[%s3 + $0x1a8] sm:$0xff]
      %v721 = vld [vmem:[%s3 + $0x1b0] sm:$0xff]
      %v722 = vld [vmem:[%s3 + $0x1b8] sm:$0xff]
      %v723 = vld [vmem:[%s3 + $0x1c0] sm:$0xff]
      %v724 = vld [vmem:[%s3 + $0x1c8] sm:$0xff]
      %v725 = vld [vmem:[%s3 + $0x1d0] sm:$0xff]
      %v726 = vld [vmem:[%s3 + $0x1d8] sm:$0xff]
      %v727 = vld [vmem:[%s3 + $0x1e0] sm:$0xff]
      %v728 = vld [vmem:[%s3 + $0x1e8] sm:$0xff]
      %v729 = vld [vmem:[%s3 + $0x1f0] sm:$0xff]
      %v730 = vld [vmem:[%s3 + $0x1f8] sm:$0xff]
      %v732 = vcombine.low %v365, %v366
      %v733 = vcombine.low %v367, %v368
      %736 = vmatprep.subr.mxu0 0.0
      %737 = vmatpush1.msra.mxu0 %v730
      %738 = vmatprep.subr.mxu0 0.0
      %739 = vmatpush1.msra.mxu0 %v729
      %740 = vmatprep.subr.mxu0 0.0
      %741 = vmatpush1.msra.mxu0 %v728
      %742 = vmatprep.subr.mxu0 0.0
      %743 = vmatpush1.msra.mxu0 %v727
      %744 = vmatprep.subr.mxu0 0.0
      %745 = vmatpush1.msra.mxu0 %v726
      %746 = vmatprep.subr.mxu0 0.0
      %747 = vmatpush1.msra.mxu0 %v725
      %748 = vmatprep.subr.mxu0 0.0
      %749 = vmatpush1.msra.mxu0 %v724
      %750 = vmatprep.subr.mxu0 0.0
      %751 = vmatpush1.msra.mxu0 %v723
      %752 = vmatprep.subr.mxu0 0.0
      %753 = vmatpush1.msra.mxu0 %v722
      %754 = vmatprep.subr.mxu0 0.0
      %755 = vmatpush1.msra.mxu0 %v721
      %756 = vmatprep.subr.mxu0 0.0
      %757 = vmatpush1.msra.mxu0 %v720
      %758 = vmatprep.subr.mxu0 0.0
      %759 = vmatpush1.msra.mxu0 %v719
      %760 = vmatprep.subr.mxu0 0.0
      %761 = vmatpush1.msra.mxu0 %v718
      %762 = vmatprep.subr.mxu0 0.0
      %763 = vmatpush1.msra.mxu0 %v717
      %764 = vmatprep.subr.mxu0 0.0
      %765 = vmatpush1.msra.mxu0 %v716
      %766 = vmatprep.subr.mxu0 0.0
      %767 = vmatpush1.msra.mxu0 %v715
      %768 = vmatprep.subr.mxu0 0.0
      %769 = vmatpush2.msra.mxu0 0.0
      %770 = vmatprep.subr.mxu0 0.0
      %771 = vmatpush2.msra.mxu0 0.0
      %772 = vmatprep.subr.mxu0 0.0
      %773 = vmatpush2.msra.mxu0 0.0
      %774 = vmatprep.subr.mxu0 0.0
      %775 = vmatpush2.msra.mxu0 0.0
      %776 = vmatprep.subr.mxu0 0.0
      %777 = vmatpush2.msra.mxu0 0.0
      %778 = vmatprep.subr.mxu0 0.0
      %779 = vmatpush2.msra.mxu0 0.0
      %780 = vmatprep.subr.mxu0 0.0
      %781 = vmatpush2.msra.mxu0 0.0
      %782 = vmatprep.subr.mxu0 0.0
      %783 = vmatpush2.msra.mxu0 0.0
      %784 = vmatprep.subr.mxu0 0.0
      %785 = vmatpush2.msra.mxu0 0.0
      %786 = vmatprep.subr.mxu0 0.0
      %787 = vmatpush2.msra.mxu0 0.0
      %788 = vmatprep.subr.mxu0 0.0
      %789 = vmatpush2.msra.mxu0 0.0
      %790 = vmatprep.subr.mxu0 0.0
      %791 = vmatpush2.msra.mxu0 0.0
      %792 = vmatprep.subr.mxu0 0.0
      %793 = vmatpush2.msra.mxu0 0.0
      %794 = vmatprep.subr.mxu0 0.0
      %795 = vmatpush2.msra.mxu0 0.0
      %796 = vmatprep.subr.mxu0 0.0
      %797 = vmatpush2.msra.mxu0 0.0
      %798 = vmatprep.subr.mxu0 0.0
      %799 = vmatpush2.msra.mxu0 0.0
      %800 = vmatprep.mubr.f32.mxu0 0.0
      %801 = vmatmul.mubr.f32.gmra.mxu0 %v732
      %v802 = vpop.f32.mrf.mxu0
      %v803 = vadd.f32 0.0, %v802
      %v804 = vpop.f32.mrf.mxu0
      %805 = vmatprep.mubr.f32.mxu0 0.0
      %806 = vmatmul.mubr.f32.gmra.mxu0 %v733
      %v807 = vpop.f32.mrf.mxu0
      %v808 = vadd.f32 0.0, %v807
      %v809 = vpop.f32.mrf.mxu0
      %810 = vdwg.mxu0
      %v811 = vadd.f32 %v713, %v803
      %v812 = vadd.f32 %v714, %v808
      %v813 = vcombine.high %v368, %v368
      %v814 = vrot.slane %v368, 5
      %v815 = vrot.slane %v814, 4
      %v816 = vrot.slane %v813, 5
      %v817 = vsel %vm408, %v815, %v816
      %v818 = vld [vmem:[%s3 + $0x200] sm:$0xff]
      %v819 = vld [vmem:[%s3 + $0x208] sm:$0xff]
      %v820 = vld [vmem:[%s3 + $0x210] sm:$0xff]
      %v821 = vld [vmem:[%s3 + $0x218] sm:$0xff]
      %v822 = vld [vmem:[%s3 + $0x220] sm:$0xff]
      %v823 = vld [vmem:[%s3 + $0x228] sm:$0xff]
      %v824 = vld [vmem:[%s3 + $0x230] sm:$0xff]
      %v825 = vld [vmem:[%s3 + $0x238] sm:$0xff]
      %v826 = vld [vmem:[%s3 + $0x240] sm:$0xff]
      %v827 = vld [vmem:[%s3 + $0x248] sm:$0xff]
      %v828 = vld [vmem:[%s3 + $0x250] sm:$0xff]
      %v829 = vld [vmem:[%s3 + $0x258] sm:$0xff]
      %v830 = vld [vmem:[%s3 + $0x260] sm:$0xff]
      %v831 = vld [vmem:[%s3 + $0x268] sm:$0xff]
      %v832 = vld [vmem:[%s3 + $0x270] sm:$0xff]
      %v833 = vld [vmem:[%s3 + $0x278] sm:$0xff]
      %v834 = vcombine.low %v416, %v420
      %v835 = vcombine.low %v424, %v817
      %838 = vmatprep.subr.mxu0 0.0
      %839 = vmatpush1.msra.mxu0 %v833
      %840 = vmatprep.subr.mxu0 0.0
      %841 = vmatpush1.msra.mxu0 %v832
      %842 = vmatprep.subr.mxu0 0.0
      %843 = vmatpush1.msra.mxu0 %v831
      %844 = vmatprep.subr.mxu0 0.0
      %845 = vmatpush1.msra.mxu0 %v830
      %846 = vmatprep.subr.mxu0 0.0
      %847 = vmatpush1.msra.mxu0 %v829
      %848 = vmatprep.subr.mxu0 0.0
      %849 = vmatpush1.msra.mxu0 %v828
      %850 = vmatprep.subr.mxu0 0.0
      %851 = vmatpush1.msra.mxu0 %v827
      %852 = vmatprep.subr.mxu0 0.0
      %853 = vmatpush1.msra.mxu0 %v826
      %854 = vmatprep.subr.mxu0 0.0
      %855 = vmatpush1.msra.mxu0 %v825
      %856 = vmatprep.subr.mxu0 0.0
      %857 = vmatpush1.msra.mxu0 %v824
      %858 = vmatprep.subr.mxu0 0.0
      %859 = vmatpush1.msra.mxu0 %v823
      %860 = vmatprep.subr.mxu0 0.0
      %861 = vmatpush1.msra.mxu0 %v822
      %862 = vmatprep.subr.mxu0 0.0
      %863 = vmatpush1.msra.mxu0 %v821
      %864 = vmatprep.subr.mxu0 0.0
      %865 = vmatpush1.msra.mxu0 %v820
      %866 = vmatprep.subr.mxu0 0.0
      %867 = vmatpush1.msra.mxu0 %v819
      %868 = vmatprep.subr.mxu0 0.0
      %869 = vmatpush1.msra.mxu0 %v818
      %870 = vmatprep.subr.mxu0 0.0
      %871 = vmatpush2.msra.mxu0 0.0
      %872 = vmatprep.subr.mxu0 0.0
      %873 = vmatpush2.msra.mxu0 0.0
      %874 = vmatprep.subr.mxu0 0.0
      %875 = vmatpush2.msra.mxu0 0.0
      %876 = vmatprep.subr.mxu0 0.0
      %877 = vmatpush2.msra.mxu0 0.0
      %878 = vmatprep.subr.mxu0 0.0
      %879 = vmatpush2.msra.mxu0 0.0
      %880 = vmatprep.subr.mxu0 0.0
      %881 = vmatpush2.msra.mxu0 0.0
      %882 = vmatprep.subr.mxu0 0.0
      %883 = vmatpush2.msra.mxu0 0.0
      %884 = vmatprep.subr.mxu0 0.0
      %885 = vmatpush2.msra.mxu0 0.0
      %886 = vmatprep.subr.mxu0 0.0
      %887 = vmatpush2.msra.mxu0 0.0
      %888 = vmatprep.subr.mxu0 0.0
      %889 = vmatpush2.msra.mxu0 0.0
      %890 = vmatprep.subr.mxu0 0.0
      %891 = vmatpush2.msra.mxu0 0.0
      %892 = vmatprep.subr.mxu0 0.0
      %893 = vmatpush2.msra.mxu0 0.0
      %894 = vmatprep.subr.mxu0 0.0
      %895 = vmatpush2.msra.mxu0 0.0
      %896 = vmatprep.subr.mxu0 0.0
      %897 = vmatpush2.msra.mxu0 0.0
      %898 = vmatprep.subr.mxu0 0.0
      %899 = vmatpush2.msra.mxu0 0.0
      %900 = vmatprep.subr.mxu0 0.0
      %901 = vmatpush2.msra.mxu0 0.0
      %902 = vmatprep.mubr.f32.mxu0 0.0
      %903 = vmatmul.mubr.f32.gmra.mxu0 %v834
      %v904 = vpop.f32.mrf.mxu0
      %v905 = vadd.f32 0.0, %v904
      %v906 = vpop.f32.mrf.mxu0
      %907 = vmatprep.mubr.f32.mxu0 0.0
      %908 = vmatmul.mubr.f32.gmra.mxu0 %v835
      %v909 = vpop.f32.mrf.mxu0
      %v910 = vadd.f32 0.0, %v909
      %v911 = vpop.f32.mrf.mxu0
      %912 = vdwg.mxu0
      %v913 = vadd.f32 %v811, %v905
      %v914 = vadd.f32 %v812, %v910
      %v915 = vrot.slane %v368, 6
      %v916 = vrot.slane %v915, 4
      %v917 = vrot.slane %v813, 6
      %v918 = vsel %vm601, %v916, %v917
      %v919 = vld [vmem:[%s3 + $0x280] sm:$0xff]
      %v920 = vld [vmem:[%s3 + $0x288] sm:$0xff]
      %v921 = vld [vmem:[%s3 + $0x290] sm:$0xff]
      %v922 = vld [vmem:[%s3 + $0x298] sm:$0xff]
      %v923 = vld [vmem:[%s3 + $0x2a0] sm:$0xff]
      %v924 = vld [vmem:[%s3 + $0x2a8] sm:$0xff]
      %v925 = vld [vmem:[%s3 + $0x2b0] sm:$0xff]
      %v926 = vld [vmem:[%s3 + $0x2b8] sm:$0xff]
      %v927 = vld [vmem:[%s3 + $0x2c0] sm:$0xff]
      %v928 = vld [vmem:[%s3 + $0x2c8] sm:$0xff]
      %v929 = vld [vmem:[%s3 + $0x2d0] sm:$0xff]
      %v930 = vld [vmem:[%s3 + $0x2d8] sm:$0xff]
      %v931 = vld [vmem:[%s3 + $0x2e0] sm:$0xff]
      %v932 = vld [vmem:[%s3 + $0x2e8] sm:$0xff]
      %v933 = vld [vmem:[%s3 + $0x2f0] sm:$0xff]
      %v934 = vld [vmem:[%s3 + $0x2f8] sm:$0xff]
      %v935 = vcombine.low %v609, %v613
      %v936 = vcombine.low %v617, %v918
      %939 = vmatprep.subr.mxu0 0.0
      %940 = vmatpush1.msra.mxu0 %v934
      %941 = vmatprep.subr.mxu0 0.0
      %942 = vmatpush1.msra.mxu0 %v933
      %943 = vmatprep.subr.mxu0 0.0
      %944 = vmatpush1.msra.mxu0 %v932
      %945 = vmatprep.subr.mxu0 0.0
      %946 = vmatpush1.msra.mxu0 %v931
      %947 = vmatprep.subr.mxu0 0.0
      %948 = vmatpush1.msra.mxu0 %v930
      %949 = vmatprep.subr.mxu0 0.0
      %950 = vmatpush1.msra.mxu0 %v929
      %951 = vmatprep.subr.mxu0 0.0
      %952 = vmatpush1.msra.mxu0 %v928
      %953 = vmatprep.subr.mxu0 0.0
      %954 = vmatpush1.msra.mxu0 %v927
      %955 = vmatprep.subr.mxu0 0.0
      %956 = vmatpush1.msra.mxu0 %v926
      %957 = vmatprep.subr.mxu0 0.0
      %958 = vmatpush1.msra.mxu0 %v925
      %959 = vmatprep.subr.mxu0 0.0
      %960 = vmatpush1.msra.mxu0 %v924
      %961 = vmatprep.subr.mxu0 0.0
      %962 = vmatpush1.msra.mxu0 %v923
      %963 = vmatprep.subr.mxu0 0.0
      %964 = vmatpush1.msra.mxu0 %v922
      %965 = vmatprep.subr.mxu0 0.0
      %966 = vmatpush1.msra.mxu0 %v921
      %967 = vmatprep.subr.mxu0 0.0
      %968 = vmatpush1.msra.mxu0 %v920
      %969 = vmatprep.subr.mxu0 0.0
      %970 = vmatpush1.msra.mxu0 %v919
      %971 = vmatprep.subr.mxu0 0.0
      %972 = vmatpush2.msra.mxu0 0.0
      %973 = vmatprep.subr.mxu0 0.0
      %974 = vmatpush2.msra.mxu0 0.0
      %975 = vmatprep.subr.mxu0 0.0
      %976 = vmatpush2.msra.mxu0 0.0
      %977 = vmatprep.subr.mxu0 0.0
      %978 = vmatpush2.msra.mxu0 0.0
      %979 = vmatprep.subr.mxu0 0.0
      %980 = vmatpush2.msra.mxu0 0.0
      %981 = vmatprep.subr.mxu0 0.0
      %982 = vmatpush2.msra.mxu0 0.0
      %983 = vmatprep.subr.mxu0 0.0
      %984 = vmatpush2.msra.mxu0 0.0
      %985 = vmatprep.subr.mxu0 0.0
      %986 = vmatpush2.msra.mxu0 0.0
      %987 = vmatprep.subr.mxu0 0.0
      %988 = vmatpush2.msra.mxu0 0.0
      %989 = vmatprep.subr.mxu0 0.0
      %990 = vmatpush2.msra.mxu0 0.0
      %991 = vmatprep.subr.mxu0 0.0
      %992 = vmatpush2.msra.mxu0 0.0
      %993 = vmatprep.subr.mxu0 0.0
      %994 = vmatpush2.msra.mxu0 0.0
      %995 = vmatprep.subr.mxu0 0.0
      %996 = vmatpush2.msra.mxu0 0.0
      %997 = vmatprep.subr.mxu0 0.0
      %998 = vmatpush2.msra.mxu0 0.0
      %999 = vmatprep.subr.mxu0 0.0
      %1000 = vmatpush2.msra.mxu0 0.0
      %1001 = vmatprep.subr.mxu0 0.0
      %1002 = vmatpush2.msra.mxu0 0.0
      %1003 = vmatprep.mubr.f32.mxu0 0.0
      %1004 = vmatmul.mubr.f32.gmra.mxu0 %v935
      %v1005 = vpop.f32.mrf.mxu0
      %v1006 = vadd.f32 0.0, %v1005
      %v1007 = vpop.f32.mrf.mxu0
      %1008 = vmatprep.mubr.f32.mxu0 0.0
      %1009 = vmatmul.mubr.f32.gmra.mxu0 %v936
      %v1010 = vpop.f32.mrf.mxu0
      %v1011 = vadd.f32 0.0, %v1010
      %v1012 = vpop.f32.mrf.mxu0
      %1013 = vdwg.mxu0
      %v1014 = vadd.f32 %v913, %v1006
      %v1015 = vadd.f32 %v914, %v1011
      %v1016 = vld [vmem:[%s3 + $0x300] sm:$0xff]
      %v1017 = vld [vmem:[%s3 + $0x308] sm:$0xff]
      %v1018 = vld [vmem:[%s3 + $0x310] sm:$0xff]
      %v1019 = vld [vmem:[%s3 + $0x318] sm:$0xff]
      %v1020 = vld [vmem:[%s3 + $0x320] sm:$0xff]
      %v1021 = vld [vmem:[%s3 + $0x328] sm:$0xff]
      %v1022 = vld [vmem:[%s3 + $0x330] sm:$0xff]
      %v1023 = vld [vmem:[%s3 + $0x338] sm:$0xff]
      %v1024 = vld [vmem:[%s3 + $0x340] sm:$0xff]
      %v1025 = vld [vmem:[%s3 + $0x348] sm:$0xff]
      %v1026 = vld [vmem:[%s3 + $0x350] sm:$0xff]
      %v1027 = vld [vmem:[%s3 + $0x358] sm:$0xff]
      %v1028 = vld [vmem:[%s3 + $0x360] sm:$0xff]
      %v1029 = vld [vmem:[%s3 + $0x368] sm:$0xff]
      %v1030 = vld [vmem:[%s3 + $0x370] sm:$0xff]
      %v1031 = vld [vmem:[%s3 + $0x378] sm:$0xff]
      %v1033 = vcombine.low %v368, %v369
      %1035 = vmatprep.subr.mxu0 0.0
      %1036 = vmatpush1.msra.mxu0 %v1031
      %1037 = vmatprep.subr.mxu0 0.0
      %1038 = vmatpush1.msra.mxu0 %v1030
      %1039 = vmatprep.subr.mxu0 0.0
      %1040 = vmatpush1.msra.mxu0 %v1029
      %1041 = vmatprep.subr.mxu0 0.0
      %1042 = vmatpush1.msra.mxu0 %v1028
      %1043 = vmatprep.subr.mxu0 0.0
      %1044 = vmatpush1.msra.mxu0 %v1027
      %1045 = vmatprep.subr.mxu0 0.0
      %1046 = vmatpush1.msra.mxu0 %v1026
      %1047 = vmatprep.subr.mxu0 0.0
      %1048 = vmatpush1.msra.mxu0 %v1025
      %1049 = vmatprep.subr.mxu0 0.0
      %1050 = vmatpush1.msra.mxu0 %v1024
      %1051 = vmatprep.subr.mxu0 0.0
      %1052 = vmatpush1.msra.mxu0 %v1023
      %1053 = vmatprep.subr.mxu0 0.0
      %1054 = vmatpush1.msra.mxu0 %v1022
      %1055 = vmatprep.subr.mxu0 0.0
      %1056 = vmatpush1.msra.mxu0 %v1021
      %1057 = vmatprep.subr.mxu0 0.0
      %1058 = vmatpush1.msra.mxu0 %v1020
      %1059 = vmatprep.subr.mxu0 0.0
      %1060 = vmatpush1.msra.mxu0 %v1019
      %1061 = vmatprep.subr.mxu0 0.0
      %1062 = vmatpush1.msra.mxu0 %v1018
      %1063 = vmatprep.subr.mxu0 0.0
      %1064 = vmatpush1.msra.mxu0 %v1017
      %1065 = vmatprep.subr.mxu0 0.0
      %1066 = vmatpush1.msra.mxu0 %v1016
      %1067 = vmatprep.subr.mxu0 0.0
      %1068 = vmatpush2.msra.mxu0 0.0
      %1069 = vmatprep.subr.mxu0 0.0
      %1070 = vmatpush2.msra.mxu0 0.0
      %1071 = vmatprep.subr.mxu0 0.0
      %1072 = vmatpush2.msra.mxu0 0.0
      %1073 = vmatprep.subr.mxu0 0.0
      %1074 = vmatpush2.msra.mxu0 0.0
      %1075 = vmatprep.subr.mxu0 0.0
      %1076 = vmatpush2.msra.mxu0 0.0
      %1077 = vmatprep.subr.mxu0 0.0
      %1078 = vmatpush2.msra.mxu0 0.0
      %1079 = vmatprep.subr.mxu0 0.0
      %1080 = vmatpush2.msra.mxu0 0.0
      %1081 = vmatprep.subr.mxu0 0.0
      %1082 = vmatpush2.msra.mxu0 0.0
      %1083 = vmatprep.subr.mxu0 0.0
      %1084 = vmatpush2.msra.mxu0 0.0
      %1085 = vmatprep.subr.mxu0 0.0
      %1086 = vmatpush2.msra.mxu0 0.0
      %1087 = vmatprep.subr.mxu0 0.0
      %1088 = vmatpush2.msra.mxu0 0.0
      %1089 = vmatprep.subr.mxu0 0.0
      %1090 = vmatpush2.msra.mxu0 0.0
      %1091 = vmatprep.subr.mxu0 0.0
      %1092 = vmatpush2.msra.mxu0 0.0
      %1093 = vmatprep.subr.mxu0 0.0
      %1094 = vmatpush2.msra.mxu0 0.0
      %1095 = vmatprep.subr.mxu0 0.0
      %1096 = vmatpush2.msra.mxu0 0.0
      %1097 = vmatprep.subr.mxu0 0.0
      %1098 = vmatpush2.msra.mxu0 0.0
      %1099 = vmatprep.mubr.f32.mxu0 0.0
      %1100 = vmatmul.mubr.f32.gmra.mxu0 %v521
      %v1101 = vpop.f32.mrf.mxu0
      %v1102 = vadd.f32 0.0, %v1101
      %v1103 = vpop.f32.mrf.mxu0
      %1104 = vmatprep.mubr.f32.mxu0 0.0
      %1105 = vmatmul.mubr.f32.gmra.mxu0 %v1033
      %v1106 = vpop.f32.mrf.mxu0
      %v1107 = vadd.f32 0.0, %v1106
      %v1108 = vpop.f32.mrf.mxu0
      %1109 = vdwg.mxu0
      %v1110 = vadd.f32 %v1014, %v1102
      %v1111 = vadd.f32 %v1015, %v1107
      %v1112 = vcombine.high %v369, %v369
      %v1113 = vrot.slane %v369, 5
      %v1114 = vrot.slane %v1113, 4
      %v1115 = vrot.slane %v1112, 5
      %v1116 = vsel %vm408, %v1114, %v1115
      %v1117 = vld [vmem:[%s3 + $0x380] sm:$0xff]
      %v1118 = vld [vmem:[%s3 + $0x388] sm:$0xff]
      %v1119 = vld [vmem:[%s3 + $0x390] sm:$0xff]
      %v1120 = vld [vmem:[%s3 + $0x398] sm:$0xff]
      %v1121 = vld [vmem:[%s3 + $0x3a0] sm:$0xff]
      %v1122 = vld [vmem:[%s3 + $0x3a8] sm:$0xff]
      %v1123 = vld [vmem:[%s3 + $0x3b0] sm:$0xff]
      %v1124 = vld [vmem:[%s3 + $0x3b8] sm:$0xff]
      %v1125 = vld [vmem:[%s3 + $0x3c0] sm:$0xff]
      %v1126 = vld [vmem:[%s3 + $0x3c8] sm:$0xff]
      %v1127 = vld [vmem:[%s3 + $0x3d0] sm:$0xff]
      %v1128 = vld [vmem:[%s3 + $0x3d8] sm:$0xff]
      %v1129 = vld [vmem:[%s3 + $0x3e0] sm:$0xff]
      %v1130 = vld [vmem:[%s3 + $0x3e8] sm:$0xff]
      %v1131 = vld [vmem:[%s3 + $0x3f0] sm:$0xff]
      %v1132 = vld [vmem:[%s3 + $0x3f8] sm:$0xff]
      %v1133 = vcombine.low %v817, %v1116
      %1135 = vmatprep.subr.mxu0 0.0
      %1136 = vmatpush1.msra.mxu0 %v1132
      %1137 = vmatprep.subr.mxu0 0.0
      %1138 = vmatpush1.msra.mxu0 %v1131
      %1139 = vmatprep.subr.mxu0 0.0
      %1140 = vmatpush1.msra.mxu0 %v1130
      %1141 = vmatprep.subr.mxu0 0.0
      %1142 = vmatpush1.msra.mxu0 %v1129
      %1143 = vmatprep.subr.mxu0 0.0
      %1144 = vmatpush1.msra.mxu0 %v1128
      %1145 = vmatprep.subr.mxu0 0.0
      %1146 = vmatpush1.msra.mxu0 %v1127
      %1147 = vmatprep.subr.mxu0 0.0
      %1148 = vmatpush1.msra.mxu0 %v1126
      %1149 = vmatprep.subr.mxu0 0.0
      %1150 = vmatpush1.msra.mxu0 %v1125
      %1151 = vmatprep.subr.mxu0 0.0
      %1152 = vmatpush1.msra.mxu0 %v1124
      %1153 = vmatprep.subr.mxu0 0.0
      %1154 = vmatpush1.msra.mxu0 %v1123
      %1155 = vmatprep.subr.mxu0 0.0
      %1156 = vmatpush1.msra.mxu0 %v1122
      %1157 = vmatprep.subr.mxu0 0.0
      %1158 = vmatpush1.msra.mxu0 %v1121
      %1159 = vmatprep.subr.mxu0 0.0
      %1160 = vmatpush1.msra.mxu0 %v1120
      %1161 = vmatprep.subr.mxu0 0.0
      %1162 = vmatpush1.msra.mxu0 %v1119
      %1163 = vmatprep.subr.mxu0 0.0
      %1164 = vmatpush1.msra.mxu0 %v1118
      %1165 = vmatprep.subr.mxu0 0.0
      %1166 = vmatpush1.msra.mxu0 %v1117
      %1167 = vmatprep.subr.mxu0 0.0
      %1168 = vmatpush2.msra.mxu0 0.0
      %1169 = vmatprep.subr.mxu0 0.0
      %1170 = vmatpush2.msra.mxu0 0.0
      %1171 = vmatprep.subr.mxu0 0.0
      %1172 = vmatpush2.msra.mxu0 0.0
      %1173 = vmatprep.subr.mxu0 0.0
      %1174 = vmatpush2.msra.mxu0 0.0
      %1175 = vmatprep.subr.mxu0 0.0
      %1176 = vmatpush2.msra.mxu0 0.0
      %1177 = vmatprep.subr.mxu0 0.0
      %1178 = vmatpush2.msra.mxu0 0.0
      %1179 = vmatprep.subr.mxu0 0.0
      %1180 = vmatpush2.msra.mxu0 0.0
      %1181 = vmatprep.subr.mxu0 0.0
      %1182 = vmatpush2.msra.mxu0 0.0
      %1183 = vmatprep.subr.mxu0 0.0
      %1184 = vmatpush2.msra.mxu0 0.0
      %1185 = vmatprep.subr.mxu0 0.0
      %1186 = vmatpush2.msra.mxu0 0.0
      %1187 = vmatprep.subr.mxu0 0.0
      %1188 = vmatpush2.msra.mxu0 0.0
      %1189 = vmatprep.subr.mxu0 0.0
      %1190 = vmatpush2.msra.mxu0 0.0
      %1191 = vmatprep.subr.mxu0 0.0
      %1192 = vmatpush2.msra.mxu0 0.0
      %1193 = vmatprep.subr.mxu0 0.0
      %1194 = vmatpush2.msra.mxu0 0.0
      %1195 = vmatprep.subr.mxu0 0.0
      %1196 = vmatpush2.msra.mxu0 0.0
      %1197 = vmatprep.subr.mxu0 0.0
      %1198 = vmatpush2.msra.mxu0 0.0
      %1199 = vmatprep.mubr.f32.mxu0 0.0
      %1200 = vmatmul.mubr.f32.gmra.mxu0 %v442
      %v1201 = vpop.f32.mrf.mxu0
      %v1202 = vadd.f32 0.0, %v1201
      %v1203 = vpop.f32.mrf.mxu0
      %1204 = vmatprep.mubr.f32.mxu0 0.0
      %1205 = vmatmul.mubr.f32.gmra.mxu0 %v1133
      %v1206 = vpop.f32.mrf.mxu0
      %v1207 = vadd.f32 0.0, %v1206
      %v1208 = vpop.f32.mrf.mxu0
      %1209 = vdwg.mxu0
      %v1210 = vadd.f32 %v1110, %v1202
      %v1211 = vadd.f32 %v1111, %v1207
      %v1212 = vrot.slane %v369, 6
      %v1213 = vrot.slane %v1212, 4
      %v1214 = vrot.slane %v1112, 6
      %v1215 = vsel %vm601, %v1213, %v1214
      %v1216 = vld [vmem:[%s3 + $0x400] sm:$0xff]
      %v1217 = vld [vmem:[%s3 + $0x408] sm:$0xff]
      %v1218 = vld [vmem:[%s3 + $0x410] sm:$0xff]
      %v1219 = vld [vmem:[%s3 + $0x418] sm:$0xff]
      %v1220 = vld [vmem:[%s3 + $0x420] sm:$0xff]
      %v1221 = vld [vmem:[%s3 + $0x428] sm:$0xff]
      %v1222 = vld [vmem:[%s3 + $0x430] sm:$0xff]
      %v1223 = vld [vmem:[%s3 + $0x438] sm:$0xff]
      %v1224 = vld [vmem:[%s3 + $0x440] sm:$0xff]
      %v1225 = vld [vmem:[%s3 + $0x448] sm:$0xff]
      %v1226 = vld [vmem:[%s3 + $0x450] sm:$0xff]
      %v1227 = vld [vmem:[%s3 + $0x458] sm:$0xff]
      %v1228 = vld [vmem:[%s3 + $0x460] sm:$0xff]
      %v1229 = vld [vmem:[%s3 + $0x468] sm:$0xff]
      %v1230 = vld [vmem:[%s3 + $0x470] sm:$0xff]
      %v1231 = vld [vmem:[%s3 + $0x478] sm:$0xff]
      %v1232 = vcombine.low %v918, %v1215
      %1234 = vmatprep.subr.mxu0 0.0
      %1235 = vmatpush1.msra.mxu0 %v1231
      %1236 = vmatprep.subr.mxu0 0.0
      %1237 = vmatpush1.msra.mxu0 %v1230
      %1238 = vmatprep.subr.mxu0 0.0
      %1239 = vmatpush1.msra.mxu0 %v1229
      %1240 = vmatprep.subr.mxu0 0.0
      %1241 = vmatpush1.msra.mxu0 %v1228
      %1242 = vmatprep.subr.mxu0 0.0
      %1243 = vmatpush1.msra.mxu0 %v1227
      %1244 = vmatprep.subr.mxu0 0.0
      %1245 = vmatpush1.msra.mxu0 %v1226
      %1246 = vmatprep.subr.mxu0 0.0
      %1247 = vmatpush1.msra.mxu0 %v1225
      %1248 = vmatprep.subr.mxu0 0.0
      %1249 = vmatpush1.msra.mxu0 %v1224
      %1250 = vmatprep.subr.mxu0 0.0
      %1251 = vmatpush1.msra.mxu0 %v1223
      %1252 = vmatprep.subr.mxu0 0.0
      %1253 = vmatpush1.msra.mxu0 %v1222
      %1254 = vmatprep.subr.mxu0 0.0
      %1255 = vmatpush1.msra.mxu0 %v1221
      %1256 = vmatprep.subr.mxu0 0.0
      %1257 = vmatpush1.msra.mxu0 %v1220
      %1258 = vmatprep.subr.mxu0 0.0
      %1259 = vmatpush1.msra.mxu0 %v1219
      %1260 = vmatprep.subr.mxu0 0.0
      %1261 = vmatpush1.msra.mxu0 %v1218
      %1262 = vmatprep.subr.mxu0 0.0
      %1263 = vmatpush1.msra.mxu0 %v1217
      %1264 = vmatprep.subr.mxu0 0.0
      %1265 = vmatpush1.msra.mxu0 %v1216
      %1266 = vmatprep.subr.mxu0 0.0
      %1267 = vmatpush2.msra.mxu0 0.0
      %1268 = vmatprep.subr.mxu0 0.0
      %1269 = vmatpush2.msra.mxu0 0.0
      %1270 = vmatprep.subr.mxu0 0.0
      %1271 = vmatpush2.msra.mxu0 0.0
      %1272 = vmatprep.subr.mxu0 0.0
      %1273 = vmatpush2.msra.mxu0 0.0
      %1274 = vmatprep.subr.mxu0 0.0
      %1275 = vmatpush2.msra.mxu0 0.0
      %1276 = vmatprep.subr.mxu0 0.0
      %1277 = vmatpush2.msra.mxu0 0.0
      %1278 = vmatprep.subr.mxu0 0.0
      %1279 = vmatpush2.msra.mxu0 0.0
      %1280 = vmatprep.subr.mxu0 0.0
      %1281 = vmatpush2.msra.mxu0 0.0
      %1282 = vmatprep.subr.mxu0 0.0
      %1283 = vmatpush2.msra.mxu0 0.0
      %1284 = vmatprep.subr.mxu0 0.0
      %1285 = vmatpush2.msra.mxu0 0.0
      %1286 = vmatprep.subr.mxu0 0.0
      %1287 = vmatpush2.msra.mxu0 0.0
      %1288 = vmatprep.subr.mxu0 0.0
      %1289 = vmatpush2.msra.mxu0 0.0
      %1290 = vmatprep.subr.mxu0 0.0
      %1291 = vmatpush2.msra.mxu0 0.0
      %1292 = vmatprep.subr.mxu0 0.0
      %1293 = vmatpush2.msra.mxu0 0.0
      %1294 = vmatprep.subr.mxu0 0.0
      %1295 = vmatpush2.msra.mxu0 0.0
      %1296 = vmatprep.subr.mxu0 0.0
      %1297 = vmatpush2.msra.mxu0 0.0
      %1298 = vmatprep.mubr.f32.mxu0 0.0
      %1299 = vmatmul.mubr.f32.gmra.mxu0 %v635
      %v1300 = vpop.f32.mrf.mxu0
      %v1301 = vadd.f32 0.0, %v1300
      %v1302 = vpop.f32.mrf.mxu0
      %1303 = vmatprep.mubr.f32.mxu0 0.0
      %1304 = vmatmul.mubr.f32.gmra.mxu0 %v1232
      %v1305 = vpop.f32.mrf.mxu0
      %v1306 = vadd.f32 0.0, %v1305
      %v1307 = vpop.f32.mrf.mxu0
      %1308 = vdwg.mxu0
      %v1309 = vadd.f32 %v1210, %v1301
      %v1310 = vadd.f32 %v1211, %v1306
      %v1311 = vld [vmem:[%s3 + $0x480] sm:$0xff]
      %v1312 = vld [vmem:[%s3 + $0x488] sm:$0xff]
      %v1313 = vld [vmem:[%s3 + $0x490] sm:$0xff]
      %v1314 = vld [vmem:[%s3 + $0x498] sm:$0xff]
      %v1315 = vld [vmem:[%s3 + $0x4a0] sm:$0xff]
      %v1316 = vld [vmem:[%s3 + $0x4a8] sm:$0xff]
      %v1317 = vld [vmem:[%s3 + $0x4b0] sm:$0xff]
      %v1318 = vld [vmem:[%s3 + $0x4b8] sm:$0xff]
      %v1319 = vld [vmem:[%s3 + $0x4c0] sm:$0xff]
      %v1320 = vld [vmem:[%s3 + $0x4c8] sm:$0xff]
      %v1321 = vld [vmem:[%s3 + $0x4d0] sm:$0xff]
      %v1322 = vld [vmem:[%s3 + $0x4d8] sm:$0xff]
      %v1323 = vld [vmem:[%s3 + $0x4e0] sm:$0xff]
      %v1324 = vld [vmem:[%s3 + $0x4e8] sm:$0xff]
      %v1325 = vld [vmem:[%s3 + $0x4f0] sm:$0xff]
      %v1326 = vld [vmem:[%s3 + $0x4f8] sm:$0xff]
      %v1331 = vcombine.low %v370, %v371
      %v1332 = vcombine.low %v372, %v373
      %1335 = vmatprep.subr.mxu0 0.0
      %1336 = vmatpush1.msra.mxu0 %v1326
      %1337 = vmatprep.subr.mxu0 0.0
      %1338 = vmatpush1.msra.mxu0 %v1325
      %1339 = vmatprep.subr.mxu0 0.0
      %1340 = vmatpush1.msra.mxu0 %v1324
      %1341 = vmatprep.subr.mxu0 0.0
      %1342 = vmatpush1.msra.mxu0 %v1323
      %1343 = vmatprep.subr.mxu0 0.0
      %1344 = vmatpush1.msra.mxu0 %v1322
      %1345 = vmatprep.subr.mxu0 0.0
      %1346 = vmatpush1.msra.mxu0 %v1321
      %1347 = vmatprep.subr.mxu0 0.0
      %1348 = vmatpush1.msra.mxu0 %v1320
      %1349 = vmatprep.subr.mxu0 0.0
      %1350 = vmatpush1.msra.mxu0 %v1319
      %1351 = vmatprep.subr.mxu0 0.0
      %1352 = vmatpush1.msra.mxu0 %v1318
      %1353 = vmatprep.subr.mxu0 0.0
      %1354 = vmatpush1.msra.mxu0 %v1317
      %1355 = vmatprep.subr.mxu0 0.0
      %1356 = vmatpush1.msra.mxu0 %v1316
      %1357 = vmatprep.subr.mxu0 0.0
      %1358 = vmatpush1.msra.mxu0 %v1315
      %1359 = vmatprep.subr.mxu0 0.0
      %1360 = vmatpush1.msra.mxu0 %v1314
      %1361 = vmatprep.subr.mxu0 0.0
      %1362 = vmatpush1.msra.mxu0 %v1313
      %1363 = vmatprep.subr.mxu0 0.0
      %1364 = vmatpush1.msra.mxu0 %v1312
      %1365 = vmatprep.subr.mxu0 0.0
      %1366 = vmatpush1.msra.mxu0 %v1311
      %1367 = vmatprep.subr.mxu0 0.0
      %1368 = vmatpush2.msra.mxu0 0.0
      %1369 = vmatprep.subr.mxu0 0.0
      %1370 = vmatpush2.msra.mxu0 0.0
      %1371 = vmatprep.subr.mxu0 0.0
      %1372 = vmatpush2.msra.mxu0 0.0
      %1373 = vmatprep.subr.mxu0 0.0
      %1374 = vmatpush2.msra.mxu0 0.0
      %1375 = vmatprep.subr.mxu0 0.0
      %1376 = vmatpush2.msra.mxu0 0.0
      %1377 = vmatprep.subr.mxu0 0.0
      %1378 = vmatpush2.msra.mxu0 0.0
      %1379 = vmatprep.subr.mxu0 0.0
      %1380 = vmatpush2.msra.mxu0 0.0
      %1381 = vmatprep.subr.mxu0 0.0
      %1382 = vmatpush2.msra.mxu0 0.0
      %1383 = vmatprep.subr.mxu0 0.0
      %1384 = vmatpush2.msra.mxu0 0.0
      %1385 = vmatprep.subr.mxu0 0.0
      %1386 = vmatpush2.msra.mxu0 0.0
      %1387 = vmatprep.subr.mxu0 0.0
      %1388 = vmatpush2.msra.mxu0 0.0
      %1389 = vmatprep.subr.mxu0 0.0
      %1390 = vmatpush2.msra.mxu0 0.0
      %1391 = vmatprep.subr.mxu0 0.0
      %1392 = vmatpush2.msra.mxu0 0.0
      %1393 = vmatprep.subr.mxu0 0.0
      %1394 = vmatpush2.msra.mxu0 0.0
      %1395 = vmatprep.subr.mxu0 0.0
      %1396 = vmatpush2.msra.mxu0 0.0
      %1397 = vmatprep.subr.mxu0 0.0
      %1398 = vmatpush2.msra.mxu0 0.0
      %1399 = vmatprep.mubr.f32.mxu0 0.0
      %1400 = vmatmul.mubr.f32.gmra.mxu0 %v1331
      %v1401 = vpop.f32.mrf.mxu0
      %v1402 = vadd.f32 0.0, %v1401
      %v1403 = vpop.f32.mrf.mxu0
      %1404 = vmatprep.mubr.f32.mxu0 0.0
      %1405 = vmatmul.mubr.f32.gmra.mxu0 %v1332
      %v1406 = vpop.f32.mrf.mxu0
      %v1407 = vadd.f32 0.0, %v1406
      %v1408 = vpop.f32.mrf.mxu0
      %1409 = vdwg.mxu0
      %v1410 = vadd.f32 %v1309, %v1402
      %v1411 = vadd.f32 %v1310, %v1407
      %v1412 = vcombine.high %v370, %v370
      %v1413 = vcombine.high %v371, %v371
      %v1414 = vcombine.high %v372, %v372
      %v1415 = vcombine.high %v373, %v373
      %v1416 = vrot.slane %v370, 5
      %v1417 = vrot.slane %v1416, 4
      %v1418 = vrot.slane %v1412, 5
      %v1419 = vsel %vm408, %v1417, %v1418
      %v1420 = vrot.slane %v371, 5
      %v1421 = vrot.slane %v1420, 4
      %v1422 = vrot.slane %v1413, 5
      %v1423 = vsel %vm408, %v1421, %v1422
      %v1424 = vrot.slane %v372, 5
      %v1425 = vrot.slane %v1424, 4
      %v1426 = vrot.slane %v1414, 5
      %v1427 = vsel %vm408, %v1425, %v1426
      %v1428 = vrot.slane %v373, 5
      %v1429 = vrot.slane %v1428, 4
      %v1430 = vrot.slane %v1415, 5
      %v1431 = vsel %vm408, %v1429, %v1430
      %v1432 = vld [vmem:[%s3 + $0x500] sm:$0xff]
      %v1433 = vld [vmem:[%s3 + $0x508] sm:$0xff]
      %v1434 = vld [vmem:[%s3 + $0x510] sm:$0xff]
      %v1435 = vld [vmem:[%s3 + $0x518] sm:$0xff]
      %v1436 = vld [vmem:[%s3 + $0x520] sm:$0xff]
      %v1437 = vld [vmem:[%s3 + $0x528] sm:$0xff]
      %v1438 = vld [vmem:[%s3 + $0x530] sm:$0xff]
      %v1439 = vld [vmem:[%s3 + $0x538] sm:$0xff]
      %v1440 = vld [vmem:[%s3 + $0x540] sm:$0xff]
      %v1441 = vld [vmem:[%s3 + $0x548] sm:$0xff]
      %v1442 = vld [vmem:[%s3 + $0x550] sm:$0xff]
      %v1443 = vld [vmem:[%s3 + $0x558] sm:$0xff]
      %v1444 = vld [vmem:[%s3 + $0x560] sm:$0xff]
      %v1445 = vld [vmem:[%s3 + $0x568] sm:$0xff]
      %v1446 = vld [vmem:[%s3 + $0x570] sm:$0xff]
      %v1447 = vld [vmem:[%s3 + $0x578] sm:$0xff]
      %v1448 = vcombine.low %v1419, %v1423
      %v1449 = vcombine.low %v1427, %v1431
      %1452 = vmatprep.subr.mxu0 0.0
      %1453 = vmatpush1.msra.mxu0 %v1447
      %1454 = vmatprep.subr.mxu0 0.0
      %1455 = vmatpush1.msra.mxu0 %v1446
      %1456 = vmatprep.subr.mxu0 0.0
      %1457 = vmatpush1.msra.mxu0 %v1445
      %1458 = vmatprep.subr.mxu0 0.0
      %1459 = vmatpush1.msra.mxu0 %v1444
      %1460 = vmatprep.subr.mxu0 0.0
      %1461 = vmatpush1.msra.mxu0 %v1443
      %1462 = vmatprep.subr.mxu0 0.0
      %1463 = vmatpush1.msra.mxu0 %v1442
      %1464 = vmatprep.subr.mxu0 0.0
      %1465 = vmatpush1.msra.mxu0 %v1441
      %1466 = vmatprep.subr.mxu0 0.0
      %1467 = vmatpush1.msra.mxu0 %v1440
      %1468 = vmatprep.subr.mxu0 0.0
      %1469 = vmatpush1.msra.mxu0 %v1439
      %1470 = vmatprep.subr.mxu0 0.0
      %1471 = vmatpush1.msra.mxu0 %v1438
      %1472 = vmatprep.subr.mxu0 0.0
      %1473 = vmatpush1.msra.mxu0 %v1437
      %1474 = vmatprep.subr.mxu0 0.0
      %1475 = vmatpush1.msra.mxu0 %v1436
      %1476 = vmatprep.subr.mxu0 0.0
      %1477 = vmatpush1.msra.mxu0 %v1435
      %1478 = vmatprep.subr.mxu0 0.0
      %1479 = vmatpush1.msra.mxu0 %v1434
      %1480 = vmatprep.subr.mxu0 0.0
      %1481 = vmatpush1.msra.mxu0 %v1433
      %1482 = vmatprep.subr.mxu0 0.0
      %1483 = vmatpush1.msra.mxu0 %v1432
      %1484 = vmatprep.subr.mxu0 0.0
      %1485 = vmatpush2.msra.mxu0 0.0
      %1486 = vmatprep.subr.mxu0 0.0
      %1487 = vmatpush2.msra.mxu0 0.0
      %1488 = vmatprep.subr.mxu0 0.0
      %1489 = vmatpush2.msra.mxu0 0.0
      %1490 = vmatprep.subr.mxu0 0.0
      %1491 = vmatpush2.msra.mxu0 0.0
      %1492 = vmatprep.subr.mxu0 0.0
      %1493 = vmatpush2.msra.mxu0 0.0
      %1494 = vmatprep.subr.mxu0 0.0
      %1495 = vmatpush2.msra.mxu0 0.0
      %1496 = vmatprep.subr.mxu0 0.0
      %1497 = vmatpush2.msra.mxu0 0.0
      %1498 = vmatprep.subr.mxu0 0.0
      %1499 = vmatpush2.msra.mxu0 0.0
      %1500 = vmatprep.subr.mxu0 0.0
      %1501 = vmatpush2.msra.mxu0 0.0
      %1502 = vmatprep.subr.mxu0 0.0
      %1503 = vmatpush2.msra.mxu0 0.0
      %1504 = vmatprep.subr.mxu0 0.0
      %1505 = vmatpush2.msra.mxu0 0.0
      %1506 = vmatprep.subr.mxu0 0.0
      %1507 = vmatpush2.msra.mxu0 0.0
      %1508 = vmatprep.subr.mxu0 0.0
      %1509 = vmatpush2.msra.mxu0 0.0
      %1510 = vmatprep.subr.mxu0 0.0
      %1511 = vmatpush2.msra.mxu0 0.0
      %1512 = vmatprep.subr.mxu0 0.0
      %1513 = vmatpush2.msra.mxu0 0.0
      %1514 = vmatprep.subr.mxu0 0.0
      %1515 = vmatpush2.msra.mxu0 0.0
      %1516 = vmatprep.mubr.f32.mxu0 0.0
      %1517 = vmatmul.mubr.f32.gmra.mxu0 %v1448
      %v1518 = vpop.f32.mrf.mxu0
      %v1519 = vadd.f32 0.0, %v1518
      %v1520 = vpop.f32.mrf.mxu0
      %1521 = vmatprep.mubr.f32.mxu0 0.0
      %1522 = vmatmul.mubr.f32.gmra.mxu0 %v1449
      %v1523 = vpop.f32.mrf.mxu0
      %v1524 = vadd.f32 0.0, %v1523
      %v1525 = vpop.f32.mrf.mxu0
      %1526 = vdwg.mxu0
      %v1527 = vadd.f32 %v1410, %v1519
      %v1528 = vadd.f32 %v1411, %v1524
      %v1529 = vrot.slane %v370, 6
      %v1530 = vrot.slane %v1529, 4
      %v1531 = vrot.slane %v1412, 6
      %v1532 = vsel %vm601, %v1530, %v1531
      %v1533 = vrot.slane %v371, 6
      %v1534 = vrot.slane %v1533, 4
      %v1535 = vrot.slane %v1413, 6
      %v1536 = vsel %vm601, %v1534, %v1535
      %v1537 = vrot.slane %v372, 6
      %v1538 = vrot.slane %v1537, 4
      %v1539 = vrot.slane %v1414, 6
      %v1540 = vsel %vm601, %v1538, %v1539
      %v1541 = vrot.slane %v373, 6
      %v1542 = vrot.slane %v1541, 4
      %v1543 = vrot.slane %v1415, 6
      %v1544 = vsel %vm601, %v1542, %v1543
      %v1545 = vld [vmem:[%s3 + $0x580] sm:$0xff]
      %v1546 = vld [vmem:[%s3 + $0x588] sm:$0xff]
      %v1547 = vld [vmem:[%s3 + $0x590] sm:$0xff]
      %v1548 = vld [vmem:[%s3 + $0x598] sm:$0xff]
      %v1549 = vld [vmem:[%s3 + $0x5a0] sm:$0xff]
      %v1550 = vld [vmem:[%s3 + $0x5a8] sm:$0xff]
      %v1551 = vld [vmem:[%s3 + $0x5b0] sm:$0xff]
      %v1552 = vld [vmem:[%s3 + $0x5b8] sm:$0xff]
      %v1553 = vld [vmem:[%s3 + $0x5c0] sm:$0xff]
      %v1554 = vld [vmem:[%s3 + $0x5c8] sm:$0xff]
      %v1555 = vld [vmem:[%s3 + $0x5d0] sm:$0xff]
      %v1556 = vld [vmem:[%s3 + $0x5d8] sm:$0xff]
      %v1557 = vld [vmem:[%s3 + $0x5e0] sm:$0xff]
      %v1558 = vld [vmem:[%s3 + $0x5e8] sm:$0xff]
      %v1559 = vld [vmem:[%s3 + $0x5f0] sm:$0xff]
      %v1560 = vld [vmem:[%s3 + $0x5f8] sm:$0xff]
      %v1561 = vcombine.low %v1532, %v1536
      %v1562 = vcombine.low %v1540, %v1544
      %1565 = vmatprep.subr.mxu0 0.0
      %1566 = vmatpush1.msra.mxu0 %v1560
      %1567 = vmatprep.subr.mxu0 0.0
      %1568 = vmatpush1.msra.mxu0 %v1559
      %1569 = vmatprep.subr.mxu0 0.0
      %1570 = vmatpush1.msra.mxu0 %v1558
      %1571 = vmatprep.subr.mxu0 0.0
      %1572 = vmatpush1.msra.mxu0 %v1557
      %1573 = vmatprep.subr.mxu0 0.0
      %1574 = vmatpush1.msra.mxu0 %v1556
      %1575 = vmatprep.subr.mxu0 0.0
      %1576 = vmatpush1.msra.mxu0 %v1555
      %1577 = vmatprep.subr.mxu0 0.0
      %1578 = vmatpush1.msra.mxu0 %v1554
      %1579 = vmatprep.subr.mxu0 0.0
      %1580 = vmatpush1.msra.mxu0 %v1553
      %1581 = vmatprep.subr.mxu0 0.0
      %1582 = vmatpush1.msra.mxu0 %v1552
      %1583 = vmatprep.subr.mxu0 0.0
      %1584 = vmatpush1.msra.mxu0 %v1551
      %1585 = vmatprep.subr.mxu0 0.0
      %1586 = vmatpush1.msra.mxu0 %v1550
      %1587 = vmatprep.subr.mxu0 0.0
      %1588 = vmatpush1.msra.mxu0 %v1549
      %1589 = vmatprep.subr.mxu0 0.0
      %1590 = vmatpush1.msra.mxu0 %v1548
      %1591 = vmatprep.subr.mxu0 0.0
      %1592 = vmatpush1.msra.mxu0 %v1547
      %1593 = vmatprep.subr.mxu0 0.0
      %1594 = vmatpush1.msra.mxu0 %v1546
      %1595 = vmatprep.subr.mxu0 0.0
      %1596 = vmatpush1.msra.mxu0 %v1545
      %1597 = vmatprep.subr.mxu0 0.0
      %1598 = vmatpush2.msra.mxu0 0.0
      %1599 = vmatprep.subr.mxu0 0.0
      %1600 = vmatpush2.msra.mxu0 0.0
      %1601 = vmatprep.subr.mxu0 0.0
      %1602 = vmatpush2.msra.mxu0 0.0
      %1603 = vmatprep.subr.mxu0 0.0
      %1604 = vmatpush2.msra.mxu0 0.0
      %1605 = vmatprep.subr.mxu0 0.0
      %1606 = vmatpush2.msra.mxu0 0.0
      %1607 = vmatprep.subr.mxu0 0.0
      %1608 = vmatpush2.msra.mxu0 0.0
      %1609 = vmatprep.subr.mxu0 0.0
      %1610 = vmatpush2.msra.mxu0 0.0
      %1611 = vmatprep.subr.mxu0 0.0
      %1612 = vmatpush2.msra.mxu0 0.0
      %1613 = vmatprep.subr.mxu0 0.0
      %1614 = vmatpush2.msra.mxu0 0.0
      %1615 = vmatprep.subr.mxu0 0.0
      %1616 = vmatpush2.msra.mxu0 0.0
      %1617 = vmatprep.subr.mxu0 0.0
      %1618 = vmatpush2.msra.mxu0 0.0
      %1619 = vmatprep.subr.mxu0 0.0
      %1620 = vmatpush2.msra.mxu0 0.0
      %1621 = vmatprep.subr.mxu0 0.0
      %1622 = vmatpush2.msra.mxu0 0.0
      %1623 = vmatprep.subr.mxu0 0.0
      %1624 = vmatpush2.msra.mxu0 0.0
      %1625 = vmatprep.subr.mxu0 0.0
      %1626 = vmatpush2.msra.mxu0 0.0
      %1627 = vmatprep.subr.mxu0 0.0
      %1628 = vmatpush2.msra.mxu0 0.0
      %1629 = vmatprep.mubr.f32.mxu0 0.0
      %1630 = vmatmul.mubr.f32.gmra.mxu0 %v1561
      %v1631 = vpop.f32.mrf.mxu0
      %v1632 = vadd.f32 0.0, %v1631
      %v1633 = vpop.f32.mrf.mxu0
      %1634 = vmatprep.mubr.f32.mxu0 0.0
      %1635 = vmatmul.mubr.f32.gmra.mxu0 %v1562
      %v1636 = vpop.f32.mrf.mxu0
      %v1637 = vadd.f32 0.0, %v1636
      %v1638 = vpop.f32.mrf.mxu0
      %1639 = vdwg.mxu0
      %v1640 = vadd.f32 %v1527, %v1632
      %v1641 = vadd.f32 %v1528, %v1637
      %v1642 = vld [vmem:[%s3 + $0x600] sm:$0xff]
      %v1643 = vld [vmem:[%s3 + $0x608] sm:$0xff]
      %v1644 = vld [vmem:[%s3 + $0x610] sm:$0xff]
      %v1645 = vld [vmem:[%s3 + $0x618] sm:$0xff]
      %v1646 = vld [vmem:[%s3 + $0x620] sm:$0xff]
      %v1647 = vld [vmem:[%s3 + $0x628] sm:$0xff]
      %v1648 = vld [vmem:[%s3 + $0x630] sm:$0xff]
      %v1649 = vld [vmem:[%s3 + $0x638] sm:$0xff]
      %v1650 = vld [vmem:[%s3 + $0x640] sm:$0xff]
      %v1651 = vld [vmem:[%s3 + $0x648] sm:$0xff]
      %v1652 = vld [vmem:[%s3 + $0x650] sm:$0xff]
      %v1653 = vld [vmem:[%s3 + $0x658] sm:$0xff]
      %v1654 = vld [vmem:[%s3 + $0x660] sm:$0xff]
      %v1655 = vld [vmem:[%s3 + $0x668] sm:$0xff]
      %v1656 = vld [vmem:[%s3 + $0x670] sm:$0xff]
      %v1657 = vld [vmem:[%s3 + $0x678] sm:$0xff]
      %v1659 = vcombine.low %v371, %v372
      %v1660 = vcombine.low %v373, %v374
      %1663 = vmatprep.subr.mxu0 0.0
      %1664 = vmatpush1.msra.mxu0 %v1657
      %1665 = vmatprep.subr.mxu0 0.0
      %1666 = vmatpush1.msra.mxu0 %v1656
      %1667 = vmatprep.subr.mxu0 0.0
      %1668 = vmatpush1.msra.mxu0 %v1655
      %1669 = vmatprep.subr.mxu0 0.0
      %1670 = vmatpush1.msra.mxu0 %v1654
      %1671 = vmatprep.subr.mxu0 0.0
      %1672 = vmatpush1.msra.mxu0 %v1653
      %1673 = vmatprep.subr.mxu0 0.0
      %1674 = vmatpush1.msra.mxu0 %v1652
      %1675 = vmatprep.subr.mxu0 0.0
      %1676 = vmatpush1.msra.mxu0 %v1651
      %1677 = vmatprep.subr.mxu0 0.0
      %1678 = vmatpush1.msra.mxu0 %v1650
      %1679 = vmatprep.subr.mxu0 0.0
      %1680 = vmatpush1.msra.mxu0 %v1649
      %1681 = vmatprep.subr.mxu0 0.0
      %1682 = vmatpush1.msra.mxu0 %v1648
      %1683 = vmatprep.subr.mxu0 0.0
      %1684 = vmatpush1.msra.mxu0 %v1647
      %1685 = vmatprep.subr.mxu0 0.0
      %1686 = vmatpush1.msra.mxu0 %v1646
      %1687 = vmatprep.subr.mxu0 0.0
      %1688 = vmatpush1.msra.mxu0 %v1645
      %1689 = vmatprep.subr.mxu0 0.0
      %1690 = vmatpush1.msra.mxu0 %v1644
      %1691 = vmatprep.subr.mxu0 0.0
      %1692 = vmatpush1.msra.mxu0 %v1643
      %1693 = vmatprep.subr.mxu0 0.0
      %1694 = vmatpush1.msra.mxu0 %v1642
      %1695 = vmatprep.subr.mxu0 0.0
      %1696 = vmatpush2.msra.mxu0 0.0
      %1697 = vmatprep.subr.mxu0 0.0
      %1698 = vmatpush2.msra.mxu0 0.0
      %1699 = vmatprep.subr.mxu0 0.0
      %1700 = vmatpush2.msra.mxu0 0.0
      %1701 = vmatprep.subr.mxu0 0.0
      %1702 = vmatpush2.msra.mxu0 0.0
      %1703 = vmatprep.subr.mxu0 0.0
      %1704 = vmatpush2.msra.mxu0 0.0
      %1705 = vmatprep.subr.mxu0 0.0
      %1706 = vmatpush2.msra.mxu0 0.0
      %1707 = vmatprep.subr.mxu0 0.0
      %1708 = vmatpush2.msra.mxu0 0.0
      %1709 = vmatprep.subr.mxu0 0.0
      %1710 = vmatpush2.msra.mxu0 0.0
      %1711 = vmatprep.subr.mxu0 0.0
      %1712 = vmatpush2.msra.mxu0 0.0
      %1713 = vmatprep.subr.mxu0 0.0
      %1714 = vmatpush2.msra.mxu0 0.0
      %1715 = vmatprep.subr.mxu0 0.0
      %1716 = vmatpush2.msra.mxu0 0.0
      %1717 = vmatprep.subr.mxu0 0.0
      %1718 = vmatpush2.msra.mxu0 0.0
      %1719 = vmatprep.subr.mxu0 0.0
      %1720 = vmatpush2.msra.mxu0 0.0
      %1721 = vmatprep.subr.mxu0 0.0
      %1722 = vmatpush2.msra.mxu0 0.0
      %1723 = vmatprep.subr.mxu0 0.0
      %1724 = vmatpush2.msra.mxu0 0.0
      %1725 = vmatprep.subr.mxu0 0.0
      %1726 = vmatpush2.msra.mxu0 0.0
      %1727 = vmatprep.mubr.f32.mxu0 0.0
      %1728 = vmatmul.mubr.f32.gmra.mxu0 %v1659
      %v1729 = vpop.f32.mrf.mxu0
      %v1730 = vadd.f32 0.0, %v1729
      %v1731 = vpop.f32.mrf.mxu0
      %1732 = vmatprep.mubr.f32.mxu0 0.0
      %1733 = vmatmul.mubr.f32.gmra.mxu0 %v1660
      %v1734 = vpop.f32.mrf.mxu0
      %v1735 = vadd.f32 0.0, %v1734
      %v1736 = vpop.f32.mrf.mxu0
      %1737 = vdwg.mxu0
      %v1738 = vadd.f32 %v1640, %v1730
      %v1739 = vadd.f32 %v1641, %v1735
      %v1740 = vcombine.high %v374, %v374
      %v1741 = vrot.slane %v374, 5
      %v1742 = vrot.slane %v1741, 4
      %v1743 = vrot.slane %v1740, 5
      %v1744 = vsel %vm408, %v1742, %v1743
      %v1745 = vld [vmem:[%s3 + $0x680] sm:$0xff]
      %v1746 = vld [vmem:[%s3 + $0x688] sm:$0xff]
      %v1747 = vld [vmem:[%s3 + $0x690] sm:$0xff]
      %v1748 = vld [vmem:[%s3 + $0x698] sm:$0xff]
      %v1749 = vld [vmem:[%s3 + $0x6a0] sm:$0xff]
      %v1750 = vld [vmem:[%s3 + $0x6a8] sm:$0xff]
      %v1751 = vld [vmem:[%s3 + $0x6b0] sm:$0xff]
      %v1752 = vld [vmem:[%s3 + $0x6b8] sm:$0xff]
      %v1753 = vld [vmem:[%s3 + $0x6c0] sm:$0xff]
      %v1754 = vld [vmem:[%s3 + $0x6c8] sm:$0xff]
      %v1755 = vld [vmem:[%s3 + $0x6d0] sm:$0xff]
      %v1756 = vld [vmem:[%s3 + $0x6d8] sm:$0xff]
      %v1757 = vld [vmem:[%s3 + $0x6e0] sm:$0xff]
      %v1758 = vld [vmem:[%s3 + $0x6e8] sm:$0xff]
      %v1759 = vld [vmem:[%s3 + $0x6f0] sm:$0xff]
      %v1760 = vld [vmem:[%s3 + $0x6f8] sm:$0xff]
      %v1761 = vcombine.low %v1423, %v1427
      %v1762 = vcombine.low %v1431, %v1744
      %1765 = vmatprep.subr.mxu0 0.0
      %1766 = vmatpush1.msra.mxu0 %v1760
      %1767 = vmatprep.subr.mxu0 0.0
      %1768 = vmatpush1.msra.mxu0 %v1759
      %1769 = vmatprep.subr.mxu0 0.0
      %1770 = vmatpush1.msra.mxu0 %v1758
      %1771 = vmatprep.subr.mxu0 0.0
      %1772 = vmatpush1.msra.mxu0 %v1757
      %1773 = vmatprep.subr.mxu0 0.0
      %1774 = vmatpush1.msra.mxu0 %v1756
      %1775 = vmatprep.subr.mxu0 0.0
      %1776 = vmatpush1.msra.mxu0 %v1755
      %1777 = vmatprep.subr.mxu0 0.0
      %1778 = vmatpush1.msra.mxu0 %v1754
      %1779 = vmatprep.subr.mxu0 0.0
      %1780 = vmatpush1.msra.mxu0 %v1753
      %1781 = vmatprep.subr.mxu0 0.0
      %1782 = vmatpush1.msra.mxu0 %v1752
      %1783 = vmatprep.subr.mxu0 0.0
      %1784 = vmatpush1.msra.mxu0 %v1751
      %1785 = vmatprep.subr.mxu0 0.0
      %1786 = vmatpush1.msra.mxu0 %v1750
      %1787 = vmatprep.subr.mxu0 0.0
      %1788 = vmatpush1.msra.mxu0 %v1749
      %1789 = vmatprep.subr.mxu0 0.0
      %1790 = vmatpush1.msra.mxu0 %v1748
      %1791 = vmatprep.subr.mxu0 0.0
      %1792 = vmatpush1.msra.mxu0 %v1747
      %1793 = vmatprep.subr.mxu0 0.0
      %1794 = vmatpush1.msra.mxu0 %v1746
      %1795 = vmatprep.subr.mxu0 0.0
      %1796 = vmatpush1.msra.mxu0 %v1745
      %1797 = vmatprep.subr.mxu0 0.0
      %1798 = vmatpush2.msra.mxu0 0.0
      %1799 = vmatprep.subr.mxu0 0.0
      %1800 = vmatpush2.msra.mxu0 0.0
      %1801 = vmatprep.subr.mxu0 0.0
      %1802 = vmatpush2.msra.mxu0 0.0
      %1803 = vmatprep.subr.mxu0 0.0
      %1804 = vmatpush2.msra.mxu0 0.0
      %1805 = vmatprep.subr.mxu0 0.0
      %1806 = vmatpush2.msra.mxu0 0.0
      %1807 = vmatprep.subr.mxu0 0.0
      %1808 = vmatpush2.msra.mxu0 0.0
      %1809 = vmatprep.subr.mxu0 0.0
      %1810 = vmatpush2.msra.mxu0 0.0
      %1811 = vmatprep.subr.mxu0 0.0
      %1812 = vmatpush2.msra.mxu0 0.0
      %1813 = vmatprep.subr.mxu0 0.0
      %1814 = vmatpush2.msra.mxu0 0.0
      %1815 = vmatprep.subr.mxu0 0.0
      %1816 = vmatpush2.msra.mxu0 0.0
      %1817 = vmatprep.subr.mxu0 0.0
      %1818 = vmatpush2.msra.mxu0 0.0
      %1819 = vmatprep.subr.mxu0 0.0
      %1820 = vmatpush2.msra.mxu0 0.0
      %1821 = vmatprep.subr.mxu0 0.0
      %1822 = vmatpush2.msra.mxu0 0.0
      %1823 = vmatprep.subr.mxu0 0.0
      %1824 = vmatpush2.msra.mxu0 0.0
      %1825 = vmatprep.subr.mxu0 0.0
      %1826 = vmatpush2.msra.mxu0 0.0
      %1827 = vmatprep.subr.mxu0 0.0
      %1828 = vmatpush2.msra.mxu0 0.0
      %1829 = vmatprep.mubr.f32.mxu0 0.0
      %1830 = vmatmul.mubr.f32.gmra.mxu0 %v1761
      %v1831 = vpop.f32.mrf.mxu0
      %v1832 = vadd.f32 0.0, %v1831
      %v1833 = vpop.f32.mrf.mxu0
      %1834 = vmatprep.mubr.f32.mxu0 0.0
      %1835 = vmatmul.mubr.f32.gmra.mxu0 %v1762
      %v1836 = vpop.f32.mrf.mxu0
      %v1837 = vadd.f32 0.0, %v1836
      %v1838 = vpop.f32.mrf.mxu0
      %1839 = vdwg.mxu0
      %v1840 = vadd.f32 %v1738, %v1832
      %v1841 = vadd.f32 %v1739, %v1837
      %v1842 = vrot.slane %v374, 6
      %v1843 = vrot.slane %v1842, 4
      %v1844 = vrot.slane %v1740, 6
      %v1845 = vsel %vm601, %v1843, %v1844
      %v1846 = vld [vmem:[%s3 + $0x700] sm:$0xff]
      %v1847 = vld [vmem:[%s3 + $0x708] sm:$0xff]
      %v1848 = vld [vmem:[%s3 + $0x710] sm:$0xff]
      %v1849 = vld [vmem:[%s3 + $0x718] sm:$0xff]
      %v1850 = vld [vmem:[%s3 + $0x720] sm:$0xff]
      %v1851 = vld [vmem:[%s3 + $0x728] sm:$0xff]
      %v1852 = vld [vmem:[%s3 + $0x730] sm:$0xff]
      %v1853 = vld [vmem:[%s3 + $0x738] sm:$0xff]
      %v1854 = vld [vmem:[%s3 + $0x740] sm:$0xff]
      %v1855 = vld [vmem:[%s3 + $0x748] sm:$0xff]
      %v1856 = vld [vmem:[%s3 + $0x750] sm:$0xff]
      %v1857 = vld [vmem:[%s3 + $0x758] sm:$0xff]
      %v1858 = vld [vmem:[%s3 + $0x760] sm:$0xff]
      %v1859 = vld [vmem:[%s3 + $0x768] sm:$0xff]
      %v1860 = vld [vmem:[%s3 + $0x770] sm:$0xff]
      %v1861 = vld [vmem:[%s3 + $0x778] sm:$0xff]
      %v1862 = vcombine.low %v1536, %v1540
      %v1863 = vcombine.low %v1544, %v1845
      %1866 = vmatprep.subr.mxu0 0.0
      %1867 = vmatpush1.msra.mxu0 %v1861
      %1868 = vmatprep.subr.mxu0 0.0
      %1869 = vmatpush1.msra.mxu0 %v1860
      %1870 = vmatprep.subr.mxu0 0.0
      %1871 = vmatpush1.msra.mxu0 %v1859
      %1872 = vmatprep.subr.mxu0 0.0
      %1873 = vmatpush1.msra.mxu0 %v1858
      %1874 = vmatprep.subr.mxu0 0.0
      %1875 = vmatpush1.msra.mxu0 %v1857
      %1876 = vmatprep.subr.mxu0 0.0
      %1877 = vmatpush1.msra.mxu0 %v1856
      %1878 = vmatprep.subr.mxu0 0.0
      %1879 = vmatpush1.msra.mxu0 %v1855
      %1880 = vmatprep.subr.mxu0 0.0
      %1881 = vmatpush1.msra.mxu0 %v1854
      %1882 = vmatprep.subr.mxu0 0.0
      %1883 = vmatpush1.msra.mxu0 %v1853
      %1884 = vmatprep.subr.mxu0 0.0
      %1885 = vmatpush1.msra.mxu0 %v1852
      %1886 = vmatprep.subr.mxu0 0.0
      %1887 = vmatpush1.msra.mxu0 %v1851
      %1888 = vmatprep.subr.mxu0 0.0
      %1889 = vmatpush1.msra.mxu0 %v1850
      %1890 = vmatprep.subr.mxu0 0.0
      %1891 = vmatpush1.msra.mxu0 %v1849
      %1892 = vmatprep.subr.mxu0 0.0
      %1893 = vmatpush1.msra.mxu0 %v1848
      %1894 = vmatprep.subr.mxu0 0.0
      %1895 = vmatpush1.msra.mxu0 %v1847
      %1896 = vmatprep.subr.mxu0 0.0
      %1897 = vmatpush1.msra.mxu0 %v1846
      %1898 = vmatprep.subr.mxu0 0.0
      %1899 = vmatpush2.msra.mxu0 0.0
      %1900 = vmatprep.subr.mxu0 0.0
      %1901 = vmatpush2.msra.mxu0 0.0
      %1902 = vmatprep.subr.mxu0 0.0
      %1903 = vmatpush2.msra.mxu0 0.0
      %1904 = vmatprep.subr.mxu0 0.0
      %1905 = vmatpush2.msra.mxu0 0.0
      %1906 = vmatprep.subr.mxu0 0.0
      %1907 = vmatpush2.msra.mxu0 0.0
      %1908 = vmatprep.subr.mxu0 0.0
      %1909 = vmatpush2.msra.mxu0 0.0
      %1910 = vmatprep.subr.mxu0 0.0
      %1911 = vmatpush2.msra.mxu0 0.0
      %1912 = vmatprep.subr.mxu0 0.0
      %1913 = vmatpush2.msra.mxu0 0.0
      %1914 = vmatprep.subr.mxu0 0.0
      %1915 = vmatpush2.msra.mxu0 0.0
      %1916 = vmatprep.subr.mxu0 0.0
      %1917 = vmatpush2.msra.mxu0 0.0
      %1918 = vmatprep.subr.mxu0 0.0
      %1919 = vmatpush2.msra.mxu0 0.0
      %1920 = vmatprep.subr.mxu0 0.0
      %1921 = vmatpush2.msra.mxu0 0.0
      %1922 = vmatprep.subr.mxu0 0.0
      %1923 = vmatpush2.msra.mxu0 0.0
      %1924 = vmatprep.subr.mxu0 0.0
      %1925 = vmatpush2.msra.mxu0 0.0
      %1926 = vmatprep.subr.mxu0 0.0
      %1927 = vmatpush2.msra.mxu0 0.0
      %1928 = vmatprep.subr.mxu0 0.0
      %1929 = vmatpush2.msra.mxu0 0.0
      %1930 = vmatprep.mubr.f32.mxu0 0.0
      %1931 = vmatmul.mubr.f32.gmra.mxu0 %v1862
      %v1932 = vpop.f32.mrf.mxu0
      %v1933 = vadd.f32 0.0, %v1932
      %v1934 = vpop.f32.mrf.mxu0
      %1935 = vmatprep.mubr.f32.mxu0 0.0
      %1936 = vmatmul.mubr.f32.gmra.mxu0 %v1863
      %v1937 = vpop.f32.mrf.mxu0
      %v1938 = vadd.f32 0.0, %v1937
      %v1939 = vpop.f32.mrf.mxu0
      %1940 = vdwg.mxu0
      %v1941 = vadd.f32 %v1840, %v1933
      %v1942 = vadd.f32 %v1841, %v1938
      %v1943 = vld [vmem:[%s3 + $0x780] sm:$0xff]
      %v1944 = vld [vmem:[%s3 + $0x788] sm:$0xff]
      %v1945 = vld [vmem:[%s3 + $0x790] sm:$0xff]
      %v1946 = vld [vmem:[%s3 + $0x798] sm:$0xff]
      %v1947 = vld [vmem:[%s3 + $0x7a0] sm:$0xff]
      %v1948 = vld [vmem:[%s3 + $0x7a8] sm:$0xff]
      %v1949 = vld [vmem:[%s3 + $0x7b0] sm:$0xff]
      %v1950 = vld [vmem:[%s3 + $0x7b8] sm:$0xff]
      %v1951 = vld [vmem:[%s3 + $0x7c0] sm:$0xff]
      %v1952 = vld [vmem:[%s3 + $0x7c8] sm:$0xff]
      %v1953 = vld [vmem:[%s3 + $0x7d0] sm:$0xff]
      %v1954 = vld [vmem:[%s3 + $0x7d8] sm:$0xff]
      %v1955 = vld [vmem:[%s3 + $0x7e0] sm:$0xff]
      %v1956 = vld [vmem:[%s3 + $0x7e8] sm:$0xff]
      %v1957 = vld [vmem:[%s3 + $0x7f0] sm:$0xff]
      %v1958 = vld [vmem:[%s3 + $0x7f8] sm:$0xff]
      %v1960 = vcombine.low %v374, %v375
      %1962 = vmatprep.subr.mxu0 0.0
      %1963 = vmatpush1.msra.mxu0 %v1958
      %1964 = vmatprep.subr.mxu0 0.0
      %1965 = vmatpush1.msra.mxu0 %v1957
      %1966 = vmatprep.subr.mxu0 0.0
      %1967 = vmatpush1.msra.mxu0 %v1956
      %1968 = vmatprep.subr.mxu0 0.0
      %1969 = vmatpush1.msra.mxu0 %v1955
      %1970 = vmatprep.subr.mxu0 0.0
      %1971 = vmatpush1.msra.mxu0 %v1954
      %1972 = vmatprep.subr.mxu0 0.0
      %1973 = vmatpush1.msra.mxu0 %v1953
      %1974 = vmatprep.subr.mxu0 0.0
      %1975 = vmatpush1.msra.mxu0 %v1952
      %1976 = vmatprep.subr.mxu0 0.0
      %1977 = vmatpush1.msra.mxu0 %v1951
      %1978 = vmatprep.subr.mxu0 0.0
      %1979 = vmatpush1.msra.mxu0 %v1950
      %1980 = vmatprep.subr.mxu0 0.0
      %1981 = vmatpush1.msra.mxu0 %v1949
      %1982 = vmatprep.subr.mxu0 0.0
      %1983 = vmatpush1.msra.mxu0 %v1948
      %1984 = vmatprep.subr.mxu0 0.0
      %1985 = vmatpush1.msra.mxu0 %v1947
      %1986 = vmatprep.subr.mxu0 0.0
      %1987 = vmatpush1.msra.mxu0 %v1946
      %1988 = vmatprep.subr.mxu0 0.0
      %1989 = vmatpush1.msra.mxu0 %v1945
      %1990 = vmatprep.subr.mxu0 0.0
      %1991 = vmatpush1.msra.mxu0 %v1944
      %1992 = vmatprep.subr.mxu0 0.0
      %1993 = vmatpush1.msra.mxu0 %v1943
      %1994 = vmatprep.subr.mxu0 0.0
      %1995 = vmatpush2.msra.mxu0 0.0
      %1996 = vmatprep.subr.mxu0 0.0
      %1997 = vmatpush2.msra.mxu0 0.0
      %1998 = vmatprep.subr.mxu0 0.0
      %1999 = vmatpush2.msra.mxu0 0.0
      %2000 = vmatprep.subr.mxu0 0.0
      %2001 = vmatpush2.msra.mxu0 0.0
      %2002 = vmatprep.subr.mxu0 0.0
      %2003 = vmatpush2.msra.mxu0 0.0
      %2004 = vmatprep.subr.mxu0 0.0
      %2005 = vmatpush2.msra.mxu0 0.0
      %2006 = vmatprep.subr.mxu0 0.0
      %2007 = vmatpush2.msra.mxu0 0.0
      %2008 = vmatprep.subr.mxu0 0.0
      %2009 = vmatpush2.msra.mxu0 0.0
      %2010 = vmatprep.subr.mxu0 0.0
      %2011 = vmatpush2.msra.mxu0 0.0
      %2012 = vmatprep.subr.mxu0 0.0
      %2013 = vmatpush2.msra.mxu0 0.0
      %2014 = vmatprep.subr.mxu0 0.0
      %2015 = vmatpush2.msra.mxu0 0.0
      %2016 = vmatprep.subr.mxu0 0.0
      %2017 = vmatpush2.msra.mxu0 0.0
      %2018 = vmatprep.subr.mxu0 0.0
      %2019 = vmatpush2.msra.mxu0 0.0
      %2020 = vmatprep.subr.mxu0 0.0
      %2021 = vmatpush2.msra.mxu0 0.0
      %2022 = vmatprep.subr.mxu0 0.0
      %2023 = vmatpush2.msra.mxu0 0.0
      %2024 = vmatprep.subr.mxu0 0.0
      %2025 = vmatpush2.msra.mxu0 0.0
      %2026 = vmatprep.mubr.f32.mxu0 0.0
      %2027 = vmatmul.mubr.f32.gmra.mxu0 %v1332
      %v2028 = vpop.f32.mrf.mxu0
      %v2029 = vadd.f32 0.0, %v2028
      %v2030 = vpop.f32.mrf.mxu0
      %2031 = vmatprep.mubr.f32.mxu0 0.0
      %2032 = vmatmul.mubr.f32.gmra.mxu0 %v1960
      %v2033 = vpop.f32.mrf.mxu0
      %v2034 = vadd.f32 0.0, %v2033
      %v2035 = vpop.f32.mrf.mxu0
      %2036 = vdwg.mxu0
      %v2037 = vadd.f32 %v1941, %v2029
      %v2038 = vadd.f32 %v1942, %v2034
      %v2039 = vcombine.high %v375, %v375
      %v2040 = vrot.slane %v375, 5
      %v2041 = vrot.slane %v2040, 4
      %v2042 = vrot.slane %v2039, 5
      %v2043 = vsel %vm408, %v2041, %v2042
      %v2044 = vld [vmem:[%s3 + $0x800] sm:$0xff]
      %v2045 = vld [vmem:[%s3 + $0x808] sm:$0xff]
      %v2046 = vld [vmem:[%s3 + $0x810] sm:$0xff]
      %v2047 = vld [vmem:[%s3 + $0x818] sm:$0xff]
      %v2048 = vld [vmem:[%s3 + $0x820] sm:$0xff]
      %v2049 = vld [vmem:[%s3 + $0x828] sm:$0xff]
      %v2050 = vld [vmem:[%s3 + $0x830] sm:$0xff]
      %v2051 = vld [vmem:[%s3 + $0x838] sm:$0xff]
      %v2052 = vld [vmem:[%s3 + $0x840] sm:$0xff]
      %v2053 = vld [vmem:[%s3 + $0x848] sm:$0xff]
      %v2054 = vld [vmem:[%s3 + $0x850] sm:$0xff]
      %v2055 = vld [vmem:[%s3 + $0x858] sm:$0xff]
      %v2056 = vld [vmem:[%s3 + $0x860] sm:$0xff]
      %v2057 = vld [vmem:[%s3 + $0x868] sm:$0xff]
      %v2058 = vld [vmem:[%s3 + $0x870] sm:$0xff]
      %v2059 = vld [vmem:[%s3 + $0x878] sm:$0xff]
      %v2060 = vcombine.low %v1744, %v2043
      %2062 = vmatprep.subr.mxu0 0.0
      %2063 = vmatpush1.msra.mxu0 %v2059
      %2064 = vmatprep.subr.mxu0 0.0
      %2065 = vmatpush1.msra.mxu0 %v2058
      %2066 = vmatprep.subr.mxu0 0.0
      %2067 = vmatpush1.msra.mxu0 %v2057
      %2068 = vmatprep.subr.mxu0 0.0
      %2069 = vmatpush1.msra.mxu0 %v2056
      %2070 = vmatprep.subr.mxu0 0.0
      %2071 = vmatpush1.msra.mxu0 %v2055
      %2072 = vmatprep.subr.mxu0 0.0
      %2073 = vmatpush1.msra.mxu0 %v2054
      %2074 = vmatprep.subr.mxu0 0.0
      %2075 = vmatpush1.msra.mxu0 %v2053
      %2076 = vmatprep.subr.mxu0 0.0
      %2077 = vmatpush1.msra.mxu0 %v2052
      %2078 = vmatprep.subr.mxu0 0.0
      %2079 = vmatpush1.msra.mxu0 %v2051
      %2080 = vmatprep.subr.mxu0 0.0
      %2081 = vmatpush1.msra.mxu0 %v2050
      %2082 = vmatprep.subr.mxu0 0.0
      %2083 = vmatpush1.msra.mxu0 %v2049
      %2084 = vmatprep.subr.mxu0 0.0
      %2085 = vmatpush1.msra.mxu0 %v2048
      %2086 = vmatprep.subr.mxu0 0.0
      %2087 = vmatpush1.msra.mxu0 %v2047
      %2088 = vmatprep.subr.mxu0 0.0
      %2089 = vmatpush1.msra.mxu0 %v2046
      %2090 = vmatprep.subr.mxu0 0.0
      %2091 = vmatpush1.msra.mxu0 %v2045
      %2092 = vmatprep.subr.mxu0 0.0
      %2093 = vmatpush1.msra.mxu0 %v2044
      %2094 = vmatprep.subr.mxu0 0.0
      %2095 = vmatpush2.msra.mxu0 0.0
      %2096 = vmatprep.subr.mxu0 0.0
      %2097 = vmatpush2.msra.mxu0 0.0
      %2098 = vmatprep.subr.mxu0 0.0
      %2099 = vmatpush2.msra.mxu0 0.0
      %2100 = vmatprep.subr.mxu0 0.0
      %2101 = vmatpush2.msra.mxu0 0.0
      %2102 = vmatprep.subr.mxu0 0.0
      %2103 = vmatpush2.msra.mxu0 0.0
      %2104 = vmatprep.subr.mxu0 0.0
      %2105 = vmatpush2.msra.mxu0 0.0
      %2106 = vmatprep.subr.mxu0 0.0
      %2107 = vmatpush2.msra.mxu0 0.0
      %2108 = vmatprep.subr.mxu0 0.0
      %2109 = vmatpush2.msra.mxu0 0.0
      %2110 = vmatprep.subr.mxu0 0.0
      %2111 = vmatpush2.msra.mxu0 0.0
      %2112 = vmatprep.subr.mxu0 0.0
      %2113 = vmatpush2.msra.mxu0 0.0
      %2114 = vmatprep.subr.mxu0 0.0
      %2115 = vmatpush2.msra.mxu0 0.0
      %2116 = vmatprep.subr.mxu0 0.0
      %2117 = vmatpush2.msra.mxu0 0.0
      %2118 = vmatprep.subr.mxu0 0.0
      %2119 = vmatpush2.msra.mxu0 0.0
      %2120 = vmatprep.subr.mxu0 0.0
      %2121 = vmatpush2.msra.mxu0 0.0
      %2122 = vmatprep.subr.mxu0 0.0
      %2123 = vmatpush2.msra.mxu0 0.0
      %2124 = vmatprep.subr.mxu0 0.0
      %2125 = vmatpush2.msra.mxu0 0.0
      %2126 = vmatprep.mubr.f32.mxu0 0.0
      %2127 = vmatmul.mubr.f32.gmra.mxu0 %v1449
      %v2128 = vpop.f32.mrf.mxu0
      %v2129 = vadd.f32 0.0, %v2128
      %v2130 = vpop.f32.mrf.mxu0
      %2131 = vmatprep.mubr.f32.mxu0 0.0
      %2132 = vmatmul.mubr.f32.gmra.mxu0 %v2060
      %v2133 = vpop.f32.mrf.mxu0
      %v2134 = vadd.f32 0.0, %v2133
      %v2135 = vpop.f32.mrf.mxu0
      %2136 = vdwg.mxu0
      %v2137 = vadd.f32 %v2037, %v2129
      %v2138 = vadd.f32 %v2038, %v2134
      %v2139 = vrot.slane %v375, 6
      %v2140 = vrot.slane %v2139, 4
      %v2141 = vrot.slane %v2039, 6
      %v2142 = vsel %vm601, %v2140, %v2141
      %v2143 = vld [vmem:[%s3 + $0x880] sm:$0xff]
      %v2144 = vld [vmem:[%s3 + $0x888] sm:$0xff]
      %v2145 = vld [vmem:[%s3 + $0x890] sm:$0xff]
      %v2146 = vld [vmem:[%s3 + $0x898] sm:$0xff]
      %v2147 = vld [vmem:[%s3 + $0x8a0] sm:$0xff]
      %v2148 = vld [vmem:[%s3 + $0x8a8] sm:$0xff]
      %v2149 = vld [vmem:[%s3 + $0x8b0] sm:$0xff]
      %v2150 = vld [vmem:[%s3 + $0x8b8] sm:$0xff]
      %v2151 = vld [vmem:[%s3 + $0x8c0] sm:$0xff]
      %v2152 = vld [vmem:[%s3 + $0x8c8] sm:$0xff]
      %v2153 = vld [vmem:[%s3 + $0x8d0] sm:$0xff]
      %v2154 = vld [vmem:[%s3 + $0x8d8] sm:$0xff]
      %v2155 = vld [vmem:[%s3 + $0x8e0] sm:$0xff]
      %v2156 = vld [vmem:[%s3 + $0x8e8] sm:$0xff]
      %v2157 = vld [vmem:[%s3 + $0x8f0] sm:$0xff]
      %v2158 = vld [vmem:[%s3 + $0x8f8] sm:$0xff]
      %v2159 = vcombine.low %v1845, %v2142
      %2161 = vmatprep.subr.mxu0 0.0
      %2162 = vmatpush1.msra.mxu0 %v2158
      %2163 = vmatprep.subr.mxu0 0.0
      %2164 = vmatpush1.msra.mxu0 %v2157
      %2165 = vmatprep.subr.mxu0 0.0
      %2166 = vmatpush1.msra.mxu0 %v2156
      %2167 = vmatprep.subr.mxu0 0.0
      %2168 = vmatpush1.msra.mxu0 %v2155
      %2169 = vmatprep.subr.mxu0 0.0
      %2170 = vmatpush1.msra.mxu0 %v2154
      %2171 = vmatprep.subr.mxu0 0.0
      %2172 = vmatpush1.msra.mxu0 %v2153
      %2173 = vmatprep.subr.mxu0 0.0
      %2174 = vmatpush1.msra.mxu0 %v2152
      %2175 = vmatprep.subr.mxu0 0.0
      %2176 = vmatpush1.msra.mxu0 %v2151
      %2177 = vmatprep.subr.mxu0 0.0
      %2178 = vmatpush1.msra.mxu0 %v2150
      %2179 = vmatprep.subr.mxu0 0.0
      %2180 = vmatpush1.msra.mxu0 %v2149
      %2181 = vmatprep.subr.mxu0 0.0
      %2182 = vmatpush1.msra.mxu0 %v2148
      %2183 = vmatprep.subr.mxu0 0.0
      %2184 = vmatpush1.msra.mxu0 %v2147
      %2185 = vmatprep.subr.mxu0 0.0
      %2186 = vmatpush1.msra.mxu0 %v2146
      %2187 = vmatprep.subr.mxu0 0.0
      %2188 = vmatpush1.msra.mxu0 %v2145
      %2189 = vmatprep.subr.mxu0 0.0
      %2190 = vmatpush1.msra.mxu0 %v2144
      %2191 = vmatprep.subr.mxu0 0.0
      %2192 = vmatpush1.msra.mxu0 %v2143
      %2193 = vmatprep.subr.mxu0 0.0
      %2194 = vmatpush2.msra.mxu0 0.0
      %2195 = vmatprep.subr.mxu0 0.0
      %2196 = vmatpush2.msra.mxu0 0.0
      %2197 = vmatprep.subr.mxu0 0.0
      %2198 = vmatpush2.msra.mxu0 0.0
      %2199 = vmatprep.subr.mxu0 0.0
      %2200 = vmatpush2.msra.mxu0 0.0
      %2201 = vmatprep.subr.mxu0 0.0
      %2202 = vmatpush2.msra.mxu0 0.0
      %2203 = vmatprep.subr.mxu0 0.0
      %2204 = vmatpush2.msra.mxu0 0.0
      %2205 = vmatprep.subr.mxu0 0.0
      %2206 = vmatpush2.msra.mxu0 0.0
      %2207 = vmatprep.subr.mxu0 0.0
      %2208 = vmatpush2.msra.mxu0 0.0
      %2209 = vmatprep.subr.mxu0 0.0
      %2210 = vmatpush2.msra.mxu0 0.0
      %2211 = vmatprep.subr.mxu0 0.0
      %2212 = vmatpush2.msra.mxu0 0.0
      %2213 = vmatprep.subr.mxu0 0.0
      %2214 = vmatpush2.msra.mxu0 0.0
      %2215 = vmatprep.subr.mxu0 0.0
      %2216 = vmatpush2.msra.mxu0 0.0
      %2217 = vmatprep.subr.mxu0 0.0
      %2218 = vmatpush2.msra.mxu0 0.0
      %2219 = vmatprep.subr.mxu0 0.0
      %2220 = vmatpush2.msra.mxu0 0.0
      %2221 = vmatprep.subr.mxu0 0.0
      %2222 = vmatpush2.msra.mxu0 0.0
      %2223 = vmatprep.subr.mxu0 0.0
      %2224 = vmatpush2.msra.mxu0 0.0
      %2225 = vmatprep.mubr.f32.mxu0 0.0
      %2226 = vmatmul.mubr.f32.gmra.mxu0 %v1562
      %v2227 = vpop.f32.mrf.mxu0
      %v2228 = vadd.f32 0.0, %v2227
      %v2229 = vpop.f32.mrf.mxu0
      %2230 = vmatprep.mubr.f32.mxu0 0.0
      %2231 = vmatmul.mubr.f32.gmra.mxu0 %v2159
      %v2232 = vpop.f32.mrf.mxu0
      %v2233 = vadd.f32 0.0, %v2232
      %v2234 = vpop.f32.mrf.mxu0
      %2235 = vdwg.mxu0
      %v2236 = vadd.f32 %v2137, %v2228
      %v2237 = vadd.f32 %v2138, %v2233
      %v2238 = vld [vmem:[%s3 + $0x900] sm:$0xff]
      %v2239 = vld [vmem:[%s3 + $0x908] sm:$0xff]
      %v2240 = vld [vmem:[%s3 + $0x910] sm:$0xff]
      %v2241 = vld [vmem:[%s3 + $0x918] sm:$0xff]
      %v2242 = vld [vmem:[%s3 + $0x920] sm:$0xff]
      %v2243 = vld [vmem:[%s3 + $0x928] sm:$0xff]
      %v2244 = vld [vmem:[%s3 + $0x930] sm:$0xff]
      %v2245 = vld [vmem:[%s3 + $0x938] sm:$0xff]
      %v2246 = vld [vmem:[%s3 + $0x940] sm:$0xff]
      %v2247 = vld [vmem:[%s3 + $0x948] sm:$0xff]
      %v2248 = vld [vmem:[%s3 + $0x950] sm:$0xff]
      %v2249 = vld [vmem:[%s3 + $0x958] sm:$0xff]
      %v2250 = vld [vmem:[%s3 + $0x960] sm:$0xff]
      %v2251 = vld [vmem:[%s3 + $0x968] sm:$0xff]
      %v2252 = vld [vmem:[%s3 + $0x970] sm:$0xff]
      %v2253 = vld [vmem:[%s3 + $0x978] sm:$0xff]
      %v2258 = vcombine.low %v376, %v377
      %v2259 = vcombine.low %v378, %v379
      %2262 = vmatprep.subr.mxu0 0.0
      %2263 = vmatpush1.msra.mxu0 %v2253
      %2264 = vmatprep.subr.mxu0 0.0
      %2265 = vmatpush1.msra.mxu0 %v2252
      %2266 = vmatprep.subr.mxu0 0.0
      %2267 = vmatpush1.msra.mxu0 %v2251
      %2268 = vmatprep.subr.mxu0 0.0
      %2269 = vmatpush1.msra.mxu0 %v2250
      %2270 = vmatprep.subr.mxu0 0.0
      %2271 = vmatpush1.msra.mxu0 %v2249
      %2272 = vmatprep.subr.mxu0 0.0
      %2273 = vmatpush1.msra.mxu0 %v2248
      %2274 = vmatprep.subr.mxu0 0.0
      %2275 = vmatpush1.msra.mxu0 %v2247
      %2276 = vmatprep.subr.mxu0 0.0
      %2277 = vmatpush1.msra.mxu0 %v2246
      %2278 = vmatprep.subr.mxu0 0.0
      %2279 = vmatpush1.msra.mxu0 %v2245
      %2280 = vmatprep.subr.mxu0 0.0
      %2281 = vmatpush1.msra.mxu0 %v2244
      %2282 = vmatprep.subr.mxu0 0.0
      %2283 = vmatpush1.msra.mxu0 %v2243
      %2284 = vmatprep.subr.mxu0 0.0
      %2285 = vmatpush1.msra.mxu0 %v2242
      %2286 = vmatprep.subr.mxu0 0.0
      %2287 = vmatpush1.msra.mxu0 %v2241
      %2288 = vmatprep.subr.mxu0 0.0
      %2289 = vmatpush1.msra.mxu0 %v2240
      %2290 = vmatprep.subr.mxu0 0.0
      %2291 = vmatpush1.msra.mxu0 %v2239
      %2292 = vmatprep.subr.mxu0 0.0
      %2293 = vmatpush1.msra.mxu0 %v2238
      %2294 = vmatprep.subr.mxu0 0.0
      %2295 = vmatpush2.msra.mxu0 0.0
      %2296 = vmatprep.subr.mxu0 0.0
      %2297 = vmatpush2.msra.mxu0 0.0
      %2298 = vmatprep.subr.mxu0 0.0
      %2299 = vmatpush2.msra.mxu0 0.0
      %2300 = vmatprep.subr.mxu0 0.0
      %2301 = vmatpush2.msra.mxu0 0.0
      %2302 = vmatprep.subr.mxu0 0.0
      %2303 = vmatpush2.msra.mxu0 0.0
      %2304 = vmatprep.subr.mxu0 0.0
      %2305 = vmatpush2.msra.mxu0 0.0
      %2306 = vmatprep.subr.mxu0 0.0
      %2307 = vmatpush2.msra.mxu0 0.0
      %2308 = vmatprep.subr.mxu0 0.0
      %2309 = vmatpush2.msra.mxu0 0.0
      %2310 = vmatprep.subr.mxu0 0.0
      %2311 = vmatpush2.msra.mxu0 0.0
      %2312 = vmatprep.subr.mxu0 0.0
      %2313 = vmatpush2.msra.mxu0 0.0
      %2314 = vmatprep.subr.mxu0 0.0
      %2315 = vmatpush2.msra.mxu0 0.0
      %2316 = vmatprep.subr.mxu0 0.0
      %2317 = vmatpush2.msra.mxu0 0.0
      %2318 = vmatprep.subr.mxu0 0.0
      %2319 = vmatpush2.msra.mxu0 0.0
      %2320 = vmatprep.subr.mxu0 0.0
      %2321 = vmatpush2.msra.mxu0 0.0
      %2322 = vmatprep.subr.mxu0 0.0
      %2323 = vmatpush2.msra.mxu0 0.0
      %2324 = vmatprep.subr.mxu0 0.0
      %2325 = vmatpush2.msra.mxu0 0.0
      %2326 = vmatprep.mubr.f32.mxu0 0.0
      %2327 = vmatmul.mubr.f32.gmra.mxu0 %v2258
      %v2328 = vpop.f32.mrf.mxu0
      %v2329 = vadd.f32 0.0, %v2328
      %v2330 = vpop.f32.mrf.mxu0
      %2331 = vmatprep.mubr.f32.mxu0 0.0
      %2332 = vmatmul.mubr.f32.gmra.mxu0 %v2259
      %v2333 = vpop.f32.mrf.mxu0
      %v2334 = vadd.f32 0.0, %v2333
      %v2335 = vpop.f32.mrf.mxu0
      %2336 = vdwg.mxu0
      %v2337 = vadd.f32 %v2236, %v2329
      %v2338 = vadd.f32 %v2237, %v2334
      %v2339 = vcombine.high %v376, %v376
      %v2340 = vcombine.high %v377, %v377
      %v2341 = vcombine.high %v378, %v378
      %v2342 = vcombine.high %v379, %v379
      %v2343 = vrot.slane %v376, 5
      %v2344 = vrot.slane %v2343, 4
      %v2345 = vrot.slane %v2339, 5
      %v2346 = vsel %vm408, %v2344, %v2345
      %v2347 = vrot.slane %v377, 5
      %v2348 = vrot.slane %v2347, 4
      %v2349 = vrot.slane %v2340, 5
      %v2350 = vsel %vm408, %v2348, %v2349
      %v2351 = vrot.slane %v378, 5
      %v2352 = vrot.slane %v2351, 4
      %v2353 = vrot.slane %v2341, 5
      %v2354 = vsel %vm408, %v2352, %v2353
      %v2355 = vrot.slane %v379, 5
      %v2356 = vrot.slane %v2355, 4
      %v2357 = vrot.slane %v2342, 5
      %v2358 = vsel %vm408, %v2356, %v2357
      %v2359 = vld [vmem:[%s3 + $0x980] sm:$0xff]
      %v2360 = vld [vmem:[%s3 + $0x988] sm:$0xff]
      %v2361 = vld [vmem:[%s3 + $0x990] sm:$0xff]
      %v2362 = vld [vmem:[%s3 + $0x998] sm:$0xff]
      %v2363 = vld [vmem:[%s3 + $0x9a0] sm:$0xff]
      %v2364 = vld [vmem:[%s3 + $0x9a8] sm:$0xff]
      %v2365 = vld [vmem:[%s3 + $0x9b0] sm:$0xff]
      %v2366 = vld [vmem:[%s3 + $0x9b8] sm:$0xff]
      %v2367 = vld [vmem:[%s3 + $0x9c0] sm:$0xff]
      %v2368 = vld [vmem:[%s3 + $0x9c8] sm:$0xff]
      %v2369 = vld [vmem:[%s3 + $0x9d0] sm:$0xff]
      %v2370 = vld [vmem:[%s3 + $0x9d8] sm:$0xff]
      %v2371 = vld [vmem:[%s3 + $0x9e0] sm:$0xff]
      %v2372 = vld [vmem:[%s3 + $0x9e8] sm:$0xff]
      %v2373 = vld [vmem:[%s3 + $0x9f0] sm:$0xff]
      %v2374 = vld [vmem:[%s3 + $0x9f8] sm:$0xff]
      %v2375 = vcombine.low %v2346, %v2350
      %v2376 = vcombine.low %v2354, %v2358
      %2379 = vmatprep.subr.mxu0 0.0
      %2380 = vmatpush1.msra.mxu0 %v2374
      %2381 = vmatprep.subr.mxu0 0.0
      %2382 = vmatpush1.msra.mxu0 %v2373
      %2383 = vmatprep.subr.mxu0 0.0
      %2384 = vmatpush1.msra.mxu0 %v2372
      %2385 = vmatprep.subr.mxu0 0.0
      %2386 = vmatpush1.msra.mxu0 %v2371
      %2387 = vmatprep.subr.mxu0 0.0
      %2388 = vmatpush1.msra.mxu0 %v2370
      %2389 = vmatprep.subr.mxu0 0.0
      %2390 = vmatpush1.msra.mxu0 %v2369
      %2391 = vmatprep.subr.mxu0 0.0
      %2392 = vmatpush1.msra.mxu0 %v2368
      %2393 = vmatprep.subr.mxu0 0.0
      %2394 = vmatpush1.msra.mxu0 %v2367
      %2395 = vmatprep.subr.mxu0 0.0
      %2396 = vmatpush1.msra.mxu0 %v2366
      %2397 = vmatprep.subr.mxu0 0.0
      %2398 = vmatpush1.msra.mxu0 %v2365
      %2399 = vmatprep.subr.mxu0 0.0
      %2400 = vmatpush1.msra.mxu0 %v2364
      %2401 = vmatprep.subr.mxu0 0.0
      %2402 = vmatpush1.msra.mxu0 %v2363
      %2403 = vmatprep.subr.mxu0 0.0
      %2404 = vmatpush1.msra.mxu0 %v2362
      %2405 = vmatprep.subr.mxu0 0.0
      %2406 = vmatpush1.msra.mxu0 %v2361
      %2407 = vmatprep.subr.mxu0 0.0
      %2408 = vmatpush1.msra.mxu0 %v2360
      %2409 = vmatprep.subr.mxu0 0.0
      %2410 = vmatpush1.msra.mxu0 %v2359
      %2411 = vmatprep.subr.mxu0 0.0
      %2412 = vmatpush2.msra.mxu0 0.0
      %2413 = vmatprep.subr.mxu0 0.0
      %2414 = vmatpush2.msra.mxu0 0.0
      %2415 = vmatprep.subr.mxu0 0.0
      %2416 = vmatpush2.msra.mxu0 0.0
      %2417 = vmatprep.subr.mxu0 0.0
      %2418 = vmatpush2.msra.mxu0 0.0
      %2419 = vmatprep.subr.mxu0 0.0
      %2420 = vmatpush2.msra.mxu0 0.0
      %2421 = vmatprep.subr.mxu0 0.0
      %2422 = vmatpush2.msra.mxu0 0.0
      %2423 = vmatprep.subr.mxu0 0.0
      %2424 = vmatpush2.msra.mxu0 0.0
      %2425 = vmatprep.subr.mxu0 0.0
      %2426 = vmatpush2.msra.mxu0 0.0
      %2427 = vmatprep.subr.mxu0 0.0
      %2428 = vmatpush2.msra.mxu0 0.0
      %2429 = vmatprep.subr.mxu0 0.0
      %2430 = vmatpush2.msra.mxu0 0.0
      %2431 = vmatprep.subr.mxu0 0.0
      %2432 = vmatpush2.msra.mxu0 0.0
      %2433 = vmatprep.subr.mxu0 0.0
      %2434 = vmatpush2.msra.mxu0 0.0
      %2435 = vmatprep.subr.mxu0 0.0
      %2436 = vmatpush2.msra.mxu0 0.0
      %2437 = vmatprep.subr.mxu0 0.0
      %2438 = vmatpush2.msra.mxu0 0.0
      %2439 = vmatprep.subr.mxu0 0.0
      %2440 = vmatpush2.msra.mxu0 0.0
      %2441 = vmatprep.subr.mxu0 0.0
      %2442 = vmatpush2.msra.mxu0 0.0
      %2443 = vmatprep.mubr.f32.mxu0 0.0
      %2444 = vmatmul.mubr.f32.gmra.mxu0 %v2375
      %v2445 = vpop.f32.mrf.mxu0
      %v2446 = vadd.f32 0.0, %v2445
      %v2447 = vpop.f32.mrf.mxu0
      %2448 = vmatprep.mubr.f32.mxu0 0.0
      %2449 = vmatmul.mubr.f32.gmra.mxu0 %v2376
      %v2450 = vpop.f32.mrf.mxu0
      %v2451 = vadd.f32 0.0, %v2450
      %v2452 = vpop.f32.mrf.mxu0
      %2453 = vdwg.mxu0
      %v2454 = vadd.f32 %v2337, %v2446
      %v2455 = vadd.f32 %v2338, %v2451
      %v2456 = vrot.slane %v376, 6
      %v2457 = vrot.slane %v2456, 4
      %v2458 = vrot.slane %v2339, 6
      %v2459 = vsel %vm601, %v2457, %v2458
      %v2460 = vrot.slane %v377, 6
      %v2461 = vrot.slane %v2460, 4
      %v2462 = vrot.slane %v2340, 6
      %v2463 = vsel %vm601, %v2461, %v2462
      %v2464 = vrot.slane %v378, 6
      %v2465 = vrot.slane %v2464, 4
      %v2466 = vrot.slane %v2341, 6
      %v2467 = vsel %vm601, %v2465, %v2466
      %v2468 = vrot.slane %v379, 6
      %v2469 = vrot.slane %v2468, 4
      %v2470 = vrot.slane %v2342, 6
      %v2471 = vsel %vm601, %v2469, %v2470
      %v2472 = vld [vmem:[%s3 + $0xa00] sm:$0xff]
      %v2473 = vld [vmem:[%s3 + $0xa08] sm:$0xff]
      %v2474 = vld [vmem:[%s3 + $0xa10] sm:$0xff]
      %v2475 = vld [vmem:[%s3 + $0xa18] sm:$0xff]
      %v2476 = vld [vmem:[%s3 + $0xa20] sm:$0xff]
      %v2477 = vld [vmem:[%s3 + $0xa28] sm:$0xff]
      %v2478 = vld [vmem:[%s3 + $0xa30] sm:$0xff]
      %v2479 = vld [vmem:[%s3 + $0xa38] sm:$0xff]
      %v2480 = vld [vmem:[%s3 + $0xa40] sm:$0xff]
      %v2481 = vld [vmem:[%s3 + $0xa48] sm:$0xff]
      %v2482 = vld [vmem:[%s3 + $0xa50] sm:$0xff]
      %v2483 = vld [vmem:[%s3 + $0xa58] sm:$0xff]
      %v2484 = vld [vmem:[%s3 + $0xa60] sm:$0xff]
      %v2485 = vld [vmem:[%s3 + $0xa68] sm:$0xff]
      %v2486 = vld [vmem:[%s3 + $0xa70] sm:$0xff]
      %v2487 = vld [vmem:[%s3 + $0xa78] sm:$0xff]
      %v2488 = vcombine.low %v2459, %v2463
      %v2489 = vcombine.low %v2467, %v2471
      %2492 = vmatprep.subr.mxu0 0.0
      %2493 = vmatpush1.msra.mxu0 %v2487
      %2494 = vmatprep.subr.mxu0 0.0
      %2495 = vmatpush1.msra.mxu0 %v2486
      %2496 = vmatprep.subr.mxu0 0.0
      %2497 = vmatpush1.msra.mxu0 %v2485
      %2498 = vmatprep.subr.mxu0 0.0
      %2499 = vmatpush1.msra.mxu0 %v2484
      %2500 = vmatprep.subr.mxu0 0.0
      %2501 = vmatpush1.msra.mxu0 %v2483
      %2502 = vmatprep.subr.mxu0 0.0
      %2503 = vmatpush1.msra.mxu0 %v2482
      %2504 = vmatprep.subr.mxu0 0.0
      %2505 = vmatpush1.msra.mxu0 %v2481
      %2506 = vmatprep.subr.mxu0 0.0
      %2507 = vmatpush1.msra.mxu0 %v2480
      %2508 = vmatprep.subr.mxu0 0.0
      %2509 = vmatpush1.msra.mxu0 %v2479
      %2510 = vmatprep.subr.mxu0 0.0
      %2511 = vmatpush1.msra.mxu0 %v2478
      %2512 = vmatprep.subr.mxu0 0.0
      %2513 = vmatpush1.msra.mxu0 %v2477
      %2514 = vmatprep.subr.mxu0 0.0
      %2515 = vmatpush1.msra.mxu0 %v2476
      %2516 = vmatprep.subr.mxu0 0.0
      %2517 = vmatpush1.msra.mxu0 %v2475
      %2518 = vmatprep.subr.mxu0 0.0
      %2519 = vmatpush1.msra.mxu0 %v2474
      %2520 = vmatprep.subr.mxu0 0.0
      %2521 = vmatpush1.msra.mxu0 %v2473
      %2522 = vmatprep.subr.mxu0 0.0
      %2523 = vmatpush1.msra.mxu0 %v2472
      %2524 = vmatprep.subr.mxu0 0.0
      %2525 = vmatpush2.msra.mxu0 0.0
      %2526 = vmatprep.subr.mxu0 0.0
      %2527 = vmatpush2.msra.mxu0 0.0
      %2528 = vmatprep.subr.mxu0 0.0
      %2529 = vmatpush2.msra.mxu0 0.0
      %2530 = vmatprep.subr.mxu0 0.0
      %2531 = vmatpush2.msra.mxu0 0.0
      %2532 = vmatprep.subr.mxu0 0.0
      %2533 = vmatpush2.msra.mxu0 0.0
      %2534 = vmatprep.subr.mxu0 0.0
      %2535 = vmatpush2.msra.mxu0 0.0
      %2536 = vmatprep.subr.mxu0 0.0
      %2537 = vmatpush2.msra.mxu0 0.0
      %2538 = vmatprep.subr.mxu0 0.0
      %2539 = vmatpush2.msra.mxu0 0.0
      %2540 = vmatprep.subr.mxu0 0.0
      %2541 = vmatpush2.msra.mxu0 0.0
      %2542 = vmatprep.subr.mxu0 0.0
      %2543 = vmatpush2.msra.mxu0 0.0
      %2544 = vmatprep.subr.mxu0 0.0
      %2545 = vmatpush2.msra.mxu0 0.0
      %2546 = vmatprep.subr.mxu0 0.0
      %2547 = vmatpush2.msra.mxu0 0.0
      %2548 = vmatprep.subr.mxu0 0.0
      %2549 = vmatpush2.msra.mxu0 0.0
      %2550 = vmatprep.subr.mxu0 0.0
      %2551 = vmatpush2.msra.mxu0 0.0
      %2552 = vmatprep.subr.mxu0 0.0
      %2553 = vmatpush2.msra.mxu0 0.0
      %2554 = vmatprep.subr.mxu0 0.0
      %2555 = vmatpush2.msra.mxu0 0.0
      %2556 = vmatprep.mubr.f32.mxu0 0.0
      %2557 = vmatmul.mubr.f32.gmra.mxu0 %v2488
      %v2558 = vpop.f32.mrf.mxu0
      %v2559 = vadd.f32 0.0, %v2558
      %v2560 = vpop.f32.mrf.mxu0
      %2561 = vmatprep.mubr.f32.mxu0 0.0
      %2562 = vmatmul.mubr.f32.gmra.mxu0 %v2489
      %v2563 = vpop.f32.mrf.mxu0
      %v2564 = vadd.f32 0.0, %v2563
      %v2565 = vpop.f32.mrf.mxu0
      %2566 = vdwg.mxu0
      %v2567 = vadd.f32 %v2454, %v2559
      %v2568 = vadd.f32 %v2455, %v2564
      %v2569 = vld [vmem:[%s3 + $0xa80] sm:$0xff]
      %v2570 = vld [vmem:[%s3 + $0xa88] sm:$0xff]
      %v2571 = vld [vmem:[%s3 + $0xa90] sm:$0xff]
      %v2572 = vld [vmem:[%s3 + $0xa98] sm:$0xff]
      %v2573 = vld [vmem:[%s3 + $0xaa0] sm:$0xff]
      %v2574 = vld [vmem:[%s3 + $0xaa8] sm:$0xff]
      %v2575 = vld [vmem:[%s3 + $0xab0] sm:$0xff]
      %v2576 = vld [vmem:[%s3 + $0xab8] sm:$0xff]
      %v2577 = vld [vmem:[%s3 + $0xac0] sm:$0xff]
      %v2578 = vld [vmem:[%s3 + $0xac8] sm:$0xff]
      %v2579 = vld [vmem:[%s3 + $0xad0] sm:$0xff]
      %v2580 = vld [vmem:[%s3 + $0xad8] sm:$0xff]
      %v2581 = vld [vmem:[%s3 + $0xae0] sm:$0xff]
      %v2582 = vld [vmem:[%s3 + $0xae8] sm:$0xff]
      %v2583 = vld [vmem:[%s3 + $0xaf0] sm:$0xff]
      %v2584 = vld [vmem:[%s3 + $0xaf8] sm:$0xff]
      %v2586 = vcombine.low %v377, %v378
      %v2587 = vcombine.low %v379, %v380
      %2590 = vmatprep.subr.mxu0 0.0
      %2591 = vmatpush1.msra.mxu0 %v2584
      %2592 = vmatprep.subr.mxu0 0.0
      %2593 = vmatpush1.msra.mxu0 %v2583
      %2594 = vmatprep.subr.mxu0 0.0
      %2595 = vmatpush1.msra.mxu0 %v2582
      %2596 = vmatprep.subr.mxu0 0.0
      %2597 = vmatpush1.msra.mxu0 %v2581
      %2598 = vmatprep.subr.mxu0 0.0
      %2599 = vmatpush1.msra.mxu0 %v2580
      %2600 = vmatprep.subr.mxu0 0.0
      %2601 = vmatpush1.msra.mxu0 %v2579
      %2602 = vmatprep.subr.mxu0 0.0
      %2603 = vmatpush1.msra.mxu0 %v2578
      %2604 = vmatprep.subr.mxu0 0.0
      %2605 = vmatpush1.msra.mxu0 %v2577
      %2606 = vmatprep.subr.mxu0 0.0
      %2607 = vmatpush1.msra.mxu0 %v2576
      %2608 = vmatprep.subr.mxu0 0.0
      %2609 = vmatpush1.msra.mxu0 %v2575
      %2610 = vmatprep.subr.mxu0 0.0
      %2611 = vmatpush1.msra.mxu0 %v2574
      %2612 = vmatprep.subr.mxu0 0.0
      %2613 = vmatpush1.msra.mxu0 %v2573
      %2614 = vmatprep.subr.mxu0 0.0
      %2615 = vmatpush1.msra.mxu0 %v2572
      %2616 = vmatprep.subr.mxu0 0.0
      %2617 = vmatpush1.msra.mxu0 %v2571
      %2618 = vmatprep.subr.mxu0 0.0
      %2619 = vmatpush1.msra.mxu0 %v2570
      %2620 = vmatprep.subr.mxu0 0.0
      %2621 = vmatpush1.msra.mxu0 %v2569
      %2622 = vmatprep.subr.mxu0 0.0
      %2623 = vmatpush2.msra.mxu0 0.0
      %2624 = vmatprep.subr.mxu0 0.0
      %2625 = vmatpush2.msra.mxu0 0.0
      %2626 = vmatprep.subr.mxu0 0.0
      %2627 = vmatpush2.msra.mxu0 0.0
      %2628 = vmatprep.subr.mxu0 0.0
      %2629 = vmatpush2.msra.mxu0 0.0
      %2630 = vmatprep.subr.mxu0 0.0
      %2631 = vmatpush2.msra.mxu0 0.0
      %2632 = vmatprep.subr.mxu0 0.0
      %2633 = vmatpush2.msra.mxu0 0.0
      %2634 = vmatprep.subr.mxu0 0.0
      %2635 = vmatpush2.msra.mxu0 0.0
      %2636 = vmatprep.subr.mxu0 0.0
      %2637 = vmatpush2.msra.mxu0 0.0
      %2638 = vmatprep.subr.mxu0 0.0
      %2639 = vmatpush2.msra.mxu0 0.0
      %2640 = vmatprep.subr.mxu0 0.0
      %2641 = vmatpush2.msra.mxu0 0.0
      %2642 = vmatprep.subr.mxu0 0.0
      %2643 = vmatpush2.msra.mxu0 0.0
      %2644 = vmatprep.subr.mxu0 0.0
      %2645 = vmatpush2.msra.mxu0 0.0
      %2646 = vmatprep.subr.mxu0 0.0
      %2647 = vmatpush2.msra.mxu0 0.0
      %2648 = vmatprep.subr.mxu0 0.0
      %2649 = vmatpush2.msra.mxu0 0.0
      %2650 = vmatprep.subr.mxu0 0.0
      %2651 = vmatpush2.msra.mxu0 0.0
      %2652 = vmatprep.subr.mxu0 0.0
      %2653 = vmatpush2.msra.mxu0 0.0
      %2654 = vmatprep.mubr.f32.mxu0 0.0
      %2655 = vmatmul.mubr.f32.gmra.mxu0 %v2586
      %v2656 = vpop.f32.mrf.mxu0
      %v2657 = vadd.f32 0.0, %v2656
      %v2658 = vpop.f32.mrf.mxu0
      %2659 = vmatprep.mubr.f32.mxu0 0.0
      %2660 = vmatmul.mubr.f32.gmra.mxu0 %v2587
      %v2661 = vpop.f32.mrf.mxu0
      %v2662 = vadd.f32 0.0, %v2661
      %v2663 = vpop.f32.mrf.mxu0
      %2664 = vdwg.mxu0
      %v2665 = vadd.f32 %v2567, %v2657
      %v2666 = vadd.f32 %v2568, %v2662
      %v2667 = vcombine.high %v380, %v380
      %v2668 = vrot.slane %v380, 5
      %v2669 = vrot.slane %v2668, 4
      %v2670 = vrot.slane %v2667, 5
      %v2671 = vsel %vm408, %v2669, %v2670
      %v2672 = vld [vmem:[%s3 + $0xb00] sm:$0xff]
      %v2673 = vld [vmem:[%s3 + $0xb08] sm:$0xff]
      %v2674 = vld [vmem:[%s3 + $0xb10] sm:$0xff]
      %v2675 = vld [vmem:[%s3 + $0xb18] sm:$0xff]
      %v2676 = vld [vmem:[%s3 + $0xb20] sm:$0xff]
      %v2677 = vld [vmem:[%s3 + $0xb28] sm:$0xff]
      %v2678 = vld [vmem:[%s3 + $0xb30] sm:$0xff]
      %v2679 = vld [vmem:[%s3 + $0xb38] sm:$0xff]
      %v2680 = vld [vmem:[%s3 + $0xb40] sm:$0xff]
      %v2681 = vld [vmem:[%s3 + $0xb48] sm:$0xff]
      %v2682 = vld [vmem:[%s3 + $0xb50] sm:$0xff]
      %v2683 = vld [vmem:[%s3 + $0xb58] sm:$0xff]
      %v2684 = vld [vmem:[%s3 + $0xb60] sm:$0xff]
      %v2685 = vld [vmem:[%s3 + $0xb68] sm:$0xff]
      %v2686 = vld [vmem:[%s3 + $0xb70] sm:$0xff]
      %v2687 = vld [vmem:[%s3 + $0xb78] sm:$0xff]
      %v2688 = vcombine.low %v2350, %v2354
      %v2689 = vcombine.low %v2358, %v2671
      %2692 = vmatprep.subr.mxu0 0.0
      %2693 = vmatpush1.msra.mxu0 %v2687
      %2694 = vmatprep.subr.mxu0 0.0
      %2695 = vmatpush1.msra.mxu0 %v2686
      %2696 = vmatprep.subr.mxu0 0.0
      %2697 = vmatpush1.msra.mxu0 %v2685
      %2698 = vmatprep.subr.mxu0 0.0
      %2699 = vmatpush1.msra.mxu0 %v2684
      %2700 = vmatprep.subr.mxu0 0.0
      %2701 = vmatpush1.msra.mxu0 %v2683
      %2702 = vmatprep.subr.mxu0 0.0
      %2703 = vmatpush1.msra.mxu0 %v2682
      %2704 = vmatprep.subr.mxu0 0.0
      %2705 = vmatpush1.msra.mxu0 %v2681
      %2706 = vmatprep.subr.mxu0 0.0
      %2707 = vmatpush1.msra.mxu0 %v2680
      %2708 = vmatprep.subr.mxu0 0.0
      %2709 = vmatpush1.msra.mxu0 %v2679
      %2710 = vmatprep.subr.mxu0 0.0
      %2711 = vmatpush1.msra.mxu0 %v2678
      %2712 = vmatprep.subr.mxu0 0.0
      %2713 = vmatpush1.msra.mxu0 %v2677
      %2714 = vmatprep.subr.mxu0 0.0
      %2715 = vmatpush1.msra.mxu0 %v2676
      %2716 = vmatprep.subr.mxu0 0.0
      %2717 = vmatpush1.msra.mxu0 %v2675
      %2718 = vmatprep.subr.mxu0 0.0
      %2719 = vmatpush1.msra.mxu0 %v2674
      %2720 = vmatprep.subr.mxu0 0.0
      %2721 = vmatpush1.msra.mxu0 %v2673
      %2722 = vmatprep.subr.mxu0 0.0
      %2723 = vmatpush1.msra.mxu0 %v2672
      %2724 = vmatprep.subr.mxu0 0.0
      %2725 = vmatpush2.msra.mxu0 0.0
      %2726 = vmatprep.subr.mxu0 0.0
      %2727 = vmatpush2.msra.mxu0 0.0
      %2728 = vmatprep.subr.mxu0 0.0
      %2729 = vmatpush2.msra.mxu0 0.0
      %2730 = vmatprep.subr.mxu0 0.0
      %2731 = vmatpush2.msra.mxu0 0.0
      %2732 = vmatprep.subr.mxu0 0.0
      %2733 = vmatpush2.msra.mxu0 0.0
      %2734 = vmatprep.subr.mxu0 0.0
      %2735 = vmatpush2.msra.mxu0 0.0
      %2736 = vmatprep.subr.mxu0 0.0
      %2737 = vmatpush2.msra.mxu0 0.0
      %2738 = vmatprep.subr.mxu0 0.0
      %2739 = vmatpush2.msra.mxu0 0.0
      %2740 = vmatprep.subr.mxu0 0.0
      %2741 = vmatpush2.msra.mxu0 0.0
      %2742 = vmatprep.subr.mxu0 0.0
      %2743 = vmatpush2.msra.mxu0 0.0
      %2744 = vmatprep.subr.mxu0 0.0
      %2745 = vmatpush2.msra.mxu0 0.0
      %2746 = vmatprep.subr.mxu0 0.0
      %2747 = vmatpush2.msra.mxu0 0.0
      %2748 = vmatprep.subr.mxu0 0.0
      %2749 = vmatpush2.msra.mxu0 0.0
      %2750 = vmatprep.subr.mxu0 0.0
      %2751 = vmatpush2.msra.mxu0 0.0
      %2752 = vmatprep.subr.mxu0 0.0
      %2753 = vmatpush2.msra.mxu0 0.0
      %2754 = vmatprep.subr.mxu0 0.0
      %2755 = vmatpush2.msra.mxu0 0.0
      %2756 = vmatprep.mubr.f32.mxu0 0.0
      %2757 = vmatmul.mubr.f32.gmra.mxu0 %v2688
      %v2758 = vpop.f32.mrf.mxu0
      %v2759 = vadd.f32 0.0, %v2758
      %v2760 = vpop.f32.mrf.mxu0
      %2761 = vmatprep.mubr.f32.mxu0 0.0
      %2762 = vmatmul.mubr.f32.gmra.mxu0 %v2689
      %v2763 = vpop.f32.mrf.mxu0
      %v2764 = vadd.f32 0.0, %v2763
      %v2765 = vpop.f32.mrf.mxu0
      %2766 = vdwg.mxu0
      %v2767 = vadd.f32 %v2665, %v2759
      %v2768 = vadd.f32 %v2666, %v2764
      %v2769 = vrot.slane %v380, 6
      %v2770 = vrot.slane %v2769, 4
      %v2771 = vrot.slane %v2667, 6
      %v2772 = vsel %vm601, %v2770, %v2771
      %v2773 = vld [vmem:[%s3 + $0xb80] sm:$0xff]
      %v2774 = vld [vmem:[%s3 + $0xb88] sm:$0xff]
      %v2775 = vld [vmem:[%s3 + $0xb90] sm:$0xff]
      %v2776 = vld [vmem:[%s3 + $0xb98] sm:$0xff]
      %v2777 = vld [vmem:[%s3 + $0xba0] sm:$0xff]
      %v2778 = vld [vmem:[%s3 + $0xba8] sm:$0xff]
      %v2779 = vld [vmem:[%s3 + $0xbb0] sm:$0xff]
      %v2780 = vld [vmem:[%s3 + $0xbb8] sm:$0xff]
      %v2781 = vld [vmem:[%s3 + $0xbc0] sm:$0xff]
      %v2782 = vld [vmem:[%s3 + $0xbc8] sm:$0xff]
      %v2783 = vld [vmem:[%s3 + $0xbd0] sm:$0xff]
      %v2784 = vld [vmem:[%s3 + $0xbd8] sm:$0xff]
      %v2785 = vld [vmem:[%s3 + $0xbe0] sm:$0xff]
      %v2786 = vld [vmem:[%s3 + $0xbe8] sm:$0xff]
      %v2787 = vld [vmem:[%s3 + $0xbf0] sm:$0xff]
      %v2788 = vld [vmem:[%s3 + $0xbf8] sm:$0xff]
      %v2789 = vcombine.low %v2463, %v2467
      %v2790 = vcombine.low %v2471, %v2772
      %2793 = vmatprep.subr.mxu0 0.0
      %2794 = vmatpush1.msra.mxu0 %v2788
      %2795 = vmatprep.subr.mxu0 0.0
      %2796 = vmatpush1.msra.mxu0 %v2787
      %2797 = vmatprep.subr.mxu0 0.0
      %2798 = vmatpush1.msra.mxu0 %v2786
      %2799 = vmatprep.subr.mxu0 0.0
      %2800 = vmatpush1.msra.mxu0 %v2785
      %2801 = vmatprep.subr.mxu0 0.0
      %2802 = vmatpush1.msra.mxu0 %v2784
      %2803 = vmatprep.subr.mxu0 0.0
      %2804 = vmatpush1.msra.mxu0 %v2783
      %2805 = vmatprep.subr.mxu0 0.0
      %2806 = vmatpush1.msra.mxu0 %v2782
      %2807 = vmatprep.subr.mxu0 0.0
      %2808 = vmatpush1.msra.mxu0 %v2781
      %2809 = vmatprep.subr.mxu0 0.0
      %2810 = vmatpush1.msra.mxu0 %v2780
      %2811 = vmatprep.subr.mxu0 0.0
      %2812 = vmatpush1.msra.mxu0 %v2779
      %2813 = vmatprep.subr.mxu0 0.0
      %2814 = vmatpush1.msra.mxu0 %v2778
      %2815 = vmatprep.subr.mxu0 0.0
      %2816 = vmatpush1.msra.mxu0 %v2777
      %2817 = vmatprep.subr.mxu0 0.0
      %2818 = vmatpush1.msra.mxu0 %v2776
      %2819 = vmatprep.subr.mxu0 0.0
      %2820 = vmatpush1.msra.mxu0 %v2775
      %2821 = vmatprep.subr.mxu0 0.0
      %2822 = vmatpush1.msra.mxu0 %v2774
      %2823 = vmatprep.subr.mxu0 0.0
      %2824 = vmatpush1.msra.mxu0 %v2773
      %2825 = vmatprep.subr.mxu0 0.0
      %2826 = vmatpush2.msra.mxu0 0.0
      %2827 = vmatprep.subr.mxu0 0.0
      %2828 = vmatpush2.msra.mxu0 0.0
      %2829 = vmatprep.subr.mxu0 0.0
      %2830 = vmatpush2.msra.mxu0 0.0
      %2831 = vmatprep.subr.mxu0 0.0
      %2832 = vmatpush2.msra.mxu0 0.0
      %2833 = vmatprep.subr.mxu0 0.0
      %2834 = vmatpush2.msra.mxu0 0.0
      %2835 = vmatprep.subr.mxu0 0.0
      %2836 = vmatpush2.msra.mxu0 0.0
      %2837 = vmatprep.subr.mxu0 0.0
      %2838 = vmatpush2.msra.mxu0 0.0
      %2839 = vmatprep.subr.mxu0 0.0
      %2840 = vmatpush2.msra.mxu0 0.0
      %2841 = vmatprep.subr.mxu0 0.0
      %2842 = vmatpush2.msra.mxu0 0.0
      %2843 = vmatprep.subr.mxu0 0.0
      %2844 = vmatpush2.msra.mxu0 0.0
      %2845 = vmatprep.subr.mxu0 0.0
      %2846 = vmatpush2.msra.mxu0 0.0
      %2847 = vmatprep.subr.mxu0 0.0
      %2848 = vmatpush2.msra.mxu0 0.0
      %2849 = vmatprep.subr.mxu0 0.0
      %2850 = vmatpush2.msra.mxu0 0.0
      %2851 = vmatprep.subr.mxu0 0.0
      %2852 = vmatpush2.msra.mxu0 0.0
      %2853 = vmatprep.subr.mxu0 0.0
      %2854 = vmatpush2.msra.mxu0 0.0
      %2855 = vmatprep.subr.mxu0 0.0
      %2856 = vmatpush2.msra.mxu0 0.0
      %2857 = vmatprep.mubr.f32.mxu0 0.0
      %2858 = vmatmul.mubr.f32.gmra.mxu0 %v2789
      %v2859 = vpop.f32.mrf.mxu0
      %v2860 = vadd.f32 0.0, %v2859
      %v2861 = vpop.f32.mrf.mxu0
      %2862 = vmatprep.mubr.f32.mxu0 0.0
      %2863 = vmatmul.mubr.f32.gmra.mxu0 %v2790
      %v2864 = vpop.f32.mrf.mxu0
      %v2865 = vadd.f32 0.0, %v2864
      %v2866 = vpop.f32.mrf.mxu0
      %2867 = vdwg.mxu0
      %v2868 = vadd.f32 %v2767, %v2860
      %v2869 = vadd.f32 %v2768, %v2865
      %v2870 = vld [vmem:[%s3 + $0xc00] sm:$0xff]
      %v2871 = vld [vmem:[%s3 + $0xc08] sm:$0xff]
      %v2872 = vld [vmem:[%s3 + $0xc10] sm:$0xff]
      %v2873 = vld [vmem:[%s3 + $0xc18] sm:$0xff]
      %v2874 = vld [vmem:[%s3 + $0xc20] sm:$0xff]
      %v2875 = vld [vmem:[%s3 + $0xc28] sm:$0xff]
      %v2876 = vld [vmem:[%s3 + $0xc30] sm:$0xff]
      %v2877 = vld [vmem:[%s3 + $0xc38] sm:$0xff]
      %v2878 = vld [vmem:[%s3 + $0xc40] sm:$0xff]
      %v2879 = vld [vmem:[%s3 + $0xc48] sm:$0xff]
      %v2880 = vld [vmem:[%s3 + $0xc50] sm:$0xff]
      %v2881 = vld [vmem:[%s3 + $0xc58] sm:$0xff]
      %v2882 = vld [vmem:[%s3 + $0xc60] sm:$0xff]
      %v2883 = vld [vmem:[%s3 + $0xc68] sm:$0xff]
      %v2884 = vld [vmem:[%s3 + $0xc70] sm:$0xff]
      %v2885 = vld [vmem:[%s3 + $0xc78] sm:$0xff]
      %v2887 = vcombine.low %v380, %v381
      %2889 = vmatprep.subr.mxu0 0.0
      %2890 = vmatpush1.msra.mxu0 %v2885
      %2891 = vmatprep.subr.mxu0 0.0
      %2892 = vmatpush1.msra.mxu0 %v2884
      %2893 = vmatprep.subr.mxu0 0.0
      %2894 = vmatpush1.msra.mxu0 %v2883
      %2895 = vmatprep.subr.mxu0 0.0
      %2896 = vmatpush1.msra.mxu0 %v2882
      %2897 = vmatprep.subr.mxu0 0.0
      %2898 = vmatpush1.msra.mxu0 %v2881
      %2899 = vmatprep.subr.mxu0 0.0
      %2900 = vmatpush1.msra.mxu0 %v2880
      %2901 = vmatprep.subr.mxu0 0.0
      %2902 = vmatpush1.msra.mxu0 %v2879
      %2903 = vmatprep.subr.mxu0 0.0
      %2904 = vmatpush1.msra.mxu0 %v2878
      %2905 = vmatprep.subr.mxu0 0.0
      %2906 = vmatpush1.msra.mxu0 %v2877
      %2907 = vmatprep.subr.mxu0 0.0
      %2908 = vmatpush1.msra.mxu0 %v2876
      %2909 = vmatprep.subr.mxu0 0.0
      %2910 = vmatpush1.msra.mxu0 %v2875
      %2911 = vmatprep.subr.mxu0 0.0
      %2912 = vmatpush1.msra.mxu0 %v2874
      %2913 = vmatprep.subr.mxu0 0.0
      %2914 = vmatpush1.msra.mxu0 %v2873
      %2915 = vmatprep.subr.mxu0 0.0
      %2916 = vmatpush1.msra.mxu0 %v2872
      %2917 = vmatprep.subr.mxu0 0.0
      %2918 = vmatpush1.msra.mxu0 %v2871
      %2919 = vmatprep.subr.mxu0 0.0
      %2920 = vmatpush1.msra.mxu0 %v2870
      %2921 = vmatprep.subr.mxu0 0.0
      %2922 = vmatpush2.msra.mxu0 0.0
      %2923 = vmatprep.subr.mxu0 0.0
      %2924 = vmatpush2.msra.mxu0 0.0
      %2925 = vmatprep.subr.mxu0 0.0
      %2926 = vmatpush2.msra.mxu0 0.0
      %2927 = vmatprep.subr.mxu0 0.0
      %2928 = vmatpush2.msra.mxu0 0.0
      %2929 = vmatprep.subr.mxu0 0.0
      %2930 = vmatpush2.msra.mxu0 0.0
      %2931 = vmatprep.subr.mxu0 0.0
      %2932 = vmatpush2.msra.mxu0 0.0
      %2933 = vmatprep.subr.mxu0 0.0
      %2934 = vmatpush2.msra.mxu0 0.0
      %2935 = vmatprep.subr.mxu0 0.0
      %2936 = vmatpush2.msra.mxu0 0.0
      %2937 = vmatprep.subr.mxu0 0.0
      %2938 = vmatpush2.msra.mxu0 0.0
      %2939 = vmatprep.subr.mxu0 0.0
      %2940 = vmatpush2.msra.mxu0 0.0
      %2941 = vmatprep.subr.mxu0 0.0
      %2942 = vmatpush2.msra.mxu0 0.0
      %2943 = vmatprep.subr.mxu0 0.0
      %2944 = vmatpush2.msra.mxu0 0.0
      %2945 = vmatprep.subr.mxu0 0.0
      %2946 = vmatpush2.msra.mxu0 0.0
      %2947 = vmatprep.subr.mxu0 0.0
      %2948 = vmatpush2.msra.mxu0 0.0
      %2949 = vmatprep.subr.mxu0 0.0
      %2950 = vmatpush2.msra.mxu0 0.0
      %2951 = vmatprep.subr.mxu0 0.0
      %2952 = vmatpush2.msra.mxu0 0.0
      %2953 = vmatprep.mubr.f32.mxu0 0.0
      %2954 = vmatmul.mubr.f32.gmra.mxu0 %v2259
      %v2955 = vpop.f32.mrf.mxu0
      %v2956 = vadd.f32 0.0, %v2955
      %v2957 = vpop.f32.mrf.mxu0
      %2958 = vmatprep.mubr.f32.mxu0 0.0
      %2959 = vmatmul.mubr.f32.gmra.mxu0 %v2887
      %v2960 = vpop.f32.mrf.mxu0
      %v2961 = vadd.f32 0.0, %v2960
      %v2962 = vpop.f32.mrf.mxu0
      %2963 = vdwg.mxu0
      %v2964 = vadd.f32 %v2868, %v2956
      %v2965 = vadd.f32 %v2869, %v2961
      %v2966 = vcombine.high %v381, %v381
      %v2967 = vrot.slane %v381, 5
      %v2968 = vrot.slane %v2967, 4
      %v2969 = vrot.slane %v2966, 5
      %v2970 = vsel %vm408, %v2968, %v2969
      %v2971 = vld [vmem:[%s3 + $0xc80] sm:$0xff]
      %v2972 = vld [vmem:[%s3 + $0xc88] sm:$0xff]
      %v2973 = vld [vmem:[%s3 + $0xc90] sm:$0xff]
      %v2974 = vld [vmem:[%s3 + $0xc98] sm:$0xff]
      %v2975 = vld [vmem:[%s3 + $0xca0] sm:$0xff]
      %v2976 = vld [vmem:[%s3 + $0xca8] sm:$0xff]
      %v2977 = vld [vmem:[%s3 + $0xcb0] sm:$0xff]
      %v2978 = vld [vmem:[%s3 + $0xcb8] sm:$0xff]
      %v2979 = vld [vmem:[%s3 + $0xcc0] sm:$0xff]
      %v2980 = vld [vmem:[%s3 + $0xcc8] sm:$0xff]
      %v2981 = vld [vmem:[%s3 + $0xcd0] sm:$0xff]
      %v2982 = vld [vmem:[%s3 + $0xcd8] sm:$0xff]
      %v2983 = vld [vmem:[%s3 + $0xce0] sm:$0xff]
      %v2984 = vld [vmem:[%s3 + $0xce8] sm:$0xff]
      %v2985 = vld [vmem:[%s3 + $0xcf0] sm:$0xff]
      %v2986 = vld [vmem:[%s3 + $0xcf8] sm:$0xff]
      %v2987 = vcombine.low %v2671, %v2970
      %2989 = vmatprep.subr.mxu0 0.0
      %2990 = vmatpush1.msra.mxu0 %v2986
      %2991 = vmatprep.subr.mxu0 0.0
      %2992 = vmatpush1.msra.mxu0 %v2985
      %2993 = vmatprep.subr.mxu0 0.0
      %2994 = vmatpush1.msra.mxu0 %v2984
      %2995 = vmatprep.subr.mxu0 0.0
      %2996 = vmatpush1.msra.mxu0 %v2983
      %2997 = vmatprep.subr.mxu0 0.0
      %2998 = vmatpush1.msra.mxu0 %v2982
      %2999 = vmatprep.subr.mxu0 0.0
      %3000 = vmatpush1.msra.mxu0 %v2981
      %3001 = vmatprep.subr.mxu0 0.0
      %3002 = vmatpush1.msra.mxu0 %v2980
      %3003 = vmatprep.subr.mxu0 0.0
      %3004 = vmatpush1.msra.mxu0 %v2979
      %3005 = vmatprep.subr.mxu0 0.0
      %3006 = vmatpush1.msra.mxu0 %v2978
      %3007 = vmatprep.subr.mxu0 0.0
      %3008 = vmatpush1.msra.mxu0 %v2977
      %3009 = vmatprep.subr.mxu0 0.0
      %3010 = vmatpush1.msra.mxu0 %v2976
      %3011 = vmatprep.subr.mxu0 0.0
      %3012 = vmatpush1.msra.mxu0 %v2975
      %3013 = vmatprep.subr.mxu0 0.0
      %3014 = vmatpush1.msra.mxu0 %v2974
      %3015 = vmatprep.subr.mxu0 0.0
      %3016 = vmatpush1.msra.mxu0 %v2973
      %3017 = vmatprep.subr.mxu0 0.0
      %3018 = vmatpush1.msra.mxu0 %v2972
      %3019 = vmatprep.subr.mxu0 0.0
      %3020 = vmatpush1.msra.mxu0 %v2971
      %3021 = vmatprep.subr.mxu0 0.0
      %3022 = vmatpush2.msra.mxu0 0.0
      %3023 = vmatprep.subr.mxu0 0.0
      %3024 = vmatpush2.msra.mxu0 0.0
      %3025 = vmatprep.subr.mxu0 0.0
      %3026 = vmatpush2.msra.mxu0 0.0
      %3027 = vmatprep.subr.mxu0 0.0
      %3028 = vmatpush2.msra.mxu0 0.0
      %3029 = vmatprep.subr.mxu0 0.0
      %3030 = vmatpush2.msra.mxu0 0.0
      %3031 = vmatprep.subr.mxu0 0.0
      %3032 = vmatpush2.msra.mxu0 0.0
      %3033 = vmatprep.subr.mxu0 0.0
      %3034 = vmatpush2.msra.mxu0 0.0
      %3035 = vmatprep.subr.mxu0 0.0
      %3036 = vmatpush2.msra.mxu0 0.0
      %3037 = vmatprep.subr.mxu0 0.0
      %3038 = vmatpush2.msra.mxu0 0.0
      %3039 = vmatprep.subr.mxu0 0.0
      %3040 = vmatpush2.msra.mxu0 0.0
      %3041 = vmatprep.subr.mxu0 0.0
      %3042 = vmatpush2.msra.mxu0 0.0
      %3043 = vmatprep.subr.mxu0 0.0
      %3044 = vmatpush2.msra.mxu0 0.0
      %3045 = vmatprep.subr.mxu0 0.0
      %3046 = vmatpush2.msra.mxu0 0.0
      %3047 = vmatprep.subr.mxu0 0.0
      %3048 = vmatpush2.msra.mxu0 0.0
      %3049 = vmatprep.subr.mxu0 0.0
      %3050 = vmatpush2.msra.mxu0 0.0
      %3051 = vmatprep.subr.mxu0 0.0
      %3052 = vmatpush2.msra.mxu0 0.0
      %3053 = vmatprep.mubr.f32.mxu0 0.0
      %3054 = vmatmul.mubr.f32.gmra.mxu0 %v2376
      %v3055 = vpop.f32.mrf.mxu0
      %v3056 = vadd.f32 0.0, %v3055
      %v3057 = vpop.f32.mrf.mxu0
      %3058 = vmatprep.mubr.f32.mxu0 0.0
      %3059 = vmatmul.mubr.f32.gmra.mxu0 %v2987
      %v3060 = vpop.f32.mrf.mxu0
      %v3061 = vadd.f32 0.0, %v3060
      %v3062 = vpop.f32.mrf.mxu0
      %3063 = vdwg.mxu0
      %v3064 = vadd.f32 %v2964, %v3056
      %v3065 = vadd.f32 %v2965, %v3061
      %v3066 = vrot.slane %v381, 6
      %v3067 = vrot.slane %v3066, 4
      %v3068 = vrot.slane %v2966, 6
      %v3069 = vsel %vm601, %v3067, %v3068
      %v3070 = vld [vmem:[%s3 + $0xd00] sm:$0xff]
      %v3071 = vld [vmem:[%s3 + $0xd08] sm:$0xff]
      %v3072 = vld [vmem:[%s3 + $0xd10] sm:$0xff]
      %v3073 = vld [vmem:[%s3 + $0xd18] sm:$0xff]
      %v3074 = vld [vmem:[%s3 + $0xd20] sm:$0xff]
      %v3075 = vld [vmem:[%s3 + $0xd28] sm:$0xff]
      %v3076 = vld [vmem:[%s3 + $0xd30] sm:$0xff]
      %v3077 = vld [vmem:[%s3 + $0xd38] sm:$0xff]
      %v3078 = vld [vmem:[%s3 + $0xd40] sm:$0xff]
      %v3079 = vld [vmem:[%s3 + $0xd48] sm:$0xff]
      %v3080 = vld [vmem:[%s3 + $0xd50] sm:$0xff]
      %v3081 = vld [vmem:[%s3 + $0xd58] sm:$0xff]
      %v3082 = vld [vmem:[%s3 + $0xd60] sm:$0xff]
      %v3083 = vld [vmem:[%s3 + $0xd68] sm:$0xff]
      %v3084 = vld [vmem:[%s3 + $0xd70] sm:$0xff]
      %v3085 = vld [vmem:[%s3 + $0xd78] sm:$0xff]
      %v3086 = vcombine.low %v2772, %v3069
      %3088 = vmatprep.subr.mxu0 0.0
      %3089 = vmatpush1.msra.mxu0 %v3085
      %3090 = vmatprep.subr.mxu0 0.0
      %3091 = vmatpush1.msra.mxu0 %v3084
      %3092 = vmatprep.subr.mxu0 0.0
      %3093 = vmatpush1.msra.mxu0 %v3083
      %3094 = vmatprep.subr.mxu0 0.0
      %3095 = vmatpush1.msra.mxu0 %v3082
      %3096 = vmatprep.subr.mxu0 0.0
      %3097 = vmatpush1.msra.mxu0 %v3081
      %3098 = vmatprep.subr.mxu0 0.0
      %3099 = vmatpush1.msra.mxu0 %v3080
      %3100 = vmatprep.subr.mxu0 0.0
      %3101 = vmatpush1.msra.mxu0 %v3079
      %3102 = vmatprep.subr.mxu0 0.0
      %3103 = vmatpush1.msra.mxu0 %v3078
      %3104 = vmatprep.subr.mxu0 0.0
      %3105 = vmatpush1.msra.mxu0 %v3077
      %3106 = vmatprep.subr.mxu0 0.0
      %3107 = vmatpush1.msra.mxu0 %v3076
      %3108 = vmatprep.subr.mxu0 0.0
      %3109 = vmatpush1.msra.mxu0 %v3075
      %3110 = vmatprep.subr.mxu0 0.0
      %3111 = vmatpush1.msra.mxu0 %v3074
      %3112 = vmatprep.subr.mxu0 0.0
      %3113 = vmatpush1.msra.mxu0 %v3073
      %3114 = vmatprep.subr.mxu0 0.0
      %3115 = vmatpush1.msra.mxu0 %v3072
      %3116 = vmatprep.subr.mxu0 0.0
      %3117 = vmatpush1.msra.mxu0 %v3071
      %3118 = vmatprep.subr.mxu0 0.0
      %3119 = vmatpush1.msra.mxu0 %v3070
      %3120 = vmatprep.subr.mxu0 0.0
      %3121 = vmatpush2.msra.mxu0 0.0
      %3122 = vmatprep.subr.mxu0 0.0
      %3123 = vmatpush2.msra.mxu0 0.0
      %3124 = vmatprep.subr.mxu0 0.0
      %3125 = vmatpush2.msra.mxu0 0.0
      %3126 = vmatprep.subr.mxu0 0.0
      %3127 = vmatpush2.msra.mxu0 0.0
      %3128 = vmatprep.subr.mxu0 0.0
      %3129 = vmatpush2.msra.mxu0 0.0
      %3130 = vmatprep.subr.mxu0 0.0
      %3131 = vmatpush2.msra.mxu0 0.0
      %3132 = vmatprep.subr.mxu0 0.0
      %3133 = vmatpush2.msra.mxu0 0.0
      %3134 = vmatprep.subr.mxu0 0.0
      %3135 = vmatpush2.msra.mxu0 0.0
      %3136 = vmatprep.subr.mxu0 0.0
      %3137 = vmatpush2.msra.mxu0 0.0
      %3138 = vmatprep.subr.mxu0 0.0
      %3139 = vmatpush2.msra.mxu0 0.0
      %3140 = vmatprep.subr.mxu0 0.0
      %3141 = vmatpush2.msra.mxu0 0.0
      %3142 = vmatprep.subr.mxu0 0.0
      %3143 = vmatpush2.msra.mxu0 0.0
      %3144 = vmatprep.subr.mxu0 0.0
      %3145 = vmatpush2.msra.mxu0 0.0
      %3146 = vmatprep.subr.mxu0 0.0
      %3147 = vmatpush2.msra.mxu0 0.0
      %3148 = vmatprep.subr.mxu0 0.0
      %3149 = vmatpush2.msra.mxu0 0.0
      %3150 = vmatprep.subr.mxu0 0.0
      %3151 = vmatpush2.msra.mxu0 0.0
      %3152 = vmatprep.mubr.f32.mxu0 0.0
      %3153 = vmatmul.mubr.f32.gmra.mxu0 %v2489
      %v3154 = vpop.f32.mrf.mxu0
      %v3155 = vadd.f32 0.0, %v3154
      %v3156 = vpop.f32.mrf.mxu0
      %3157 = vmatprep.mubr.f32.mxu0 0.0
      %3158 = vmatmul.mubr.f32.gmra.mxu0 %v3086
      %v3159 = vpop.f32.mrf.mxu0
      %v3160 = vadd.f32 0.0, %v3159
      %v3161 = vpop.f32.mrf.mxu0
      %3162 = vdwg.mxu0
      %v3163 = vadd.f32 %v3064, %v3155
      %v3164 = vadd.f32 %v3065, %v3160
      %v3167 = vcombine.high %v3163, %v3163
      %v3168 = vcombine.high %v3164, %v3164
      %3171 = vst [vmem:[%s355] sm:$0xf] %v3163
      %3172 = vst [vmem:[%s355 + $0x4] sm:$0xf] %v3167
      %3173 = vst [vmem:[%s355 + $0x8] sm:$0xf] %v3164
      %3174 = vst [vmem:[%s355 + $0xc] sm:$0xf] %v3168
      %v3175 = vadd.f32 %v3163, %v3164
      %v3176 = vrot.slane %v3175, 4
      %v3177 = vadd.f32 %v3175, %v3176
      %v3178 = vrot.slane %v3177, 2
      %v3179 = vadd.f32 %v3177, %v3178
      %v3180 = vrot.slane %v3179, 1
      %v3181 = vadd.f32 %v3179, %v3180
      %v3182 = vmul.f32 %v3163, %v3163
      %v3183 = vmul.f32 %v3164, %v3164
      %v3184 = vadd.f32 %v3182, %v3183
      %v3185 = vrot.slane %v3184, 4
      %v3186 = vadd.f32 %v3184, %v3185
      %v3187 = vrot.slane %v3186, 2
      %v3188 = vadd.f32 %v3186, %v3187
      %v3189 = vrot.slane %v3188, 1
      %v3190 = vadd.f32 %v3188, %v3189
      %vm3191 = vcmask 1040384
      %v3192 = vsel %vm3191, %v3181, %v3190
      %3193 = vst [vmem:[%s363] sm:$0x3] %v3192
      %p3194 = scmp.lt.s32.totalorder %s21, 1
      %s3195 = scalar_select %p3194, %s21, 1
      %p3196 = scmp.lt.s32.totalorder %s22, 3
      %s3197 = scalar_select %p3196, %s22, 3
      %s3198 = smul.addr %s3197, 4
      %s3199 = smul.addr %s3195, 16
      %s3200 = sadd.s32 %s3198, %s3199
      %s3201 = smul.addr %s3200, 4
      %s3202 = scalar_lea.vmem %s4, %s3201
      %p3203 = scmp.lt.s32.totalorder %s21, 1
      %s3204 = scalar_select %p3203, %s21, 1
      %p3205 = scmp.lt.s32.totalorder %s22, 3
      %s3206 = scalar_select %p3205, %s22, 3
      %s3207 = smul.addr %s3204, 4
      %s3208 = sadd.s32 %s3206, %s3207
      %s3209 = smul.addr %s3208, 2
      %s3210 = scalar_lea.vmem %s5, %s3209
      // Predicated region
      $region37: #{downsampling_layer.8} parent=35 // pred_check
        %p3211 = pneg %p158
      $region38: #{downsampling_layer.8} parent=35 // pred_check_branch
        %3213 = sbr.rel (%p3211) target = $region40
      $region39: #{downsampling_layer.8} parent=35 // pred_region
        _
      $region40: #{downsampling_layer.8} parent=35 // pred_fallthru
        _
      // Predicated region
      $region41: #{downsampling_layer.8} parent=35 // pred_check
        %p3214 = pneg %p186
      $region42: #{downsampling_layer.8} parent=35 // pred_check_branch
        %3216 = sbr.rel (%p3214) target = $region44
      $region43: #{downsampling_layer.8} parent=35 // pred_region
        _
      $region44: #{downsampling_layer.8} parent=35 // pred_fallthru
        _
    $region36: #{downsampling_layer.8} parent=5 // pred_fallthru
      _
    %p3217 = scmp.le.s32.totalorder 2, %s12
    // Predicated region
    $region45: #{downsampling_layer.8} parent=5 // pred_check
      %p3218 = pneg %p3217
    $region46: #{downsampling_layer.8} parent=5 // pred_check_branch
      %3220 = sbr.rel (%p3218) target = $region48
    $region47: #{downsampling_layer.8} parent=5 // pred_region
      %s3221 = ssub.s32 %s12, 2
      // Predicated region
      $region49: #{downsampling_layer.8} parent=47 // pred_check
        %p3222 = pneg %p164
      $region50: #{downsampling_layer.8} parent=47 // pred_check_branch
        %3224 = sbr.rel (%p3222) target = $region52
      $region51: #{downsampling_layer.8} parent=47 // pred_region
        %p3225 = scmp.lt.s32.totalorder %s23, 1
        %s3226 = scalar_select %p3225, %s23, 1
        %p3227 = scmp.lt.s32.totalorder %s24, 3
        %s3228 = scalar_select %p3227, %s24, 3
        %s3229 = smul.addr %s3228, 4
        %s3230 = smul.addr %s3226, 16
        %s3231 = sadd.s32 %s3229, %s3230
        %s3232 = smul.addr %s3231, 4
        %s3233 = scalar_lea.vmem %s4, %s3232
      $region52: #{downsampling_layer.8} parent=47 // pred_fallthru
        _
      // Predicated region
      $region53: #{downsampling_layer.8} parent=47 // pred_check
        %p3234 = pneg %p192
      $region54: #{downsampling_layer.8} parent=47 // pred_check_branch
        %3236 = sbr.rel (%p3234) target = $region56
      $region55: #{downsampling_layer.8} parent=47 // pred_region
        %p3237 = scmp.lt.s32.totalorder %s23, 1
        %s3238 = scalar_select %p3237, %s23, 1
        %p3239 = scmp.lt.s32.totalorder %s24, 3
        %s3240 = scalar_select %p3239, %s24, 3
        %s3241 = smul.addr %s3238, 4
        %s3242 = sadd.s32 %s3240, %s3241
        %s3243 = smul.addr %s3242, 2
        %s3244 = scalar_lea.vmem %s5, %s3243
      $region56: #{downsampling_layer.8} parent=47 // pred_fallthru
        _
    $region48: #{downsampling_layer.8} parent=5 // pred_fallthru
      _
  $region6: #{downsampling_layer.8} parent=0 // loop_footer
    %s16 = sadd.s32 1, %s12
  $region7: #{downsampling_layer.8} parent=0 // loop_footer_branch
    %11 = sbr.rel target = $region3
  $region8: #{downsampling_layer.8} parent=0 // loop_exit
    _

</llo_original>
